<compile_context>
chip_gen: v7x
topology: tpu7x:2x2x1
jax: 0.10.0
libtpu: 0.0.40
codegen_flags: <defaults>
</compile_context>

<pallas_src>
import jax
import jax.numpy as jnp
from jax import lax
from jax.experimental import pallas as pl
from jax.experimental.pallas import tpu as pltpu

# ---------------- model dimensions ----------------
LXMERT_DIM   = 768    # fixed by nn.Linear(768, scale_to) in the PyTorch module
FRCNN_DIM    = 2048   # faster-rcnn RoI feature dim (LXMERT VisualFeatEncoder input)
BOX_DIM      = 4
VIS_IN       = FRCNN_DIM + BOX_DIM          # 2052
VIS_PAD      = 2176                         # 17 * 128 (lane-aligned contraction dim)
SCALE_TO     = 128    # ensemble_args['encoder']['scale_to']
N_OBJ        = 20     # guesser objects (spatials shape [B, 20, 8])
N_OBJ_PAD    = 24     # padded to a multiple of 8 so the in-kernel reshape is tile-aligned
SPATIAL_DIM  = 8
OBJ_CAT_EMB  = 256    # guesser object-category embedding dim
OBJ_IN       = OBJ_CAT_EMB + SPATIAL_DIM    # 264
OBJ_PAD      = 384                          # 3 * 128
OBJ_MLP_HID  = 128    # guesser MLP hidden dim
N_CATEGORIES = 91     # COCO categories incl. padding
DECIDER_OUT  = 2
VOCAB        = 1000   # toy vocab for (pre-tokenized) history
OUT_PAD      = 128    # lane-dense width of each half of the output slab

# small example sizes
BATCH   = 2
SEQ_LEN = 8           # tokens of history (real model: max_seq_length=200)
N_BOXES = 8           # faster-rcnn regions (real model: 36)

N_ATTN_W = 5          # stacked q, k, v, o (attn output), p (pooler) matrices


# ====================================================================
# Fused kernel: LXRT encoder (approx) + scale_to + Decider + Guesser
# ====================================================================
def _fused_forward_kernel(
        cls_ref, vfeat_ref, obj_ref,
        wfb_ref, sfb_ref, bfb_ref,
        wattn_hbm, sattn_ref, battn_ref,
        ws_ref, bs_ref, wd1_ref, bd1_ref, wd2_ref, bd2_ref,
        wg1_ref, bg1_ref, wg2_ref, bg2_ref,
        out_ref,
        wattn_vmem, dma_sems):
    f32, bf16 = jnp.float32, jnp.bfloat16
    B   = cls_ref.shape[0]                 # batch
    NV  = vfeat_ref.shape[0] // B          # visual regions per sample
    NOP = obj_ref.shape[0] // B            # padded guesser objects per sample
    NEG = jnp.float32(-1e30)

    def deq(w_i8):
        # int8 -> bf16 is exact (|q| <= 127); per-column scale folded into epilogue.
        return w_i8.astype(f32).astype(bf16)

    # Kick off the HBM->VMEM streams of the five 768x768 attention/pooler int8
    # matrices now; they are waited on lazily so the visual projection and the
    # guesser object-MLP below overlap the weight DMA.
    copies = [pltpu.make_async_copy(wattn_hbm.at[i], wattn_vmem.at[i], dma_sems.at[i])
              for i in range(N_ATTN_W)]
    for cp in copies:
        cp.start()

    sa = sattn_ref[...]                    # (5, 768) per-output-column dequant scales
    ba = battn_ref[...]                    # (5, 768) biases

    # ---- LXMERT VisualFeatEncoder: (fc(feat) + fc(box)) / 2 as one fused matmul.
    # TODO(synk): the VisualFeatEncoder LayerNorms of the real LXMERT are omitted.
    visn = (jnp.dot(vfeat_ref[...], deq(wfb_ref[...]), preferred_element_type=f32)
            * sfb_ref[...] + bfb_ref[...]) * 0.5                            # (B*NV, 768)
    visn_bf = visn.astype(bf16)

    # ---- Guesser object MLP (independent of the attention weights -> overlapped)
    g1 = jnp.maximum(jnp.dot(obj_ref[...], wg1_ref[...],
                             preferred_element_type=f32) + bg1_ref[...], 0.0)
    g2 = jnp.dot(g1.astype(bf16), wg2_ref[...],
                 preferred_element_type=f32) + bg2_ref[...]                 # (B*NOP, H)
    g3 = g2.reshape(B, NOP, SCALE_TO).astype(bf16)                          # (B, NOP, H)

    cls = cls_ref[...]                                                      # (B, 768) bf16

    # ---- single-head cross attention: only the CLS token attends (only it feeds
    # the pooler).
    # TODO(synk): full pretrained 12-layer LXMERT (lang/vision/cross stacks,
    # checkpoint load) is approximated by this single cross-attention layer + pooler.
    copies[0].wait()
    q = (jnp.dot(cls, deq(wattn_vmem[0]), preferred_element_type=f32)
         * sa[0:1] + ba[0:1])                                               # (B, 768)
    copies[1].wait()
    k = (jnp.dot(visn_bf, deq(wattn_vmem[1]), preferred_element_type=f32)
         * sa[1:2] + ba[1:2])                                               # (B*NV, 768)
    copies[2].wait()
    v = (jnp.dot(visn_bf, deq(wattn_vmem[2]), preferred_element_type=f32)
         * sa[2:3] + ba[2:3])

    q3 = q[:, None, :].astype(bf16)                                         # (B, 1, 768)
    k3 = k.reshape(B, NV, LXMERT_DIM).astype(bf16)                          # (B, NV, 768)
    v3 = v.reshape(B, NV, LXMERT_DIM).astype(bf16)

    s = jnp.einsum('bqd,bkd->bqk', q3, k3,
                   preferred_element_type=f32) * (LXMERT_DIM ** -0.5)       # (B, 1, NV)
    s = s - jnp.max(s, axis=-1, keepdims=True)
    p = jnp.exp(s)
    p = p / jnp.sum(p, axis=-1, keepdims=True)                              # exact softmax
    ctx = jnp.einsum('bqk,bkd->bqd', p.astype(bf16), v3,
                     preferred_element_type=f32)[:, 0, :]                   # (B, 768)

    copies[3].wait()
    h = (jnp.dot(ctx.astype(bf16), deq(wattn_vmem[3]), preferred_element_type=f32)
         * sa[3:4] + ba[3:4] + cls.astype(f32))                             # residual
    copies[4].wait()
    pooled = jnp.tanh(jnp.dot(h.astype(bf16), deq(wattn_vmem[4]),
                              preferred_element_type=f32) * sa[4:5] + ba[4:5])

    # ---- scale_to: Linear(768, SCALE_TO) + Tanh -> encoder_hidden
    eh = jnp.tanh(jnp.dot(pooled.astype(bf16), ws_ref[...],
                          preferred_element_type=f32) + bs_ref[...])        # (B, H)
    eh_bf = eh.astype(bf16)

    # ---- Decider: Linear(H,H) + ReLU + Linear(H,2); columns zero-padded to 128 lanes
    d1 = jnp.maximum(jnp.dot(eh_bf, wd1_ref[...],
                             preferred_element_type=f32) + bd1_ref[...], 0.0)
    dec = jnp.dot(d1.astype(bf16), wd2_ref[...],
                  preferred_element_type=f32) + bd2_ref[...]                # (B, 128)

    # ---- Guesser scores + log_softmax over the N_OBJ real objects
    sc = jnp.einsum('bqd,bkd->bqk', eh_bf[:, None, :], g3,
                    preferred_element_type=f32)[:, 0, :]                    # (B, NOP)
    lane = lax.broadcasted_iota(jnp.int32, sc.shape, 1)
    sc = jnp.where(lane < N_OBJ, sc, NEG)                                   # mask pad objects
    z = sc - jnp.max(sc, axis=-1, keepdims=True)
    guess = z - jnp.log(jnp.sum(jnp.exp(z), axis=-1, keepdims=True))        # (B, NOP)

    out_ref[:, :OUT_PAD] = dec
    out_ref[:, OUT_PAD:OUT_PAD + NOP] = guess


def _run_fused(packed, cls_emb, vfeat, obj):
    B = cls_emb.shape[0]
    w = packed
    vspec = pl.BlockSpec(memory_space=pltpu.MemorySpace.VMEM)
    in_specs = [
        vspec, vspec, vspec,                  # cls, vfeat, obj
        vspec, vspec, vspec,                  # wfb (int8), sfb, bfb
        pl.BlockSpec(memory_space=pl.ANY),    # w_attn stays in HBM; manual async DMA
        vspec, vspec,                         # s_attn, b_attn
        vspec, vspec, vspec, vspec, vspec, vspec,   # ws, bs, wd1, bd1, wd2, bd2
        vspec, vspec, vspec, vspec,           # wg1, bg1, wg2, bg2
    ]
    return pl.pallas_call(
        _fused_forward_kernel,
        out_shape=jax.ShapeDtypeStruct((B, 2 * OUT_PAD), jnp.float32),
        in_specs=in_specs,
        out_specs=pl.BlockSpec(memory_space=pltpu.MemorySpace.VMEM),
        scratch_shapes=[pltpu.VMEM((N_ATTN_W, LXMERT_DIM, LXMERT_DIM), jnp.int8),
                        pltpu.SemaphoreType.DMA((N_ATTN_W,))],
        compiler_params=pltpu.CompilerParams(vmem_limit_bytes=24 * 1024 * 1024),
    )(cls_emb, vfeat, obj,
      w["wfb"], w["sfb"], w["bfb"],
      w["w_attn"], w["s_attn"], w["b_attn"],
      w["ws"], w["bs"], w["wd1"], w["bd1"], w["wd2"], w["bd2"],
      w["wg1"], w["bg1"], w["wg2"], w["bg2"])


# ====================================================================
# Parameter init (deterministic, synthetic) + packing for the kernel
# ====================================================================
def init_params(key):
    ks = list(jax.random.split(key, 16))

    def dense(k, fi, fo):
        return jax.random.normal(k, (fi, fo), jnp.float32) * 0.02

    def bias(fo):
        return jnp.zeros((1, fo), jnp.float32)

    D = LXMERT_DIM
    return {
        "tok_emb": jax.random.normal(ks[0], (VOCAB, D), jnp.float32) * 0.02,
        "cat_emb": jax.random.normal(ks[1], (N_CATEGORIES, OBJ_CAT_EMB), jnp.float32) * 0.02,
        "encoder": {
            "wf": dense(ks[2], FRCNN_DIM, D), "bf": bias(D),
            "wb": dense(ks[3], BOX_DIM, D),   "bb": bias(D),
            "wq": dense(ks[4], D, D), "bq": bias(D),
            "wk": dense(ks[5], D, D), "bk": bias(D),
            "wv": dense(ks[6], D, D), "bv": bias(D),
            "wo": dense(ks[7], D, D), "bo": bias(D),
            "wp": dense(ks[8], D, D), "bp": bias(D),
        },
        "heads": {
            "ws":  dense(ks[9],  D, SCALE_TO),            "bs":  bias(SCALE_TO),
            "wd1": dense(ks[10], SCALE_TO, SCALE_TO),     "bd1": bias(SCALE_TO),
            "wd2": dense(ks[11], SCALE_TO, DECIDER_OUT),  "bd2": bias(DECIDER_OUT),
            "wg1": dense(ks[12], OBJ_IN, OBJ_MLP_HID),    "bg1": bias(OBJ_MLP_HID),
            "wg2": dense(ks[13], OBJ_MLP_HID, SCALE_TO),  "bg2": bias(SCALE_TO),
        },
    }


def _quantize_cols(w):
    """Symmetric int8 quantization with one f32 scale per output column."""
    amax = jnp.max(jnp.abs(w), axis=0, keepdims=True)
    scale = jnp.maximum(amax, 1e-8) / 127.0
    q = jnp.clip(jnp.round(w / scale), -127.0, 127.0).astype(jnp.int8)
    return q, scale.astype(jnp.float32)


def pack_params(params):
    """int8-quantize the big matrices, bf16-cast the small heads, pad ragged dims."""
    bf = jnp.bfloat16
    enc, hd = params["encoder"], params["heads"]

    # fused feat/box projection, zero-padded along the contraction dim to 2176
    wfb = jnp.zeros((VIS_PAD, LXMERT_DIM), jnp.float32)
    wfb = wfb.at[:FRCNN_DIM].set(enc["wf"]).at[FRCNN_DIM:VIS_IN].set(enc["wb"])
    wfb_q, sfb = _quantize_cols(wfb)

    # q / k / v / o / p stacked (5, 768, 768), int8 with per-column scales
    attn = jnp.stack([enc["wq"], enc["wk"], enc["wv"], enc["wo"], enc["wp"]], axis=0)
    amax = jnp.max(jnp.abs(attn), axis=1, keepdims=True)                  # (5, 1, 768)
    s_attn = jnp.maximum(amax, 1e-8) / 127.0
    w_attn = jnp.clip(jnp.round(attn / s_attn), -127.0, 127.0).astype(jnp.int8)
    b_attn = jnp.concatenate([enc["bq"], enc["bk"], enc["bv"], enc["bo"], enc["bp"]],
                             axis=0)                                      # (5, 768)

    # decider output padded to 128 lanes; guesser-MLP input padded to 384 rows
    wd2 = jnp.zeros((SCALE_TO, OUT_PAD), jnp.float32).at[:, :DECIDER_OUT].set(hd["wd2"])
    bd2 = jnp.zeros((1, OUT_PAD), jnp.float32).at[:, :DECIDER_OUT].set(hd["bd2"])
    wg1 = jnp.zeros((OBJ_PAD, OBJ_MLP_HID), jnp.float32).at[:OBJ_IN].set(hd["wg1"])

    return {
        "tok_emb": params["tok_emb"].astype(bf),
        "cat_emb": params["cat_emb"].astype(bf),
        "wfb": wfb_q, "sfb": sfb, "bfb": enc["bf"] + enc["bb"],
        "w_attn": w_attn, "s_attn": s_attn[:, 0, :].astype(jnp.float32), "b_attn": b_attn,
        "ws": hd["ws"].astype(bf),   "bs": hd["bs"],
        "wd1": hd["wd1"].astype(bf), "bd1": hd["bd1"],
        "wd2": wd2.astype(bf),       "bd2": bd2,
        "wg1": wg1.astype(bf),       "bg1": hd["bg1"],
        "wg2": hd["wg2"].astype(bf), "bg2": hd["bg2"],
    }


# ====================================================================
# Full forward wrapper
# ====================================================================
@jax.jit
def lxmert_ensemble_guesser_only(packed, history_ids, frcnn_feats, frcnn_boxes,
                                 spatials, objects):
    # TODO(synk): history_raw WordPiece tokenization has no Pallas equivalent; the
    # kernel consumes pre-tokenized ids. Embedding gathers are plain-JAX glue.
    B  = history_ids.shape[0]
    NV = frcnn_feats.shape[1]

    # only the CLS (first) token feeds the pooler in the single-layer approximation
    cls_emb = jnp.take(packed["tok_emb"], history_ids[:, 0], axis=0)        # (B, 768) bf16

    # fuse RoI features + boxes, zero-pad contraction dim 2052 -> 2176
    vis = jnp.concatenate([frcnn_feats, frcnn_boxes], axis=-1).astype(jnp.bfloat16)
    vis = jnp.pad(vis, ((0, 0), (0, 0), (0, VIS_PAD - VIS_IN)))
    vfeat = vis.reshape(B * NV, VIS_PAD)

    # guesser object features; pad object count 20 -> 24 and input dim 264 -> 384
    cat_emb = jnp.take(packed["cat_emb"], objects, axis=0)                  # (B, 20, 256) bf16
    obj = jnp.concatenate([cat_emb, spatials.astype(jnp.bfloat16)], axis=-1)
    obj = jnp.pad(obj, ((0, 0), (0, N_OBJ_PAD - N_OBJ), (0, OBJ_PAD - OBJ_IN)))
    obj = obj.reshape(B * N_OBJ_PAD, OBJ_PAD)

    out = _run_fused(packed, cls_emb, vfeat, obj)                           # (B, 256)

    decider_out = out[:, :DECIDER_OUT].reshape(B, 1, DECIDER_OUT)
    guesser_out = out[:, OUT_PAD:OUT_PAD + N_OBJ]
    # nn.Dropout(p=0.5) is declared in __init__ but never used in forward -> omitted.
    return decider_out, guesser_out


if __name__ == "__main__":
    key = jax.random.PRNGKey(0)
    kp, k1, k2, k3, k4, k5 = jax.random.split(key, 6)

    params = init_params(kp)
    packed = pack_params(params)

    history_ids = jax.random.randint(k1, (BATCH, SEQ_LEN), 0, VOCAB, dtype=jnp.int32)
    frcnn_feats = jax.random.normal(k2, (BATCH, N_BOXES, FRCNN_DIM), jnp.float32)
    frcnn_boxes = jax.random.uniform(k3, (BATCH, N_BOXES, BOX_DIM), jnp.float32)
    spatials    = jax.random.normal(k4, (BATCH, N_OBJ, SPATIAL_DIM), jnp.float32)
    objects     = jax.random.randint(k5, (BATCH, N_OBJ), 0, N_CATEGORIES, dtype=jnp.int32)

    decider_out, guesser_out = lxmert_ensemble_guesser_only(
        packed, history_ids, frcnn_feats, frcnn_boxes, spatials, objects)
    jax.block_until_ready((decider_out, guesser_out))

    assert decider_out.shape == (BATCH, 1, DECIDER_OUT)
    assert guesser_out.shape == (BATCH, N_OBJ)
    # guesser_out are log-probabilities -> rows should (approx.) sum to 1 after exp
    assert jnp.allclose(jnp.exp(guesser_out).sum(axis=-1), 1.0, atol=1e-4)
    print("KERNEL_OK")
</pallas_src>

<mosaic_0001>
module attributes {stable_mosaic.version = 11 : i64} {
  func.func @_fused_forward_kernel(%arg0: memref<2x768xbf16, #tpu.memory_space<vmem>>, %arg1: memref<16x2176xbf16, #tpu.memory_space<vmem>>, %arg2: memref<48x384xbf16, #tpu.memory_space<vmem>>, %arg3: memref<2176x768xi8, #tpu.memory_space<vmem>>, %arg4: memref<1x768xf32, #tpu.memory_space<vmem>>, %arg5: memref<1x768xf32, #tpu.memory_space<vmem>>, %arg6: memref<5x768x768xi8, #tpu.memory_space<any>>, %arg7: memref<5x768xf32, #tpu.memory_space<vmem>>, %arg8: memref<5x768xf32, #tpu.memory_space<vmem>>, %arg9: memref<768x128xbf16, #tpu.memory_space<vmem>>, %arg10: memref<1x128xf32, #tpu.memory_space<vmem>>, %arg11: memref<128x128xbf16, #tpu.memory_space<vmem>>, %arg12: memref<1x128xf32, #tpu.memory_space<vmem>>, %arg13: memref<128x128xbf16, #tpu.memory_space<vmem>>, %arg14: memref<1x128xf32, #tpu.memory_space<vmem>>, %arg15: memref<384x128xbf16, #tpu.memory_space<vmem>>, %arg16: memref<1x128xf32, #tpu.memory_space<vmem>>, %arg17: memref<128x128xbf16, #tpu.memory_space<vmem>>, %arg18: memref<1x128xf32, #tpu.memory_space<vmem>>, %arg19: memref<2x256xf32, #tpu.memory_space<vmem>>, %arg20: memref<5x768x768xi8, #tpu.memory_space<vmem>>, %arg21: memref<5x!tpu.dma_semaphore, #tpu.memory_space<semaphore_mem>>) attributes {dimension_semantics = [], scalar_prefetch = 0 : i64, scratch_operands = 2 : i64, tpu.core_type = #tpu.core_type<tc>} {
    %c0_i32 = arith.constant 0 : i32
    %c0_i32_0 = arith.constant 0 : i32
    %c0_i32_1 = arith.constant 0 : i32
    %c0_i32_2 = arith.constant 0 : i32
    %c0_i32_3 = arith.constant 0 : i32
    %0 = tpu.memref_slice %arg6[%c0_i32, %c0_i32_2, %c0_i32_3] : memref<5x768x768xi8, #tpu.memory_space<any>> -> memref<1x768x768xi8, #tpu.memory_space<any>>
    %1 = tpu.memref_squeeze %0 : memref<1x768x768xi8, #tpu.memory_space<any>> -> memref<768x768xi8, #tpu.memory_space<any>>
    %c0_i32_4 = arith.constant 0 : i32
    %c0_i32_5 = arith.constant 0 : i32
    %2 = tpu.memref_slice %arg20[%c0_i32_0, %c0_i32_4, %c0_i32_5] : memref<5x768x768xi8, #tpu.memory_space<vmem>> -> memref<1x768x768xi8, #tpu.memory_space<vmem>>
    %3 = tpu.memref_squeeze %2 : memref<1x768x768xi8, #tpu.memory_space<vmem>> -> memref<768x768xi8, #tpu.memory_space<vmem>>
    %4 = tpu.memref_slice %arg21[%c0_i32_1] : memref<5x!tpu.dma_semaphore, #tpu.memory_space<semaphore_mem>> -> memref<1x!tpu.dma_semaphore, #tpu.memory_space<semaphore_mem>>
    %5 = tpu.memref_squeeze %4 : memref<1x!tpu.dma_semaphore, #tpu.memory_space<semaphore_mem>> -> memref<!tpu.dma_semaphore, #tpu.memory_space<semaphore_mem>>
    tpu.enqueue_dma source(%1 : memref<768x768xi8, #tpu.memory_space<any>>) target(%3 : memref<768x768xi8, #tpu.memory_space<vmem>>) target_semaphore(%5 : memref<!tpu.dma_semaphore, #tpu.memory_space<semaphore_mem>>)
    %c1_i32 = arith.constant 1 : i32
    %c1_i32_6 = arith.constant 1 : i32
    %c1_i32_7 = arith.constant 1 : i32
    %c0_i32_8 = arith.constant 0 : i32
    %c0_i32_9 = arith.constant 0 : i32
    %6 = tpu.memref_slice %arg6[%c1_i32, %c0_i32_8, %c0_i32_9] : memref<5x768x768xi8, #tpu.memory_space<any>> -> memref<1x768x768xi8, #tpu.memory_space<any>>
    %7 = tpu.memref_squeeze %6 : memref<1x768x768xi8, #tpu.memory_space<any>> -> memref<768x768xi8, #tpu.memory_space<any>>
    %c0_i32_10 = arith.constant 0 : i32
    %c0_i32_11 = arith.constant 0 : i32
    %8 = tpu.memref_slice %arg20[%c1_i32_6, %c0_i32_10, %c0_i32_11] : memref<5x768x768xi8, #tpu.memory_space<vmem>> -> memref<1x768x768xi8, #tpu.memory_space<vmem>>
    %9 = tpu.memref_squeeze %8 : memref<1x768x768xi8, #tpu.memory_space<vmem>> -> memref<768x768xi8, #tpu.memory_space<vmem>>
    %10 = tpu.memref_slice %arg21[%c1_i32_7] : memref<5x!tpu.dma_semaphore, #tpu.memory_space<semaphore_mem>> -> memref<1x!tpu.dma_semaphore, #tpu.memory_space<semaphore_mem>>
    %11 = tpu.memref_squeeze %10 : memref<1x!tpu.dma_semaphore, #tpu.memory_space<semaphore_mem>> -> memref<!tpu.dma_semaphore, #tpu.memory_space<semaphore_mem>>
    tpu.enqueue_dma source(%7 : memref<768x768xi8, #tpu.memory_space<any>>) target(%9 : memref<768x768xi8, #tpu.memory_space<vmem>>) target_semaphore(%11 : memref<!tpu.dma_semaphore, #tpu.memory_space<semaphore_mem>>)
    %c2_i32 = arith.constant 2 : i32
    %c2_i32_12 = arith.constant 2 : i32
    %c2_i32_13 = arith.constant 2 : i32
    %c0_i32_14 = arith.constant 0 : i32
    %c0_i32_15 = arith.constant 0 : i32
    %12 = tpu.memref_slice %arg6[%c2_i32, %c0_i32_14, %c0_i32_15] : memref<5x768x768xi8, #tpu.memory_space<any>> -> memref<1x768x768xi8, #tpu.memory_space<any>>
    %13 = tpu.memref_squeeze %12 : memref<1x768x768xi8, #tpu.memory_space<any>> -> memref<768x768xi8, #tpu.memory_space<any>>
    %c0_i32_16 = arith.constant 0 : i32
    %c0_i32_17 = arith.constant 0 : i32
    %14 = tpu.memref_slice %arg20[%c2_i32_12, %c0_i32_16, %c0_i32_17] : memref<5x768x768xi8, #tpu.memory_space<vmem>> -> memref<1x768x768xi8, #tpu.memory_space<vmem>>
    %15 = tpu.memref_squeeze %14 : memref<1x768x768xi8, #tpu.memory_space<vmem>> -> memref<768x768xi8, #tpu.memory_space<vmem>>
    %16 = tpu.memref_slice %arg21[%c2_i32_13] : memref<5x!tpu.dma_semaphore, #tpu.memory_space<semaphore_mem>> -> memref<1x!tpu.dma_semaphore, #tpu.memory_space<semaphore_mem>>
    %17 = tpu.memref_squeeze %16 : memref<1x!tpu.dma_semaphore, #tpu.memory_space<semaphore_mem>> -> memref<!tpu.dma_semaphore, #tpu.memory_space<semaphore_mem>>
    tpu.enqueue_dma source(%13 : memref<768x768xi8, #tpu.memory_space<any>>) target(%15 : memref<768x768xi8, #tpu.memory_space<vmem>>) target_semaphore(%17 : memref<!tpu.dma_semaphore, #tpu.memory_space<semaphore_mem>>)
    %c3_i32 = arith.constant 3 : i32
    %c3_i32_18 = arith.constant 3 : i32
    %c3_i32_19 = arith.constant 3 : i32
    %c0_i32_20 = arith.constant 0 : i32
    %c0_i32_21 = arith.constant 0 : i32
    %18 = tpu.memref_slice %arg6[%c3_i32, %c0_i32_20, %c0_i32_21] : memref<5x768x768xi8, #tpu.memory_space<any>> -> memref<1x768x768xi8, #tpu.memory_space<any>>
    %19 = tpu.memref_squeeze %18 : memref<1x768x768xi8, #tpu.memory_space<any>> -> memref<768x768xi8, #tpu.memory_space<any>>
    %c0_i32_22 = arith.constant 0 : i32
    %c0_i32_23 = arith.constant 0 : i32
    %20 = tpu.memref_slice %arg20[%c3_i32_18, %c0_i32_22, %c0_i32_23] : memref<5x768x768xi8, #tpu.memory_space<vmem>> -> memref<1x768x768xi8, #tpu.memory_space<vmem>>
    %21 = tpu.memref_squeeze %20 : memref<1x768x768xi8, #tpu.memory_space<vmem>> -> memref<768x768xi8, #tpu.memory_space<vmem>>
    %22 = tpu.memref_slice %arg21[%c3_i32_19] : memref<5x!tpu.dma_semaphore, #tpu.memory_space<semaphore_mem>> -> memref<1x!tpu.dma_semaphore, #tpu.memory_space<semaphore_mem>>
    %23 = tpu.memref_squeeze %22 : memref<1x!tpu.dma_semaphore, #tpu.memory_space<semaphore_mem>> -> memref<!tpu.dma_semaphore, #tpu.memory_space<semaphore_mem>>
    tpu.enqueue_dma source(%19 : memref<768x768xi8, #tpu.memory_space<any>>) target(%21 : memref<768x768xi8, #tpu.memory_space<vmem>>) target_semaphore(%23 : memref<!tpu.dma_semaphore, #tpu.memory_space<semaphore_mem>>)
    %c4_i32 = arith.constant 4 : i32
    %c4_i32_24 = arith.constant 4 : i32
    %c4_i32_25 = arith.constant 4 : i32
    %c0_i32_26 = arith.constant 0 : i32
    %c0_i32_27 = arith.constant 0 : i32
    %24 = tpu.memref_slice %arg6[%c4_i32, %c0_i32_26, %c0_i32_27] : memref<5x768x768xi8, #tpu.memory_space<any>> -> memref<1x768x768xi8, #tpu.memory_space<any>>
    %25 = tpu.memref_squeeze %24 : memref<1x768x768xi8, #tpu.memory_space<any>> -> memref<768x768xi8, #tpu.memory_space<any>>
    %c0_i32_28 = arith.constant 0 : i32
    %c0_i32_29 = arith.constant 0 : i32
    %26 = tpu.memref_slice %arg20[%c4_i32_24, %c0_i32_28, %c0_i32_29] : memref<5x768x768xi8, #tpu.memory_space<vmem>> -> memref<1x768x768xi8, #tpu.memory_space<vmem>>
    %27 = tpu.memref_squeeze %26 : memref<1x768x768xi8, #tpu.memory_space<vmem>> -> memref<768x768xi8, #tpu.memory_space<vmem>>
    %28 = tpu.memref_slice %arg21[%c4_i32_25] : memref<5x!tpu.dma_semaphore, #tpu.memory_space<semaphore_mem>> -> memref<1x!tpu.dma_semaphore, #tpu.memory_space<semaphore_mem>>
    %29 = tpu.memref_squeeze %28 : memref<1x!tpu.dma_semaphore, #tpu.memory_space<semaphore_mem>> -> memref<!tpu.dma_semaphore, #tpu.memory_space<semaphore_mem>>
    tpu.enqueue_dma source(%25 : memref<768x768xi8, #tpu.memory_space<any>>) target(%27 : memref<768x768xi8, #tpu.memory_space<vmem>>) target_semaphore(%29 : memref<!tpu.dma_semaphore, #tpu.memory_space<semaphore_mem>>)
    %c0 = arith.constant 0 : index
    %c0_30 = arith.constant 0 : index
    %30 = vector.load %arg7[%c0, %c0_30] : memref<5x768xf32, #tpu.memory_space<vmem>>, vector<5x768xf32>
    %c0_31 = arith.constant 0 : index
    %c0_32 = arith.constant 0 : index
    %31 = vector.load %arg8[%c0_31, %c0_32] : memref<5x768xf32, #tpu.memory_space<vmem>>, vector<5x768xf32>
    %c0_33 = arith.constant 0 : index
    %c0_34 = arith.constant 0 : index
    %32 = vector.load %arg1[%c0_33, %c0_34] : memref<16x2176xbf16, #tpu.memory_space<vmem>>, vector<16x2176xbf16>
    %c0_35 = arith.constant 0 : index
    %c0_36 = arith.constant 0 : index
    %33 = vector.load %arg3[%c0_35, %c0_36] : memref<2176x768xi8, #tpu.memory_space<vmem>>, vector<2176x768xi8>
    %34 = arith.sitofp %33 : vector<2176x768xi8> to vector<2176x768xf32>
    %35 = arith.truncf %34 : vector<2176x768xf32> to vector<2176x768xbf16>
    %cst = arith.constant dense<0.000000e+00> : vector<16x768xf32>
    %36 = tpu.matmul %32, %35, %cst {dimension_numbers = #tpu.dot_dimension_numbers<[1], [0], [0], [1], [0, 0, 1, 1], [], []>} : vector<16x2176xbf16>, vector<2176x768xbf16>, vector<16x768xf32> -> vector<16x768xf32>
    %c0_37 = arith.constant 0 : index
    %c0_38 = arith.constant 0 : index
    %37 = vector.load %arg4[%c0_37, %c0_38] : memref<1x768xf32, #tpu.memory_space<vmem>>, vector<1x768xf32>
    %38 = vector.broadcast %37 : vector<1x768xf32> to vector<16x768xf32>
    %39 = arith.mulf %36, %38 : vector<16x768xf32>
    %c0_39 = arith.constant 0 : index
    %c0_40 = arith.constant 0 : index
    %40 = vector.load %arg5[%c0_39, %c0_40] : memref<1x768xf32, #tpu.memory_space<vmem>>, vector<1x768xf32>
    %41 = vector.broadcast %40 : vector<1x768xf32> to vector<16x768xf32>
    %42 = arith.addf %39, %41 : vector<16x768xf32>
    %cst_41 = arith.constant 5.000000e-01 : f32
    %43 = vector.broadcast %cst_41 : f32 to vector<16x768xf32>
    %44 = arith.mulf %42, %43 : vector<16x768xf32>
    %45 = arith.truncf %44 : vector<16x768xf32> to vector<16x768xbf16>
    %c0_42 = arith.constant 0 : index
    %c0_43 = arith.constant 0 : index
    %46 = vector.load %arg2[%c0_42, %c0_43] : memref<48x384xbf16, #tpu.memory_space<vmem>>, vector<48x384xbf16>
    %c0_44 = arith.constant 0 : index
    %c0_45 = arith.constant 0 : index
    %47 = vector.load %arg15[%c0_44, %c0_45] : memref<384x128xbf16, #tpu.memory_space<vmem>>, vector<384x128xbf16>
    %cst_46 = arith.constant dense<0.000000e+00> : vector<48x128xf32>
    %48 = tpu.matmul %46, %47, %cst_46 {dimension_numbers = #tpu.dot_dimension_numbers<[1], [0], [0], [1], [0, 0, 1, 1], [], []>} : vector<48x384xbf16>, vector<384x128xbf16>, vector<48x128xf32> -> vector<48x128xf32>
    %c0_47 = arith.constant 0 : index
    %c0_48 = arith.constant 0 : index
    %49 = vector.load %arg16[%c0_47, %c0_48] : memref<1x128xf32, #tpu.memory_space<vmem>>, vector<1x128xf32>
    %50 = vector.broadcast %49 : vector<1x128xf32> to vector<48x128xf32>
    %51 = arith.addf %48, %50 : vector<48x128xf32>
    %cst_49 = arith.constant 0.000000e+00 : f32
    %52 = vector.broadcast %cst_49 : f32 to vector<48x128xf32>
    %53 = arith.maximumf %51, %52 : vector<48x128xf32>
    %54 = arith.truncf %53 : vector<48x128xf32> to vector<48x128xbf16>
    %c0_50 = arith.constant 0 : index
    %c0_51 = arith.constant 0 : index
    %55 = vector.load %arg17[%c0_50, %c0_51] : memref<128x128xbf16, #tpu.memory_space<vmem>>, vector<128x128xbf16>
    %cst_52 = arith.constant dense<0.000000e+00> : vector<48x128xf32>
    %56 = tpu.matmul %54, %55, %cst_52 {dimension_numbers = #tpu.dot_dimension_numbers<[1], [0], [0], [1], [0, 0, 1, 1], [], []>} : vector<48x128xbf16>, vector<128x128xbf16>, vector<48x128xf32> -> vector<48x128xf32>
    %c0_53 = arith.constant 0 : index
    %c0_54 = arith.constant 0 : index
    %57 = vector.load %arg18[%c0_53, %c0_54] : memref<1x128xf32, #tpu.memory_space<vmem>>, vector<1x128xf32>
    %58 = vector.broadcast %57 : vector<1x128xf32> to vector<48x128xf32>
    %59 = arith.addf %56, %58 : vector<48x128xf32>
    %60 = vector.shape_cast %59 : vector<48x128xf32> to vector<2x24x128xf32>
    %61 = arith.truncf %60 : vector<2x24x128xf32> to vector<2x24x128xbf16>
    %c0_55 = arith.constant 0 : index
    %c0_56 = arith.constant 0 : index
    %62 = vector.load %arg0[%c0_55, %c0_56] : memref<2x768xbf16, #tpu.memory_space<vmem>>, vector<2x768xbf16>
    %c0_i32_57 = arith.constant 0 : i32
    %c0_i32_58 = arith.constant 0 : i32
    %c0_i32_59 = arith.constant 0 : i32
    %c0_i32_60 = arith.constant 0 : i32
    %c0_i32_61 = arith.constant 0 : i32
    %63 = tpu.memref_slice %arg6[%c0_i32_57, %c0_i32_60, %c0_i32_61] : memref<5x768x768xi8, #tpu.memory_space<any>> -> memref<1x768x768xi8, #tpu.memory_space<any>>
    %64 = tpu.memref_squeeze %63 : memref<1x768x768xi8, #tpu.memory_space<any>> -> memref<768x768xi8, #tpu.memory_space<any>>
    %c0_i32_62 = arith.constant 0 : i32
    %c0_i32_63 = arith.constant 0 : i32
    %65 = tpu.memref_slice %arg20[%c0_i32_58, %c0_i32_62, %c0_i32_63] : memref<5x768x768xi8, #tpu.memory_space<vmem>> -> memref<1x768x768xi8, #tpu.memory_space<vmem>>
    %66 = tpu.memref_squeeze %65 : memref<1x768x768xi8, #tpu.memory_space<vmem>> -> memref<768x768xi8, #tpu.memory_space<vmem>>
    %67 = tpu.memref_slice %arg21[%c0_i32_59] : memref<5x!tpu.dma_semaphore, #tpu.memory_space<semaphore_mem>> -> memref<1x!tpu.dma_semaphore, #tpu.memory_space<semaphore_mem>>
    %68 = tpu.memref_squeeze %67 : memref<1x!tpu.dma_semaphore, #tpu.memory_space<semaphore_mem>> -> memref<!tpu.dma_semaphore, #tpu.memory_space<semaphore_mem>>
    tpu.wait_dma2 semaphore(%68 : memref<!tpu.dma_semaphore, #tpu.memory_space<semaphore_mem>>) src(%64 : memref<768x768xi8, #tpu.memory_space<any>>) dst(%66 : memref<768x768xi8, #tpu.memory_space<vmem>>)
    %c0_64 = arith.constant 0 : index
    %c0_65 = arith.constant 0 : index
    %c0_66 = arith.constant 0 : index
    %69 = vector.load %arg20[%c0_64, %c0_65, %c0_66] : memref<5x768x768xi8, #tpu.memory_space<vmem>>, vector<1x768x768xi8>
    %70 = vector.shape_cast %69 : vector<1x768x768xi8> to vector<768x768xi8>
    %71 = arith.sitofp %70 : vector<768x768xi8> to vector<768x768xf32>
    %72 = arith.truncf %71 : vector<768x768xf32> to vector<768x768xbf16>
    %cst_67 = arith.constant dense<0.000000e+00> : vector<2x768xf32>
    %73 = tpu.matmul %62, %72, %cst_67 {dimension_numbers = #tpu.dot_dimension_numbers<[1], [0], [0], [1], [0, 0, 1, 1], [], []>} : vector<2x768xbf16>, vector<768x768xbf16>, vector<2x768xf32> -> vector<2x768xf32>
    %74 = vector.extract_strided_slice %30 {offsets = [0, 0], sizes = [1, 768], strides = [1, 1]} : vector<5x768xf32> to vector<1x768xf32>
    %75 = vector.broadcast %74 : vector<1x768xf32> to vector<2x768xf32>
    %76 = arith.mulf %73, %75 : vector<2x768xf32>
    %77 = vector.extract_strided_slice %31 {offsets = [0, 0], sizes = [1, 768], strides = [1, 1]} : vector<5x768xf32> to vector<1x768xf32>
    %78 = vector.broadcast %77 : vector<1x768xf32> to vector<2x768xf32>
    %79 = arith.addf %76, %78 : vector<2x768xf32>
    %c1_i32_68 = arith.constant 1 : i32
    %c1_i32_69 = arith.constant 1 : i32
    %c1_i32_70 = arith.constant 1 : i32
    %c0_i32_71 = arith.constant 0 : i32
    %c0_i32_72 = arith.constant 0 : i32
    %80 = tpu.memref_slice %arg6[%c1_i32_68, %c0_i32_71, %c0_i32_72] : memref<5x768x768xi8, #tpu.memory_space<any>> -> memref<1x768x768xi8, #tpu.memory_space<any>>
    %81 = tpu.memref_squeeze %80 : memref<1x768x768xi8, #tpu.memory_space<any>> -> memref<768x768xi8, #tpu.memory_space<any>>
    %c0_i32_73 = arith.constant 0 : i32
    %c0_i32_74 = arith.constant 0 : i32
    %82 = tpu.memref_slice %arg20[%c1_i32_69, %c0_i32_73, %c0_i32_74] : memref<5x768x768xi8, #tpu.memory_space<vmem>> -> memref<1x768x768xi8, #tpu.memory_space<vmem>>
    %83 = tpu.memref_squeeze %82 : memref<1x768x768xi8, #tpu.memory_space<vmem>> -> memref<768x768xi8, #tpu.memory_space<vmem>>
    %84 = tpu.memref_slice %arg21[%c1_i32_70] : memref<5x!tpu.dma_semaphore, #tpu.memory_space<semaphore_mem>> -> memref<1x!tpu.dma_semaphore, #tpu.memory_space<semaphore_mem>>
    %85 = tpu.memref_squeeze %84 : memref<1x!tpu.dma_semaphore, #tpu.memory_space<semaphore_mem>> -> memref<!tpu.dma_semaphore, #tpu.memory_space<semaphore_mem>>
    tpu.wait_dma2 semaphore(%85 : memref<!tpu.dma_semaphore, #tpu.memory_space<semaphore_mem>>) src(%81 : memref<768x768xi8, #tpu.memory_space<any>>) dst(%83 : memref<768x768xi8, #tpu.memory_space<vmem>>)
    %c1 = arith.constant 1 : index
    %c0_75 = arith.constant 0 : index
    %c0_76 = arith.constant 0 : index
    %86 = vector.load %arg20[%c1, %c0_75, %c0_76] : memref<5x768x768xi8, #tpu.memory_space<vmem>>, vector<1x768x768xi8>
    %87 = vector.shape_cast %86 : vector<1x768x768xi8> to vector<768x768xi8>
    %88 = arith.sitofp %87 : vector<768x768xi8> to vector<768x768xf32>
    %89 = arith.truncf %88 : vector<768x768xf32> to vector<768x768xbf16>
    %cst_77 = arith.constant dense<0.000000e+00> : vector<16x768xf32>
    %90 = tpu.matmul %45, %89, %cst_77 {dimension_numbers = #tpu.dot_dimension_numbers<[1], [0], [0], [1], [0, 0, 1, 1], [], []>} : vector<16x768xbf16>, vector<768x768xbf16>, vector<16x768xf32> -> vector<16x768xf32>
    %91 = vector.extract_strided_slice %30 {offsets = [1, 0], sizes = [1, 768], strides = [1, 1]} : vector<5x768xf32> to vector<1x768xf32>
    %92 = vector.broadcast %91 : vector<1x768xf32> to vector<16x768xf32>
    %93 = arith.mulf %90, %92 : vector<16x768xf32>
    %94 = vector.extract_strided_slice %31 {offsets = [1, 0], sizes = [1, 768], strides = [1, 1]} : vector<5x768xf32> to vector<1x768xf32>
    %95 = vector.broadcast %94 : vector<1x768xf32> to vector<16x768xf32>
    %96 = arith.addf %93, %95 : vector<16x768xf32>
    %c2_i32_78 = arith.constant 2 : i32
    %c2_i32_79 = arith.constant 2 : i32
    %c2_i32_80 = arith.constant 2 : i32
    %c0_i32_81 = arith.constant 0 : i32
    %c0_i32_82 = arith.constant 0 : i32
    %97 = tpu.memref_slice %arg6[%c2_i32_78, %c0_i32_81, %c0_i32_82] : memref<5x768x768xi8, #tpu.memory_space<any>> -> memref<1x768x768xi8, #tpu.memory_space<any>>
    %98 = tpu.memref_squeeze %97 : memref<1x768x768xi8, #tpu.memory_space<any>> -> memref<768x768xi8, #tpu.memory_space<any>>
    %c0_i32_83 = arith.constant 0 : i32
    %c0_i32_84 = arith.constant 0 : i32
    %99 = tpu.memref_slice %arg20[%c2_i32_79, %c0_i32_83, %c0_i32_84] : memref<5x768x768xi8, #tpu.memory_space<vmem>> -> memref<1x768x768xi8, #tpu.memory_space<vmem>>
    %100 = tpu.memref_squeeze %99 : memref<1x768x768xi8, #tpu.memory_space<vmem>> -> memref<768x768xi8, #tpu.memory_space<vmem>>
    %101 = tpu.memref_slice %arg21[%c2_i32_80] : memref<5x!tpu.dma_semaphore, #tpu.memory_space<semaphore_mem>> -> memref<1x!tpu.dma_semaphore, #tpu.memory_space<semaphore_mem>>
    %102 = tpu.memref_squeeze %101 : memref<1x!tpu.dma_semaphore, #tpu.memory_space<semaphore_mem>> -> memref<!tpu.dma_semaphore, #tpu.memory_space<semaphore_mem>>
    tpu.wait_dma2 semaphore(%102 : memref<!tpu.dma_semaphore, #tpu.memory_space<semaphore_mem>>) src(%98 : memref<768x768xi8, #tpu.memory_space<any>>) dst(%100 : memref<768x768xi8, #tpu.memory_space<vmem>>)
    %c2 = arith.constant 2 : index
    %c0_85 = arith.constant 0 : index
    %c0_86 = arith.constant 0 : index
    %103 = vector.load %arg20[%c2, %c0_85, %c0_86] : memref<5x768x768xi8, #tpu.memory_space<vmem>>, vector<1x768x768xi8>
    %104 = vector.shape_cast %103 : vector<1x768x768xi8> to vector<768x768xi8>
    %105 = arith.sitofp %104 : vector<768x768xi8> to vector<768x768xf32>
    %106 = arith.truncf %105 : vector<768x768xf32> to vector<768x768xbf16>
    %cst_87 = arith.constant dense<0.000000e+00> : vector<16x768xf32>
    %107 = tpu.matmul %45, %106, %cst_87 {dimension_numbers = #tpu.dot_dimension_numbers<[1], [0], [0], [1], [0, 0, 1, 1], [], []>} : vector<16x768xbf16>, vector<768x768xbf16>, vector<16x768xf32> -> vector<16x768xf32>
    %108 = vector.extract_strided_slice %30 {offsets = [2, 0], sizes = [1, 768], strides = [1, 1]} : vector<5x768xf32> to vector<1x768xf32>
    %109 = vector.broadcast %108 : vector<1x768xf32> to vector<16x768xf32>
    %110 = arith.mulf %107, %109 : vector<16x768xf32>
    %111 = vector.extract_strided_slice %31 {offsets = [2, 0], sizes = [1, 768], strides = [1, 1]} : vector<5x768xf32> to vector<1x768xf32>
    %112 = vector.broadcast %111 : vector<1x768xf32> to vector<16x768xf32>
    %113 = arith.addf %110, %112 : vector<16x768xf32>
    %114 = vector.shape_cast %79 : vector<2x768xf32> to vector<2x1x768xf32>
    %115 = arith.truncf %114 : vector<2x1x768xf32> to vector<2x1x768xbf16>
    %116 = vector.shape_cast %96 : vector<16x768xf32> to vector<2x8x768xf32>
    %117 = arith.truncf %116 : vector<2x8x768xf32> to vector<2x8x768xbf16>
    %118 = vector.shape_cast %113 : vector<16x768xf32> to vector<2x8x768xf32>
    %119 = arith.truncf %118 : vector<2x8x768xf32> to vector<2x8x768xbf16>
    "tpu.trace_start"() <{level = 10 : i32, message = "bqd,bkd->bqk"}> : () -> ()
    %cst_88 = arith.constant dense<0.000000e+00> : vector<2x1x8xf32>
    %120 = tpu.matmul %115, %117, %cst_88 {dimension_numbers = #tpu.dot_dimension_numbers<[2], [2], [1], [1], [0, 0, 0, 1, 1, 1], [0], [0]>} : vector<2x1x768xbf16>, vector<2x8x768xbf16>, vector<2x1x8xf32> -> vector<2x1x8xf32>
    "tpu.trace_stop"() : () -> ()
    %cst_89 = arith.constant 0.0360843912 : f32
    %121 = vector.broadcast %cst_89 : f32 to vector<2x1x8xf32>
    %122 = arith.mulf %120, %121 : vector<2x1x8xf32>
    %cst_90 = arith.constant dense<0xFF800000> : vector<2x1xf32>
    %123 = vector.multi_reduction <maximumf>, %122, %cst_90 [2] : vector<2x1x8xf32> to vector<2x1xf32>
    %124 = vector.shape_cast %123 : vector<2x1xf32> to vector<2x1x1xf32>
    %125 = vector.broadcast %124 : vector<2x1x1xf32> to vector<2x1x8xf32>
    %126 = arith.subf %122, %125 : vector<2x1x8xf32>
    %127 = math.exp %126 : vector<2x1x8xf32>
    %cst_91 = arith.constant dense<0.000000e+00> : vector<2x1xf32>
    %128 = vector.multi_reduction <add>, %127, %cst_91 [2] : vector<2x1x8xf32> to vector<2x1xf32>
    %129 = vector.shape_cast %128 : vector<2x1xf32> to vector<2x1x1xf32>
    %130 = vector.broadcast %129 : vector<2x1x1xf32> to vector<2x1x8xf32>
    %131 = arith.divf %127, %130 : vector<2x1x8xf32>
    %132 = arith.truncf %131 : vector<2x1x8xf32> to vector<2x1x8xbf16>
    "tpu.trace_start"() <{level = 10 : i32, message = "bqk,bkd->bqd"}> : () -> ()
    %cst_92 = arith.constant dense<0.000000e+00> : vector<2x1x768xf32>
    %133 = tpu.matmul %132, %119, %cst_92 {dimension_numbers = #tpu.dot_dimension_numbers<[2], [1], [1], [2], [0, 0, 0, 1, 1, 2], [0], [0]>} : vector<2x1x8xbf16>, vector<2x8x768xbf16>, vector<2x1x768xf32> -> vector<2x1x768xf32>
    "tpu.trace_stop"() : () -> ()
    %134 = vector.shape_cast %133 : vector<2x1x768xf32> to vector<2x768xf32>
    %c3_i32_93 = arith.constant 3 : i32
    %c3_i32_94 = arith.constant 3 : i32
    %c3_i32_95 = arith.constant 3 : i32
    %c0_i32_96 = arith.constant 0 : i32
    %c0_i32_97 = arith.constant 0 : i32
    %135 = tpu.memref_slice %arg6[%c3_i32_93, %c0_i32_96, %c0_i32_97] : memref<5x768x768xi8, #tpu.memory_space<any>> -> memref<1x768x768xi8, #tpu.memory_space<any>>
    %136 = tpu.memref_squeeze %135 : memref<1x768x768xi8, #tpu.memory_space<any>> -> memref<768x768xi8, #tpu.memory_space<any>>
    %c0_i32_98 = arith.constant 0 : i32
    %c0_i32_99 = arith.constant 0 : i32
    %137 = tpu.memref_slice %arg20[%c3_i32_94, %c0_i32_98, %c0_i32_99] : memref<5x768x768xi8, #tpu.memory_space<vmem>> -> memref<1x768x768xi8, #tpu.memory_space<vmem>>
    %138 = tpu.memref_squeeze %137 : memref<1x768x768xi8, #tpu.memory_space<vmem>> -> memref<768x768xi8, #tpu.memory_space<vmem>>
    %139 = tpu.memref_slice %arg21[%c3_i32_95] : memref<5x!tpu.dma_semaphore, #tpu.memory_space<semaphore_mem>> -> memref<1x!tpu.dma_semaphore, #tpu.memory_space<semaphore_mem>>
    %140 = tpu.memref_squeeze %139 : memref<1x!tpu.dma_semaphore, #tpu.memory_space<semaphore_mem>> -> memref<!tpu.dma_semaphore, #tpu.memory_space<semaphore_mem>>
    tpu.wait_dma2 semaphore(%140 : memref<!tpu.dma_semaphore, #tpu.memory_space<semaphore_mem>>) src(%136 : memref<768x768xi8, #tpu.memory_space<any>>) dst(%138 : memref<768x768xi8, #tpu.memory_space<vmem>>)
    %141 = arith.truncf %134 : vector<2x768xf32> to vector<2x768xbf16>
    %c3 = arith.constant 3 : index
    %c0_100 = arith.constant 0 : index
    %c0_101 = arith.constant 0 : index
    %142 = vector.load %arg20[%c3, %c0_100, %c0_101] : memref<5x768x768xi8, #tpu.memory_space<vmem>>, vector<1x768x768xi8>
    %143 = vector.shape_cast %142 : vector<1x768x768xi8> to vector<768x768xi8>
    %144 = arith.sitofp %143 : vector<768x768xi8> to vector<768x768xf32>
    %145 = arith.truncf %144 : vector<768x768xf32> to vector<768x768xbf16>
    %cst_102 = arith.constant dense<0.000000e+00> : vector<2x768xf32>
    %146 = tpu.matmul %141, %145, %cst_102 {dimension_numbers = #tpu.dot_dimension_numbers<[1], [0], [0], [1], [0, 0, 1, 1], [], []>} : vector<2x768xbf16>, vector<768x768xbf16>, vector<2x768xf32> -> vector<2x768xf32>
    %147 = vector.extract_strided_slice %30 {offsets = [3, 0], sizes = [1, 768], strides = [1, 1]} : vector<5x768xf32> to vector<1x768xf32>
    %148 = vector.broadcast %147 : vector<1x768xf32> to vector<2x768xf32>
    %149 = arith.mulf %146, %148 : vector<2x768xf32>
    %150 = vector.extract_strided_slice %31 {offsets = [3, 0], sizes = [1, 768], strides = [1, 1]} : vector<5x768xf32> to vector<1x768xf32>
    %151 = vector.broadcast %150 : vector<1x768xf32> to vector<2x768xf32>
    %152 = arith.addf %149, %151 : vector<2x768xf32>
    %153 = arith.extf %62 : vector<2x768xbf16> to vector<2x768xf32>
    %154 = arith.addf %152, %153 : vector<2x768xf32>
    %c4_i32_103 = arith.constant 4 : i32
    %c4_i32_104 = arith.constant 4 : i32
    %c4_i32_105 = arith.constant 4 : i32
    %c0_i32_106 = arith.constant 0 : i32
    %c0_i32_107 = arith.constant 0 : i32
    %155 = tpu.memref_slice %arg6[%c4_i32_103, %c0_i32_106, %c0_i32_107] : memref<5x768x768xi8, #tpu.memory_space<any>> -> memref<1x768x768xi8, #tpu.memory_space<any>>
    %156 = tpu.memref_squeeze %155 : memref<1x768x768xi8, #tpu.memory_space<any>> -> memref<768x768xi8, #tpu.memory_space<any>>
    %c0_i32_108 = arith.constant 0 : i32
    %c0_i32_109 = arith.constant 0 : i32
    %157 = tpu.memref_slice %arg20[%c4_i32_104, %c0_i32_108, %c0_i32_109] : memref<5x768x768xi8, #tpu.memory_space<vmem>> -> memref<1x768x768xi8, #tpu.memory_space<vmem>>
    %158 = tpu.memref_squeeze %157 : memref<1x768x768xi8, #tpu.memory_space<vmem>> -> memref<768x768xi8, #tpu.memory_space<vmem>>
    %159 = tpu.memref_slice %arg21[%c4_i32_105] : memref<5x!tpu.dma_semaphore, #tpu.memory_space<semaphore_mem>> -> memref<1x!tpu.dma_semaphore, #tpu.memory_space<semaphore_mem>>
    %160 = tpu.memref_squeeze %159 : memref<1x!tpu.dma_semaphore, #tpu.memory_space<semaphore_mem>> -> memref<!tpu.dma_semaphore, #tpu.memory_space<semaphore_mem>>
    tpu.wait_dma2 semaphore(%160 : memref<!tpu.dma_semaphore, #tpu.memory_space<semaphore_mem>>) src(%156 : memref<768x768xi8, #tpu.memory_space<any>>) dst(%158 : memref<768x768xi8, #tpu.memory_space<vmem>>)
    %161 = arith.truncf %154 : vector<2x768xf32> to vector<2x768xbf16>
    %c4 = arith.constant 4 : index
    %c0_110 = arith.constant 0 : index
    %c0_111 = arith.constant 0 : index
    %162 = vector.load %arg20[%c4, %c0_110, %c0_111] : memref<5x768x768xi8, #tpu.memory_space<vmem>>, vector<1x768x768xi8>
    %163 = vector.shape_cast %162 : vector<1x768x768xi8> to vector<768x768xi8>
    %164 = arith.sitofp %163 : vector<768x768xi8> to vector<768x768xf32>
    %165 = arith.truncf %164 : vector<768x768xf32> to vector<768x768xbf16>
    %cst_112 = arith.constant dense<0.000000e+00> : vector<2x768xf32>
    %166 = tpu.matmul %161, %165, %cst_112 {dimension_numbers = #tpu.dot_dimension_numbers<[1], [0], [0], [1], [0, 0, 1, 1], [], []>} : vector<2x768xbf16>, vector<768x768xbf16>, vector<2x768xf32> -> vector<2x768xf32>
    %167 = vector.extract_strided_slice %30 {offsets = [4, 0], sizes = [1, 768], strides = [1, 1]} : vector<5x768xf32> to vector<1x768xf32>
    %168 = vector.broadcast %167 : vector<1x768xf32> to vector<2x768xf32>
    %169 = arith.mulf %166, %168 : vector<2x768xf32>
    %170 = vector.extract_strided_slice %31 {offsets = [4, 0], sizes = [1, 768], strides = [1, 1]} : vector<5x768xf32> to vector<1x768xf32>
    %171 = vector.broadcast %170 : vector<1x768xf32> to vector<2x768xf32>
    %172 = arith.addf %169, %171 : vector<2x768xf32>
    %173 = math.tanh %172 : vector<2x768xf32>
    %174 = arith.truncf %173 : vector<2x768xf32> to vector<2x768xbf16>
    %c0_113 = arith.constant 0 : index
    %c0_114 = arith.constant 0 : index
    %175 = vector.load %arg9[%c0_113, %c0_114] : memref<768x128xbf16, #tpu.memory_space<vmem>>, vector<768x128xbf16>
    %cst_115 = arith.constant dense<0.000000e+00> : vector<2x128xf32>
    %176 = tpu.matmul %174, %175, %cst_115 {dimension_numbers = #tpu.dot_dimension_numbers<[1], [0], [0], [1], [0, 0, 1, 1], [], []>} : vector<2x768xbf16>, vector<768x128xbf16>, vector<2x128xf32> -> vector<2x128xf32>
    %c0_116 = arith.constant 0 : index
    %c0_117 = arith.constant 0 : index
    %177 = vector.load %arg10[%c0_116, %c0_117] : memref<1x128xf32, #tpu.memory_space<vmem>>, vector<1x128xf32>
    %178 = vector.broadcast %177 : vector<1x128xf32> to vector<2x128xf32>
    %179 = arith.addf %176, %178 : vector<2x128xf32>
    %180 = math.tanh %179 : vector<2x128xf32>
    %181 = arith.truncf %180 : vector<2x128xf32> to vector<2x128xbf16>
    %c0_118 = arith.constant 0 : index
    %c0_119 = arith.constant 0 : index
    %182 = vector.load %arg11[%c0_118, %c0_119] : memref<128x128xbf16, #tpu.memory_space<vmem>>, vector<128x128xbf16>
    %cst_120 = arith.constant dense<0.000000e+00> : vector<2x128xf32>
    %183 = tpu.matmul %181, %182, %cst_120 {dimension_numbers = #tpu.dot_dimension_numbers<[1], [0], [0], [1], [0, 0, 1, 1], [], []>} : vector<2x128xbf16>, vector<128x128xbf16>, vector<2x128xf32> -> vector<2x128xf32>
    %c0_121 = arith.constant 0 : index
    %c0_122 = arith.constant 0 : index
    %184 = vector.load %arg12[%c0_121, %c0_122] : memref<1x128xf32, #tpu.memory_space<vmem>>, vector<1x128xf32>
    %185 = vector.broadcast %184 : vector<1x128xf32> to vector<2x128xf32>
    %186 = arith.addf %183, %185 : vector<2x128xf32>
    %cst_123 = arith.constant 0.000000e+00 : f32
    %187 = vector.broadcast %cst_123 : f32 to vector<2x128xf32>
    %188 = arith.maximumf %186, %187 : vector<2x128xf32>
    %189 = arith.truncf %188 : vector<2x128xf32> to vector<2x128xbf16>
    %c0_124 = arith.constant 0 : index
    %c0_125 = arith.constant 0 : index
    %190 = vector.load %arg13[%c0_124, %c0_125] : memref<128x128xbf16, #tpu.memory_space<vmem>>, vector<128x128xbf16>
    %cst_126 = arith.constant dense<0.000000e+00> : vector<2x128xf32>
    %191 = tpu.matmul %189, %190, %cst_126 {dimension_numbers = #tpu.dot_dimension_numbers<[1], [0], [0], [1], [0, 0, 1, 1], [], []>} : vector<2x128xbf16>, vector<128x128xbf16>, vector<2x128xf32> -> vector<2x128xf32>
    %c0_127 = arith.constant 0 : index
    %c0_128 = arith.constant 0 : index
    %192 = vector.load %arg14[%c0_127, %c0_128] : memref<1x128xf32, #tpu.memory_space<vmem>>, vector<1x128xf32>
    %193 = vector.broadcast %192 : vector<1x128xf32> to vector<2x128xf32>
    %194 = arith.addf %191, %193 : vector<2x128xf32>
    %195 = vector.shape_cast %181 : vector<2x128xbf16> to vector<2x1x128xbf16>
    "tpu.trace_start"() <{level = 10 : i32, message = "bqd,bkd->bqk"}> : () -> ()
    %cst_129 = arith.constant dense<0.000000e+00> : vector<2x1x24xf32>
    %196 = tpu.matmul %195, %61, %cst_129 {dimension_numbers = #tpu.dot_dimension_numbers<[2], [2], [1], [1], [0, 0, 0, 1, 1, 1], [0], [0]>} : vector<2x1x128xbf16>, vector<2x24x128xbf16>, vector<2x1x24xf32> -> vector<2x1x24xf32>
    "tpu.trace_stop"() : () -> ()
    %197 = vector.shape_cast %196 : vector<2x1x24xf32> to vector<2x24xf32>
    %198 = tpu.iota {dimensions = array<i32: 1>} : vector<2x24xi32>
    %c20_i32 = arith.constant 20 : i32
    %199 = vector.broadcast %c20_i32 : i32 to vector<2x24xi32>
    %200 = arith.cmpi slt, %198, %199 : vector<2x24xi32>
    %cst_130 = arith.constant -1.000000e+30 : f32
    %201 = vector.broadcast %cst_130 : f32 to vector<2x24xf32>
    %202 = arith.select %200, %197, %201 : vector<2x24xi1>, vector<2x24xf32>
    %cst_131 = arith.constant dense<0xFF800000> : vector<2xf32>
    %203 = vector.multi_reduction <maximumf>, %202, %cst_131 [1] : vector<2x24xf32> to vector<2xf32>
    %204 = vector.shape_cast %203 : vector<2xf32> to vector<2x1xf32>
    %205 = vector.broadcast %204 : vector<2x1xf32> to vector<2x24xf32>
    %206 = arith.subf %202, %205 : vector<2x24xf32>
    %207 = math.exp %206 : vector<2x24xf32>
    %cst_132 = arith.constant dense<0.000000e+00> : vector<2xf32>
    %208 = vector.multi_reduction <add>, %207, %cst_132 [1] : vector<2x24xf32> to vector<2xf32>
    %209 = vector.shape_cast %208 : vector<2xf32> to vector<2x1xf32>
    %210 = math.log %209 : vector<2x1xf32>
    %211 = vector.broadcast %210 : vector<2x1xf32> to vector<2x24xf32>
    %212 = arith.subf %206, %211 : vector<2x24xf32>
    %c0_133 = arith.constant 0 : index
    %c0_134 = arith.constant 0 : index
    %213 = vector.load %arg19[%c0_133, %c0_134] : memref<2x256xf32, #tpu.memory_space<vmem>>, vector<2x128xf32>
    tpu.vector_store %arg19[%c0_133, %c0_134], %194 {strides = array<i32>} : memref<2x256xf32, #tpu.memory_space<vmem>>, vector<2x128xf32>,
    %c0_135 = arith.constant 0 : index
    %c128 = arith.constant 128 : index
    %214 = vector.load %arg19[%c0_135, %c128] : memref<2x256xf32, #tpu.memory_space<vmem>>, vector<2x24xf32>
    tpu.vector_store %arg19[%c0_135, %c128], %212 {strides = array<i32>} : memref<2x256xf32, #tpu.memory_space<vmem>>, vector<2x24xf32>,
    return
  }
}

</mosaic_0001>

<llo_original>
// kernel: lxmert_ensemble_guesser_only.1
$region0: #{lxmert_ensemble_guesser_only.1}
  #allocation0 [shape = 'u32[]', space=smem, size = 0x4, offset = 0x4, fixed_abs, tag = 'smem constant byte address 0x4 - core index']
  #allocation1 [shape = 'u32[144,128]{1,0:T(1,128)}', space=vmem, size = 0x12000, scoped, tag = 'internal scratch']
  #allocation2 [shape = 's8[5,768,768]{2,1,0:T(32,128)(4,1)}', space=vmem, size = 0x2d0000, scoped, tag = 'scratch operand']
  #allocation3 [shape = 's32[5]{0}', space=sflag, size = 0x14, scoped, tag = 'scratch operand']
  #allocation27 [shape = 's32[]', space=sflag, size = 0x4, offset = 0, fixed_abs, tag = 'sflag constant byte address 0x0 - dummy sync flag']
  #allocation28 [shape = 's32[]', space=sflag, size = 0x4, offset = 0, fixed_abs, tag = 'sflag constant byte address 0x0 - dummy sync flag']
  #allocation29 [shape = 'u32[]', space=smem, size = 0x4, offset = 0x44, fixed_abs, tag = 'smem constant byte address 0x44 - assertion arg 0']
  #allocation30 [shape = 'u32[]', space=smem, size = 0x4, offset = 0x48, fixed_abs, tag = 'smem constant byte address 0x48 - assertion arg 1']
  #allocation31 [shape = 's32[]', space=sflag, size = 0x4, offset = 0, fixed_abs, tag = 'sflag constant byte address 0x0 - dummy sync flag']
  #allocation32 [shape = 's32[]', space=sflag, size = 0x4, offset = 0, fixed_abs, tag = 'sflag constant byte address 0x0 - dummy sync flag']
  #allocation33 [shape = 's32[]', space=sflag, size = 0x4, offset = 0, fixed_abs, tag = 'sflag constant byte address 0x0 - dummy sync flag']
  #allocation34 [shape = 's32[]', space=sflag, size = 0x4, offset = 0, fixed_abs, tag = 'sflag constant byte address 0x0 - dummy sync flag']
  #allocation35 [shape = 's32[]', space=sflag, size = 0x4, offset = 0, fixed_abs, tag = 'sflag constant byte address 0x0 - dummy sync flag']
  #allocation36 [shape = 's32[]', space=sflag, size = 0x4, offset = 0, fixed_abs, tag = 'sflag constant byte address 0x0 - dummy sync flag']
  #allocation37 [shape = 's32[]', space=sflag, size = 0x4, offset = 0, fixed_abs, tag = 'sflag constant byte address 0x0 - dummy sync flag']
  #allocation38 [shape = 's32[]', space=sflag, size = 0x4, offset = 0, fixed_abs, tag = 'sflag constant byte address 0x0 - dummy sync flag']
  %s0 = inlined_call_operand.vmem [shape: bf16[2,768], index: 0, kind: input, shape index: {}]
  %s1 = inlined_call_operand.vmem [shape: bf16[16,2176], index: 1, kind: input, shape index: {}]
  %s2 = inlined_call_operand.vmem [shape: bf16[48,384], index: 2, kind: input, shape index: {}]
  %s3 = inlined_call_operand.hbm [shape: s8[2176,768], index: 3, kind: input, shape index: {}]
  %s4 = inlined_call_operand.hbm [shape: f32[1,768], index: 4, kind: input, shape index: {}]
  %s5 = inlined_call_operand.hbm [shape: f32[1,768], index: 5, kind: input, shape index: {}]
  %s6 = inlined_call_operand.hbm [shape: s8[5,768,768], index: 6, kind: input, shape index: {}]
  %s7 = inlined_call_operand.hbm [shape: f32[5,768], index: 7, kind: input, shape index: {}]
  %s8 = inlined_call_operand.hbm [shape: f32[5,768], index: 8, kind: input, shape index: {}]
  %s9 = inlined_call_operand.hbm [shape: bf16[768,128], index: 9, kind: input, shape index: {}]
  %s10 = inlined_call_operand.hbm [shape: f32[1,128], index: 10, kind: input, shape index: {}]
  %s11 = inlined_call_operand.hbm [shape: bf16[128,128], index: 11, kind: input, shape index: {}]
  %s12 = inlined_call_operand.hbm [shape: f32[1,128], index: 12, kind: input, shape index: {}]
  %s13 = inlined_call_operand.hbm [shape: bf16[128,128], index: 13, kind: input, shape index: {}]
  %s14 = inlined_call_operand.hbm [shape: f32[1,128], index: 14, kind: input, shape index: {}]
  %s15 = inlined_call_operand.hbm [shape: bf16[384,128], index: 15, kind: input, shape index: {}]
  %s16 = inlined_call_operand.hbm [shape: f32[1,128], index: 16, kind: input, shape index: {}]
  %s17 = inlined_call_operand.hbm [shape: bf16[128,128], index: 17, kind: input, shape index: {}]
  %s18 = inlined_call_operand.hbm [shape: f32[1,128], index: 18, kind: input, shape index: {}]
  %s19 = inlined_call_operand.vmem [shape: f32[2,256], index: 19, kind: output, shape index: {}]
  %s20 = sld [smem:[#allocation0]]
  $region162: #{lxmert_ensemble_guesser_only.1} parent=0
    _
  %s22 = ssub.s32 1, %s20
  %s23 = scalar_select 0, %s22, %s20
  $region1: #{lxmert_ensemble_guesser_only.1} parent=0
    #allocation4 [shape = 'u8[1671168]{0}', space=vmem, size = 0x198000, scoped, tag = 'input window, operand 3, single buffered']
    #allocation5 [shape = 's32[1]{0}', space=sflag, size = 0x4, scoped, tag = 'scoped memory for lxmert_ensemble_guesser_only.1']
    #allocation6 [shape = 'u8[3072]{0}', space=vmem, size = 0xc00, scoped, tag = 'input window, operand 4, single buffered']
    #allocation7 [shape = 's32[1]{0}', space=sflag, size = 0x4, scoped, tag = 'scoped memory for lxmert_ensemble_guesser_only.1']
    #allocation8 [shape = 'u8[3072]{0}', space=vmem, size = 0xc00, scoped, tag = 'input window, operand 5, single buffered']
    #allocation9 [shape = 'u8[24576]{0}', space=vmem, size = 0x6000, scoped, tag = 'input window, operand 7, single buffered']
    #allocation10 [shape = 's32[1]{0}', space=sflag, size = 0x4, scoped, tag = 'scoped memory for lxmert_ensemble_guesser_only.1']
    #allocation11 [shape = 'u8[24576]{0}', space=vmem, size = 0x6000, scoped, tag = 'input window, operand 8, single buffered']
    #allocation12 [shape = 'u8[196608]{0}', space=vmem, size = 0x30000, scoped, tag = 'input window, operand 9, single buffered']
    #allocation13 [shape = 's32[1]{0}', space=sflag, size = 0x4, scoped, tag = 'scoped memory for lxmert_ensemble_guesser_only.1']
    #allocation14 [shape = 'u8[512]{0}', space=vmem, size = 0x400, scoped, tag = 'input window, operand 10, single buffered']
    #allocation15 [shape = 'u8[32768]{0}', space=vmem, size = 0x8000, scoped, tag = 'input window, operand 11, single buffered']
    #allocation16 [shape = 's32[1]{0}', space=sflag, size = 0x4, scoped, tag = 'scoped memory for lxmert_ensemble_guesser_only.1']
    #allocation17 [shape = 'u8[512]{0}', space=vmem, size = 0x400, scoped, tag = 'input window, operand 12, single buffered']
    #allocation18 [shape = 'u8[32768]{0}', space=vmem, size = 0x8000, scoped, tag = 'input window, operand 13, single buffered']
    #allocation19 [shape = 's32[1]{0}', space=sflag, size = 0x4, scoped, tag = 'scoped memory for lxmert_ensemble_guesser_only.1']
    #allocation20 [shape = 'u8[512]{0}', space=vmem, size = 0x400, scoped, tag = 'input window, operand 14, single buffered']
    #allocation21 [shape = 'u8[98304]{0}', space=vmem, size = 0x18000, scoped, tag = 'input window, operand 15, single buffered']
    #allocation22 [shape = 's32[1]{0}', space=sflag, size = 0x4, scoped, tag = 'scoped memory for lxmert_ensemble_guesser_only.1']
    #allocation23 [shape = 'u8[512]{0}', space=vmem, size = 0x400, scoped, tag = 'input window, operand 16, single buffered']
    #allocation24 [shape = 'u8[32768]{0}', space=vmem, size = 0x8000, scoped, tag = 'input window, operand 17, single buffered']
    #allocation25 [shape = 's32[1]{0}', space=sflag, size = 0x4, scoped, tag = 'scoped memory for lxmert_ensemble_guesser_only.1']
    #allocation26 [shape = 'u8[512]{0}', space=vmem, size = 0x400, scoped, tag = 'input window, operand 18, single buffered']
    %24 = vsyncpa [#allocation5], 0
    %25 = vsyncpa [#allocation7], 0
    %26 = vsyncpa [#allocation10], 0
    %27 = vsyncpa [#allocation13], 0
    %28 = vsyncpa [#allocation16], 0
    %29 = vsyncpa [#allocation19], 0
    %30 = vsyncpa [#allocation22], 0
    %31 = vsyncpa [#allocation25], 0
    // Predicated region
    $region2: #{lxmert_ensemble_guesser_only.1} parent=1 // pred_check
      _
    $region3: #{lxmert_ensemble_guesser_only.1} parent=1 // pred_check_branch
      %33 = sbr.rel (0) target = $region5
    $region4: #{lxmert_ensemble_guesser_only.1} parent=1 // pred_region
      _
    $region5: #{lxmert_ensemble_guesser_only.1} parent=1 // pred_fallthru
      _
    // Predicated region
    $region6: #{lxmert_ensemble_guesser_only.1} parent=1 // pred_check
      _
    $region7: #{lxmert_ensemble_guesser_only.1} parent=1 // pred_check_branch
      %35 = sbr.rel (0) target = $region9
    $region8: #{lxmert_ensemble_guesser_only.1} parent=1 // pred_region
      _
    $region9: #{lxmert_ensemble_guesser_only.1} parent=1 // pred_fallthru
      _
    // Predicated region
    $region10: #{lxmert_ensemble_guesser_only.1} parent=1 // pred_check
      _
    $region11: #{lxmert_ensemble_guesser_only.1} parent=1 // pred_check_branch
      %37 = sbr.rel (0) target = $region13
    $region12: #{lxmert_ensemble_guesser_only.1} parent=1 // pred_region
      _
    $region13: #{lxmert_ensemble_guesser_only.1} parent=1 // pred_fallthru
      _
    // Predicated region
    $region14: #{lxmert_ensemble_guesser_only.1} parent=1 // pred_check
      _
    $region15: #{lxmert_ensemble_guesser_only.1} parent=1 // pred_check_branch
      %39 = sbr.rel (0) target = $region17
    $region16: #{lxmert_ensemble_guesser_only.1} parent=1 // pred_region
      %s41 = ssub.s32 52224, 52224
      %42 = vsyncadd [#allocation5], %s41
      %s43 = sshll.u32 [#allocation4], 4
      %s44 = int_to_ptr.vmem [resolvable:$true] %s43
      %49 = dma.hbm_to_vmem [thread:$0]  %s3, 52224, %s44, [#allocation5], 768, 768, 48
    $region17: #{lxmert_ensemble_guesser_only.1} parent=1 // pred_fallthru
      _
    // Predicated region
    $region18: #{lxmert_ensemble_guesser_only.1} parent=1 // pred_check
      _
    $region19: #{lxmert_ensemble_guesser_only.1} parent=1 // pred_check_branch
      %51 = sbr.rel (0) target = $region21
    $region20: #{lxmert_ensemble_guesser_only.1} parent=1 // pred_region
      %s53 = ssub.s32 96, 96
      %54 = vsyncadd [#allocation7], %s53
      %s56 = sshll.u32 [#allocation6], 4
      %s57 = int_to_ptr.vmem [resolvable:$true] %s56
      %59 = dma.hbm_to_vmem [thread:$0]  %s4, 96, %s57, [#allocation7]
    $region21: #{lxmert_ensemble_guesser_only.1} parent=1 // pred_fallthru
      _
    // Predicated region
    $region22: #{lxmert_ensemble_guesser_only.1} parent=1 // pred_check
      _
    $region23: #{lxmert_ensemble_guesser_only.1} parent=1 // pred_check_branch
      %61 = sbr.rel (0) target = $region25
    $region24: #{lxmert_ensemble_guesser_only.1} parent=1 // pred_region
      %s63 = ssub.s32 96, 96
      %64 = vsyncadd [#allocation7], %s63
      %s66 = sshll.u32 [#allocation8], 4
      %s67 = int_to_ptr.vmem [resolvable:$true] %s66
      %69 = dma.hbm_to_vmem [thread:$0]  %s5, 96, %s67, [#allocation7]
    $region25: #{lxmert_ensemble_guesser_only.1} parent=1 // pred_fallthru
      _
    // Predicated region
    $region26: #{lxmert_ensemble_guesser_only.1} parent=1 // pred_check
      _
    $region27: #{lxmert_ensemble_guesser_only.1} parent=1 // pred_check_branch
      %71 = sbr.rel (0) target = $region29
    $region28: #{lxmert_ensemble_guesser_only.1} parent=1 // pred_region
      %s73 = ssub.s32 768, 768
      %74 = vsyncadd [#allocation10], %s73
      %s76 = sshll.u32 [#allocation9], 4
      %s77 = int_to_ptr.vmem [resolvable:$true] %s76
      %79 = dma.hbm_to_vmem [thread:$0]  %s7, 768, %s77, [#allocation10]
    $region29: #{lxmert_ensemble_guesser_only.1} parent=1 // pred_fallthru
      _
    // Predicated region
    $region30: #{lxmert_ensemble_guesser_only.1} parent=1 // pred_check
      _
    $region31: #{lxmert_ensemble_guesser_only.1} parent=1 // pred_check_branch
      %81 = sbr.rel (0) target = $region33
    $region32: #{lxmert_ensemble_guesser_only.1} parent=1 // pred_region
      %s83 = ssub.s32 768, 768
      %84 = vsyncadd [#allocation10], %s83
      %s86 = sshll.u32 [#allocation11], 4
      %s87 = int_to_ptr.vmem [resolvable:$true] %s86
      %89 = dma.hbm_to_vmem [thread:$0]  %s8, 768, %s87, [#allocation10]
    $region33: #{lxmert_ensemble_guesser_only.1} parent=1 // pred_fallthru
      _
    // Predicated region
    $region34: #{lxmert_ensemble_guesser_only.1} parent=1 // pred_check
      _
    $region35: #{lxmert_ensemble_guesser_only.1} parent=1 // pred_check_branch
      %91 = sbr.rel (0) target = $region37
    $region36: #{lxmert_ensemble_guesser_only.1} parent=1 // pred_region
      %s93 = ssub.s32 6144, 6144
      %94 = vsyncadd [#allocation13], %s93
      %s95 = sshll.u32 [#allocation12], 4
      %s96 = int_to_ptr.vmem [resolvable:$true] %s95
      %101 = dma.hbm_to_vmem [thread:$0]  %s9, 6144, %s96, [#allocation13], 64, 64, 4
    $region37: #{lxmert_ensemble_guesser_only.1} parent=1 // pred_fallthru
      _
    // Predicated region
    $region38: #{lxmert_ensemble_guesser_only.1} parent=1 // pred_check
      _
    $region39: #{lxmert_ensemble_guesser_only.1} parent=1 // pred_check_branch
      %103 = sbr.rel (0) target = $region41
    $region40: #{lxmert_ensemble_guesser_only.1} parent=1 // pred_region
      %s105 = ssub.s32 16, 16
      %106 = vsyncadd [#allocation13], %s105
      %s108 = sshll.u32 [#allocation14], 4
      %s109 = int_to_ptr.vmem [resolvable:$true] %s108
      %111 = dma.hbm_to_vmem [thread:$0]  %s10, 16, %s109, [#allocation13]
    $region41: #{lxmert_ensemble_guesser_only.1} parent=1 // pred_fallthru
      _
    // Predicated region
    $region42: #{lxmert_ensemble_guesser_only.1} parent=1 // pred_check
      _
    $region43: #{lxmert_ensemble_guesser_only.1} parent=1 // pred_check_branch
      %113 = sbr.rel (0) target = $region45
    $region44: #{lxmert_ensemble_guesser_only.1} parent=1 // pred_region
      %s115 = ssub.s32 1024, 1024
      %116 = vsyncadd [#allocation16], %s115
      %s117 = sshll.u32 [#allocation15], 4
      %s118 = int_to_ptr.vmem [resolvable:$true] %s117
      %123 = dma.hbm_to_vmem [thread:$0]  %s11, 1024, %s118, [#allocation16], 64, 64, 4
    $region45: #{lxmert_ensemble_guesser_only.1} parent=1 // pred_fallthru
      _
    // Predicated region
    $region46: #{lxmert_ensemble_guesser_only.1} parent=1 // pred_check
      _
    $region47: #{lxmert_ensemble_guesser_only.1} parent=1 // pred_check_branch
      %125 = sbr.rel (0) target = $region49
    $region48: #{lxmert_ensemble_guesser_only.1} parent=1 // pred_region
      %s127 = ssub.s32 16, 16
      %128 = vsyncadd [#allocation16], %s127
      %s130 = sshll.u32 [#allocation17], 4
      %s131 = int_to_ptr.vmem [resolvable:$true] %s130
      %133 = dma.hbm_to_vmem [thread:$0]  %s12, 16, %s131, [#allocation16]
    $region49: #{lxmert_ensemble_guesser_only.1} parent=1 // pred_fallthru
      _
    // Predicated region
    $region50: #{lxmert_ensemble_guesser_only.1} parent=1 // pred_check
      _
    $region51: #{lxmert_ensemble_guesser_only.1} parent=1 // pred_check_branch
      %135 = sbr.rel (0) target = $region53
    $region52: #{lxmert_ensemble_guesser_only.1} parent=1 // pred_region
      %s137 = ssub.s32 1024, 1024
      %138 = vsyncadd [#allocation19], %s137
      %s139 = sshll.u32 [#allocation18], 4
      %s140 = int_to_ptr.vmem [resolvable:$true] %s139
      %145 = dma.hbm_to_vmem [thread:$0]  %s13, 1024, %s140, [#allocation19], 64, 64, 4
    $region53: #{lxmert_ensemble_guesser_only.1} parent=1 // pred_fallthru
      _
    // Predicated region
    $region54: #{lxmert_ensemble_guesser_only.1} parent=1 // pred_check
      _
    $region55: #{lxmert_ensemble_guesser_only.1} parent=1 // pred_check_branch
      %147 = sbr.rel (0) target = $region57
    $region56: #{lxmert_ensemble_guesser_only.1} parent=1 // pred_region
      %s149 = ssub.s32 16, 16
      %150 = vsyncadd [#allocation19], %s149
      %s152 = sshll.u32 [#allocation20], 4
      %s153 = int_to_ptr.vmem [resolvable:$true] %s152
      %155 = dma.hbm_to_vmem [thread:$0]  %s14, 16, %s153, [#allocation19]
    $region57: #{lxmert_ensemble_guesser_only.1} parent=1 // pred_fallthru
      _
    // Predicated region
    $region58: #{lxmert_ensemble_guesser_only.1} parent=1 // pred_check
      _
    $region59: #{lxmert_ensemble_guesser_only.1} parent=1 // pred_check_branch
      %157 = sbr.rel (0) target = $region61
    $region60: #{lxmert_ensemble_guesser_only.1} parent=1 // pred_region
      %s159 = ssub.s32 3072, 3072
      %160 = vsyncadd [#allocation22], %s159
      %s161 = sshll.u32 [#allocation21], 4
      %s162 = int_to_ptr.vmem [resolvable:$true] %s161
      %167 = dma.hbm_to_vmem [thread:$0]  %s15, 3072, %s162, [#allocation22], 64, 64, 4
    $region61: #{lxmert_ensemble_guesser_only.1} parent=1 // pred_fallthru
      _
    // Predicated region
    $region62: #{lxmert_ensemble_guesser_only.1} parent=1 // pred_check
      _
    $region63: #{lxmert_ensemble_guesser_only.1} parent=1 // pred_check_branch
      %169 = sbr.rel (0) target = $region65
    $region64: #{lxmert_ensemble_guesser_only.1} parent=1 // pred_region
      %s171 = ssub.s32 16, 16
      %172 = vsyncadd [#allocation22], %s171
      %s174 = sshll.u32 [#allocation23], 4
      %s175 = int_to_ptr.vmem [resolvable:$true] %s174
      %177 = dma.hbm_to_vmem [thread:$0]  %s16, 16, %s175, [#allocation22]
    $region65: #{lxmert_ensemble_guesser_only.1} parent=1 // pred_fallthru
      _
    // Predicated region
    $region66: #{lxmert_ensemble_guesser_only.1} parent=1 // pred_check
      _
    $region67: #{lxmert_ensemble_guesser_only.1} parent=1 // pred_check_branch
      %179 = sbr.rel (0) target = $region69
    $region68: #{lxmert_ensemble_guesser_only.1} parent=1 // pred_region
      %s181 = ssub.s32 1024, 1024
      %182 = vsyncadd [#allocation25], %s181
      %s183 = sshll.u32 [#allocation24], 4
      %s184 = int_to_ptr.vmem [resolvable:$true] %s183
      %189 = dma.hbm_to_vmem [thread:$0]  %s17, 1024, %s184, [#allocation25], 64, 64, 4
    $region69: #{lxmert_ensemble_guesser_only.1} parent=1 // pred_fallthru
      _
    // Predicated region
    $region70: #{lxmert_ensemble_guesser_only.1} parent=1 // pred_check
      _
    $region71: #{lxmert_ensemble_guesser_only.1} parent=1 // pred_check_branch
      %191 = sbr.rel (0) target = $region73
    $region72: #{lxmert_ensemble_guesser_only.1} parent=1 // pred_region
      %s193 = ssub.s32 16, 16
      %194 = vsyncadd [#allocation25], %s193
      %s196 = sshll.u32 [#allocation26], 4
      %s197 = int_to_ptr.vmem [resolvable:$true] %s196
      %199 = dma.hbm_to_vmem [thread:$0]  %s18, 16, %s197, [#allocation25]
    $region73: #{lxmert_ensemble_guesser_only.1} parent=1 // pred_fallthru
      _
    // Predicated region
    $region74: #{lxmert_ensemble_guesser_only.1} parent=1 // pred_check
      _
    $region75: #{lxmert_ensemble_guesser_only.1} parent=1 // pred_check_branch
      %201 = sbr.rel (0) target = $region77
    $region76: #{lxmert_ensemble_guesser_only.1} parent=1 // pred_region
      %202 = dma.done [#allocation5], 52224
    $region77: #{lxmert_ensemble_guesser_only.1} parent=1 // pred_fallthru
      _
    // Predicated region
    $region78: #{lxmert_ensemble_guesser_only.1} parent=1 // pred_check
      _
    $region79: #{lxmert_ensemble_guesser_only.1} parent=1 // pred_check_branch
      %204 = sbr.rel (0) target = $region81
    $region80: #{lxmert_ensemble_guesser_only.1} parent=1 // pred_region
      %205 = dma.done [#allocation7], 96
    $region81: #{lxmert_ensemble_guesser_only.1} parent=1 // pred_fallthru
      _
    // Predicated region
    $region82: #{lxmert_ensemble_guesser_only.1} parent=1 // pred_check
      _
    $region83: #{lxmert_ensemble_guesser_only.1} parent=1 // pred_check_branch
      %207 = sbr.rel (0) target = $region85
    $region84: #{lxmert_ensemble_guesser_only.1} parent=1 // pred_region
      %208 = dma.done [#allocation7], 96
    $region85: #{lxmert_ensemble_guesser_only.1} parent=1 // pred_fallthru
      _
    // Predicated region
    $region86: #{lxmert_ensemble_guesser_only.1} parent=1 // pred_check
      _
    $region87: #{lxmert_ensemble_guesser_only.1} parent=1 // pred_check_branch
      %210 = sbr.rel (0) target = $region89
    $region88: #{lxmert_ensemble_guesser_only.1} parent=1 // pred_region
      %211 = dma.done [#allocation10], 768
    $region89: #{lxmert_ensemble_guesser_only.1} parent=1 // pred_fallthru
      _
    // Predicated region
    $region90: #{lxmert_ensemble_guesser_only.1} parent=1 // pred_check
      _
    $region91: #{lxmert_ensemble_guesser_only.1} parent=1 // pred_check_branch
      %213 = sbr.rel (0) target = $region93
    $region92: #{lxmert_ensemble_guesser_only.1} parent=1 // pred_region
      %214 = dma.done [#allocation10], 768
    $region93: #{lxmert_ensemble_guesser_only.1} parent=1 // pred_fallthru
      _
    // Predicated region
    $region94: #{lxmert_ensemble_guesser_only.1} parent=1 // pred_check
      _
    $region95: #{lxmert_ensemble_guesser_only.1} parent=1 // pred_check_branch
      %216 = sbr.rel (0) target = $region97
    $region96: #{lxmert_ensemble_guesser_only.1} parent=1 // pred_region
      %217 = dma.done [#allocation13], 6144
    $region97: #{lxmert_ensemble_guesser_only.1} parent=1 // pred_fallthru
      _
    // Predicated region
    $region98: #{lxmert_ensemble_guesser_only.1} parent=1 // pred_check
      _
    $region99: #{lxmert_ensemble_guesser_only.1} parent=1 // pred_check_branch
      %219 = sbr.rel (0) target = $region101
    $region100: #{lxmert_ensemble_guesser_only.1} parent=1 // pred_region
      %220 = dma.done [#allocation13], 16
    $region101: #{lxmert_ensemble_guesser_only.1} parent=1 // pred_fallthru
      _
    // Predicated region
    $region102: #{lxmert_ensemble_guesser_only.1} parent=1 // pred_check
      _
    $region103: #{lxmert_ensemble_guesser_only.1} parent=1 // pred_check_branch
      %222 = sbr.rel (0) target = $region105
    $region104: #{lxmert_ensemble_guesser_only.1} parent=1 // pred_region
      %223 = dma.done [#allocation16], 1024
    $region105: #{lxmert_ensemble_guesser_only.1} parent=1 // pred_fallthru
      _
    // Predicated region
    $region106: #{lxmert_ensemble_guesser_only.1} parent=1 // pred_check
      _
    $region107: #{lxmert_ensemble_guesser_only.1} parent=1 // pred_check_branch
      %225 = sbr.rel (0) target = $region109
    $region108: #{lxmert_ensemble_guesser_only.1} parent=1 // pred_region
      %226 = dma.done [#allocation16], 16
    $region109: #{lxmert_ensemble_guesser_only.1} parent=1 // pred_fallthru
      _
    // Predicated region
    $region110: #{lxmert_ensemble_guesser_only.1} parent=1 // pred_check
      _
    $region111: #{lxmert_ensemble_guesser_only.1} parent=1 // pred_check_branch
      %228 = sbr.rel (0) target = $region113
    $region112: #{lxmert_ensemble_guesser_only.1} parent=1 // pred_region
      %229 = dma.done [#allocation19], 1024
    $region113: #{lxmert_ensemble_guesser_only.1} parent=1 // pred_fallthru
      _
    // Predicated region
    $region114: #{lxmert_ensemble_guesser_only.1} parent=1 // pred_check
      _
    $region115: #{lxmert_ensemble_guesser_only.1} parent=1 // pred_check_branch
      %231 = sbr.rel (0) target = $region117
    $region116: #{lxmert_ensemble_guesser_only.1} parent=1 // pred_region
      %232 = dma.done [#allocation19], 16
    $region117: #{lxmert_ensemble_guesser_only.1} parent=1 // pred_fallthru
      _
    // Predicated region
    $region118: #{lxmert_ensemble_guesser_only.1} parent=1 // pred_check
      _
    $region119: #{lxmert_ensemble_guesser_only.1} parent=1 // pred_check_branch
      %234 = sbr.rel (0) target = $region121
    $region120: #{lxmert_ensemble_guesser_only.1} parent=1 // pred_region
      %235 = dma.done [#allocation22], 3072
    $region121: #{lxmert_ensemble_guesser_only.1} parent=1 // pred_fallthru
      _
    // Predicated region
    $region122: #{lxmert_ensemble_guesser_only.1} parent=1 // pred_check
      _
    $region123: #{lxmert_ensemble_guesser_only.1} parent=1 // pred_check_branch
      %237 = sbr.rel (0) target = $region125
    $region124: #{lxmert_ensemble_guesser_only.1} parent=1 // pred_region
      %238 = dma.done [#allocation22], 16
    $region125: #{lxmert_ensemble_guesser_only.1} parent=1 // pred_fallthru
      _
    // Predicated region
    $region126: #{lxmert_ensemble_guesser_only.1} parent=1 // pred_check
      _
    $region127: #{lxmert_ensemble_guesser_only.1} parent=1 // pred_check_branch
      %240 = sbr.rel (0) target = $region129
    $region128: #{lxmert_ensemble_guesser_only.1} parent=1 // pred_region
      %241 = dma.done [#allocation25], 1024
    $region129: #{lxmert_ensemble_guesser_only.1} parent=1 // pred_fallthru
      _
    // Predicated region
    $region130: #{lxmert_ensemble_guesser_only.1} parent=1 // pred_check
      _
    $region131: #{lxmert_ensemble_guesser_only.1} parent=1 // pred_check_branch
      %243 = sbr.rel (0) target = $region133
    $region132: #{lxmert_ensemble_guesser_only.1} parent=1 // pred_region
      %244 = dma.done [#allocation25], 16
    $region133: #{lxmert_ensemble_guesser_only.1} parent=1 // pred_fallthru
      _
    // Predicated region
    $region134: #{lxmert_ensemble_guesser_only.1} parent=1 // pred_check
      _
    $region135: #{lxmert_ensemble_guesser_only.1} parent=1 // pred_check_branch
      %247 = sbr.rel target = $region137
    $region136: #{lxmert_ensemble_guesser_only.1} parent=1 // pred_region
      %248 = sst [smem:[#allocation29]] [#allocation28]
      %249 = sst [smem:[#allocation30]] [#allocation27]
    $region137: #{lxmert_ensemble_guesser_only.1} parent=1 // pred_fallthru
      _
    %251 = shalt.err (0)
    %s253 = sshll.u32 [#allocation2], 4
    %s254 = int_to_ptr.vmem [resolvable:$true] %s253
    %256 = dma.hbm_to_vmem [thread:$0]  %s6, 18432, %s254, [#allocation3]
    %s257 = scalar_lea.hbm %s6, 18432
    %s258 = scalar_lea.vmem [#allocation2], 1152
    %s259 = scalar_lea.sflag [#allocation3], 1
    // Predicated region
    $region138: #{lxmert_ensemble_guesser_only.1} parent=1 // pred_check
      _
    $region139: #{lxmert_ensemble_guesser_only.1} parent=1 // pred_check_branch
      %261 = sbr.rel target = $region141
    $region140: #{lxmert_ensemble_guesser_only.1} parent=1 // pred_region
      %262 = sst [smem:[#allocation29]] [#allocation32]
      %263 = sst [smem:[#allocation30]] [#allocation31]
    $region141: #{lxmert_ensemble_guesser_only.1} parent=1 // pred_fallthru
      _
    %265 = shalt.err (0)
    %s267 = sshll.u32 %s258, 4
    %s268 = int_to_ptr.vmem [resolvable:$true] %s267
    %270 = dma.hbm_to_vmem [thread:$0]  %s257, 18432, %s268, %s259
    %s271 = scalar_lea.hbm %s6, 36864
    %s272 = scalar_lea.vmem [#allocation2], 2304
    %s273 = scalar_lea.sflag [#allocation3], 2
    // Predicated region
    $region142: #{lxmert_ensemble_guesser_only.1} parent=1 // pred_check
      _
    $region143: #{lxmert_ensemble_guesser_only.1} parent=1 // pred_check_branch
      %275 = sbr.rel target = $region145
    $region144: #{lxmert_ensemble_guesser_only.1} parent=1 // pred_region
      %276 = sst [smem:[#allocation29]] [#allocation34]
      %277 = sst [smem:[#allocation30]] [#allocation33]
    $region145: #{lxmert_ensemble_guesser_only.1} parent=1 // pred_fallthru
      _
    %279 = shalt.err (0)
    %s281 = sshll.u32 %s272, 4
    %s282 = int_to_ptr.vmem [resolvable:$true] %s281
    %284 = dma.hbm_to_vmem [thread:$0]  %s271, 18432, %s282, %s273
    %s285 = scalar_lea.hbm %s6, 55296
    %s286 = scalar_lea.vmem [#allocation2], 3456
    %s287 = scalar_lea.sflag [#allocation3], 3
    // Predicated region
    $region146: #{lxmert_ensemble_guesser_only.1} parent=1 // pred_check
      _
    $region147: #{lxmert_ensemble_guesser_only.1} parent=1 // pred_check_branch
      %289 = sbr.rel target = $region149
    $region148: #{lxmert_ensemble_guesser_only.1} parent=1 // pred_region
      %290 = sst [smem:[#allocation29]] [#allocation36]
      %291 = sst [smem:[#allocation30]] [#allocation35]
    $region149: #{lxmert_ensemble_guesser_only.1} parent=1 // pred_fallthru
      _
    %293 = shalt.err (0)
    %s295 = sshll.u32 %s286, 4
    %s296 = int_to_ptr.vmem [resolvable:$true] %s295
    %298 = dma.hbm_to_vmem [thread:$0]  %s285, 18432, %s296, %s287
    %s299 = scalar_lea.hbm %s6, 73728
    %s300 = scalar_lea.vmem [#allocation2], 4608
    %s301 = scalar_lea.sflag [#allocation3], 4
    // Predicated region
    $region150: #{lxmert_ensemble_guesser_only.1} parent=1 // pred_check
      _
    $region151: #{lxmert_ensemble_guesser_only.1} parent=1 // pred_check_branch
      %303 = sbr.rel target = $region153
    $region152: #{lxmert_ensemble_guesser_only.1} parent=1 // pred_region
      %304 = sst [smem:[#allocation29]] [#allocation38]
      %305 = sst [smem:[#allocation30]] [#allocation37]
    $region153: #{lxmert_ensemble_guesser_only.1} parent=1 // pred_fallthru
      _
    %307 = shalt.err (0)
    %s309 = sshll.u32 %s300, 4
    %s310 = int_to_ptr.vmem [resolvable:$true] %s309
    %312 = dma.hbm_to_vmem [thread:$0]  %s299, 18432, %s310, %s301
    %v313 = vld [vmem:[#allocation9] sm:$0x1f]
    %v314 = vld [vmem:[#allocation9 + $0x8] sm:$0x1f]
    %v315 = vld [vmem:[#allocation9 + $0x10] sm:$0x1f]
    %v316 = vld [vmem:[#allocation9 + $0x18] sm:$0x1f]
    %v317 = vld [vmem:[#allocation9 + $0x20] sm:$0x1f]
    %v318 = vld [vmem:[#allocation9 + $0x28] sm:$0x1f]
    %v319 = vld [vmem:[#allocation11] sm:$0x1f]
    %v320 = vld [vmem:[#allocation11 + $0x8] sm:$0x1f]
    %v321 = vld [vmem:[#allocation11 + $0x10] sm:$0x1f]
    %v322 = vld [vmem:[#allocation11 + $0x18] sm:$0x1f]
    %v323 = vld [vmem:[#allocation11 + $0x20] sm:$0x1f]
    %v324 = vld [vmem:[#allocation11 + $0x28] sm:$0x1f]
    %v325 = vld [vmem:[%s1] sm:$0xff]
    %v326 = vld [vmem:[%s1 + $0x8] sm:$0xff]
    %v327 = vld [vmem:[%s1 + $0x10] sm:$0xff]
    %v328 = vld [vmem:[%s1 + $0x18] sm:$0xff]
    %v329 = vld [vmem:[%s1 + $0x20] sm:$0xff]
    %v330 = vld [vmem:[%s1 + $0x28] sm:$0xff]
    %v331 = vld [vmem:[%s1 + $0x30] sm:$0xff]
    %v332 = vld [vmem:[%s1 + $0x38] sm:$0xff]
    %v333 = vld [vmem:[%s1 + $0x40] sm:$0xf]
    %v334 = vld [vmem:[%s1 + $0x44] sm:$0xff]
    %v335 = vld [vmem:[%s1 + $0x4c] sm:$0xff]
    %v336 = vld [vmem:[%s1 + $0x54] sm:$0xff]
    %v337 = vld [vmem:[%s1 + $0x5c] sm:$0xff]
    %v338 = vld [vmem:[%s1 + $0x64] sm:$0xff]
    %v339 = vld [vmem:[%s1 + $0x6c] sm:$0xff]
    %v340 = vld [vmem:[%s1 + $0x74] sm:$0xff]
    %v341 = vld [vmem:[%s1 + $0x7c] sm:$0xff]
    %v342 = vld [vmem:[%s1 + $0x84] sm:$0xf]
    %v343 = vld [vmem:[#allocation4] sm:$0xff]
    %v344 = vld [vmem:[#allocation4 + $0x8] sm:$0xff]
    %v345 = vld [vmem:[#allocation4 + $0x10] sm:$0xff]
    %v346 = vld [vmem:[#allocation4 + $0x18] sm:$0xff]
    %v347 = vld [vmem:[#allocation4 + $0x20] sm:$0xff]
    %v348 = vld [vmem:[#allocation4 + $0x28] sm:$0xff]
    %v349 = vld [vmem:[#allocation4 + $0x30] sm:$0xff]
    %v350 = vld [vmem:[#allocation4 + $0x38] sm:$0xff]
    %v351 = vld [vmem:[#allocation4 + $0x40] sm:$0xff]
    %v352 = vld [vmem:[#allocation4 + $0x48] sm:$0xff]
    %v353 = vld [vmem:[#allocation4 + $0x50] sm:$0xff]
    %v354 = vld [vmem:[#allocation4 + $0x58] sm:$0xff]
    %v355 = vld [vmem:[#allocation4 + $0x60] sm:$0xff]
    %v356 = vld [vmem:[#allocation4 + $0x68] sm:$0xff]
    %v357 = vld [vmem:[#allocation4 + $0x70] sm:$0xff]
    %v358 = vld [vmem:[#allocation4 + $0x78] sm:$0xff]
    %v359 = vld [vmem:[#allocation4 + $0x80] sm:$0xff]
    %v360 = vld [vmem:[#allocation4 + $0x88] sm:$0xff]
    %v361 = vld [vmem:[#allocation4 + $0x90] sm:$0xff]
    %v362 = vld [vmem:[#allocation4 + $0x98] sm:$0xff]
    %v363 = vld [vmem:[#allocation4 + $0xa0] sm:$0xff]
    %v364 = vld [vmem:[#allocation4 + $0xa8] sm:$0xff]
    %v365 = vld [vmem:[#allocation4 + $0xb0] sm:$0xff]
    %v366 = vld [vmem:[#allocation4 + $0xb8] sm:$0xff]
    %v367 = vld [vmem:[#allocation4 + $0xc0] sm:$0xff]
    %v368 = vld [vmem:[#allocation4 + $0xc8] sm:$0xff]
    %v369 = vld [vmem:[#allocation4 + $0xd0] sm:$0xff]
    %v370 = vld [vmem:[#allocation4 + $0xd8] sm:$0xff]
    %v371 = vld [vmem:[#allocation4 + $0xe0] sm:$0xff]
    %v372 = vld [vmem:[#allocation4 + $0xe8] sm:$0xff]
    %v373 = vld [vmem:[#allocation4 + $0xf0] sm:$0xff]
    %v374 = vld [vmem:[#allocation4 + $0xf8] sm:$0xff]
    %v375 = vld [vmem:[#allocation4 + $0x100] sm:$0xff]
    %v376 = vld [vmem:[#allocation4 + $0x108] sm:$0xff]
    %v377 = vld [vmem:[#allocation4 + $0x110] sm:$0xff]
    %v378 = vld [vmem:[#allocation4 + $0x118] sm:$0xff]
    %v379 = vld [vmem:[#allocation4 + $0x120] sm:$0xff]
    %v380 = vld [vmem:[#allocation4 + $0x128] sm:$0xff]
    %v381 = vld [vmem:[#allocation4 + $0x130] sm:$0xff]
    %v382 = vld [vmem:[#allocation4 + $0x138] sm:$0xff]
    %v383 = vld [vmem:[#allocation4 + $0x140] sm:$0xff]
    %v384 = vld [vmem:[#allocation4 + $0x148] sm:$0xff]
    %v385 = vld [vmem:[#allocation4 + $0x150] sm:$0xff]
    %v386 = vld [vmem:[#allocation4 + $0x158] sm:$0xff]
    %v387 = vld [vmem:[#allocation4 + $0x160] sm:$0xff]
    %v388 = vld [vmem:[#allocation4 + $0x168] sm:$0xff]
    %v389 = vld [vmem:[#allocation4 + $0x170] sm:$0xff]
    %v390 = vld [vmem:[#allocation4 + $0x178] sm:$0xff]
    %v391 = vld [vmem:[#allocation4 + $0x180] sm:$0xff]
    %v392 = vld [vmem:[#allocation4 + $0x188] sm:$0xff]
    %v393 = vld [vmem:[#allocation4 + $0x190] sm:$0xff]
    %v394 = vld [vmem:[#allocation4 + $0x198] sm:$0xff]
    %v395 = vld [vmem:[#allocation4 + $0x1a0] sm:$0xff]
    %v396 = vld [vmem:[#allocation4 + $0x1a8] sm:$0xff]
    %v397 = vld [vmem:[#allocation4 + $0x1b0] sm:$0xff]
    %v398 = vld [vmem:[#allocation4 + $0x1b8] sm:$0xff]
    %v399 = vld [vmem:[#allocation4 + $0x1c0] sm:$0xff]
    %v400 = vld [vmem:[#allocation4 + $0x1c8] sm:$0xff]
    %v401 = vld [vmem:[#allocation4 + $0x1d0] sm:$0xff]
    %v402 = vld [vmem:[#allocation4 + $0x1d8] sm:$0xff]
    %v403 = vld [vmem:[#allocation4 + $0x1e0] sm:$0xff]
    %v404 = vld [vmem:[#allocation4 + $0x1e8] sm:$0xff]
    %v405 = vld [vmem:[#allocation4 + $0x1f0] sm:$0xff]
    %v406 = vld [vmem:[#allocation4 + $0x1f8] sm:$0xff]
    %v407 = vld [vmem:[#allocation4 + $0x200] sm:$0xff]
    %v408 = vld [vmem:[#allocation4 + $0x208] sm:$0xff]
    %v409 = vld [vmem:[#allocation4 + $0x210] sm:$0xff]
    %v410 = vld [vmem:[#allocation4 + $0x218] sm:$0xff]
    %v411 = vld [vmem:[#allocation4 + $0x220] sm:$0xff]
    %v412 = vld [vmem:[#allocation4 + $0x228] sm:$0xff]
    %v413 = vld [vmem:[#allocation4 + $0x230] sm:$0xff]
    %v414 = vld [vmem:[#allocation4 + $0x238] sm:$0xff]
    %v415 = vld [vmem:[#allocation4 + $0x240] sm:$0xff]
    %v416 = vld [vmem:[#allocation4 + $0x248] sm:$0xff]
    %v417 = vld [vmem:[#allocation4 + $0x250] sm:$0xff]
    %v418 = vld [vmem:[#allocation4 + $0x258] sm:$0xff]
    %v419 = vld [vmem:[#allocation4 + $0x260] sm:$0xff]
    %v420 = vld [vmem:[#allocation4 + $0x268] sm:$0xff]
    %v421 = vld [vmem:[#allocation4 + $0x270] sm:$0xff]
    %v422 = vld [vmem:[#allocation4 + $0x278] sm:$0xff]
    %v423 = vld [vmem:[#allocation4 + $0x280] sm:$0xff]
    %v424 = vld [vmem:[#allocation4 + $0x288] sm:$0xff]
    %v425 = vld [vmem:[#allocation4 + $0x290] sm:$0xff]
    %v426 = vld [vmem:[#allocation4 + $0x298] sm:$0xff]
    %v427 = vld [vmem:[#allocation4 + $0x2a0] sm:$0xff]
    %v428 = vld [vmem:[#allocation4 + $0x2a8] sm:$0xff]
    %v429 = vld [vmem:[#allocation4 + $0x2b0] sm:$0xff]
    %v430 = vld [vmem:[#allocation4 + $0x2b8] sm:$0xff]
    %v431 = vld [vmem:[#allocation4 + $0x2c0] sm:$0xff]
    %v432 = vld [vmem:[#allocation4 + $0x2c8] sm:$0xff]
    %v433 = vld [vmem:[#allocation4 + $0x2d0] sm:$0xff]
    %v434 = vld [vmem:[#allocation4 + $0x2d8] sm:$0xff]
    %v435 = vld [vmem:[#allocation4 + $0x2e0] sm:$0xff]
    %v436 = vld [vmem:[#allocation4 + $0x2e8] sm:$0xff]
    %v437 = vld [vmem:[#allocation4 + $0x2f0] sm:$0xff]
    %v438 = vld [vmem:[#allocation4 + $0x2f8] sm:$0xff]
    %v439 = vld [vmem:[#allocation4 + $0x300] sm:$0xff]
    %v440 = vld [vmem:[#allocation4 + $0x308] sm:$0xff]
    %v441 = vld [vmem:[#allocation4 + $0x310] sm:$0xff]
    %v442 = vld [vmem:[#allocation4 + $0x318] sm:$0xff]
    %v443 = vld [vmem:[#allocation4 + $0x320] sm:$0xff]
    %v444 = vld [vmem:[#allocation4 + $0x328] sm:$0xff]
    %v445 = vld [vmem:[#allocation4 + $0x330] sm:$0xff]
    %v446 = vld [vmem:[#allocation4 + $0x338] sm:$0xff]
    %v447 = vld [vmem:[#allocation4 + $0x340] sm:$0xff]
    %v448 = vld [vmem:[#allocation4 + $0x348] sm:$0xff]
    %v449 = vld [vmem:[#allocation4 + $0x350] sm:$0xff]
    %v450 = vld [vmem:[#allocation4 + $0x358] sm:$0xff]
    %v451 = vld [vmem:[#allocation4 + $0x360] sm:$0xff]
    %v452 = vld [vmem:[#allocation4 + $0x368] sm:$0xff]
    %v453 = vld [vmem:[#allocation4 + $0x370] sm:$0xff]
    %v454 = vld [vmem:[#allocation4 + $0x378] sm:$0xff]
    %v455 = vld [vmem:[#allocation4 + $0x380] sm:$0xff]
    %v456 = vld [vmem:[#allocation4 + $0x388] sm:$0xff]
    %v457 = vld [vmem:[#allocation4 + $0x390] sm:$0xff]
    %v458 = vld [vmem:[#allocation4 + $0x398] sm:$0xff]
    %v459 = vld [vmem:[#allocation4 + $0x3a0] sm:$0xff]
    %v460 = vld [vmem:[#allocation4 + $0x3a8] sm:$0xff]
    %v461 = vld [vmem:[#allocation4 + $0x3b0] sm:$0xff]
    %v462 = vld [vmem:[#allocation4 + $0x3b8] sm:$0xff]
    %v463 = vld [vmem:[#allocation4 + $0x3c0] sm:$0xff]
    %v464 = vld [vmem:[#allocation4 + $0x3c8] sm:$0xff]
    %v465 = vld [vmem:[#allocation4 + $0x3d0] sm:$0xff]
    %v466 = vld [vmem:[#allocation4 + $0x3d8] sm:$0xff]
    %v467 = vld [vmem:[#allocation4 + $0x3e0] sm:$0xff]
    %v468 = vld [vmem:[#allocation4 + $0x3e8] sm:$0xff]
    %v469 = vld [vmem:[#allocation4 + $0x3f0] sm:$0xff]
    %v470 = vld [vmem:[#allocation4 + $0x3f8] sm:$0xff]
    %v471 = vld [vmem:[#allocation4 + $0x400] sm:$0xff]
    %v472 = vld [vmem:[#allocation4 + $0x408] sm:$0xff]
    %v473 = vld [vmem:[#allocation4 + $0x410] sm:$0xff]
    %v474 = vld [vmem:[#allocation4 + $0x418] sm:$0xff]
    %v475 = vld [vmem:[#allocation4 + $0x420] sm:$0xff]
    %v476 = vld [vmem:[#allocation4 + $0x428] sm:$0xff]
    %v477 = vld [vmem:[#allocation4 + $0x430] sm:$0xff]
    %v478 = vld [vmem:[#allocation4 + $0x438] sm:$0xff]
    %v479 = vld [vmem:[#allocation4 + $0x440] sm:$0xff]
    %v480 = vld [vmem:[#allocation4 + $0x448] sm:$0xff]
    %v481 = vld [vmem:[#allocation4 + $0x450] sm:$0xff]
    %v482 = vld [vmem:[#allocation4 + $0x458] sm:$0xff]
    %v483 = vld [vmem:[#allocation4 + $0x460] sm:$0xff]
    %v484 = vld [vmem:[#allocation4 + $0x468] sm:$0xff]
    %v485 = vld [vmem:[#allocation4 + $0x470] sm:$0xff]
    %v486 = vld [vmem:[#allocation4 + $0x478] sm:$0xff]
    %v487 = vld [vmem:[#allocation4 + $0x480] sm:$0xff]
    %v488 = vld [vmem:[#allocation4 + $0x488] sm:$0xff]
    %v489 = vld [vmem:[#allocation4 + $0x490] sm:$0xff]
    %v490 = vld [vmem:[#allocation4 + $0x498] sm:$0xff]
    %v491 = vld [vmem:[#allocation4 + $0x4a0] sm:$0xff]
    %v492 = vld [vmem:[#allocation4 + $0x4a8] sm:$0xff]
    %v493 = vld [vmem:[#allocation4 + $0x4b0] sm:$0xff]
    %v494 = vld [vmem:[#allocation4 + $0x4b8] sm:$0xff]
    %v495 = vld [vmem:[#allocation4 + $0x4c0] sm:$0xff]
    %v496 = vld [vmem:[#allocation4 + $0x4c8] sm:$0xff]
    %v497 = vld [vmem:[#allocation4 + $0x4d0] sm:$0xff]
    %v498 = vld [vmem:[#allocation4 + $0x4d8] sm:$0xff]
    %v499 = vld [vmem:[#allocation4 + $0x4e0] sm:$0xff]
    %v500 = vld [vmem:[#allocation4 + $0x4e8] sm:$0xff]
    %v501 = vld [vmem:[#allocation4 + $0x4f0] sm:$0xff]
    %v502 = vld [vmem:[#allocation4 + $0x4f8] sm:$0xff]
    %v503 = vld [vmem:[#allocation4 + $0x500] sm:$0xff]
    %v504 = vld [vmem:[#allocation4 + $0x508] sm:$0xff]
    %v505 = vld [vmem:[#allocation4 + $0x510] sm:$0xff]
    %v506 = vld [vmem:[#allocation4 + $0x518] sm:$0xff]
    %v507 = vld [vmem:[#allocation4 + $0x520] sm:$0xff]
    %v508 = vld [vmem:[#allocation4 + $0x528] sm:$0xff]
    %v509 = vld [vmem:[#allocation4 + $0x530] sm:$0xff]
    %v510 = vld [vmem:[#allocation4 + $0x538] sm:$0xff]
    %v511 = vld [vmem:[#allocation4 + $0x540] sm:$0xff]
    %v512 = vld [vmem:[#allocation4 + $0x548] sm:$0xff]
    %v513 = vld [vmem:[#allocation4 + $0x550] sm:$0xff]
    %v514 = vld [vmem:[#allocation4 + $0x558] sm:$0xff]
    %v515 = vld [vmem:[#allocation4 + $0x560] sm:$0xff]
    %v516 = vld [vmem:[#allocation4 + $0x568] sm:$0xff]
    %v517 = vld [vmem:[#allocation4 + $0x570] sm:$0xff]
    %v518 = vld [vmem:[#allocation4 + $0x578] sm:$0xff]
    %v519 = vld [vmem:[#allocation4 + $0x580] sm:$0xff]
    %v520 = vld [vmem:[#allocation4 + $0x588] sm:$0xff]
    %v521 = vld [vmem:[#allocation4 + $0x590] sm:$0xff]
    %v522 = vld [vmem:[#allocation4 + $0x598] sm:$0xff]
    %v523 = vld [vmem:[#allocation4 + $0x5a0] sm:$0xff]
    %v524 = vld [vmem:[#allocation4 + $0x5a8] sm:$0xff]
    %v525 = vld [vmem:[#allocation4 + $0x5b0] sm:$0xff]
    %v526 = vld [vmem:[#allocation4 + $0x5b8] sm:$0xff]
    %v527 = vld [vmem:[#allocation4 + $0x5c0] sm:$0xff]
    %v528 = vld [vmem:[#allocation4 + $0x5c8] sm:$0xff]
    %v529 = vld [vmem:[#allocation4 + $0x5d0] sm:$0xff]
    %v530 = vld [vmem:[#allocation4 + $0x5d8] sm:$0xff]
    %v531 = vld [vmem:[#allocation4 + $0x5e0] sm:$0xff]
    %v532 = vld [vmem:[#allocation4 + $0x5e8] sm:$0xff]
    %v533 = vld [vmem:[#allocation4 + $0x5f0] sm:$0xff]
    %v534 = vld [vmem:[#allocation4 + $0x5f8] sm:$0xff]
    %v535 = vld [vmem:[#allocation4 + $0x600] sm:$0xff]
    %v536 = vld [vmem:[#allocation4 + $0x608] sm:$0xff]
    %v537 = vld [vmem:[#allocation4 + $0x610] sm:$0xff]
    %v538 = vld [vmem:[#allocation4 + $0x618] sm:$0xff]
    %v539 = vld [vmem:[#allocation4 + $0x620] sm:$0xff]
    %v540 = vld [vmem:[#allocation4 + $0x628] sm:$0xff]
    %v541 = vld [vmem:[#allocation4 + $0x630] sm:$0xff]
    %v542 = vld [vmem:[#allocation4 + $0x638] sm:$0xff]
    %v543 = vld [vmem:[#allocation4 + $0x640] sm:$0xff]
    %v544 = vld [vmem:[#allocation4 + $0x648] sm:$0xff]
    %v545 = vld [vmem:[#allocation4 + $0x650] sm:$0xff]
    %v546 = vld [vmem:[#allocation4 + $0x658] sm:$0xff]
    %v547 = vld [vmem:[#allocation4 + $0x660] sm:$0xff]
    %v548 = vld [vmem:[#allocation4 + $0x668] sm:$0xff]
    %v549 = vld [vmem:[#allocation4 + $0x670] sm:$0xff]
    %v550 = vld [vmem:[#allocation4 + $0x678] sm:$0xff]
    %v551 = vld [vmem:[#allocation4 + $0x680] sm:$0xff]
    %v552 = vld [vmem:[#allocation4 + $0x688] sm:$0xff]
    %v553 = vld [vmem:[#allocation4 + $0x690] sm:$0xff]
    %v554 = vld [vmem:[#allocation4 + $0x698] sm:$0xff]
    %v555 = vld [vmem:[#allocation4 + $0x6a0] sm:$0xff]
    %v556 = vld [vmem:[#allocation4 + $0x6a8] sm:$0xff]
    %v557 = vld [vmem:[#allocation4 + $0x6b0] sm:$0xff]
    %v558 = vld [vmem:[#allocation4 + $0x6b8] sm:$0xff]
    %v559 = vld [vmem:[#allocation4 + $0x6c0] sm:$0xff]
    %v560 = vld [vmem:[#allocation4 + $0x6c8] sm:$0xff]
    %v561 = vld [vmem:[#allocation4 + $0x6d0] sm:$0xff]
    %v562 = vld [vmem:[#allocation4 + $0x6d8] sm:$0xff]
    %v563 = vld [vmem:[#allocation4 + $0x6e0] sm:$0xff]
    %v564 = vld [vmem:[#allocation4 + $0x6e8] sm:$0xff]
    %v565 = vld [vmem:[#allocation4 + $0x6f0] sm:$0xff]
    %v566 = vld [vmem:[#allocation4 + $0x6f8] sm:$0xff]
    %v567 = vld [vmem:[#allocation4 + $0x700] sm:$0xff]
    %v568 = vld [vmem:[#allocation4 + $0x708] sm:$0xff]
    %v569 = vld [vmem:[#allocation4 + $0x710] sm:$0xff]
    %v570 = vld [vmem:[#allocation4 + $0x718] sm:$0xff]
    %v571 = vld [vmem:[#allocation4 + $0x720] sm:$0xff]
    %v572 = vld [vmem:[#allocation4 + $0x728] sm:$0xff]
    %v573 = vld [vmem:[#allocation4 + $0x730] sm:$0xff]
    %v574 = vld [vmem:[#allocation4 + $0x738] sm:$0xff]
    %v575 = vld [vmem:[#allocation4 + $0x740] sm:$0xff]
    %v576 = vld [vmem:[#allocation4 + $0x748] sm:$0xff]
    %v577 = vld [vmem:[#allocation4 + $0x750] sm:$0xff]
    %v578 = vld [vmem:[#allocation4 + $0x758] sm:$0xff]
    %v579 = vld [vmem:[#allocation4 + $0x760] sm:$0xff]
    %v580 = vld [vmem:[#allocation4 + $0x768] sm:$0xff]
    %v581 = vld [vmem:[#allocation4 + $0x770] sm:$0xff]
    %v582 = vld [vmem:[#allocation4 + $0x778] sm:$0xff]
    %v583 = vld [vmem:[#allocation4 + $0x780] sm:$0xff]
    %v584 = vld [vmem:[#allocation4 + $0x788] sm:$0xff]
    %v585 = vld [vmem:[#allocation4 + $0x790] sm:$0xff]
    %v586 = vld [vmem:[#allocation4 + $0x798] sm:$0xff]
    %v587 = vld [vmem:[#allocation4 + $0x7a0] sm:$0xff]
    %v588 = vld [vmem:[#allocation4 + $0x7a8] sm:$0xff]
    %v589 = vld [vmem:[#allocation4 + $0x7b0] sm:$0xff]
    %v590 = vld [vmem:[#allocation4 + $0x7b8] sm:$0xff]
    %v591 = vld [vmem:[#allocation4 + $0x7c0] sm:$0xff]
    %v592 = vld [vmem:[#allocation4 + $0x7c8] sm:$0xff]
    %v593 = vld [vmem:[#allocation4 + $0x7d0] sm:$0xff]
    %v594 = vld [vmem:[#allocation4 + $0x7d8] sm:$0xff]
    %v595 = vld [vmem:[#allocation4 + $0x7e0] sm:$0xff]
    %v596 = vld [vmem:[#allocation4 + $0x7e8] sm:$0xff]
    %v597 = vld [vmem:[#allocation4 + $0x7f0] sm:$0xff]
    %v598 = vld [vmem:[#allocation4 + $0x7f8] sm:$0xff]
    %v599 = vld [vmem:[#allocation4 + $0x800] sm:$0xff]
    %v600 = vld [vmem:[#allocation4 + $0x808] sm:$0xff]
    %v601 = vld [vmem:[#allocation4 + $0x810] sm:$0xff]
    %v602 = vld [vmem:[#allocation4 + $0x818] sm:$0xff]
    %v603 = vld [vmem:[#allocation4 + $0x820] sm:$0xff]
    %v604 = vld [vmem:[#allocation4 + $0x828] sm:$0xff]
    %v605 = vld [vmem:[#allocation4 + $0x830] sm:$0xff]
    %v606 = vld [vmem:[#allocation4 + $0x838] sm:$0xff]
    %v607 = vld [vmem:[#allocation4 + $0x840] sm:$0xff]
    %v608 = vld [vmem:[#allocation4 + $0x848] sm:$0xff]
    %v609 = vld [vmem:[#allocation4 + $0x850] sm:$0xff]
    %v610 = vld [vmem:[#allocation4 + $0x858] sm:$0xff]
    %v611 = vld [vmem:[#allocation4 + $0x860] sm:$0xff]
    %v612 = vld [vmem:[#allocation4 + $0x868] sm:$0xff]
    %v613 = vld [vmem:[#allocation4 + $0x870] sm:$0xff]
    %v614 = vld [vmem:[#allocation4 + $0x878] sm:$0xff]
    %v615 = vld [vmem:[#allocation4 + $0x880] sm:$0xff]
    %v616 = vld [vmem:[#allocation4 + $0x888] sm:$0xff]
    %v617 = vld [vmem:[#allocation4 + $0x890] sm:$0xff]
    %v618 = vld [vmem:[#allocation4 + $0x898] sm:$0xff]
    %v619 = vld [vmem:[#allocation4 + $0x8a0] sm:$0xff]
    %v620 = vld [vmem:[#allocation4 + $0x8a8] sm:$0xff]
    %v621 = vld [vmem:[#allocation4 + $0x8b0] sm:$0xff]
    %v622 = vld [vmem:[#allocation4 + $0x8b8] sm:$0xff]
    %v623 = vld [vmem:[#allocation4 + $0x8c0] sm:$0xff]
    %v624 = vld [vmem:[#allocation4 + $0x8c8] sm:$0xff]
    %v625 = vld [vmem:[#allocation4 + $0x8d0] sm:$0xff]
    %v626 = vld [vmem:[#allocation4 + $0x8d8] sm:$0xff]
    %v627 = vld [vmem:[#allocation4 + $0x8e0] sm:$0xff]
    %v628 = vld [vmem:[#allocation4 + $0x8e8] sm:$0xff]
    %v629 = vld [vmem:[#allocation4 + $0x8f0] sm:$0xff]
    %v630 = vld [vmem:[#allocation4 + $0x8f8] sm:$0xff]
    %v631 = vld [vmem:[#allocation4 + $0x900] sm:$0xff]
    %v632 = vld [vmem:[#allocation4 + $0x908] sm:$0xff]
    %v633 = vld [vmem:[#allocation4 + $0x910] sm:$0xff]
    %v634 = vld [vmem:[#allocation4 + $0x918] sm:$0xff]
    %v635 = vld [vmem:[#allocation4 + $0x920] sm:$0xff]
    %v636 = vld [vmem:[#allocation4 + $0x928] sm:$0xff]
    %v637 = vld [vmem:[#allocation4 + $0x930] sm:$0xff]
    %v638 = vld [vmem:[#allocation4 + $0x938] sm:$0xff]
    %v639 = vld [vmem:[#allocation4 + $0x940] sm:$0xff]
    %v640 = vld [vmem:[#allocation4 + $0x948] sm:$0xff]
    %v641 = vld [vmem:[#allocation4 + $0x950] sm:$0xff]
    %v642 = vld [vmem:[#allocation4 + $0x958] sm:$0xff]
    %v643 = vld [vmem:[#allocation4 + $0x960] sm:$0xff]
    %v644 = vld [vmem:[#allocation4 + $0x968] sm:$0xff]
    %v645 = vld [vmem:[#allocation4 + $0x970] sm:$0xff]
    %v646 = vld [vmem:[#allocation4 + $0x978] sm:$0xff]
    %v647 = vld [vmem:[#allocation4 + $0x980] sm:$0xff]
    %v648 = vld [vmem:[#allocation4 + $0x988] sm:$0xff]
    %v649 = vld [vmem:[#allocation4 + $0x990] sm:$0xff]
    %v650 = vld [vmem:[#allocation4 + $0x998] sm:$0xff]
    %v651 = vld [vmem:[#allocation4 + $0x9a0] sm:$0xff]
    %v652 = vld [vmem:[#allocation4 + $0x9a8] sm:$0xff]
    %v653 = vld [vmem:[#allocation4 + $0x9b0] sm:$0xff]
    %v654 = vld [vmem:[#allocation4 + $0x9b8] sm:$0xff]
    %v655 = vld [vmem:[#allocation4 + $0x9c0] sm:$0xff]
    %v656 = vld [vmem:[#allocation4 + $0x9c8] sm:$0xff]
    %v657 = vld [vmem:[#allocation4 + $0x9d0] sm:$0xff]
    %v658 = vld [vmem:[#allocation4 + $0x9d8] sm:$0xff]
    %v659 = vld [vmem:[#allocation4 + $0x9e0] sm:$0xff]
    %v660 = vld [vmem:[#allocation4 + $0x9e8] sm:$0xff]
    %v661 = vld [vmem:[#allocation4 + $0x9f0] sm:$0xff]
    %v662 = vld [vmem:[#allocation4 + $0x9f8] sm:$0xff]
    %v663 = vld [vmem:[#allocation4 + $0xa00] sm:$0xff]
    %v664 = vld [vmem:[#allocation4 + $0xa08] sm:$0xff]
    %v665 = vld [vmem:[#allocation4 + $0xa10] sm:$0xff]
    %v666 = vld [vmem:[#allocation4 + $0xa18] sm:$0xff]
    %v667 = vld [vmem:[#allocation4 + $0xa20] sm:$0xff]
    %v668 = vld [vmem:[#allocation4 + $0xa28] sm:$0xff]
    %v669 = vld [vmem:[#allocation4 + $0xa30] sm:$0xff]
    %v670 = vld [vmem:[#allocation4 + $0xa38] sm:$0xff]
    %v671 = vld [vmem:[#allocation4 + $0xa40] sm:$0xff]
    %v672 = vld [vmem:[#allocation4 + $0xa48] sm:$0xff]
    %v673 = vld [vmem:[#allocation4 + $0xa50] sm:$0xff]
    %v674 = vld [vmem:[#allocation4 + $0xa58] sm:$0xff]
    %v675 = vld [vmem:[#allocation4 + $0xa60] sm:$0xff]
    %v676 = vld [vmem:[#allocation4 + $0xa68] sm:$0xff]
    %v677 = vld [vmem:[#allocation4 + $0xa70] sm:$0xff]
    %v678 = vld [vmem:[#allocation4 + $0xa78] sm:$0xff]
    %v679 = vld [vmem:[#allocation4 + $0xa80] sm:$0xff]
    %v680 = vld [vmem:[#allocation4 + $0xa88] sm:$0xff]
    %v681 = vld [vmem:[#allocation4 + $0xa90] sm:$0xff]
    %v682 = vld [vmem:[#allocation4 + $0xa98] sm:$0xff]
    %v683 = vld [vmem:[#allocation4 + $0xaa0] sm:$0xff]
    %v684 = vld [vmem:[#allocation4 + $0xaa8] sm:$0xff]
    %v685 = vld [vmem:[#allocation4 + $0xab0] sm:$0xff]
    %v686 = vld [vmem:[#allocation4 + $0xab8] sm:$0xff]
    %v687 = vld [vmem:[#allocation4 + $0xac0] sm:$0xff]
    %v688 = vld [vmem:[#allocation4 + $0xac8] sm:$0xff]
    %v689 = vld [vmem:[#allocation4 + $0xad0] sm:$0xff]
    %v690 = vld [vmem:[#allocation4 + $0xad8] sm:$0xff]
    %v691 = vld [vmem:[#allocation4 + $0xae0] sm:$0xff]
    %v692 = vld [vmem:[#allocation4 + $0xae8] sm:$0xff]
    %v693 = vld [vmem:[#allocation4 + $0xaf0] sm:$0xff]
    %v694 = vld [vmem:[#allocation4 + $0xaf8] sm:$0xff]
    %v695 = vld [vmem:[#allocation4 + $0xb00] sm:$0xff]
    %v696 = vld [vmem:[#allocation4 + $0xb08] sm:$0xff]
    %v697 = vld [vmem:[#allocation4 + $0xb10] sm:$0xff]
    %v698 = vld [vmem:[#allocation4 + $0xb18] sm:$0xff]
    %v699 = vld [vmem:[#allocation4 + $0xb20] sm:$0xff]
    %v700 = vld [vmem:[#allocation4 + $0xb28] sm:$0xff]
    %v701 = vld [vmem:[#allocation4 + $0xb30] sm:$0xff]
    %v702 = vld [vmem:[#allocation4 + $0xb38] sm:$0xff]
    %v703 = vld [vmem:[#allocation4 + $0xb40] sm:$0xff]
    %v704 = vld [vmem:[#allocation4 + $0xb48] sm:$0xff]
    %v705 = vld [vmem:[#allocation4 + $0xb50] sm:$0xff]
    %v706 = vld [vmem:[#allocation4 + $0xb58] sm:$0xff]
    %v707 = vld [vmem:[#allocation4 + $0xb60] sm:$0xff]
    %v708 = vld [vmem:[#allocation4 + $0xb68] sm:$0xff]
    %v709 = vld [vmem:[#allocation4 + $0xb70] sm:$0xff]
    %v710 = vld [vmem:[#allocation4 + $0xb78] sm:$0xff]
    %v711 = vld [vmem:[#allocation4 + $0xb80] sm:$0xff]
    %v712 = vld [vmem:[#allocation4 + $0xb88] sm:$0xff]
    %v713 = vld [vmem:[#allocation4 + $0xb90] sm:$0xff]
    %v714 = vld [vmem:[#allocation4 + $0xb98] sm:$0xff]
    %v715 = vld [vmem:[#allocation4 + $0xba0] sm:$0xff]
    %v716 = vld [vmem:[#allocation4 + $0xba8] sm:$0xff]
    %v717 = vld [vmem:[#allocation4 + $0xbb0] sm:$0xff]
    %v718 = vld [vmem:[#allocation4 + $0xbb8] sm:$0xff]
    %v719 = vld [vmem:[#allocation4 + $0xbc0] sm:$0xff]
    %v720 = vld [vmem:[#allocation4 + $0xbc8] sm:$0xff]
    %v721 = vld [vmem:[#allocation4 + $0xbd0] sm:$0xff]
    %v722 = vld [vmem:[#allocation4 + $0xbd8] sm:$0xff]
    %v723 = vld [vmem:[#allocation4 + $0xbe0] sm:$0xff]
    %v724 = vld [vmem:[#allocation4 + $0xbe8] sm:$0xff]
    %v725 = vld [vmem:[#allocation4 + $0xbf0] sm:$0xff]
    %v726 = vld [vmem:[#allocation4 + $0xbf8] sm:$0xff]
    %v727 = vld [vmem:[#allocation4 + $0xc00] sm:$0xff]
    %v728 = vld [vmem:[#allocation4 + $0xc08] sm:$0xff]
    %v729 = vld [vmem:[#allocation4 + $0xc10] sm:$0xff]
    %v730 = vld [vmem:[#allocation4 + $0xc18] sm:$0xff]
    %v731 = vld [vmem:[#allocation4 + $0xc20] sm:$0xff]
    %v732 = vld [vmem:[#allocation4 + $0xc28] sm:$0xff]
    %v733 = vld [vmem:[#allocation4 + $0xc30] sm:$0xff]
    %v734 = vld [vmem:[#allocation4 + $0xc38] sm:$0xff]
    %v735 = vld [vmem:[#allocation4 + $0xc40] sm:$0xff]
    %v736 = vld [vmem:[#allocation4 + $0xc48] sm:$0xff]
    %v737 = vld [vmem:[#allocation4 + $0xc50] sm:$0xff]
    %v738 = vld [vmem:[#allocation4 + $0xc58] sm:$0xff]
    %v739 = vld [vmem:[#allocation4 + $0xc60] sm:$0xff]
    %v740 = vld [vmem:[#allocation4 + $0xc68] sm:$0xff]
    %v741 = vld [vmem:[#allocation4 + $0xc70] sm:$0xff]
    %v742 = vld [vmem:[#allocation4 + $0xc78] sm:$0xff]
    %v743 = vld [vmem:[#allocation4 + $0xc80] sm:$0xff]
    %v744 = vld [vmem:[#allocation4 + $0xc88] sm:$0xff]
    %v745 = vld [vmem:[#allocation4 + $0xc90] sm:$0xff]
    %v746 = vld [vmem:[#allocation4 + $0xc98] sm:$0xff]
    %v747 = vld [vmem:[#allocation4 + $0xca0] sm:$0xff]
    %v748 = vld [vmem:[#allocation4 + $0xca8] sm:$0xff]
    %v749 = vld [vmem:[#allocation4 + $0xcb0] sm:$0xff]
    %v750 = vld [vmem:[#allocation4 + $0xcb8] sm:$0xff]
    %v751 = vunpack.c.l.s8.bf16 %v343
    %v752 = vunpack.c.l.s8.bf16 %v344
    %v753 = vunpack.c.l.s8.bf16 %v345
    %v754 = vunpack.c.l.s8.bf16 %v346
    %v755 = vunpack.c.l.s8.bf16 %v347
    %v756 = vunpack.c.l.s8.bf16 %v348
    %v757 = vunpack.c.h.s8.bf16 %v343
    %v758 = vunpack.c.h.s8.bf16 %v344
    %v759 = vunpack.c.h.s8.bf16 %v345
    %v760 = vunpack.c.h.s8.bf16 %v346
    %v761 = vunpack.c.h.s8.bf16 %v347
    %v762 = vunpack.c.h.s8.bf16 %v348
    %v763 = vunpack.c.l.s8.bf16 %v349
    %v764 = vunpack.c.l.s8.bf16 %v350
    %v765 = vunpack.c.l.s8.bf16 %v351
    %v766 = vunpack.c.l.s8.bf16 %v352
    %v767 = vunpack.c.l.s8.bf16 %v353
    %v768 = vunpack.c.l.s8.bf16 %v354
    %v769 = vunpack.c.h.s8.bf16 %v349
    %v770 = vunpack.c.h.s8.bf16 %v350
    %v771 = vunpack.c.h.s8.bf16 %v351
    %v772 = vunpack.c.h.s8.bf16 %v352
    %v773 = vunpack.c.h.s8.bf16 %v353
    %v774 = vunpack.c.h.s8.bf16 %v354
    %v775 = vunpack.c.l.s8.bf16 %v355
    %v776 = vunpack.c.l.s8.bf16 %v356
    %v777 = vunpack.c.l.s8.bf16 %v357
    %v778 = vunpack.c.l.s8.bf16 %v358
    %v779 = vunpack.c.l.s8.bf16 %v359
    %v780 = vunpack.c.l.s8.bf16 %v360
    %v781 = vunpack.c.h.s8.bf16 %v355
    %v782 = vunpack.c.h.s8.bf16 %v356
    %v783 = vunpack.c.h.s8.bf16 %v357
    %v784 = vunpack.c.h.s8.bf16 %v358
    %v785 = vunpack.c.h.s8.bf16 %v359
    %v786 = vunpack.c.h.s8.bf16 %v360
    %v787 = vunpack.c.l.s8.bf16 %v361
    %v788 = vunpack.c.l.s8.bf16 %v362
    %v789 = vunpack.c.l.s8.bf16 %v363
    %v790 = vunpack.c.l.s8.bf16 %v364
    %v791 = vunpack.c.l.s8.bf16 %v365
    %v792 = vunpack.c.l.s8.bf16 %v366
    %v793 = vunpack.c.h.s8.bf16 %v361
    %v794 = vunpack.c.h.s8.bf16 %v362
    %v795 = vunpack.c.h.s8.bf16 %v363
    %v796 = vunpack.c.h.s8.bf16 %v364
    %v797 = vunpack.c.h.s8.bf16 %v365
    %v798 = vunpack.c.h.s8.bf16 %v366
    %v799 = vunpack.c.l.s8.bf16 %v367
    %v800 = vunpack.c.l.s8.bf16 %v368
    %v801 = vunpack.c.l.s8.bf16 %v369
    %v802 = vunpack.c.l.s8.bf16 %v370
    %v803 = vunpack.c.l.s8.bf16 %v371
    %v804 = vunpack.c.l.s8.bf16 %v372
    %v805 = vunpack.c.h.s8.bf16 %v367
    %v806 = vunpack.c.h.s8.bf16 %v368
    %v807 = vunpack.c.h.s8.bf16 %v369
    %v808 = vunpack.c.h.s8.bf16 %v370
    %v809 = vunpack.c.h.s8.bf16 %v371
    %v810 = vunpack.c.h.s8.bf16 %v372
    %v811 = vunpack.c.l.s8.bf16 %v373
    %v812 = vunpack.c.l.s8.bf16 %v374
    %v813 = vunpack.c.l.s8.bf16 %v375
    %v814 = vunpack.c.l.s8.bf16 %v376
    %v815 = vunpack.c.l.s8.bf16 %v377
    %v816 = vunpack.c.l.s8.bf16 %v378
    %v817 = vunpack.c.h.s8.bf16 %v373
    %v818 = vunpack.c.h.s8.bf16 %v374
    %v819 = vunpack.c.h.s8.bf16 %v375
    %v820 = vunpack.c.h.s8.bf16 %v376
    %v821 = vunpack.c.h.s8.bf16 %v377
    %v822 = vunpack.c.h.s8.bf16 %v378
    %v823 = vunpack.c.l.s8.bf16 %v379
    %v824 = vunpack.c.l.s8.bf16 %v380
    %v825 = vunpack.c.l.s8.bf16 %v381
    %v826 = vunpack.c.l.s8.bf16 %v382
    %v827 = vunpack.c.l.s8.bf16 %v383
    %v828 = vunpack.c.l.s8.bf16 %v384
    %v829 = vunpack.c.h.s8.bf16 %v379
    %v830 = vunpack.c.h.s8.bf16 %v380
    %v831 = vunpack.c.h.s8.bf16 %v381
    %v832 = vunpack.c.h.s8.bf16 %v382
    %v833 = vunpack.c.h.s8.bf16 %v383
    %v834 = vunpack.c.h.s8.bf16 %v384
    %v835 = vunpack.c.l.s8.bf16 %v385
    %v836 = vunpack.c.l.s8.bf16 %v386
    %v837 = vunpack.c.l.s8.bf16 %v387
    %v838 = vunpack.c.l.s8.bf16 %v388
    %v839 = vunpack.c.l.s8.bf16 %v389
    %v840 = vunpack.c.l.s8.bf16 %v390
    %v841 = vunpack.c.h.s8.bf16 %v385
    %v842 = vunpack.c.h.s8.bf16 %v386
    %v843 = vunpack.c.h.s8.bf16 %v387
    %v844 = vunpack.c.h.s8.bf16 %v388
    %v845 = vunpack.c.h.s8.bf16 %v389
    %v846 = vunpack.c.h.s8.bf16 %v390
    %v847 = vunpack.c.l.s8.bf16 %v391
    %v848 = vunpack.c.l.s8.bf16 %v392
    %v849 = vunpack.c.l.s8.bf16 %v393
    %v850 = vunpack.c.l.s8.bf16 %v394
    %v851 = vunpack.c.l.s8.bf16 %v395
    %v852 = vunpack.c.l.s8.bf16 %v396
    %v853 = vunpack.c.h.s8.bf16 %v391
    %v854 = vunpack.c.h.s8.bf16 %v392
    %v855 = vunpack.c.h.s8.bf16 %v393
    %v856 = vunpack.c.h.s8.bf16 %v394
    %v857 = vunpack.c.h.s8.bf16 %v395
    %v858 = vunpack.c.h.s8.bf16 %v396
    %v859 = vunpack.c.l.s8.bf16 %v397
    %v860 = vunpack.c.l.s8.bf16 %v398
    %v861 = vunpack.c.l.s8.bf16 %v399
    %v862 = vunpack.c.l.s8.bf16 %v400
    %v863 = vunpack.c.l.s8.bf16 %v401
    %v864 = vunpack.c.l.s8.bf16 %v402
    %v865 = vunpack.c.h.s8.bf16 %v397
    %v866 = vunpack.c.h.s8.bf16 %v398
    %v867 = vunpack.c.h.s8.bf16 %v399
    %v868 = vunpack.c.h.s8.bf16 %v400
    %v869 = vunpack.c.h.s8.bf16 %v401
    %v870 = vunpack.c.h.s8.bf16 %v402
    %v871 = vunpack.c.l.s8.bf16 %v403
    %v872 = vunpack.c.l.s8.bf16 %v404
    %v873 = vunpack.c.l.s8.bf16 %v405
    %v874 = vunpack.c.l.s8.bf16 %v406
    %v875 = vunpack.c.l.s8.bf16 %v407
    %v876 = vunpack.c.l.s8.bf16 %v408
    %v877 = vunpack.c.h.s8.bf16 %v403
    %v878 = vunpack.c.h.s8.bf16 %v404
    %v879 = vunpack.c.h.s8.bf16 %v405
    %v880 = vunpack.c.h.s8.bf16 %v406
    %v881 = vunpack.c.h.s8.bf16 %v407
    %v882 = vunpack.c.h.s8.bf16 %v408
    %v883 = vunpack.c.l.s8.bf16 %v409
    %v884 = vunpack.c.l.s8.bf16 %v410
    %v885 = vunpack.c.l.s8.bf16 %v411
    %v886 = vunpack.c.l.s8.bf16 %v412
    %v887 = vunpack.c.l.s8.bf16 %v413
    %v888 = vunpack.c.l.s8.bf16 %v414
    %v889 = vunpack.c.h.s8.bf16 %v409
    %v890 = vunpack.c.h.s8.bf16 %v410
    %v891 = vunpack.c.h.s8.bf16 %v411
    %v892 = vunpack.c.h.s8.bf16 %v412
    %v893 = vunpack.c.h.s8.bf16 %v413
    %v894 = vunpack.c.h.s8.bf16 %v414
    %v895 = vunpack.c.l.s8.bf16 %v415
    %v896 = vunpack.c.l.s8.bf16 %v416
    %v897 = vunpack.c.l.s8.bf16 %v417
    %v898 = vunpack.c.l.s8.bf16 %v418
    %v899 = vunpack.c.l.s8.bf16 %v419
    %v900 = vunpack.c.l.s8.bf16 %v420
    %v901 = vunpack.c.h.s8.bf16 %v415
    %v902 = vunpack.c.h.s8.bf16 %v416
    %v903 = vunpack.c.h.s8.bf16 %v417
    %v904 = vunpack.c.h.s8.bf16 %v418
    %v905 = vunpack.c.h.s8.bf16 %v419
    %v906 = vunpack.c.h.s8.bf16 %v420
    %v907 = vunpack.c.l.s8.bf16 %v421
    %v908 = vunpack.c.l.s8.bf16 %v422
    %v909 = vunpack.c.l.s8.bf16 %v423
    %v910 = vunpack.c.l.s8.bf16 %v424
    %v911 = vunpack.c.l.s8.bf16 %v425
    %v912 = vunpack.c.l.s8.bf16 %v426
    %v913 = vunpack.c.h.s8.bf16 %v421
    %v914 = vunpack.c.h.s8.bf16 %v422
    %v915 = vunpack.c.h.s8.bf16 %v423
    %v916 = vunpack.c.h.s8.bf16 %v424
    %v917 = vunpack.c.h.s8.bf16 %v425
    %v918 = vunpack.c.h.s8.bf16 %v426
    %v919 = vunpack.c.l.s8.bf16 %v427
    %v920 = vunpack.c.l.s8.bf16 %v428
    %v921 = vunpack.c.l.s8.bf16 %v429
    %v922 = vunpack.c.l.s8.bf16 %v430
    %v923 = vunpack.c.l.s8.bf16 %v431
    %v924 = vunpack.c.l.s8.bf16 %v432
    %v925 = vunpack.c.h.s8.bf16 %v427
    %v926 = vunpack.c.h.s8.bf16 %v428
    %v927 = vunpack.c.h.s8.bf16 %v429
    %v928 = vunpack.c.h.s8.bf16 %v430
    %v929 = vunpack.c.h.s8.bf16 %v431
    %v930 = vunpack.c.h.s8.bf16 %v432
    %v931 = vunpack.c.l.s8.bf16 %v433
    %v932 = vunpack.c.l.s8.bf16 %v434
    %v933 = vunpack.c.l.s8.bf16 %v435
    %v934 = vunpack.c.l.s8.bf16 %v436
    %v935 = vunpack.c.l.s8.bf16 %v437
    %v936 = vunpack.c.l.s8.bf16 %v438
    %v937 = vunpack.c.h.s8.bf16 %v433
    %v938 = vunpack.c.h.s8.bf16 %v434
    %v939 = vunpack.c.h.s8.bf16 %v435
    %v940 = vunpack.c.h.s8.bf16 %v436
    %v941 = vunpack.c.h.s8.bf16 %v437
    %v942 = vunpack.c.h.s8.bf16 %v438
    %v943 = vunpack.c.l.s8.bf16 %v439
    %v944 = vunpack.c.l.s8.bf16 %v440
    %v945 = vunpack.c.l.s8.bf16 %v441
    %v946 = vunpack.c.l.s8.bf16 %v442
    %v947 = vunpack.c.l.s8.bf16 %v443
    %v948 = vunpack.c.l.s8.bf16 %v444
    %v949 = vunpack.c.h.s8.bf16 %v439
    %v950 = vunpack.c.h.s8.bf16 %v440
    %v951 = vunpack.c.h.s8.bf16 %v441
    %v952 = vunpack.c.h.s8.bf16 %v442
    %v953 = vunpack.c.h.s8.bf16 %v443
    %v954 = vunpack.c.h.s8.bf16 %v444
    %v955 = vunpack.c.l.s8.bf16 %v445
    %v956 = vunpack.c.l.s8.bf16 %v446
    %v957 = vunpack.c.l.s8.bf16 %v447
    %v958 = vunpack.c.l.s8.bf16 %v448
    %v959 = vunpack.c.l.s8.bf16 %v449
    %v960 = vunpack.c.l.s8.bf16 %v450
    %v961 = vunpack.c.h.s8.bf16 %v445
    %v962 = vunpack.c.h.s8.bf16 %v446
    %v963 = vunpack.c.h.s8.bf16 %v447
    %v964 = vunpack.c.h.s8.bf16 %v448
    %v965 = vunpack.c.h.s8.bf16 %v449
    %v966 = vunpack.c.h.s8.bf16 %v450
    %v967 = vunpack.c.l.s8.bf16 %v451
    %v968 = vunpack.c.l.s8.bf16 %v452
    %v969 = vunpack.c.l.s8.bf16 %v453
    %v970 = vunpack.c.l.s8.bf16 %v454
    %v971 = vunpack.c.l.s8.bf16 %v455
    %v972 = vunpack.c.l.s8.bf16 %v456
    %v973 = vunpack.c.h.s8.bf16 %v451
    %v974 = vunpack.c.h.s8.bf16 %v452
    %v975 = vunpack.c.h.s8.bf16 %v453
    %v976 = vunpack.c.h.s8.bf16 %v454
    %v977 = vunpack.c.h.s8.bf16 %v455
    %v978 = vunpack.c.h.s8.bf16 %v456
    %v979 = vunpack.c.l.s8.bf16 %v457
    %v980 = vunpack.c.l.s8.bf16 %v458
    %v981 = vunpack.c.l.s8.bf16 %v459
    %v982 = vunpack.c.l.s8.bf16 %v460
    %v983 = vunpack.c.l.s8.bf16 %v461
    %v984 = vunpack.c.l.s8.bf16 %v462
    %v985 = vunpack.c.h.s8.bf16 %v457
    %v986 = vunpack.c.h.s8.bf16 %v458
    %v987 = vunpack.c.h.s8.bf16 %v459
    %v988 = vunpack.c.h.s8.bf16 %v460
    %v989 = vunpack.c.h.s8.bf16 %v461
    %v990 = vunpack.c.h.s8.bf16 %v462
    %v991 = vunpack.c.l.s8.bf16 %v463
    %v992 = vunpack.c.l.s8.bf16 %v464
    %v993 = vunpack.c.l.s8.bf16 %v465
    %v994 = vunpack.c.l.s8.bf16 %v466
    %v995 = vunpack.c.l.s8.bf16 %v467
    %v996 = vunpack.c.l.s8.bf16 %v468
    %v997 = vunpack.c.h.s8.bf16 %v463
    %v998 = vunpack.c.h.s8.bf16 %v464
    %v999 = vunpack.c.h.s8.bf16 %v465
    %v1000 = vunpack.c.h.s8.bf16 %v466
    %v1001 = vunpack.c.h.s8.bf16 %v467
    %v1002 = vunpack.c.h.s8.bf16 %v468
    %v1003 = vunpack.c.l.s8.bf16 %v469
    %v1004 = vunpack.c.l.s8.bf16 %v470
    %v1005 = vunpack.c.l.s8.bf16 %v471
    %v1006 = vunpack.c.l.s8.bf16 %v472
    %v1007 = vunpack.c.l.s8.bf16 %v473
    %v1008 = vunpack.c.l.s8.bf16 %v474
    %v1009 = vunpack.c.h.s8.bf16 %v469
    %v1010 = vunpack.c.h.s8.bf16 %v470
    %v1011 = vunpack.c.h.s8.bf16 %v471
    %v1012 = vunpack.c.h.s8.bf16 %v472
    %v1013 = vunpack.c.h.s8.bf16 %v473
    %v1014 = vunpack.c.h.s8.bf16 %v474
    %v1015 = vunpack.c.l.s8.bf16 %v475
    %v1016 = vunpack.c.l.s8.bf16 %v476
    %v1017 = vunpack.c.l.s8.bf16 %v477
    %v1018 = vunpack.c.l.s8.bf16 %v478
    %v1019 = vunpack.c.l.s8.bf16 %v479
    %v1020 = vunpack.c.l.s8.bf16 %v480
    %v1021 = vunpack.c.h.s8.bf16 %v475
    %v1022 = vunpack.c.h.s8.bf16 %v476
    %v1023 = vunpack.c.h.s8.bf16 %v477
    %v1024 = vunpack.c.h.s8.bf16 %v478
    %v1025 = vunpack.c.h.s8.bf16 %v479
    %v1026 = vunpack.c.h.s8.bf16 %v480
    %v1027 = vunpack.c.l.s8.bf16 %v481
    %v1028 = vunpack.c.l.s8.bf16 %v482
    %v1029 = vunpack.c.l.s8.bf16 %v483
    %v1030 = vunpack.c.l.s8.bf16 %v484
    %v1031 = vunpack.c.l.s8.bf16 %v485
    %v1032 = vunpack.c.l.s8.bf16 %v486
    %v1033 = vunpack.c.h.s8.bf16 %v481
    %v1034 = vunpack.c.h.s8.bf16 %v482
    %v1035 = vunpack.c.h.s8.bf16 %v483
    %v1036 = vunpack.c.h.s8.bf16 %v484
    %v1037 = vunpack.c.h.s8.bf16 %v485
    %v1038 = vunpack.c.h.s8.bf16 %v486
    %v1039 = vunpack.c.l.s8.bf16 %v487
    %v1040 = vunpack.c.l.s8.bf16 %v488
    %v1041 = vunpack.c.l.s8.bf16 %v489
    %v1042 = vunpack.c.l.s8.bf16 %v490
    %v1043 = vunpack.c.l.s8.bf16 %v491
    %v1044 = vunpack.c.l.s8.bf16 %v492
    %v1045 = vunpack.c.h.s8.bf16 %v487
    %v1046 = vunpack.c.h.s8.bf16 %v488
    %v1047 = vunpack.c.h.s8.bf16 %v489
    %v1048 = vunpack.c.h.s8.bf16 %v490
    %v1049 = vunpack.c.h.s8.bf16 %v491
    %v1050 = vunpack.c.h.s8.bf16 %v492
    %v1051 = vunpack.c.l.s8.bf16 %v493
    %v1052 = vunpack.c.l.s8.bf16 %v494
    %v1053 = vunpack.c.l.s8.bf16 %v495
    %v1054 = vunpack.c.l.s8.bf16 %v496
    %v1055 = vunpack.c.l.s8.bf16 %v497
    %v1056 = vunpack.c.l.s8.bf16 %v498
    %v1057 = vunpack.c.h.s8.bf16 %v493
    %v1058 = vunpack.c.h.s8.bf16 %v494
    %v1059 = vunpack.c.h.s8.bf16 %v495
    %v1060 = vunpack.c.h.s8.bf16 %v496
    %v1061 = vunpack.c.h.s8.bf16 %v497
    %v1062 = vunpack.c.h.s8.bf16 %v498
    %v1063 = vunpack.c.l.s8.bf16 %v499
    %v1064 = vunpack.c.l.s8.bf16 %v500
    %v1065 = vunpack.c.l.s8.bf16 %v501
    %v1066 = vunpack.c.l.s8.bf16 %v502
    %v1067 = vunpack.c.l.s8.bf16 %v503
    %v1068 = vunpack.c.l.s8.bf16 %v504
    %v1069 = vunpack.c.h.s8.bf16 %v499
    %v1070 = vunpack.c.h.s8.bf16 %v500
    %v1071 = vunpack.c.h.s8.bf16 %v501
    %v1072 = vunpack.c.h.s8.bf16 %v502
    %v1073 = vunpack.c.h.s8.bf16 %v503
    %v1074 = vunpack.c.h.s8.bf16 %v504
    %v1075 = vunpack.c.l.s8.bf16 %v505
    %v1076 = vunpack.c.l.s8.bf16 %v506
    %v1077 = vunpack.c.l.s8.bf16 %v507
    %v1078 = vunpack.c.l.s8.bf16 %v508
    %v1079 = vunpack.c.l.s8.bf16 %v509
    %v1080 = vunpack.c.l.s8.bf16 %v510
    %v1081 = vunpack.c.h.s8.bf16 %v505
    %v1082 = vunpack.c.h.s8.bf16 %v506
    %v1083 = vunpack.c.h.s8.bf16 %v507
    %v1084 = vunpack.c.h.s8.bf16 %v508
    %v1085 = vunpack.c.h.s8.bf16 %v509
    %v1086 = vunpack.c.h.s8.bf16 %v510
    %v1087 = vunpack.c.l.s8.bf16 %v511
    %v1088 = vunpack.c.l.s8.bf16 %v512
    %v1089 = vunpack.c.l.s8.bf16 %v513
    %v1090 = vunpack.c.l.s8.bf16 %v514
    %v1091 = vunpack.c.l.s8.bf16 %v515
    %v1092 = vunpack.c.l.s8.bf16 %v516
    %v1093 = vunpack.c.h.s8.bf16 %v511
    %v1094 = vunpack.c.h.s8.bf16 %v512
    %v1095 = vunpack.c.h.s8.bf16 %v513
    %v1096 = vunpack.c.h.s8.bf16 %v514
    %v1097 = vunpack.c.h.s8.bf16 %v515
    %v1098 = vunpack.c.h.s8.bf16 %v516
    %v1099 = vunpack.c.l.s8.bf16 %v517
    %v1100 = vunpack.c.l.s8.bf16 %v518
    %v1101 = vunpack.c.l.s8.bf16 %v519
    %v1102 = vunpack.c.l.s8.bf16 %v520
    %v1103 = vunpack.c.l.s8.bf16 %v521
    %v1104 = vunpack.c.l.s8.bf16 %v522
    %v1105 = vunpack.c.h.s8.bf16 %v517
    %v1106 = vunpack.c.h.s8.bf16 %v518
    %v1107 = vunpack.c.h.s8.bf16 %v519
    %v1108 = vunpack.c.h.s8.bf16 %v520
    %v1109 = vunpack.c.h.s8.bf16 %v521
    %v1110 = vunpack.c.h.s8.bf16 %v522
    %v1111 = vunpack.c.l.s8.bf16 %v523
    %v1112 = vunpack.c.l.s8.bf16 %v524
    %v1113 = vunpack.c.l.s8.bf16 %v525
    %v1114 = vunpack.c.l.s8.bf16 %v526
    %v1115 = vunpack.c.l.s8.bf16 %v527
    %v1116 = vunpack.c.l.s8.bf16 %v528
    %v1117 = vunpack.c.h.s8.bf16 %v523
    %v1118 = vunpack.c.h.s8.bf16 %v524
    %v1119 = vunpack.c.h.s8.bf16 %v525
    %v1120 = vunpack.c.h.s8.bf16 %v526
    %v1121 = vunpack.c.h.s8.bf16 %v527
    %v1122 = vunpack.c.h.s8.bf16 %v528
    %v1123 = vunpack.c.l.s8.bf16 %v529
    %v1124 = vunpack.c.l.s8.bf16 %v530
    %v1125 = vunpack.c.l.s8.bf16 %v531
    %v1126 = vunpack.c.l.s8.bf16 %v532
    %v1127 = vunpack.c.l.s8.bf16 %v533
    %v1128 = vunpack.c.l.s8.bf16 %v534
    %v1129 = vunpack.c.h.s8.bf16 %v529
    %v1130 = vunpack.c.h.s8.bf16 %v530
    %v1131 = vunpack.c.h.s8.bf16 %v531
    %v1132 = vunpack.c.h.s8.bf16 %v532
    %v1133 = vunpack.c.h.s8.bf16 %v533
    %v1134 = vunpack.c.h.s8.bf16 %v534
    %v1135 = vunpack.c.l.s8.bf16 %v535
    %v1136 = vunpack.c.l.s8.bf16 %v536
    %v1137 = vunpack.c.l.s8.bf16 %v537
    %v1138 = vunpack.c.l.s8.bf16 %v538
    %v1139 = vunpack.c.l.s8.bf16 %v539
    %v1140 = vunpack.c.l.s8.bf16 %v540
    %v1141 = vunpack.c.h.s8.bf16 %v535
    %v1142 = vunpack.c.h.s8.bf16 %v536
    %v1143 = vunpack.c.h.s8.bf16 %v537
    %v1144 = vunpack.c.h.s8.bf16 %v538
    %v1145 = vunpack.c.h.s8.bf16 %v539
    %v1146 = vunpack.c.h.s8.bf16 %v540
    %v1147 = vunpack.c.l.s8.bf16 %v541
    %v1148 = vunpack.c.l.s8.bf16 %v542
    %v1149 = vunpack.c.l.s8.bf16 %v543
    %v1150 = vunpack.c.l.s8.bf16 %v544
    %v1151 = vunpack.c.l.s8.bf16 %v545
    %v1152 = vunpack.c.l.s8.bf16 %v546
    %v1153 = vunpack.c.h.s8.bf16 %v541
    %v1154 = vunpack.c.h.s8.bf16 %v542
    %v1155 = vunpack.c.h.s8.bf16 %v543
    %v1156 = vunpack.c.h.s8.bf16 %v544
    %v1157 = vunpack.c.h.s8.bf16 %v545
    %v1158 = vunpack.c.h.s8.bf16 %v546
    %v1159 = vunpack.c.l.s8.bf16 %v547
    %v1160 = vunpack.c.l.s8.bf16 %v548
    %v1161 = vunpack.c.l.s8.bf16 %v549
    %v1162 = vunpack.c.l.s8.bf16 %v550
    %v1163 = vunpack.c.l.s8.bf16 %v551
    %v1164 = vunpack.c.l.s8.bf16 %v552
    %v1165 = vunpack.c.h.s8.bf16 %v547
    %v1166 = vunpack.c.h.s8.bf16 %v548
    %v1167 = vunpack.c.h.s8.bf16 %v549
    %v1168 = vunpack.c.h.s8.bf16 %v550
    %v1169 = vunpack.c.h.s8.bf16 %v551
    %v1170 = vunpack.c.h.s8.bf16 %v552
    %v1171 = vunpack.c.l.s8.bf16 %v553
    %v1172 = vunpack.c.l.s8.bf16 %v554
    %v1173 = vunpack.c.l.s8.bf16 %v555
    %v1174 = vunpack.c.l.s8.bf16 %v556
    %v1175 = vunpack.c.l.s8.bf16 %v557
    %v1176 = vunpack.c.l.s8.bf16 %v558
    %v1177 = vunpack.c.h.s8.bf16 %v553
    %v1178 = vunpack.c.h.s8.bf16 %v554
    %v1179 = vunpack.c.h.s8.bf16 %v555
    %v1180 = vunpack.c.h.s8.bf16 %v556
    %v1181 = vunpack.c.h.s8.bf16 %v557
    %v1182 = vunpack.c.h.s8.bf16 %v558
    %v1183 = vunpack.c.l.s8.bf16 %v559
    %v1184 = vunpack.c.l.s8.bf16 %v560
    %v1185 = vunpack.c.l.s8.bf16 %v561
    %v1186 = vunpack.c.l.s8.bf16 %v562
    %v1187 = vunpack.c.l.s8.bf16 %v563
    %v1188 = vunpack.c.l.s8.bf16 %v564
    %v1189 = vunpack.c.h.s8.bf16 %v559
    %v1190 = vunpack.c.h.s8.bf16 %v560
    %v1191 = vunpack.c.h.s8.bf16 %v561
    %v1192 = vunpack.c.h.s8.bf16 %v562
    %v1193 = vunpack.c.h.s8.bf16 %v563
    %v1194 = vunpack.c.h.s8.bf16 %v564
    %v1195 = vunpack.c.l.s8.bf16 %v565
    %v1196 = vunpack.c.l.s8.bf16 %v566
    %v1197 = vunpack.c.l.s8.bf16 %v567
    %v1198 = vunpack.c.l.s8.bf16 %v568
    %v1199 = vunpack.c.l.s8.bf16 %v569
    %v1200 = vunpack.c.l.s8.bf16 %v570
    %v1201 = vunpack.c.h.s8.bf16 %v565
    %v1202 = vunpack.c.h.s8.bf16 %v566
    %v1203 = vunpack.c.h.s8.bf16 %v567
    %v1204 = vunpack.c.h.s8.bf16 %v568
    %v1205 = vunpack.c.h.s8.bf16 %v569
    %v1206 = vunpack.c.h.s8.bf16 %v570
    %v1207 = vunpack.c.l.s8.bf16 %v571
    %v1208 = vunpack.c.l.s8.bf16 %v572
    %v1209 = vunpack.c.l.s8.bf16 %v573
    %v1210 = vunpack.c.l.s8.bf16 %v574
    %v1211 = vunpack.c.l.s8.bf16 %v575
    %v1212 = vunpack.c.l.s8.bf16 %v576
    %v1213 = vunpack.c.h.s8.bf16 %v571
    %v1214 = vunpack.c.h.s8.bf16 %v572
    %v1215 = vunpack.c.h.s8.bf16 %v573
    %v1216 = vunpack.c.h.s8.bf16 %v574
    %v1217 = vunpack.c.h.s8.bf16 %v575
    %v1218 = vunpack.c.h.s8.bf16 %v576
    %v1219 = vunpack.c.l.s8.bf16 %v577
    %v1220 = vunpack.c.l.s8.bf16 %v578
    %v1221 = vunpack.c.l.s8.bf16 %v579
    %v1222 = vunpack.c.l.s8.bf16 %v580
    %v1223 = vunpack.c.l.s8.bf16 %v581
    %v1224 = vunpack.c.l.s8.bf16 %v582
    %v1225 = vunpack.c.h.s8.bf16 %v577
    %v1226 = vunpack.c.h.s8.bf16 %v578
    %v1227 = vunpack.c.h.s8.bf16 %v579
    %v1228 = vunpack.c.h.s8.bf16 %v580
    %v1229 = vunpack.c.h.s8.bf16 %v581
    %v1230 = vunpack.c.h.s8.bf16 %v582
    %v1231 = vunpack.c.l.s8.bf16 %v583
    %v1232 = vunpack.c.l.s8.bf16 %v584
    %v1233 = vunpack.c.l.s8.bf16 %v585
    %v1234 = vunpack.c.l.s8.bf16 %v586
    %v1235 = vunpack.c.l.s8.bf16 %v587
    %v1236 = vunpack.c.l.s8.bf16 %v588
    %v1237 = vunpack.c.h.s8.bf16 %v583
    %v1238 = vunpack.c.h.s8.bf16 %v584
    %v1239 = vunpack.c.h.s8.bf16 %v585
    %v1240 = vunpack.c.h.s8.bf16 %v586
    %v1241 = vunpack.c.h.s8.bf16 %v587
    %v1242 = vunpack.c.h.s8.bf16 %v588
    %v1243 = vunpack.c.l.s8.bf16 %v589
    %v1244 = vunpack.c.l.s8.bf16 %v590
    %v1245 = vunpack.c.l.s8.bf16 %v591
    %v1246 = vunpack.c.l.s8.bf16 %v592
    %v1247 = vunpack.c.l.s8.bf16 %v593
    %v1248 = vunpack.c.l.s8.bf16 %v594
    %v1249 = vunpack.c.h.s8.bf16 %v589
    %v1250 = vunpack.c.h.s8.bf16 %v590
    %v1251 = vunpack.c.h.s8.bf16 %v591
    %v1252 = vunpack.c.h.s8.bf16 %v592
    %v1253 = vunpack.c.h.s8.bf16 %v593
    %v1254 = vunpack.c.h.s8.bf16 %v594
    %v1255 = vunpack.c.l.s8.bf16 %v595
    %v1256 = vunpack.c.l.s8.bf16 %v596
    %v1257 = vunpack.c.l.s8.bf16 %v597
    %v1258 = vunpack.c.l.s8.bf16 %v598
    %v1259 = vunpack.c.l.s8.bf16 %v599
    %v1260 = vunpack.c.l.s8.bf16 %v600
    %v1261 = vunpack.c.h.s8.bf16 %v595
    %v1262 = vunpack.c.h.s8.bf16 %v596
    %v1263 = vunpack.c.h.s8.bf16 %v597
    %v1264 = vunpack.c.h.s8.bf16 %v598
    %v1265 = vunpack.c.h.s8.bf16 %v599
    %v1266 = vunpack.c.h.s8.bf16 %v600
    %v1267 = vunpack.c.l.s8.bf16 %v601
    %v1268 = vunpack.c.l.s8.bf16 %v602
    %v1269 = vunpack.c.l.s8.bf16 %v603
    %v1270 = vunpack.c.l.s8.bf16 %v604
    %v1271 = vunpack.c.l.s8.bf16 %v605
    %v1272 = vunpack.c.l.s8.bf16 %v606
    %v1273 = vunpack.c.h.s8.bf16 %v601
    %v1274 = vunpack.c.h.s8.bf16 %v602
    %v1275 = vunpack.c.h.s8.bf16 %v603
    %v1276 = vunpack.c.h.s8.bf16 %v604
    %v1277 = vunpack.c.h.s8.bf16 %v605
    %v1278 = vunpack.c.h.s8.bf16 %v606
    %v1279 = vunpack.c.l.s8.bf16 %v607
    %v1280 = vunpack.c.l.s8.bf16 %v608
    %v1281 = vunpack.c.l.s8.bf16 %v609
    %v1282 = vunpack.c.l.s8.bf16 %v610
    %v1283 = vunpack.c.l.s8.bf16 %v611
    %v1284 = vunpack.c.l.s8.bf16 %v612
    %v1285 = vunpack.c.h.s8.bf16 %v607
    %v1286 = vunpack.c.h.s8.bf16 %v608
    %v1287 = vunpack.c.h.s8.bf16 %v609
    %v1288 = vunpack.c.h.s8.bf16 %v610
    %v1289 = vunpack.c.h.s8.bf16 %v611
    %v1290 = vunpack.c.h.s8.bf16 %v612
    %v1291 = vunpack.c.l.s8.bf16 %v613
    %v1292 = vunpack.c.l.s8.bf16 %v614
    %v1293 = vunpack.c.l.s8.bf16 %v615
    %v1294 = vunpack.c.l.s8.bf16 %v616
    %v1295 = vunpack.c.l.s8.bf16 %v617
    %v1296 = vunpack.c.l.s8.bf16 %v618
    %v1297 = vunpack.c.h.s8.bf16 %v613
    %v1298 = vunpack.c.h.s8.bf16 %v614
    %v1299 = vunpack.c.h.s8.bf16 %v615
    %v1300 = vunpack.c.h.s8.bf16 %v616
    %v1301 = vunpack.c.h.s8.bf16 %v617
    %v1302 = vunpack.c.h.s8.bf16 %v618
    %v1303 = vunpack.c.l.s8.bf16 %v619
    %v1304 = vunpack.c.l.s8.bf16 %v620
    %v1305 = vunpack.c.l.s8.bf16 %v621
    %v1306 = vunpack.c.l.s8.bf16 %v622
    %v1307 = vunpack.c.l.s8.bf16 %v623
    %v1308 = vunpack.c.l.s8.bf16 %v624
    %v1309 = vunpack.c.h.s8.bf16 %v619
    %v1310 = vunpack.c.h.s8.bf16 %v620
    %v1311 = vunpack.c.h.s8.bf16 %v621
    %v1312 = vunpack.c.h.s8.bf16 %v622
    %v1313 = vunpack.c.h.s8.bf16 %v623
    %v1314 = vunpack.c.h.s8.bf16 %v624
    %v1315 = vunpack.c.l.s8.bf16 %v625
    %v1316 = vunpack.c.l.s8.bf16 %v626
    %v1317 = vunpack.c.l.s8.bf16 %v627
    %v1318 = vunpack.c.l.s8.bf16 %v628
    %v1319 = vunpack.c.l.s8.bf16 %v629
    %v1320 = vunpack.c.l.s8.bf16 %v630
    %v1321 = vunpack.c.h.s8.bf16 %v625
    %v1322 = vunpack.c.h.s8.bf16 %v626
    %v1323 = vunpack.c.h.s8.bf16 %v627
    %v1324 = vunpack.c.h.s8.bf16 %v628
    %v1325 = vunpack.c.h.s8.bf16 %v629
    %v1326 = vunpack.c.h.s8.bf16 %v630
    %v1327 = vunpack.c.l.s8.bf16 %v631
    %v1328 = vunpack.c.l.s8.bf16 %v632
    %v1329 = vunpack.c.l.s8.bf16 %v633
    %v1330 = vunpack.c.l.s8.bf16 %v634
    %v1331 = vunpack.c.l.s8.bf16 %v635
    %v1332 = vunpack.c.l.s8.bf16 %v636
    %v1333 = vunpack.c.h.s8.bf16 %v631
    %v1334 = vunpack.c.h.s8.bf16 %v632
    %v1335 = vunpack.c.h.s8.bf16 %v633
    %v1336 = vunpack.c.h.s8.bf16 %v634
    %v1337 = vunpack.c.h.s8.bf16 %v635
    %v1338 = vunpack.c.h.s8.bf16 %v636
    %v1339 = vunpack.c.l.s8.bf16 %v637
    %v1340 = vunpack.c.l.s8.bf16 %v638
    %v1341 = vunpack.c.l.s8.bf16 %v639
    %v1342 = vunpack.c.l.s8.bf16 %v640
    %v1343 = vunpack.c.l.s8.bf16 %v641
    %v1344 = vunpack.c.l.s8.bf16 %v642
    %v1345 = vunpack.c.h.s8.bf16 %v637
    %v1346 = vunpack.c.h.s8.bf16 %v638
    %v1347 = vunpack.c.h.s8.bf16 %v639
    %v1348 = vunpack.c.h.s8.bf16 %v640
    %v1349 = vunpack.c.h.s8.bf16 %v641
    %v1350 = vunpack.c.h.s8.bf16 %v642
    %v1351 = vunpack.c.l.s8.bf16 %v643
    %v1352 = vunpack.c.l.s8.bf16 %v644
    %v1353 = vunpack.c.l.s8.bf16 %v645
    %v1354 = vunpack.c.l.s8.bf16 %v646
    %v1355 = vunpack.c.l.s8.bf16 %v647
    %v1356 = vunpack.c.l.s8.bf16 %v648
    %v1357 = vunpack.c.h.s8.bf16 %v643
    %v1358 = vunpack.c.h.s8.bf16 %v644
    %v1359 = vunpack.c.h.s8.bf16 %v645
    %v1360 = vunpack.c.h.s8.bf16 %v646
    %v1361 = vunpack.c.h.s8.bf16 %v647
    %v1362 = vunpack.c.h.s8.bf16 %v648
    %v1363 = vunpack.c.l.s8.bf16 %v649
    %v1364 = vunpack.c.l.s8.bf16 %v650
    %v1365 = vunpack.c.l.s8.bf16 %v651
    %v1366 = vunpack.c.l.s8.bf16 %v652
    %v1367 = vunpack.c.l.s8.bf16 %v653
    %v1368 = vunpack.c.l.s8.bf16 %v654
    %v1369 = vunpack.c.h.s8.bf16 %v649
    %v1370 = vunpack.c.h.s8.bf16 %v650
    %v1371 = vunpack.c.h.s8.bf16 %v651
    %v1372 = vunpack.c.h.s8.bf16 %v652
    %v1373 = vunpack.c.h.s8.bf16 %v653
    %v1374 = vunpack.c.h.s8.bf16 %v654
    %v1375 = vunpack.c.l.s8.bf16 %v655
    %v1376 = vunpack.c.l.s8.bf16 %v656
    %v1377 = vunpack.c.l.s8.bf16 %v657
    %v1378 = vunpack.c.l.s8.bf16 %v658
    %v1379 = vunpack.c.l.s8.bf16 %v659
    %v1380 = vunpack.c.l.s8.bf16 %v660
    %v1381 = vunpack.c.h.s8.bf16 %v655
    %v1382 = vunpack.c.h.s8.bf16 %v656
    %v1383 = vunpack.c.h.s8.bf16 %v657
    %v1384 = vunpack.c.h.s8.bf16 %v658
    %v1385 = vunpack.c.h.s8.bf16 %v659
    %v1386 = vunpack.c.h.s8.bf16 %v660
    %v1387 = vunpack.c.l.s8.bf16 %v661
    %v1388 = vunpack.c.l.s8.bf16 %v662
    %v1389 = vunpack.c.l.s8.bf16 %v663
    %v1390 = vunpack.c.l.s8.bf16 %v664
    %v1391 = vunpack.c.l.s8.bf16 %v665
    %v1392 = vunpack.c.l.s8.bf16 %v666
    %v1393 = vunpack.c.h.s8.bf16 %v661
    %v1394 = vunpack.c.h.s8.bf16 %v662
    %v1395 = vunpack.c.h.s8.bf16 %v663
    %v1396 = vunpack.c.h.s8.bf16 %v664
    %v1397 = vunpack.c.h.s8.bf16 %v665
    %v1398 = vunpack.c.h.s8.bf16 %v666
    %v1399 = vunpack.c.l.s8.bf16 %v667
    %v1400 = vunpack.c.l.s8.bf16 %v668
    %v1401 = vunpack.c.l.s8.bf16 %v669
    %v1402 = vunpack.c.l.s8.bf16 %v670
    %v1403 = vunpack.c.l.s8.bf16 %v671
    %v1404 = vunpack.c.l.s8.bf16 %v672
    %v1405 = vunpack.c.h.s8.bf16 %v667
    %v1406 = vunpack.c.h.s8.bf16 %v668
    %v1407 = vunpack.c.h.s8.bf16 %v669
    %v1408 = vunpack.c.h.s8.bf16 %v670
    %v1409 = vunpack.c.h.s8.bf16 %v671
    %v1410 = vunpack.c.h.s8.bf16 %v672
    %v1411 = vunpack.c.l.s8.bf16 %v673
    %v1412 = vunpack.c.l.s8.bf16 %v674
    %v1413 = vunpack.c.l.s8.bf16 %v675
    %v1414 = vunpack.c.l.s8.bf16 %v676
    %v1415 = vunpack.c.l.s8.bf16 %v677
    %v1416 = vunpack.c.l.s8.bf16 %v678
    %v1417 = vunpack.c.h.s8.bf16 %v673
    %v1418 = vunpack.c.h.s8.bf16 %v674
    %v1419 = vunpack.c.h.s8.bf16 %v675
    %v1420 = vunpack.c.h.s8.bf16 %v676
    %v1421 = vunpack.c.h.s8.bf16 %v677
    %v1422 = vunpack.c.h.s8.bf16 %v678
    %v1423 = vunpack.c.l.s8.bf16 %v679
    %v1424 = vunpack.c.l.s8.bf16 %v680
    %v1425 = vunpack.c.l.s8.bf16 %v681
    %v1426 = vunpack.c.l.s8.bf16 %v682
    %v1427 = vunpack.c.l.s8.bf16 %v683
    %v1428 = vunpack.c.l.s8.bf16 %v684
    %v1429 = vunpack.c.h.s8.bf16 %v679
    %v1430 = vunpack.c.h.s8.bf16 %v680
    %v1431 = vunpack.c.h.s8.bf16 %v681
    %v1432 = vunpack.c.h.s8.bf16 %v682
    %v1433 = vunpack.c.h.s8.bf16 %v683
    %v1434 = vunpack.c.h.s8.bf16 %v684
    %v1435 = vunpack.c.l.s8.bf16 %v685
    %v1436 = vunpack.c.l.s8.bf16 %v686
    %v1437 = vunpack.c.l.s8.bf16 %v687
    %v1438 = vunpack.c.l.s8.bf16 %v688
    %v1439 = vunpack.c.l.s8.bf16 %v689
    %v1440 = vunpack.c.l.s8.bf16 %v690
    %v1441 = vunpack.c.h.s8.bf16 %v685
    %v1442 = vunpack.c.h.s8.bf16 %v686
    %v1443 = vunpack.c.h.s8.bf16 %v687
    %v1444 = vunpack.c.h.s8.bf16 %v688
    %v1445 = vunpack.c.h.s8.bf16 %v689
    %v1446 = vunpack.c.h.s8.bf16 %v690
    %v1447 = vunpack.c.l.s8.bf16 %v691
    %v1448 = vunpack.c.l.s8.bf16 %v692
    %v1449 = vunpack.c.l.s8.bf16 %v693
    %v1450 = vunpack.c.l.s8.bf16 %v694
    %v1451 = vunpack.c.l.s8.bf16 %v695
    %v1452 = vunpack.c.l.s8.bf16 %v696
    %v1453 = vunpack.c.h.s8.bf16 %v691
    %v1454 = vunpack.c.h.s8.bf16 %v692
    %v1455 = vunpack.c.h.s8.bf16 %v693
    %v1456 = vunpack.c.h.s8.bf16 %v694
    %v1457 = vunpack.c.h.s8.bf16 %v695
    %v1458 = vunpack.c.h.s8.bf16 %v696
    %v1459 = vunpack.c.l.s8.bf16 %v697
    %v1460 = vunpack.c.l.s8.bf16 %v698
    %v1461 = vunpack.c.l.s8.bf16 %v699
    %v1462 = vunpack.c.l.s8.bf16 %v700
    %v1463 = vunpack.c.l.s8.bf16 %v701
    %v1464 = vunpack.c.l.s8.bf16 %v702
    %v1465 = vunpack.c.h.s8.bf16 %v697
    %v1466 = vunpack.c.h.s8.bf16 %v698
    %v1467 = vunpack.c.h.s8.bf16 %v699
    %v1468 = vunpack.c.h.s8.bf16 %v700
    %v1469 = vunpack.c.h.s8.bf16 %v701
    %v1470 = vunpack.c.h.s8.bf16 %v702
    %v1471 = vunpack.c.l.s8.bf16 %v703
    %v1472 = vunpack.c.l.s8.bf16 %v704
    %v1473 = vunpack.c.l.s8.bf16 %v705
    %v1474 = vunpack.c.l.s8.bf16 %v706
    %v1475 = vunpack.c.l.s8.bf16 %v707
    %v1476 = vunpack.c.l.s8.bf16 %v708
    %v1477 = vunpack.c.h.s8.bf16 %v703
    %v1478 = vunpack.c.h.s8.bf16 %v704
    %v1479 = vunpack.c.h.s8.bf16 %v705
    %v1480 = vunpack.c.h.s8.bf16 %v706
    %v1481 = vunpack.c.h.s8.bf16 %v707
    %v1482 = vunpack.c.h.s8.bf16 %v708
    %v1483 = vunpack.c.l.s8.bf16 %v709
    %v1484 = vunpack.c.l.s8.bf16 %v710
    %v1485 = vunpack.c.l.s8.bf16 %v711
    %v1486 = vunpack.c.l.s8.bf16 %v712
    %v1487 = vunpack.c.l.s8.bf16 %v713
    %v1488 = vunpack.c.l.s8.bf16 %v714
    %v1489 = vunpack.c.h.s8.bf16 %v709
    %v1490 = vunpack.c.h.s8.bf16 %v710
    %v1491 = vunpack.c.h.s8.bf16 %v711
    %v1492 = vunpack.c.h.s8.bf16 %v712
    %v1493 = vunpack.c.h.s8.bf16 %v713
    %v1494 = vunpack.c.h.s8.bf16 %v714
    %v1495 = vunpack.c.l.s8.bf16 %v715
    %v1496 = vunpack.c.l.s8.bf16 %v716
    %v1497 = vunpack.c.l.s8.bf16 %v717
    %v1498 = vunpack.c.l.s8.bf16 %v718
    %v1499 = vunpack.c.l.s8.bf16 %v719
    %v1500 = vunpack.c.l.s8.bf16 %v720
    %v1501 = vunpack.c.h.s8.bf16 %v715
    %v1502 = vunpack.c.h.s8.bf16 %v716
    %v1503 = vunpack.c.h.s8.bf16 %v717
    %v1504 = vunpack.c.h.s8.bf16 %v718
    %v1505 = vunpack.c.h.s8.bf16 %v719
    %v1506 = vunpack.c.h.s8.bf16 %v720
    %v1507 = vunpack.c.l.s8.bf16 %v721
    %v1508 = vunpack.c.l.s8.bf16 %v722
    %v1509 = vunpack.c.l.s8.bf16 %v723
    %v1510 = vunpack.c.l.s8.bf16 %v724
    %v1511 = vunpack.c.l.s8.bf16 %v725
    %v1512 = vunpack.c.l.s8.bf16 %v726
    %v1513 = vunpack.c.h.s8.bf16 %v721
    %v1514 = vunpack.c.h.s8.bf16 %v722
    %v1515 = vunpack.c.h.s8.bf16 %v723
    %v1516 = vunpack.c.h.s8.bf16 %v724
    %v1517 = vunpack.c.h.s8.bf16 %v725
    %v1518 = vunpack.c.h.s8.bf16 %v726
    %v1519 = vunpack.c.l.s8.bf16 %v727
    %v1520 = vunpack.c.l.s8.bf16 %v728
    %v1521 = vunpack.c.l.s8.bf16 %v729
    %v1522 = vunpack.c.l.s8.bf16 %v730
    %v1523 = vunpack.c.l.s8.bf16 %v731
    %v1524 = vunpack.c.l.s8.bf16 %v732
    %v1525 = vunpack.c.h.s8.bf16 %v727
    %v1526 = vunpack.c.h.s8.bf16 %v728
    %v1527 = vunpack.c.h.s8.bf16 %v729
    %v1528 = vunpack.c.h.s8.bf16 %v730
    %v1529 = vunpack.c.h.s8.bf16 %v731
    %v1530 = vunpack.c.h.s8.bf16 %v732
    %v1531 = vunpack.c.l.s8.bf16 %v733
    %v1532 = vunpack.c.l.s8.bf16 %v734
    %v1533 = vunpack.c.l.s8.bf16 %v735
    %v1534 = vunpack.c.l.s8.bf16 %v736
    %v1535 = vunpack.c.l.s8.bf16 %v737
    %v1536 = vunpack.c.l.s8.bf16 %v738
    %v1537 = vunpack.c.h.s8.bf16 %v733
    %v1538 = vunpack.c.h.s8.bf16 %v734
    %v1539 = vunpack.c.h.s8.bf16 %v735
    %v1540 = vunpack.c.h.s8.bf16 %v736
    %v1541 = vunpack.c.h.s8.bf16 %v737
    %v1542 = vunpack.c.h.s8.bf16 %v738
    %v1543 = vunpack.c.l.s8.bf16 %v739
    %v1544 = vunpack.c.l.s8.bf16 %v740
    %v1545 = vunpack.c.l.s8.bf16 %v741
    %v1546 = vunpack.c.l.s8.bf16 %v742
    %v1547 = vunpack.c.l.s8.bf16 %v743
    %v1548 = vunpack.c.l.s8.bf16 %v744
    %v1549 = vunpack.c.h.s8.bf16 %v739
    %v1550 = vunpack.c.h.s8.bf16 %v740
    %v1551 = vunpack.c.h.s8.bf16 %v741
    %v1552 = vunpack.c.h.s8.bf16 %v742
    %v1553 = vunpack.c.h.s8.bf16 %v743
    %v1554 = vunpack.c.h.s8.bf16 %v744
    %v1555 = vunpack.c.l.s8.bf16 %v745
    %v1556 = vunpack.c.l.s8.bf16 %v746
    %v1557 = vunpack.c.l.s8.bf16 %v747
    %v1558 = vunpack.c.l.s8.bf16 %v748
    %v1559 = vunpack.c.l.s8.bf16 %v749
    %v1560 = vunpack.c.l.s8.bf16 %v750
    %v1561 = vunpack.c.h.s8.bf16 %v745
    %v1562 = vunpack.c.h.s8.bf16 %v746
    %v1563 = vunpack.c.h.s8.bf16 %v747
    %v1564 = vunpack.c.h.s8.bf16 %v748
    %v1565 = vunpack.c.h.s8.bf16 %v749
    %v1566 = vunpack.c.h.s8.bf16 %v750
    %v1585 = vunpack.c.l.b16 %v325
    %v1586 = vunpack.c.h.b16 %v325
    %v1587 = vunpack.c.l.b16 %v326
    %v1588 = vunpack.c.h.b16 %v326
    %v1589 = vunpack.c.l.b16 %v327
    %v1590 = vunpack.c.h.b16 %v327
    %v1591 = vunpack.c.l.b16 %v328
    %v1592 = vunpack.c.h.b16 %v328
    %v1593 = vunpack.c.l.b16 %v329
    %v1594 = vunpack.c.h.b16 %v329
    %v1595 = vunpack.c.l.b16 %v330
    %v1596 = vunpack.c.h.b16 %v330
    %v1597 = vunpack.c.l.b16 %v331
    %v1598 = vunpack.c.h.b16 %v331
    %v1599 = vunpack.c.l.b16 %v332
    %v1600 = vunpack.c.h.b16 %v332
    %v1601 = vunpack.c.l.b16 %v333
    %v1602 = vunpack.c.l.b16 %v334
    %v1603 = vunpack.c.h.b16 %v334
    %v1604 = vunpack.c.l.b16 %v335
    %v1605 = vunpack.c.h.b16 %v335
    %v1606 = vunpack.c.l.b16 %v336
    %v1607 = vunpack.c.h.b16 %v336
    %v1608 = vunpack.c.l.b16 %v337
    %v1609 = vunpack.c.h.b16 %v337
    %v1610 = vunpack.c.l.b16 %v338
    %v1611 = vunpack.c.h.b16 %v338
    %v1612 = vunpack.c.l.b16 %v339
    %v1613 = vunpack.c.h.b16 %v339
    %v1614 = vunpack.c.l.b16 %v340
    %v1615 = vunpack.c.h.b16 %v340
    %v1616 = vunpack.c.l.b16 %v341
    %v1617 = vunpack.c.h.b16 %v341
    %v1618 = vunpack.c.l.b16 %v342
    %v1619 = vpack.c.b16 %v1602, %v1585
    %v1620 = vpack.c.b16 %v1603, %v1586
    %v1621 = vpack.c.b16 %v1604, %v1587
    %v1622 = vpack.c.b16 %v1605, %v1588
    %v1623 = vpack.c.b16 %v1606, %v1589
    %v1624 = vpack.c.b16 %v1607, %v1590
    %v1625 = vpack.c.b16 %v1608, %v1591
    %v1626 = vpack.c.b16 %v1609, %v1592
    %v1627 = vpack.c.b16 %v1610, %v1593
    %v1628 = vpack.c.b16 %v1611, %v1594
    %v1629 = vpack.c.b16 %v1612, %v1595
    %v1630 = vpack.c.b16 %v1613, %v1596
    %v1631 = vpack.c.b16 %v1614, %v1597
    %v1632 = vpack.c.b16 %v1615, %v1598
    %v1633 = vpack.c.b16 %v1616, %v1599
    %v1634 = vpack.c.b16 %v1617, %v1600
    %v1635 = vpack.c.b16 %v1618, %v1601
    %1653 = vmatprep.subr.bf16.mxu0 %v752
    %1654 = vmatpush1.bf16.msra.mxu0 %v751
    %1655 = vmatprep.subr.bf16.mxu0 %v758
    %1656 = vmatpush1.bf16.msra.mxu0 %v757
    %1657 = vmatprep.subr.bf16.mxu0 %v764
    %1658 = vmatpush1.bf16.msra.mxu0 %v763
    %1659 = vmatprep.subr.bf16.mxu0 %v770
    %1660 = vmatpush1.bf16.msra.mxu0 %v769
    %1661 = vmatprep.subr.bf16.mxu0 %v776
    %1662 = vmatpush1.bf16.msra.mxu0 %v775
    %1663 = vmatprep.subr.bf16.mxu0 %v782
    %1664 = vmatpush1.bf16.msra.mxu0 %v781
    %1665 = vmatprep.subr.bf16.mxu0 %v788
    %1666 = vmatpush1.bf16.msra.mxu0 %v787
    %1667 = vmatprep.subr.bf16.mxu0 %v794
    %1668 = vmatpush1.bf16.msra.mxu0 %v793
    %1669 = vmatprep.subr.bf16.mxu0 %v800
    %1670 = vmatpush1.bf16.msra.mxu0 %v799
    %1671 = vmatprep.subr.bf16.mxu0 %v806
    %1672 = vmatpush1.bf16.msra.mxu0 %v805
    %1673 = vmatprep.subr.bf16.mxu0 %v812
    %1674 = vmatpush1.bf16.msra.mxu0 %v811
    %1675 = vmatprep.subr.bf16.mxu0 %v818
    %1676 = vmatpush1.bf16.msra.mxu0 %v817
    %1677 = vmatprep.subr.bf16.mxu0 %v824
    %1678 = vmatpush1.bf16.msra.mxu0 %v823
    %1679 = vmatprep.subr.bf16.mxu0 %v830
    %1680 = vmatpush1.bf16.msra.mxu0 %v829
    %1681 = vmatprep.subr.bf16.mxu0 %v836
    %1682 = vmatpush1.bf16.msra.mxu0 %v835
    %1683 = vmatprep.subr.bf16.mxu0 %v842
    %1684 = vmatpush1.bf16.msra.mxu0 %v841
    %1685 = vmatprep.mubr.bf16.mxu0 %v1620
    %1686 = vmatmul.mubr.bf16.gmra.mrb[0].mxu0 %v1619
    %v1687 = vpop.f32.mrb[0].mxu0
    %v1688 = vadd.f32 0.0, %v1687
    %v1689 = vpop.f32.mrb[0].mxu0
    %v1690 = vadd.f32 0.0, %v1689
    %v1691 = vpop.f32.mrb[0].mxu0
    %v1692 = vadd.f32 0.0, %v1691
    %v1693 = vpop.f32.mrb[0].mxu0
    %v1694 = vadd.f32 0.0, %v1693
    %1695 = vdwg.mxu0
    %1696 = vmatprep.subr.bf16.mxu0 %v848
    %1697 = vmatpush1.bf16.msra.mxu0 %v847
    %1698 = vmatprep.subr.bf16.mxu0 %v854
    %1699 = vmatpush1.bf16.msra.mxu0 %v853
    %1700 = vmatprep.subr.bf16.mxu0 %v860
    %1701 = vmatpush1.bf16.msra.mxu0 %v859
    %1702 = vmatprep.subr.bf16.mxu0 %v866
    %1703 = vmatpush1.bf16.msra.mxu0 %v865
    %1704 = vmatprep.subr.bf16.mxu0 %v872
    %1705 = vmatpush1.bf16.msra.mxu0 %v871
    %1706 = vmatprep.subr.bf16.mxu0 %v878
    %1707 = vmatpush1.bf16.msra.mxu0 %v877
    %1708 = vmatprep.subr.bf16.mxu0 %v884
    %1709 = vmatpush1.bf16.msra.mxu0 %v883
    %1710 = vmatprep.subr.bf16.mxu0 %v890
    %1711 = vmatpush1.bf16.msra.mxu0 %v889
    %1712 = vmatprep.subr.bf16.mxu0 %v896
    %1713 = vmatpush1.bf16.msra.mxu0 %v895
    %1714 = vmatprep.subr.bf16.mxu0 %v902
    %1715 = vmatpush1.bf16.msra.mxu0 %v901
    %1716 = vmatprep.subr.bf16.mxu0 %v908
    %1717 = vmatpush1.bf16.msra.mxu0 %v907
    %1718 = vmatprep.subr.bf16.mxu0 %v914
    %1719 = vmatpush1.bf16.msra.mxu0 %v913
    %1720 = vmatprep.subr.bf16.mxu0 %v920
    %1721 = vmatpush1.bf16.msra.mxu0 %v919
    %1722 = vmatprep.subr.bf16.mxu0 %v926
    %1723 = vmatpush1.bf16.msra.mxu0 %v925
    %1724 = vmatprep.subr.bf16.mxu0 %v932
    %1725 = vmatpush1.bf16.msra.mxu0 %v931
    %1726 = vmatprep.subr.bf16.mxu0 %v938
    %1727 = vmatpush1.bf16.msra.mxu0 %v937
    %1728 = vmatprep.mubr.bf16.mxu0 %v1622
    %1729 = vmatmul.mubr.bf16.gmra.mrb[0].mxu0 %v1621
    %v1730 = vpop.f32.mrb[0].mxu0
    %v1731 = vadd.f32 %v1688, %v1730
    %v1732 = vpop.f32.mrb[0].mxu0
    %v1733 = vadd.f32 %v1690, %v1732
    %v1734 = vpop.f32.mrb[0].mxu0
    %v1735 = vadd.f32 %v1692, %v1734
    %v1736 = vpop.f32.mrb[0].mxu0
    %v1737 = vadd.f32 %v1694, %v1736
    %1738 = vdwg.mxu0
    %1739 = vmatprep.subr.bf16.mxu0 %v944
    %1740 = vmatpush1.bf16.msra.mxu0 %v943
    %1741 = vmatprep.subr.bf16.mxu0 %v950
    %1742 = vmatpush1.bf16.msra.mxu0 %v949
    %1743 = vmatprep.subr.bf16.mxu0 %v956
    %1744 = vmatpush1.bf16.msra.mxu0 %v955
    %1745 = vmatprep.subr.bf16.mxu0 %v962
    %1746 = vmatpush1.bf16.msra.mxu0 %v961
    %1747 = vmatprep.subr.bf16.mxu0 %v968
    %1748 = vmatpush1.bf16.msra.mxu0 %v967
    %1749 = vmatprep.subr.bf16.mxu0 %v974
    %1750 = vmatpush1.bf16.msra.mxu0 %v973
    %1751 = vmatprep.subr.bf16.mxu0 %v980
    %1752 = vmatpush1.bf16.msra.mxu0 %v979
    %1753 = vmatprep.subr.bf16.mxu0 %v986
    %1754 = vmatpush1.bf16.msra.mxu0 %v985
    %1755 = vmatprep.subr.bf16.mxu0 %v992
    %1756 = vmatpush1.bf16.msra.mxu0 %v991
    %1757 = vmatprep.subr.bf16.mxu0 %v998
    %1758 = vmatpush1.bf16.msra.mxu0 %v997
    %1759 = vmatprep.subr.bf16.mxu0 %v1004
    %1760 = vmatpush1.bf16.msra.mxu0 %v1003
    %1761 = vmatprep.subr.bf16.mxu0 %v1010
    %1762 = vmatpush1.bf16.msra.mxu0 %v1009
    %1763 = vmatprep.subr.bf16.mxu0 %v1016
    %1764 = vmatpush1.bf16.msra.mxu0 %v1015
    %1765 = vmatprep.subr.bf16.mxu0 %v1022
    %1766 = vmatpush1.bf16.msra.mxu0 %v1021
    %1767 = vmatprep.subr.bf16.mxu0 %v1028
    %1768 = vmatpush1.bf16.msra.mxu0 %v1027
    %1769 = vmatprep.subr.bf16.mxu0 %v1034
    %1770 = vmatpush1.bf16.msra.mxu0 %v1033
    %1771 = vmatprep.mubr.bf16.mxu0 %v1624
    %1772 = vmatmul.mubr.bf16.gmra.mrb[0].mxu0 %v1623
    %v1773 = vpop.f32.mrb[0].mxu0
    %v1774 = vadd.f32 %v1731, %v1773
    %v1775 = vpop.f32.mrb[0].mxu0
    %v1776 = vadd.f32 %v1733, %v1775
    %v1777 = vpop.f32.mrb[0].mxu0
    %v1778 = vadd.f32 %v1735, %v1777
    %v1779 = vpop.f32.mrb[0].mxu0
    %v1780 = vadd.f32 %v1737, %v1779
    %1781 = vdwg.mxu0
    %1782 = vmatprep.subr.bf16.mxu0 %v1040
    %1783 = vmatpush1.bf16.msra.mxu0 %v1039
    %1784 = vmatprep.subr.bf16.mxu0 %v1046
    %1785 = vmatpush1.bf16.msra.mxu0 %v1045
    %1786 = vmatprep.subr.bf16.mxu0 %v1052
    %1787 = vmatpush1.bf16.msra.mxu0 %v1051
    %1788 = vmatprep.subr.bf16.mxu0 %v1058
    %1789 = vmatpush1.bf16.msra.mxu0 %v1057
    %1790 = vmatprep.subr.bf16.mxu0 %v1064
    %1791 = vmatpush1.bf16.msra.mxu0 %v1063
    %1792 = vmatprep.subr.bf16.mxu0 %v1070
    %1793 = vmatpush1.bf16.msra.mxu0 %v1069
    %1794 = vmatprep.subr.bf16.mxu0 %v1076
    %1795 = vmatpush1.bf16.msra.mxu0 %v1075
    %1796 = vmatprep.subr.bf16.mxu0 %v1082
    %1797 = vmatpush1.bf16.msra.mxu0 %v1081
    %1798 = vmatprep.subr.bf16.mxu0 %v1088
    %1799 = vmatpush1.bf16.msra.mxu0 %v1087
    %1800 = vmatprep.subr.bf16.mxu0 %v1094
    %1801 = vmatpush1.bf16.msra.mxu0 %v1093
    %1802 = vmatprep.subr.bf16.mxu0 %v1100
    %1803 = vmatpush1.bf16.msra.mxu0 %v1099
    %1804 = vmatprep.subr.bf16.mxu0 %v1106
    %1805 = vmatpush1.bf16.msra.mxu0 %v1105
    %1806 = vmatprep.subr.bf16.mxu0 %v1112
    %1807 = vmatpush1.bf16.msra.mxu0 %v1111
    %1808 = vmatprep.subr.bf16.mxu0 %v1118
    %1809 = vmatpush1.bf16.msra.mxu0 %v1117
    %1810 = vmatprep.subr.bf16.mxu0 %v1124
    %1811 = vmatpush1.bf16.msra.mxu0 %v1123
    %1812 = vmatprep.subr.bf16.mxu0 %v1130
    %1813 = vmatpush1.bf16.msra.mxu0 %v1129
    %1814 = vmatprep.mubr.bf16.mxu0 %v1626
    %1815 = vmatmul.mubr.bf16.gmra.mrb[0].mxu0 %v1625
    %v1816 = vpop.f32.mrb[0].mxu0
    %v1817 = vadd.f32 %v1774, %v1816
    %v1818 = vpop.f32.mrb[0].mxu0
    %v1819 = vadd.f32 %v1776, %v1818
    %v1820 = vpop.f32.mrb[0].mxu0
    %v1821 = vadd.f32 %v1778, %v1820
    %v1822 = vpop.f32.mrb[0].mxu0
    %v1823 = vadd.f32 %v1780, %v1822
    %1824 = vdwg.mxu0
    %1825 = vmatprep.subr.bf16.mxu0 %v1136
    %1826 = vmatpush1.bf16.msra.mxu0 %v1135
    %1827 = vmatprep.subr.bf16.mxu0 %v1142
    %1828 = vmatpush1.bf16.msra.mxu0 %v1141
    %1829 = vmatprep.subr.bf16.mxu0 %v1148
    %1830 = vmatpush1.bf16.msra.mxu0 %v1147
    %1831 = vmatprep.subr.bf16.mxu0 %v1154
    %1832 = vmatpush1.bf16.msra.mxu0 %v1153
    %1833 = vmatprep.subr.bf16.mxu0 %v1160
    %1834 = vmatpush1.bf16.msra.mxu0 %v1159
    %1835 = vmatprep.subr.bf16.mxu0 %v1166
    %1836 = vmatpush1.bf16.msra.mxu0 %v1165
    %1837 = vmatprep.subr.bf16.mxu0 %v1172
    %1838 = vmatpush1.bf16.msra.mxu0 %v1171
    %1839 = vmatprep.subr.bf16.mxu0 %v1178
    %1840 = vmatpush1.bf16.msra.mxu0 %v1177
    %1841 = vmatprep.subr.bf16.mxu0 %v1184
    %1842 = vmatpush1.bf16.msra.mxu0 %v1183
    %1843 = vmatprep.subr.bf16.mxu0 %v1190
    %1844 = vmatpush1.bf16.msra.mxu0 %v1189
    %1845 = vmatprep.subr.bf16.mxu0 %v1196
    %1846 = vmatpush1.bf16.msra.mxu0 %v1195
    %1847 = vmatprep.subr.bf16.mxu0 %v1202
    %1848 = vmatpush1.bf16.msra.mxu0 %v1201
    %1849 = vmatprep.subr.bf16.mxu0 %v1208
    %1850 = vmatpush1.bf16.msra.mxu0 %v1207
    %1851 = vmatprep.subr.bf16.mxu0 %v1214
    %1852 = vmatpush1.bf16.msra.mxu0 %v1213
    %1853 = vmatprep.subr.bf16.mxu0 %v1220
    %1854 = vmatpush1.bf16.msra.mxu0 %v1219
    %1855 = vmatprep.subr.bf16.mxu0 %v1226
    %1856 = vmatpush1.bf16.msra.mxu0 %v1225
    %1857 = vmatprep.mubr.bf16.mxu0 %v1628
    %1858 = vmatmul.mubr.bf16.gmra.mrb[0].mxu0 %v1627
    %v1859 = vpop.f32.mrb[0].mxu0
    %v1860 = vadd.f32 %v1817, %v1859
    %v1861 = vpop.f32.mrb[0].mxu0
    %v1862 = vadd.f32 %v1819, %v1861
    %v1863 = vpop.f32.mrb[0].mxu0
    %v1864 = vadd.f32 %v1821, %v1863
    %v1865 = vpop.f32.mrb[0].mxu0
    %v1866 = vadd.f32 %v1823, %v1865
    %1867 = vdwg.mxu0
    %1868 = vmatprep.subr.bf16.mxu0 %v1232
    %1869 = vmatpush1.bf16.msra.mxu0 %v1231
    %1870 = vmatprep.subr.bf16.mxu0 %v1238
    %1871 = vmatpush1.bf16.msra.mxu0 %v1237
    %1872 = vmatprep.subr.bf16.mxu0 %v1244
    %1873 = vmatpush1.bf16.msra.mxu0 %v1243
    %1874 = vmatprep.subr.bf16.mxu0 %v1250
    %1875 = vmatpush1.bf16.msra.mxu0 %v1249
    %1876 = vmatprep.subr.bf16.mxu0 %v1256
    %1877 = vmatpush1.bf16.msra.mxu0 %v1255
    %1878 = vmatprep.subr.bf16.mxu0 %v1262
    %1879 = vmatpush1.bf16.msra.mxu0 %v1261
    %1880 = vmatprep.subr.bf16.mxu0 %v1268
    %1881 = vmatpush1.bf16.msra.mxu0 %v1267
    %1882 = vmatprep.subr.bf16.mxu0 %v1274
    %1883 = vmatpush1.bf16.msra.mxu0 %v1273
    %1884 = vmatprep.subr.bf16.mxu0 %v1280
    %1885 = vmatpush1.bf16.msra.mxu0 %v1279
    %1886 = vmatprep.subr.bf16.mxu0 %v1286
    %1887 = vmatpush1.bf16.msra.mxu0 %v1285
    %1888 = vmatprep.subr.bf16.mxu0 %v1292
    %1889 = vmatpush1.bf16.msra.mxu0 %v1291
    %1890 = vmatprep.subr.bf16.mxu0 %v1298
    %1891 = vmatpush1.bf16.msra.mxu0 %v1297
    %1892 = vmatprep.subr.bf16.mxu0 %v1304
    %1893 = vmatpush1.bf16.msra.mxu0 %v1303
    %1894 = vmatprep.subr.bf16.mxu0 %v1310
    %1895 = vmatpush1.bf16.msra.mxu0 %v1309
    %1896 = vmatprep.subr.bf16.mxu0 %v1316
    %1897 = vmatpush1.bf16.msra.mxu0 %v1315
    %1898 = vmatprep.subr.bf16.mxu0 %v1322
    %1899 = vmatpush1.bf16.msra.mxu0 %v1321
    %1900 = vmatprep.mubr.bf16.mxu0 %v1630
    %1901 = vmatmul.mubr.bf16.gmra.mrb[0].mxu0 %v1629
    %v1902 = vpop.f32.mrb[0].mxu0
    %v1903 = vadd.f32 %v1860, %v1902
    %v1904 = vpop.f32.mrb[0].mxu0
    %v1905 = vadd.f32 %v1862, %v1904
    %v1906 = vpop.f32.mrb[0].mxu0
    %v1907 = vadd.f32 %v1864, %v1906
    %v1908 = vpop.f32.mrb[0].mxu0
    %v1909 = vadd.f32 %v1866, %v1908
    %1910 = vdwg.mxu0
    %1911 = vmatprep.subr.bf16.mxu0 %v1328
    %1912 = vmatpush1.bf16.msra.mxu0 %v1327
    %1913 = vmatprep.subr.bf16.mxu0 %v1334
    %1914 = vmatpush1.bf16.msra.mxu0 %v1333
    %1915 = vmatprep.subr.bf16.mxu0 %v1340
    %1916 = vmatpush1.bf16.msra.mxu0 %v1339
    %1917 = vmatprep.subr.bf16.mxu0 %v1346
    %1918 = vmatpush1.bf16.msra.mxu0 %v1345
    %1919 = vmatprep.subr.bf16.mxu0 %v1352
    %1920 = vmatpush1.bf16.msra.mxu0 %v1351
    %1921 = vmatprep.subr.bf16.mxu0 %v1358
    %1922 = vmatpush1.bf16.msra.mxu0 %v1357
    %1923 = vmatprep.subr.bf16.mxu0 %v1364
    %1924 = vmatpush1.bf16.msra.mxu0 %v1363
    %1925 = vmatprep.subr.bf16.mxu0 %v1370
    %1926 = vmatpush1.bf16.msra.mxu0 %v1369
    %1927 = vmatprep.subr.bf16.mxu0 %v1376
    %1928 = vmatpush1.bf16.msra.mxu0 %v1375
    %1929 = vmatprep.subr.bf16.mxu0 %v1382
    %1930 = vmatpush1.bf16.msra.mxu0 %v1381
    %1931 = vmatprep.subr.bf16.mxu0 %v1388
    %1932 = vmatpush1.bf16.msra.mxu0 %v1387
    %1933 = vmatprep.subr.bf16.mxu0 %v1394
    %1934 = vmatpush1.bf16.msra.mxu0 %v1393
    %1935 = vmatprep.subr.bf16.mxu0 %v1400
    %1936 = vmatpush1.bf16.msra.mxu0 %v1399
    %1937 = vmatprep.subr.bf16.mxu0 %v1406
    %1938 = vmatpush1.bf16.msra.mxu0 %v1405
    %1939 = vmatprep.subr.bf16.mxu0 %v1412
    %1940 = vmatpush1.bf16.msra.mxu0 %v1411
    %1941 = vmatprep.subr.bf16.mxu0 %v1418
    %1942 = vmatpush1.bf16.msra.mxu0 %v1417
    %1943 = vmatprep.mubr.bf16.mxu0 %v1632
    %1944 = vmatmul.mubr.bf16.gmra.mrb[0].mxu0 %v1631
    %v1945 = vpop.f32.mrb[0].mxu0
    %v1946 = vadd.f32 %v1903, %v1945
    %v1947 = vpop.f32.mrb[0].mxu0
    %v1948 = vadd.f32 %v1905, %v1947
    %v1949 = vpop.f32.mrb[0].mxu0
    %v1950 = vadd.f32 %v1907, %v1949
    %v1951 = vpop.f32.mrb[0].mxu0
    %v1952 = vadd.f32 %v1909, %v1951
    %1953 = vdwg.mxu0
    %1954 = vmatprep.subr.bf16.mxu0 %v1424
    %1955 = vmatpush1.bf16.msra.mxu0 %v1423
    %1956 = vmatprep.subr.bf16.mxu0 %v1430
    %1957 = vmatpush1.bf16.msra.mxu0 %v1429
    %1958 = vmatprep.subr.bf16.mxu0 %v1436
    %1959 = vmatpush1.bf16.msra.mxu0 %v1435
    %1960 = vmatprep.subr.bf16.mxu0 %v1442
    %1961 = vmatpush1.bf16.msra.mxu0 %v1441
    %1962 = vmatprep.subr.bf16.mxu0 %v1448
    %1963 = vmatpush1.bf16.msra.mxu0 %v1447
    %1964 = vmatprep.subr.bf16.mxu0 %v1454
    %1965 = vmatpush1.bf16.msra.mxu0 %v1453
    %1966 = vmatprep.subr.bf16.mxu0 %v1460
    %1967 = vmatpush1.bf16.msra.mxu0 %v1459
    %1968 = vmatprep.subr.bf16.mxu0 %v1466
    %1969 = vmatpush1.bf16.msra.mxu0 %v1465
    %1970 = vmatprep.subr.bf16.mxu0 %v1472
    %1971 = vmatpush1.bf16.msra.mxu0 %v1471
    %1972 = vmatprep.subr.bf16.mxu0 %v1478
    %1973 = vmatpush1.bf16.msra.mxu0 %v1477
    %1974 = vmatprep.subr.bf16.mxu0 %v1484
    %1975 = vmatpush1.bf16.msra.mxu0 %v1483
    %1976 = vmatprep.subr.bf16.mxu0 %v1490
    %1977 = vmatpush1.bf16.msra.mxu0 %v1489
    %1978 = vmatprep.subr.bf16.mxu0 %v1496
    %1979 = vmatpush1.bf16.msra.mxu0 %v1495
    %1980 = vmatprep.subr.bf16.mxu0 %v1502
    %1981 = vmatpush1.bf16.msra.mxu0 %v1501
    %1982 = vmatprep.subr.bf16.mxu0 %v1508
    %1983 = vmatpush1.bf16.msra.mxu0 %v1507
    %1984 = vmatprep.subr.bf16.mxu0 %v1514
    %1985 = vmatpush1.bf16.msra.mxu0 %v1513
    %1986 = vmatprep.mubr.bf16.mxu0 %v1634
    %1987 = vmatmul.mubr.bf16.gmra.mrb[0].mxu0 %v1633
    %v1988 = vpop.f32.mrb[0].mxu0
    %v1989 = vadd.f32 %v1946, %v1988
    %v1990 = vpop.f32.mrb[0].mxu0
    %v1991 = vadd.f32 %v1948, %v1990
    %v1992 = vpop.f32.mrb[0].mxu0
    %v1993 = vadd.f32 %v1950, %v1992
    %v1994 = vpop.f32.mrb[0].mxu0
    %v1995 = vadd.f32 %v1952, %v1994
    %1996 = vdwg.mxu0
    %1997 = vmatprep.subr.bf16.mxu0 %v1520
    %1998 = vmatpush1.bf16.msra.mxu0 %v1519
    %1999 = vmatprep.subr.bf16.mxu0 %v1526
    %2000 = vmatpush1.bf16.msra.mxu0 %v1525
    %2001 = vmatprep.subr.bf16.mxu0 %v1532
    %2002 = vmatpush1.bf16.msra.mxu0 %v1531
    %2003 = vmatprep.subr.bf16.mxu0 %v1538
    %2004 = vmatpush1.bf16.msra.mxu0 %v1537
    %2005 = vmatprep.subr.bf16.mxu0 %v1544
    %2006 = vmatpush1.bf16.msra.mxu0 %v1543
    %2007 = vmatprep.subr.bf16.mxu0 %v1550
    %2008 = vmatpush1.bf16.msra.mxu0 %v1549
    %2009 = vmatprep.subr.bf16.mxu0 %v1556
    %2010 = vmatpush1.bf16.msra.mxu0 %v1555
    %2011 = vmatprep.subr.bf16.mxu0 %v1562
    %2012 = vmatpush1.bf16.msra.mxu0 %v1561
    %2013 = vmatprep.subr.bf16.mxu0 0
    %2014 = vmatpush1.bf16.msra.mxu0 0
    %2015 = vmatprep.subr.bf16.mxu0 0
    %2016 = vmatpush1.bf16.msra.mxu0 0
    %2017 = vmatprep.subr.bf16.mxu0 0
    %2018 = vmatpush1.bf16.msra.mxu0 0
    %2019 = vmatprep.subr.bf16.mxu0 0
    %2020 = vmatpush1.bf16.msra.mxu0 0
    %2021 = vmatprep.subr.bf16.mxu0 0
    %2022 = vmatpush1.bf16.msra.mxu0 0
    %2023 = vmatprep.subr.bf16.mxu0 0
    %2024 = vmatpush1.bf16.msra.mxu0 0
    %2025 = vmatprep.subr.bf16.mxu0 0
    %2026 = vmatpush1.bf16.msra.mxu0 0
    %2027 = vmatprep.subr.bf16.mxu0 0
    %2028 = vmatpush1.bf16.msra.mxu0 0
    %2029 = vmatprep.mubr.bf16.mxu0 0
    %2030 = vmatmul.mubr.bf16.gmra.mrb[0].mxu0 %v1635
    %v2031 = vpop.f32.mrb[0].mxu0
    %v2032 = vadd.f32 %v1989, %v2031
    %v2033 = vpop.f32.mrb[0].mxu0
    %v2034 = vadd.f32 %v1991, %v2033
    %v2035 = vpop.f32.mrb[0].mxu0
    %v2036 = vadd.f32 %v1993, %v2035
    %v2037 = vpop.f32.mrb[0].mxu0
    %v2038 = vadd.f32 %v1995, %v2037
    %2039 = vdwg.mxu0
    %2040 = vmatprep.subr.bf16.mxu0 %v754
    %2041 = vmatpush1.bf16.msra.mxu0 %v753
    %2042 = vmatprep.subr.bf16.mxu0 %v760
    %2043 = vmatpush1.bf16.msra.mxu0 %v759
    %2044 = vmatprep.subr.bf16.mxu0 %v766
    %2045 = vmatpush1.bf16.msra.mxu0 %v765
    %2046 = vmatprep.subr.bf16.mxu0 %v772
    %2047 = vmatpush1.bf16.msra.mxu0 %v771
    %2048 = vmatprep.subr.bf16.mxu0 %v778
    %2049 = vmatpush1.bf16.msra.mxu0 %v777
    %2050 = vmatprep.subr.bf16.mxu0 %v784
    %2051 = vmatpush1.bf16.msra.mxu0 %v783
    %2052 = vmatprep.subr.bf16.mxu0 %v790
    %2053 = vmatpush1.bf16.msra.mxu0 %v789
    %2054 = vmatprep.subr.bf16.mxu0 %v796
    %2055 = vmatpush1.bf16.msra.mxu0 %v795
    %2056 = vmatprep.subr.bf16.mxu0 %v802
    %2057 = vmatpush1.bf16.msra.mxu0 %v801
    %2058 = vmatprep.subr.bf16.mxu0 %v808
    %2059 = vmatpush1.bf16.msra.mxu0 %v807
    %2060 = vmatprep.subr.bf16.mxu0 %v814
    %2061 = vmatpush1.bf16.msra.mxu0 %v813
    %2062 = vmatprep.subr.bf16.mxu0 %v820
    %2063 = vmatpush1.bf16.msra.mxu0 %v819
    %2064 = vmatprep.subr.bf16.mxu0 %v826
    %2065 = vmatpush1.bf16.msra.mxu0 %v825
    %2066 = vmatprep.subr.bf16.mxu0 %v832
    %2067 = vmatpush1.bf16.msra.mxu0 %v831
    %2068 = vmatprep.subr.bf16.mxu0 %v838
    %2069 = vmatpush1.bf16.msra.mxu0 %v837
    %2070 = vmatprep.subr.bf16.mxu0 %v844
    %2071 = vmatpush1.bf16.msra.mxu0 %v843
    %2072 = vmatprep.mubr.bf16.mxu0 %v1620
    %2073 = vmatmul.mubr.bf16.gmra.mrb[0].mxu0 %v1619
    %v2074 = vpop.f32.mrb[0].mxu0
    %v2075 = vadd.f32 0.0, %v2074
    %v2076 = vpop.f32.mrb[0].mxu0
    %v2077 = vadd.f32 0.0, %v2076
    %v2078 = vpop.f32.mrb[0].mxu0
    %v2079 = vadd.f32 0.0, %v2078
    %v2080 = vpop.f32.mrb[0].mxu0
    %v2081 = vadd.f32 0.0, %v2080
    %2082 = vdwg.mxu0
    %2083 = vmatprep.subr.bf16.mxu0 %v850
    %2084 = vmatpush1.bf16.msra.mxu0 %v849
    %2085 = vmatprep.subr.bf16.mxu0 %v856
    %2086 = vmatpush1.bf16.msra.mxu0 %v855
    %2087 = vmatprep.subr.bf16.mxu0 %v862
    %2088 = vmatpush1.bf16.msra.mxu0 %v861
    %2089 = vmatprep.subr.bf16.mxu0 %v868
    %2090 = vmatpush1.bf16.msra.mxu0 %v867
    %2091 = vmatprep.subr.bf16.mxu0 %v874
    %2092 = vmatpush1.bf16.msra.mxu0 %v873
    %2093 = vmatprep.subr.bf16.mxu0 %v880
    %2094 = vmatpush1.bf16.msra.mxu0 %v879
    %2095 = vmatprep.subr.bf16.mxu0 %v886
    %2096 = vmatpush1.bf16.msra.mxu0 %v885
    %2097 = vmatprep.subr.bf16.mxu0 %v892
    %2098 = vmatpush1.bf16.msra.mxu0 %v891
    %2099 = vmatprep.subr.bf16.mxu0 %v898
    %2100 = vmatpush1.bf16.msra.mxu0 %v897
    %2101 = vmatprep.subr.bf16.mxu0 %v904
    %2102 = vmatpush1.bf16.msra.mxu0 %v903
    %2103 = vmatprep.subr.bf16.mxu0 %v910
    %2104 = vmatpush1.bf16.msra.mxu0 %v909
    %2105 = vmatprep.subr.bf16.mxu0 %v916
    %2106 = vmatpush1.bf16.msra.mxu0 %v915
    %2107 = vmatprep.subr.bf16.mxu0 %v922
    %2108 = vmatpush1.bf16.msra.mxu0 %v921
    %2109 = vmatprep.subr.bf16.mxu0 %v928
    %2110 = vmatpush1.bf16.msra.mxu0 %v927
    %2111 = vmatprep.subr.bf16.mxu0 %v934
    %2112 = vmatpush1.bf16.msra.mxu0 %v933
    %2113 = vmatprep.subr.bf16.mxu0 %v940
    %2114 = vmatpush1.bf16.msra.mxu0 %v939
    %2115 = vmatprep.mubr.bf16.mxu0 %v1622
    %2116 = vmatmul.mubr.bf16.gmra.mrb[0].mxu0 %v1621
    %v2117 = vpop.f32.mrb[0].mxu0
    %v2118 = vadd.f32 %v2075, %v2117
    %v2119 = vpop.f32.mrb[0].mxu0
    %v2120 = vadd.f32 %v2077, %v2119
    %v2121 = vpop.f32.mrb[0].mxu0
    %v2122 = vadd.f32 %v2079, %v2121
    %v2123 = vpop.f32.mrb[0].mxu0
    %v2124 = vadd.f32 %v2081, %v2123
    %2125 = vdwg.mxu0
    %2126 = vmatprep.subr.bf16.mxu0 %v946
    %2127 = vmatpush1.bf16.msra.mxu0 %v945
    %2128 = vmatprep.subr.bf16.mxu0 %v952
    %2129 = vmatpush1.bf16.msra.mxu0 %v951
    %2130 = vmatprep.subr.bf16.mxu0 %v958
    %2131 = vmatpush1.bf16.msra.mxu0 %v957
    %2132 = vmatprep.subr.bf16.mxu0 %v964
    %2133 = vmatpush1.bf16.msra.mxu0 %v963
    %2134 = vmatprep.subr.bf16.mxu0 %v970
    %2135 = vmatpush1.bf16.msra.mxu0 %v969
    %2136 = vmatprep.subr.bf16.mxu0 %v976
    %2137 = vmatpush1.bf16.msra.mxu0 %v975
    %2138 = vmatprep.subr.bf16.mxu0 %v982
    %2139 = vmatpush1.bf16.msra.mxu0 %v981
    %2140 = vmatprep.subr.bf16.mxu0 %v988
    %2141 = vmatpush1.bf16.msra.mxu0 %v987
    %2142 = vmatprep.subr.bf16.mxu0 %v994
    %2143 = vmatpush1.bf16.msra.mxu0 %v993
    %2144 = vmatprep.subr.bf16.mxu0 %v1000
    %2145 = vmatpush1.bf16.msra.mxu0 %v999
    %2146 = vmatprep.subr.bf16.mxu0 %v1006
    %2147 = vmatpush1.bf16.msra.mxu0 %v1005
    %2148 = vmatprep.subr.bf16.mxu0 %v1012
    %2149 = vmatpush1.bf16.msra.mxu0 %v1011
    %2150 = vmatprep.subr.bf16.mxu0 %v1018
    %2151 = vmatpush1.bf16.msra.mxu0 %v1017
    %2152 = vmatprep.subr.bf16.mxu0 %v1024
    %2153 = vmatpush1.bf16.msra.mxu0 %v1023
    %2154 = vmatprep.subr.bf16.mxu0 %v1030
    %2155 = vmatpush1.bf16.msra.mxu0 %v1029
    %2156 = vmatprep.subr.bf16.mxu0 %v1036
    %2157 = vmatpush1.bf16.msra.mxu0 %v1035
    %2158 = vmatprep.mubr.bf16.mxu0 %v1624
    %2159 = vmatmul.mubr.bf16.gmra.mrb[0].mxu0 %v1623
    %v2160 = vpop.f32.mrb[0].mxu0
    %v2161 = vadd.f32 %v2118, %v2160
    %v2162 = vpop.f32.mrb[0].mxu0
    %v2163 = vadd.f32 %v2120, %v2162
    %v2164 = vpop.f32.mrb[0].mxu0
    %v2165 = vadd.f32 %v2122, %v2164
    %v2166 = vpop.f32.mrb[0].mxu0
    %v2167 = vadd.f32 %v2124, %v2166
    %2168 = vdwg.mxu0
    %2169 = vmatprep.subr.bf16.mxu0 %v1042
    %2170 = vmatpush1.bf16.msra.mxu0 %v1041
    %2171 = vmatprep.subr.bf16.mxu0 %v1048
    %2172 = vmatpush1.bf16.msra.mxu0 %v1047
    %2173 = vmatprep.subr.bf16.mxu0 %v1054
    %2174 = vmatpush1.bf16.msra.mxu0 %v1053
    %2175 = vmatprep.subr.bf16.mxu0 %v1060
    %2176 = vmatpush1.bf16.msra.mxu0 %v1059
    %2177 = vmatprep.subr.bf16.mxu0 %v1066
    %2178 = vmatpush1.bf16.msra.mxu0 %v1065
    %2179 = vmatprep.subr.bf16.mxu0 %v1072
    %2180 = vmatpush1.bf16.msra.mxu0 %v1071
    %2181 = vmatprep.subr.bf16.mxu0 %v1078
    %2182 = vmatpush1.bf16.msra.mxu0 %v1077
    %2183 = vmatprep.subr.bf16.mxu0 %v1084
    %2184 = vmatpush1.bf16.msra.mxu0 %v1083
    %2185 = vmatprep.subr.bf16.mxu0 %v1090
    %2186 = vmatpush1.bf16.msra.mxu0 %v1089
    %2187 = vmatprep.subr.bf16.mxu0 %v1096
    %2188 = vmatpush1.bf16.msra.mxu0 %v1095
    %2189 = vmatprep.subr.bf16.mxu0 %v1102
    %2190 = vmatpush1.bf16.msra.mxu0 %v1101
    %2191 = vmatprep.subr.bf16.mxu0 %v1108
    %2192 = vmatpush1.bf16.msra.mxu0 %v1107
    %2193 = vmatprep.subr.bf16.mxu0 %v1114
    %2194 = vmatpush1.bf16.msra.mxu0 %v1113
    %2195 = vmatprep.subr.bf16.mxu0 %v1120
    %2196 = vmatpush1.bf16.msra.mxu0 %v1119
    %2197 = vmatprep.subr.bf16.mxu0 %v1126
    %2198 = vmatpush1.bf16.msra.mxu0 %v1125
    %2199 = vmatprep.subr.bf16.mxu0 %v1132
    %2200 = vmatpush1.bf16.msra.mxu0 %v1131
    %2201 = vmatprep.mubr.bf16.mxu0 %v1626
    %2202 = vmatmul.mubr.bf16.gmra.mrb[0].mxu0 %v1625
    %v2203 = vpop.f32.mrb[0].mxu0
    %v2204 = vadd.f32 %v2161, %v2203
    %v2205 = vpop.f32.mrb[0].mxu0
    %v2206 = vadd.f32 %v2163, %v2205
    %v2207 = vpop.f32.mrb[0].mxu0
    %v2208 = vadd.f32 %v2165, %v2207
    %v2209 = vpop.f32.mrb[0].mxu0
    %v2210 = vadd.f32 %v2167, %v2209
    %2211 = vdwg.mxu0
    %2212 = vmatprep.subr.bf16.mxu0 %v1138
    %2213 = vmatpush1.bf16.msra.mxu0 %v1137
    %2214 = vmatprep.subr.bf16.mxu0 %v1144
    %2215 = vmatpush1.bf16.msra.mxu0 %v1143
    %2216 = vmatprep.subr.bf16.mxu0 %v1150
    %2217 = vmatpush1.bf16.msra.mxu0 %v1149
    %2218 = vmatprep.subr.bf16.mxu0 %v1156
    %2219 = vmatpush1.bf16.msra.mxu0 %v1155
    %2220 = vmatprep.subr.bf16.mxu0 %v1162
    %2221 = vmatpush1.bf16.msra.mxu0 %v1161
    %2222 = vmatprep.subr.bf16.mxu0 %v1168
    %2223 = vmatpush1.bf16.msra.mxu0 %v1167
    %2224 = vmatprep.subr.bf16.mxu0 %v1174
    %2225 = vmatpush1.bf16.msra.mxu0 %v1173
    %2226 = vmatprep.subr.bf16.mxu0 %v1180
    %2227 = vmatpush1.bf16.msra.mxu0 %v1179
    %2228 = vmatprep.subr.bf16.mxu0 %v1186
    %2229 = vmatpush1.bf16.msra.mxu0 %v1185
    %2230 = vmatprep.subr.bf16.mxu0 %v1192
    %2231 = vmatpush1.bf16.msra.mxu0 %v1191
    %2232 = vmatprep.subr.bf16.mxu0 %v1198
    %2233 = vmatpush1.bf16.msra.mxu0 %v1197
    %2234 = vmatprep.subr.bf16.mxu0 %v1204
    %2235 = vmatpush1.bf16.msra.mxu0 %v1203
    %2236 = vmatprep.subr.bf16.mxu0 %v1210
    %2237 = vmatpush1.bf16.msra.mxu0 %v1209
    %2238 = vmatprep.subr.bf16.mxu0 %v1216
    %2239 = vmatpush1.bf16.msra.mxu0 %v1215
    %2240 = vmatprep.subr.bf16.mxu0 %v1222
    %2241 = vmatpush1.bf16.msra.mxu0 %v1221
    %2242 = vmatprep.subr.bf16.mxu0 %v1228
    %2243 = vmatpush1.bf16.msra.mxu0 %v1227
    %2244 = vmatprep.mubr.bf16.mxu0 %v1628
    %2245 = vmatmul.mubr.bf16.gmra.mrb[0].mxu0 %v1627
    %v2246 = vpop.f32.mrb[0].mxu0
    %v2247 = vadd.f32 %v2204, %v2246
    %v2248 = vpop.f32.mrb[0].mxu0
    %v2249 = vadd.f32 %v2206, %v2248
    %v2250 = vpop.f32.mrb[0].mxu0
    %v2251 = vadd.f32 %v2208, %v2250
    %v2252 = vpop.f32.mrb[0].mxu0
    %v2253 = vadd.f32 %v2210, %v2252
    %2254 = vdwg.mxu0
    %2255 = vmatprep.subr.bf16.mxu0 %v1234
    %2256 = vmatpush1.bf16.msra.mxu0 %v1233
    %2257 = vmatprep.subr.bf16.mxu0 %v1240
    %2258 = vmatpush1.bf16.msra.mxu0 %v1239
    %2259 = vmatprep.subr.bf16.mxu0 %v1246
    %2260 = vmatpush1.bf16.msra.mxu0 %v1245
    %2261 = vmatprep.subr.bf16.mxu0 %v1252
    %2262 = vmatpush1.bf16.msra.mxu0 %v1251
    %2263 = vmatprep.subr.bf16.mxu0 %v1258
    %2264 = vmatpush1.bf16.msra.mxu0 %v1257
    %2265 = vmatprep.subr.bf16.mxu0 %v1264
    %2266 = vmatpush1.bf16.msra.mxu0 %v1263
    %2267 = vmatprep.subr.bf16.mxu0 %v1270
    %2268 = vmatpush1.bf16.msra.mxu0 %v1269
    %2269 = vmatprep.subr.bf16.mxu0 %v1276
    %2270 = vmatpush1.bf16.msra.mxu0 %v1275
    %2271 = vmatprep.subr.bf16.mxu0 %v1282
    %2272 = vmatpush1.bf16.msra.mxu0 %v1281
    %2273 = vmatprep.subr.bf16.mxu0 %v1288
    %2274 = vmatpush1.bf16.msra.mxu0 %v1287
    %2275 = vmatprep.subr.bf16.mxu0 %v1294
    %2276 = vmatpush1.bf16.msra.mxu0 %v1293
    %2277 = vmatprep.subr.bf16.mxu0 %v1300
    %2278 = vmatpush1.bf16.msra.mxu0 %v1299
    %2279 = vmatprep.subr.bf16.mxu0 %v1306
    %2280 = vmatpush1.bf16.msra.mxu0 %v1305
    %2281 = vmatprep.subr.bf16.mxu0 %v1312
    %2282 = vmatpush1.bf16.msra.mxu0 %v1311
    %2283 = vmatprep.subr.bf16.mxu0 %v1318
    %2284 = vmatpush1.bf16.msra.mxu0 %v1317
    %2285 = vmatprep.subr.bf16.mxu0 %v1324
    %2286 = vmatpush1.bf16.msra.mxu0 %v1323
    %2287 = vmatprep.mubr.bf16.mxu0 %v1630
    %2288 = vmatmul.mubr.bf16.gmra.mrb[0].mxu0 %v1629
    %v2289 = vpop.f32.mrb[0].mxu0
    %v2290 = vadd.f32 %v2247, %v2289
    %v2291 = vpop.f32.mrb[0].mxu0
    %v2292 = vadd.f32 %v2249, %v2291
    %v2293 = vpop.f32.mrb[0].mxu0
    %v2294 = vadd.f32 %v2251, %v2293
    %v2295 = vpop.f32.mrb[0].mxu0
    %v2296 = vadd.f32 %v2253, %v2295
    %2297 = vdwg.mxu0
    %2298 = vmatprep.subr.bf16.mxu0 %v1330
    %2299 = vmatpush1.bf16.msra.mxu0 %v1329
    %2300 = vmatprep.subr.bf16.mxu0 %v1336
    %2301 = vmatpush1.bf16.msra.mxu0 %v1335
    %2302 = vmatprep.subr.bf16.mxu0 %v1342
    %2303 = vmatpush1.bf16.msra.mxu0 %v1341
    %2304 = vmatprep.subr.bf16.mxu0 %v1348
    %2305 = vmatpush1.bf16.msra.mxu0 %v1347
    %2306 = vmatprep.subr.bf16.mxu0 %v1354
    %2307 = vmatpush1.bf16.msra.mxu0 %v1353
    %2308 = vmatprep.subr.bf16.mxu0 %v1360
    %2309 = vmatpush1.bf16.msra.mxu0 %v1359
    %2310 = vmatprep.subr.bf16.mxu0 %v1366
    %2311 = vmatpush1.bf16.msra.mxu0 %v1365
    %2312 = vmatprep.subr.bf16.mxu0 %v1372
    %2313 = vmatpush1.bf16.msra.mxu0 %v1371
    %2314 = vmatprep.subr.bf16.mxu0 %v1378
    %2315 = vmatpush1.bf16.msra.mxu0 %v1377
    %2316 = vmatprep.subr.bf16.mxu0 %v1384
    %2317 = vmatpush1.bf16.msra.mxu0 %v1383
    %2318 = vmatprep.subr.bf16.mxu0 %v1390
    %2319 = vmatpush1.bf16.msra.mxu0 %v1389
    %2320 = vmatprep.subr.bf16.mxu0 %v1396
    %2321 = vmatpush1.bf16.msra.mxu0 %v1395
    %2322 = vmatprep.subr.bf16.mxu0 %v1402
    %2323 = vmatpush1.bf16.msra.mxu0 %v1401
    %2324 = vmatprep.subr.bf16.mxu0 %v1408
    %2325 = vmatpush1.bf16.msra.mxu0 %v1407
    %2326 = vmatprep.subr.bf16.mxu0 %v1414
    %2327 = vmatpush1.bf16.msra.mxu0 %v1413
    %2328 = vmatprep.subr.bf16.mxu0 %v1420
    %2329 = vmatpush1.bf16.msra.mxu0 %v1419
    %2330 = vmatprep.mubr.bf16.mxu0 %v1632
    %2331 = vmatmul.mubr.bf16.gmra.mrb[0].mxu0 %v1631
    %v2332 = vpop.f32.mrb[0].mxu0
    %v2333 = vadd.f32 %v2290, %v2332
    %v2334 = vpop.f32.mrb[0].mxu0
    %v2335 = vadd.f32 %v2292, %v2334
    %v2336 = vpop.f32.mrb[0].mxu0
    %v2337 = vadd.f32 %v2294, %v2336
    %v2338 = vpop.f32.mrb[0].mxu0
    %v2339 = vadd.f32 %v2296, %v2338
    %2340 = vdwg.mxu0
    %2341 = vmatprep.subr.bf16.mxu0 %v1426
    %2342 = vmatpush1.bf16.msra.mxu0 %v1425
    %2343 = vmatprep.subr.bf16.mxu0 %v1432
    %2344 = vmatpush1.bf16.msra.mxu0 %v1431
    %2345 = vmatprep.subr.bf16.mxu0 %v1438
    %2346 = vmatpush1.bf16.msra.mxu0 %v1437
    %2347 = vmatprep.subr.bf16.mxu0 %v1444
    %2348 = vmatpush1.bf16.msra.mxu0 %v1443
    %2349 = vmatprep.subr.bf16.mxu0 %v1450
    %2350 = vmatpush1.bf16.msra.mxu0 %v1449
    %2351 = vmatprep.subr.bf16.mxu0 %v1456
    %2352 = vmatpush1.bf16.msra.mxu0 %v1455
    %2353 = vmatprep.subr.bf16.mxu0 %v1462
    %2354 = vmatpush1.bf16.msra.mxu0 %v1461
    %2355 = vmatprep.subr.bf16.mxu0 %v1468
    %2356 = vmatpush1.bf16.msra.mxu0 %v1467
    %2357 = vmatprep.subr.bf16.mxu0 %v1474
    %2358 = vmatpush1.bf16.msra.mxu0 %v1473
    %2359 = vmatprep.subr.bf16.mxu0 %v1480
    %2360 = vmatpush1.bf16.msra.mxu0 %v1479
    %2361 = vmatprep.subr.bf16.mxu0 %v1486
    %2362 = vmatpush1.bf16.msra.mxu0 %v1485
    %2363 = vmatprep.subr.bf16.mxu0 %v1492
    %2364 = vmatpush1.bf16.msra.mxu0 %v1491
    %2365 = vmatprep.subr.bf16.mxu0 %v1498
    %2366 = vmatpush1.bf16.msra.mxu0 %v1497
    %2367 = vmatprep.subr.bf16.mxu0 %v1504
    %2368 = vmatpush1.bf16.msra.mxu0 %v1503
    %2369 = vmatprep.subr.bf16.mxu0 %v1510
    %2370 = vmatpush1.bf16.msra.mxu0 %v1509
    %2371 = vmatprep.subr.bf16.mxu0 %v1516
    %2372 = vmatpush1.bf16.msra.mxu0 %v1515
    %2373 = vmatprep.mubr.bf16.mxu0 %v1634
    %2374 = vmatmul.mubr.bf16.gmra.mrb[0].mxu0 %v1633
    %v2375 = vpop.f32.mrb[0].mxu0
    %v2376 = vadd.f32 %v2333, %v2375
    %v2377 = vpop.f32.mrb[0].mxu0
    %v2378 = vadd.f32 %v2335, %v2377
    %v2379 = vpop.f32.mrb[0].mxu0
    %v2380 = vadd.f32 %v2337, %v2379
    %v2381 = vpop.f32.mrb[0].mxu0
    %v2382 = vadd.f32 %v2339, %v2381
    %2383 = vdwg.mxu0
    %2384 = vmatprep.subr.bf16.mxu0 %v1522
    %2385 = vmatpush1.bf16.msra.mxu0 %v1521
    %2386 = vmatprep.subr.bf16.mxu0 %v1528
    %2387 = vmatpush1.bf16.msra.mxu0 %v1527
    %2388 = vmatprep.subr.bf16.mxu0 %v1534
    %2389 = vmatpush1.bf16.msra.mxu0 %v1533
    %2390 = vmatprep.subr.bf16.mxu0 %v1540
    %2391 = vmatpush1.bf16.msra.mxu0 %v1539
    %2392 = vmatprep.subr.bf16.mxu0 %v1546
    %2393 = vmatpush1.bf16.msra.mxu0 %v1545
    %2394 = vmatprep.subr.bf16.mxu0 %v1552
    %2395 = vmatpush1.bf16.msra.mxu0 %v1551
    %2396 = vmatprep.subr.bf16.mxu0 %v1558
    %2397 = vmatpush1.bf16.msra.mxu0 %v1557
    %2398 = vmatprep.subr.bf16.mxu0 %v1564
    %2399 = vmatpush1.bf16.msra.mxu0 %v1563
    %2400 = vmatprep.subr.bf16.mxu0 0
    %2401 = vmatpush1.bf16.msra.mxu0 0
    %2402 = vmatprep.subr.bf16.mxu0 0
    %2403 = vmatpush1.bf16.msra.mxu0 0
    %2404 = vmatprep.subr.bf16.mxu0 0
    %2405 = vmatpush1.bf16.msra.mxu0 0
    %2406 = vmatprep.subr.bf16.mxu0 0
    %2407 = vmatpush1.bf16.msra.mxu0 0
    %2408 = vmatprep.subr.bf16.mxu0 0
    %2409 = vmatpush1.bf16.msra.mxu0 0
    %2410 = vmatprep.subr.bf16.mxu0 0
    %2411 = vmatpush1.bf16.msra.mxu0 0
    %2412 = vmatprep.subr.bf16.mxu0 0
    %2413 = vmatpush1.bf16.msra.mxu0 0
    %2414 = vmatprep.subr.bf16.mxu0 0
    %2415 = vmatpush1.bf16.msra.mxu0 0
    %2416 = vmatprep.mubr.bf16.mxu0 0
    %2417 = vmatmul.mubr.bf16.gmra.mrb[0].mxu0 %v1635
    %v2418 = vpop.f32.mrb[0].mxu0
    %v2419 = vadd.f32 %v2376, %v2418
    %v2420 = vpop.f32.mrb[0].mxu0
    %v2421 = vadd.f32 %v2378, %v2420
    %v2422 = vpop.f32.mrb[0].mxu0
    %v2423 = vadd.f32 %v2380, %v2422
    %v2424 = vpop.f32.mrb[0].mxu0
    %v2425 = vadd.f32 %v2382, %v2424
    %2426 = vdwg.mxu0
    %2427 = vmatprep.subr.bf16.mxu0 %v756
    %2428 = vmatpush1.bf16.msra.mxu0 %v755
    %2429 = vmatprep.subr.bf16.mxu0 %v762
    %2430 = vmatpush1.bf16.msra.mxu0 %v761
    %2431 = vmatprep.subr.bf16.mxu0 %v768
    %2432 = vmatpush1.bf16.msra.mxu0 %v767
    %2433 = vmatprep.subr.bf16.mxu0 %v774
    %2434 = vmatpush1.bf16.msra.mxu0 %v773
    %2435 = vmatprep.subr.bf16.mxu0 %v780
    %2436 = vmatpush1.bf16.msra.mxu0 %v779
    %2437 = vmatprep.subr.bf16.mxu0 %v786
    %2438 = vmatpush1.bf16.msra.mxu0 %v785
    %2439 = vmatprep.subr.bf16.mxu0 %v792
    %2440 = vmatpush1.bf16.msra.mxu0 %v791
    %2441 = vmatprep.subr.bf16.mxu0 %v798
    %2442 = vmatpush1.bf16.msra.mxu0 %v797
    %2443 = vmatprep.subr.bf16.mxu0 %v804
    %2444 = vmatpush1.bf16.msra.mxu0 %v803
    %2445 = vmatprep.subr.bf16.mxu0 %v810
    %2446 = vmatpush1.bf16.msra.mxu0 %v809
    %2447 = vmatprep.subr.bf16.mxu0 %v816
    %2448 = vmatpush1.bf16.msra.mxu0 %v815
    %2449 = vmatprep.subr.bf16.mxu0 %v822
    %2450 = vmatpush1.bf16.msra.mxu0 %v821
    %2451 = vmatprep.subr.bf16.mxu0 %v828
    %2452 = vmatpush1.bf16.msra.mxu0 %v827
    %2453 = vmatprep.subr.bf16.mxu0 %v834
    %2454 = vmatpush1.bf16.msra.mxu0 %v833
    %2455 = vmatprep.subr.bf16.mxu0 %v840
    %2456 = vmatpush1.bf16.msra.mxu0 %v839
    %2457 = vmatprep.subr.bf16.mxu0 %v846
    %2458 = vmatpush1.bf16.msra.mxu0 %v845
    %2459 = vmatprep.mubr.bf16.mxu0 %v1620
    %2460 = vmatmul.mubr.bf16.gmra.mrb[0].mxu0 %v1619
    %v2461 = vpop.f32.mrb[0].mxu0
    %v2462 = vadd.f32 0.0, %v2461
    %v2463 = vpop.f32.mrb[0].mxu0
    %v2464 = vadd.f32 0.0, %v2463
    %v2465 = vpop.f32.mrb[0].mxu0
    %v2466 = vadd.f32 0.0, %v2465
    %v2467 = vpop.f32.mrb[0].mxu0
    %v2468 = vadd.f32 0.0, %v2467
    %2469 = vdwg.mxu0
    %2470 = vmatprep.subr.bf16.mxu0 %v852
    %2471 = vmatpush1.bf16.msra.mxu0 %v851
    %2472 = vmatprep.subr.bf16.mxu0 %v858
    %2473 = vmatpush1.bf16.msra.mxu0 %v857
    %2474 = vmatprep.subr.bf16.mxu0 %v864
    %2475 = vmatpush1.bf16.msra.mxu0 %v863
    %2476 = vmatprep.subr.bf16.mxu0 %v870
    %2477 = vmatpush1.bf16.msra.mxu0 %v869
    %2478 = vmatprep.subr.bf16.mxu0 %v876
    %2479 = vmatpush1.bf16.msra.mxu0 %v875
    %2480 = vmatprep.subr.bf16.mxu0 %v882
    %2481 = vmatpush1.bf16.msra.mxu0 %v881
    %2482 = vmatprep.subr.bf16.mxu0 %v888
    %2483 = vmatpush1.bf16.msra.mxu0 %v887
    %2484 = vmatprep.subr.bf16.mxu0 %v894
    %2485 = vmatpush1.bf16.msra.mxu0 %v893
    %2486 = vmatprep.subr.bf16.mxu0 %v900
    %2487 = vmatpush1.bf16.msra.mxu0 %v899
    %2488 = vmatprep.subr.bf16.mxu0 %v906
    %2489 = vmatpush1.bf16.msra.mxu0 %v905
    %2490 = vmatprep.subr.bf16.mxu0 %v912
    %2491 = vmatpush1.bf16.msra.mxu0 %v911
    %2492 = vmatprep.subr.bf16.mxu0 %v918
    %2493 = vmatpush1.bf16.msra.mxu0 %v917
    %2494 = vmatprep.subr.bf16.mxu0 %v924
    %2495 = vmatpush1.bf16.msra.mxu0 %v923
    %2496 = vmatprep.subr.bf16.mxu0 %v930
    %2497 = vmatpush1.bf16.msra.mxu0 %v929
    %2498 = vmatprep.subr.bf16.mxu0 %v936
    %2499 = vmatpush1.bf16.msra.mxu0 %v935
    %2500 = vmatprep.subr.bf16.mxu0 %v942
    %2501 = vmatpush1.bf16.msra.mxu0 %v941
    %2502 = vmatprep.mubr.bf16.mxu0 %v1622
    %2503 = vmatmul.mubr.bf16.gmra.mrb[0].mxu0 %v1621
    %v2504 = vpop.f32.mrb[0].mxu0
    %v2505 = vadd.f32 %v2462, %v2504
    %v2506 = vpop.f32.mrb[0].mxu0
    %v2507 = vadd.f32 %v2464, %v2506
    %v2508 = vpop.f32.mrb[0].mxu0
    %v2509 = vadd.f32 %v2466, %v2508
    %v2510 = vpop.f32.mrb[0].mxu0
    %v2511 = vadd.f32 %v2468, %v2510
    %2512 = vdwg.mxu0
    %2513 = vmatprep.subr.bf16.mxu0 %v948
    %2514 = vmatpush1.bf16.msra.mxu0 %v947
    %2515 = vmatprep.subr.bf16.mxu0 %v954
    %2516 = vmatpush1.bf16.msra.mxu0 %v953
    %2517 = vmatprep.subr.bf16.mxu0 %v960
    %2518 = vmatpush1.bf16.msra.mxu0 %v959
    %2519 = vmatprep.subr.bf16.mxu0 %v966
    %2520 = vmatpush1.bf16.msra.mxu0 %v965
    %2521 = vmatprep.subr.bf16.mxu0 %v972
    %2522 = vmatpush1.bf16.msra.mxu0 %v971
    %2523 = vmatprep.subr.bf16.mxu0 %v978
    %2524 = vmatpush1.bf16.msra.mxu0 %v977
    %2525 = vmatprep.subr.bf16.mxu0 %v984
    %2526 = vmatpush1.bf16.msra.mxu0 %v983
    %2527 = vmatprep.subr.bf16.mxu0 %v990
    %2528 = vmatpush1.bf16.msra.mxu0 %v989
    %2529 = vmatprep.subr.bf16.mxu0 %v996
    %2530 = vmatpush1.bf16.msra.mxu0 %v995
    %2531 = vmatprep.subr.bf16.mxu0 %v1002
    %2532 = vmatpush1.bf16.msra.mxu0 %v1001
    %2533 = vmatprep.subr.bf16.mxu0 %v1008
    %2534 = vmatpush1.bf16.msra.mxu0 %v1007
    %2535 = vmatprep.subr.bf16.mxu0 %v1014
    %2536 = vmatpush1.bf16.msra.mxu0 %v1013
    %2537 = vmatprep.subr.bf16.mxu0 %v1020
    %2538 = vmatpush1.bf16.msra.mxu0 %v1019
    %2539 = vmatprep.subr.bf16.mxu0 %v1026
    %2540 = vmatpush1.bf16.msra.mxu0 %v1025
    %2541 = vmatprep.subr.bf16.mxu0 %v1032
    %2542 = vmatpush1.bf16.msra.mxu0 %v1031
    %2543 = vmatprep.subr.bf16.mxu0 %v1038
    %2544 = vmatpush1.bf16.msra.mxu0 %v1037
    %2545 = vmatprep.mubr.bf16.mxu0 %v1624
    %2546 = vmatmul.mubr.bf16.gmra.mrb[0].mxu0 %v1623
    %v2547 = vpop.f32.mrb[0].mxu0
    %v2548 = vadd.f32 %v2505, %v2547
    %v2549 = vpop.f32.mrb[0].mxu0
    %v2550 = vadd.f32 %v2507, %v2549
    %v2551 = vpop.f32.mrb[0].mxu0
    %v2552 = vadd.f32 %v2509, %v2551
    %v2553 = vpop.f32.mrb[0].mxu0
    %v2554 = vadd.f32 %v2511, %v2553
    %2555 = vdwg.mxu0
    %2556 = vmatprep.subr.bf16.mxu0 %v1044
    %2557 = vmatpush1.bf16.msra.mxu0 %v1043
    %2558 = vmatprep.subr.bf16.mxu0 %v1050
    %2559 = vmatpush1.bf16.msra.mxu0 %v1049
    %2560 = vmatprep.subr.bf16.mxu0 %v1056
    %2561 = vmatpush1.bf16.msra.mxu0 %v1055
    %2562 = vmatprep.subr.bf16.mxu0 %v1062
    %2563 = vmatpush1.bf16.msra.mxu0 %v1061
    %2564 = vmatprep.subr.bf16.mxu0 %v1068
    %2565 = vmatpush1.bf16.msra.mxu0 %v1067
    %2566 = vmatprep.subr.bf16.mxu0 %v1074
    %2567 = vmatpush1.bf16.msra.mxu0 %v1073
    %2568 = vmatprep.subr.bf16.mxu0 %v1080
    %2569 = vmatpush1.bf16.msra.mxu0 %v1079
    %2570 = vmatprep.subr.bf16.mxu0 %v1086
    %2571 = vmatpush1.bf16.msra.mxu0 %v1085
    %2572 = vmatprep.subr.bf16.mxu0 %v1092
    %2573 = vmatpush1.bf16.msra.mxu0 %v1091
    %2574 = vmatprep.subr.bf16.mxu0 %v1098
    %2575 = vmatpush1.bf16.msra.mxu0 %v1097
    %2576 = vmatprep.subr.bf16.mxu0 %v1104
    %2577 = vmatpush1.bf16.msra.mxu0 %v1103
    %2578 = vmatprep.subr.bf16.mxu0 %v1110
    %2579 = vmatpush1.bf16.msra.mxu0 %v1109
    %2580 = vmatprep.subr.bf16.mxu0 %v1116
    %2581 = vmatpush1.bf16.msra.mxu0 %v1115
    %2582 = vmatprep.subr.bf16.mxu0 %v1122
    %2583 = vmatpush1.bf16.msra.mxu0 %v1121
    %2584 = vmatprep.subr.bf16.mxu0 %v1128
    %2585 = vmatpush1.bf16.msra.mxu0 %v1127
    %2586 = vmatprep.subr.bf16.mxu0 %v1134
    %2587 = vmatpush1.bf16.msra.mxu0 %v1133
    %2588 = vmatprep.mubr.bf16.mxu0 %v1626
    %2589 = vmatmul.mubr.bf16.gmra.mrb[0].mxu0 %v1625
    %v2590 = vpop.f32.mrb[0].mxu0
    %v2591 = vadd.f32 %v2548, %v2590
    %v2592 = vpop.f32.mrb[0].mxu0
    %v2593 = vadd.f32 %v2550, %v2592
    %v2594 = vpop.f32.mrb[0].mxu0
    %v2595 = vadd.f32 %v2552, %v2594
    %v2596 = vpop.f32.mrb[0].mxu0
    %v2597 = vadd.f32 %v2554, %v2596
    %2598 = vdwg.mxu0
    %2599 = vmatprep.subr.bf16.mxu0 %v1140
    %2600 = vmatpush1.bf16.msra.mxu0 %v1139
    %2601 = vmatprep.subr.bf16.mxu0 %v1146
    %2602 = vmatpush1.bf16.msra.mxu0 %v1145
    %2603 = vmatprep.subr.bf16.mxu0 %v1152
    %2604 = vmatpush1.bf16.msra.mxu0 %v1151
    %2605 = vmatprep.subr.bf16.mxu0 %v1158
    %2606 = vmatpush1.bf16.msra.mxu0 %v1157
    %2607 = vmatprep.subr.bf16.mxu0 %v1164
    %2608 = vmatpush1.bf16.msra.mxu0 %v1163
    %2609 = vmatprep.subr.bf16.mxu0 %v1170
    %2610 = vmatpush1.bf16.msra.mxu0 %v1169
    %2611 = vmatprep.subr.bf16.mxu0 %v1176
    %2612 = vmatpush1.bf16.msra.mxu0 %v1175
    %2613 = vmatprep.subr.bf16.mxu0 %v1182
    %2614 = vmatpush1.bf16.msra.mxu0 %v1181
    %2615 = vmatprep.subr.bf16.mxu0 %v1188
    %2616 = vmatpush1.bf16.msra.mxu0 %v1187
    %2617 = vmatprep.subr.bf16.mxu0 %v1194
    %2618 = vmatpush1.bf16.msra.mxu0 %v1193
    %2619 = vmatprep.subr.bf16.mxu0 %v1200
    %2620 = vmatpush1.bf16.msra.mxu0 %v1199
    %2621 = vmatprep.subr.bf16.mxu0 %v1206
    %2622 = vmatpush1.bf16.msra.mxu0 %v1205
    %2623 = vmatprep.subr.bf16.mxu0 %v1212
    %2624 = vmatpush1.bf16.msra.mxu0 %v1211
    %2625 = vmatprep.subr.bf16.mxu0 %v1218
    %2626 = vmatpush1.bf16.msra.mxu0 %v1217
    %2627 = vmatprep.subr.bf16.mxu0 %v1224
    %2628 = vmatpush1.bf16.msra.mxu0 %v1223
    %2629 = vmatprep.subr.bf16.mxu0 %v1230
    %2630 = vmatpush1.bf16.msra.mxu0 %v1229
    %2631 = vmatprep.mubr.bf16.mxu0 %v1628
    %2632 = vmatmul.mubr.bf16.gmra.mrb[0].mxu0 %v1627
    %v2633 = vpop.f32.mrb[0].mxu0
    %v2634 = vadd.f32 %v2591, %v2633
    %v2635 = vpop.f32.mrb[0].mxu0
    %v2636 = vadd.f32 %v2593, %v2635
    %v2637 = vpop.f32.mrb[0].mxu0
    %v2638 = vadd.f32 %v2595, %v2637
    %v2639 = vpop.f32.mrb[0].mxu0
    %v2640 = vadd.f32 %v2597, %v2639
    %2641 = vdwg.mxu0
    %2642 = vmatprep.subr.bf16.mxu0 %v1236
    %2643 = vmatpush1.bf16.msra.mxu0 %v1235
    %2644 = vmatprep.subr.bf16.mxu0 %v1242
    %2645 = vmatpush1.bf16.msra.mxu0 %v1241
    %2646 = vmatprep.subr.bf16.mxu0 %v1248
    %2647 = vmatpush1.bf16.msra.mxu0 %v1247
    %2648 = vmatprep.subr.bf16.mxu0 %v1254
    %2649 = vmatpush1.bf16.msra.mxu0 %v1253
    %2650 = vmatprep.subr.bf16.mxu0 %v1260
    %2651 = vmatpush1.bf16.msra.mxu0 %v1259
    %2652 = vmatprep.subr.bf16.mxu0 %v1266
    %2653 = vmatpush1.bf16.msra.mxu0 %v1265
    %2654 = vmatprep.subr.bf16.mxu0 %v1272
    %2655 = vmatpush1.bf16.msra.mxu0 %v1271
    %2656 = vmatprep.subr.bf16.mxu0 %v1278
    %2657 = vmatpush1.bf16.msra.mxu0 %v1277
    %2658 = vmatprep.subr.bf16.mxu0 %v1284
    %2659 = vmatpush1.bf16.msra.mxu0 %v1283
    %2660 = vmatprep.subr.bf16.mxu0 %v1290
    %2661 = vmatpush1.bf16.msra.mxu0 %v1289
    %2662 = vmatprep.subr.bf16.mxu0 %v1296
    %2663 = vmatpush1.bf16.msra.mxu0 %v1295
    %2664 = vmatprep.subr.bf16.mxu0 %v1302
    %2665 = vmatpush1.bf16.msra.mxu0 %v1301
    %2666 = vmatprep.subr.bf16.mxu0 %v1308
    %2667 = vmatpush1.bf16.msra.mxu0 %v1307
    %2668 = vmatprep.subr.bf16.mxu0 %v1314
    %2669 = vmatpush1.bf16.msra.mxu0 %v1313
    %2670 = vmatprep.subr.bf16.mxu0 %v1320
    %2671 = vmatpush1.bf16.msra.mxu0 %v1319
    %2672 = vmatprep.subr.bf16.mxu0 %v1326
    %2673 = vmatpush1.bf16.msra.mxu0 %v1325
    %2674 = vmatprep.mubr.bf16.mxu0 %v1630
    %2675 = vmatmul.mubr.bf16.gmra.mrb[0].mxu0 %v1629
    %v2676 = vpop.f32.mrb[0].mxu0
    %v2677 = vadd.f32 %v2634, %v2676
    %v2678 = vpop.f32.mrb[0].mxu0
    %v2679 = vadd.f32 %v2636, %v2678
    %v2680 = vpop.f32.mrb[0].mxu0
    %v2681 = vadd.f32 %v2638, %v2680
    %v2682 = vpop.f32.mrb[0].mxu0
    %v2683 = vadd.f32 %v2640, %v2682
    %2684 = vdwg.mxu0
    %2685 = vmatprep.subr.bf16.mxu0 %v1332
    %2686 = vmatpush1.bf16.msra.mxu0 %v1331
    %2687 = vmatprep.subr.bf16.mxu0 %v1338
    %2688 = vmatpush1.bf16.msra.mxu0 %v1337
    %2689 = vmatprep.subr.bf16.mxu0 %v1344
    %2690 = vmatpush1.bf16.msra.mxu0 %v1343
    %2691 = vmatprep.subr.bf16.mxu0 %v1350
    %2692 = vmatpush1.bf16.msra.mxu0 %v1349
    %2693 = vmatprep.subr.bf16.mxu0 %v1356
    %2694 = vmatpush1.bf16.msra.mxu0 %v1355
    %2695 = vmatprep.subr.bf16.mxu0 %v1362
    %2696 = vmatpush1.bf16.msra.mxu0 %v1361
    %2697 = vmatprep.subr.bf16.mxu0 %v1368
    %2698 = vmatpush1.bf16.msra.mxu0 %v1367
    %2699 = vmatprep.subr.bf16.mxu0 %v1374
    %2700 = vmatpush1.bf16.msra.mxu0 %v1373
    %2701 = vmatprep.subr.bf16.mxu0 %v1380
    %2702 = vmatpush1.bf16.msra.mxu0 %v1379
    %2703 = vmatprep.subr.bf16.mxu0 %v1386
    %2704 = vmatpush1.bf16.msra.mxu0 %v1385
    %2705 = vmatprep.subr.bf16.mxu0 %v1392
    %2706 = vmatpush1.bf16.msra.mxu0 %v1391
    %2707 = vmatprep.subr.bf16.mxu0 %v1398
    %2708 = vmatpush1.bf16.msra.mxu0 %v1397
    %2709 = vmatprep.subr.bf16.mxu0 %v1404
    %2710 = vmatpush1.bf16.msra.mxu0 %v1403
    %2711 = vmatprep.subr.bf16.mxu0 %v1410
    %2712 = vmatpush1.bf16.msra.mxu0 %v1409
    %2713 = vmatprep.subr.bf16.mxu0 %v1416
    %2714 = vmatpush1.bf16.msra.mxu0 %v1415
    %2715 = vmatprep.subr.bf16.mxu0 %v1422
    %2716 = vmatpush1.bf16.msra.mxu0 %v1421
    %2717 = vmatprep.mubr.bf16.mxu0 %v1632
    %2718 = vmatmul.mubr.bf16.gmra.mrb[0].mxu0 %v1631
    %v2719 = vpop.f32.mrb[0].mxu0
    %v2720 = vadd.f32 %v2677, %v2719
    %v2721 = vpop.f32.mrb[0].mxu0
    %v2722 = vadd.f32 %v2679, %v2721
    %v2723 = vpop.f32.mrb[0].mxu0
    %v2724 = vadd.f32 %v2681, %v2723
    %v2725 = vpop.f32.mrb[0].mxu0
    %v2726 = vadd.f32 %v2683, %v2725
    %2727 = vdwg.mxu0
    %2728 = vmatprep.subr.bf16.mxu0 %v1428
    %2729 = vmatpush1.bf16.msra.mxu0 %v1427
    %2730 = vmatprep.subr.bf16.mxu0 %v1434
    %2731 = vmatpush1.bf16.msra.mxu0 %v1433
    %2732 = vmatprep.subr.bf16.mxu0 %v1440
    %2733 = vmatpush1.bf16.msra.mxu0 %v1439
    %2734 = vmatprep.subr.bf16.mxu0 %v1446
    %2735 = vmatpush1.bf16.msra.mxu0 %v1445
    %2736 = vmatprep.subr.bf16.mxu0 %v1452
    %2737 = vmatpush1.bf16.msra.mxu0 %v1451
    %2738 = vmatprep.subr.bf16.mxu0 %v1458
    %2739 = vmatpush1.bf16.msra.mxu0 %v1457
    %2740 = vmatprep.subr.bf16.mxu0 %v1464
    %2741 = vmatpush1.bf16.msra.mxu0 %v1463
    %2742 = vmatprep.subr.bf16.mxu0 %v1470
    %2743 = vmatpush1.bf16.msra.mxu0 %v1469
    %2744 = vmatprep.subr.bf16.mxu0 %v1476
    %2745 = vmatpush1.bf16.msra.mxu0 %v1475
    %2746 = vmatprep.subr.bf16.mxu0 %v1482
    %2747 = vmatpush1.bf16.msra.mxu0 %v1481
    %2748 = vmatprep.subr.bf16.mxu0 %v1488
    %2749 = vmatpush1.bf16.msra.mxu0 %v1487
    %2750 = vmatprep.subr.bf16.mxu0 %v1494
    %2751 = vmatpush1.bf16.msra.mxu0 %v1493
    %2752 = vmatprep.subr.bf16.mxu0 %v1500
    %2753 = vmatpush1.bf16.msra.mxu0 %v1499
    %2754 = vmatprep.subr.bf16.mxu0 %v1506
    %2755 = vmatpush1.bf16.msra.mxu0 %v1505
    %2756 = vmatprep.subr.bf16.mxu0 %v1512
    %2757 = vmatpush1.bf16.msra.mxu0 %v1511
    %2758 = vmatprep.subr.bf16.mxu0 %v1518
    %2759 = vmatpush1.bf16.msra.mxu0 %v1517
    %2760 = vmatprep.mubr.bf16.mxu0 %v1634
    %2761 = vmatmul.mubr.bf16.gmra.mrb[0].mxu0 %v1633
    %v2762 = vpop.f32.mrb[0].mxu0
    %v2763 = vadd.f32 %v2720, %v2762
    %v2764 = vpop.f32.mrb[0].mxu0
    %v2765 = vadd.f32 %v2722, %v2764
    %v2766 = vpop.f32.mrb[0].mxu0
    %v2767 = vadd.f32 %v2724, %v2766
    %v2768 = vpop.f32.mrb[0].mxu0
    %v2769 = vadd.f32 %v2726, %v2768
    %2770 = vdwg.mxu0
    %2771 = vmatprep.subr.bf16.mxu0 %v1524
    %2772 = vmatpush1.bf16.msra.mxu0 %v1523
    %2773 = vmatprep.subr.bf16.mxu0 %v1530
    %2774 = vmatpush1.bf16.msra.mxu0 %v1529
    %2775 = vmatprep.subr.bf16.mxu0 %v1536
    %2776 = vmatpush1.bf16.msra.mxu0 %v1535
    %2777 = vmatprep.subr.bf16.mxu0 %v1542
    %2778 = vmatpush1.bf16.msra.mxu0 %v1541
    %2779 = vmatprep.subr.bf16.mxu0 %v1548
    %2780 = vmatpush1.bf16.msra.mxu0 %v1547
    %2781 = vmatprep.subr.bf16.mxu0 %v1554
    %2782 = vmatpush1.bf16.msra.mxu0 %v1553
    %2783 = vmatprep.subr.bf16.mxu0 %v1560
    %2784 = vmatpush1.bf16.msra.mxu0 %v1559
    %2785 = vmatprep.subr.bf16.mxu0 %v1566
    %2786 = vmatpush1.bf16.msra.mxu0 %v1565
    %2787 = vmatprep.subr.bf16.mxu0 0
    %2788 = vmatpush1.bf16.msra.mxu0 0
    %2789 = vmatprep.subr.bf16.mxu0 0
    %2790 = vmatpush1.bf16.msra.mxu0 0
    %2791 = vmatprep.subr.bf16.mxu0 0
    %2792 = vmatpush1.bf16.msra.mxu0 0
    %2793 = vmatprep.subr.bf16.mxu0 0
    %2794 = vmatpush1.bf16.msra.mxu0 0
    %2795 = vmatprep.subr.bf16.mxu0 0
    %2796 = vmatpush1.bf16.msra.mxu0 0
    %2797 = vmatprep.subr.bf16.mxu0 0
    %2798 = vmatpush1.bf16.msra.mxu0 0
    %2799 = vmatprep.subr.bf16.mxu0 0
    %2800 = vmatpush1.bf16.msra.mxu0 0
    %2801 = vmatprep.subr.bf16.mxu0 0
    %2802 = vmatpush1.bf16.msra.mxu0 0
    %2803 = vmatprep.mubr.bf16.mxu0 0
    %2804 = vmatmul.mubr.bf16.gmra.mrb[0].mxu0 %v1635
    %v2805 = vpop.f32.mrb[0].mxu0
    %v2806 = vadd.f32 %v2763, %v2805
    %v2807 = vpop.f32.mrb[0].mxu0
    %v2808 = vadd.f32 %v2765, %v2807
    %v2809 = vpop.f32.mrb[0].mxu0
    %v2810 = vadd.f32 %v2767, %v2809
    %v2811 = vpop.f32.mrb[0].mxu0
    %v2812 = vadd.f32 %v2769, %v2811
    %2813 = vdwg.mxu0
    %v2814 = vld [vmem:[#allocation6] sm:$0x3f]
    %v2816 = vlaneseq
    %v2817 = vshrl.u32 %v2816, 7
    %v2818 = vsub.s32 0, %v2817
    %v2819 = vrot.slane %v2814, %v2818
    %v2820 = vlaneseq
    %v2821 = vshrl.u32 %v2820, 7
    %v2822 = vsub.s32 1, %v2821
    %v2823 = vrot.slane %v2814, %v2822
    %v2824 = vlaneseq
    %v2825 = vshrl.u32 %v2824, 7
    %v2826 = vsub.s32 2, %v2825
    %v2827 = vrot.slane %v2814, %v2826
    %v2828 = vlaneseq
    %v2829 = vshrl.u32 %v2828, 7
    %v2830 = vsub.s32 3, %v2829
    %v2831 = vrot.slane %v2814, %v2830
    %v2832 = vlaneseq
    %v2833 = vshrl.u32 %v2832, 7
    %v2834 = vsub.s32 4, %v2833
    %v2835 = vrot.slane %v2814, %v2834
    %v2836 = vlaneseq
    %v2837 = vshrl.u32 %v2836, 7
    %v2838 = vsub.s32 5, %v2837
    %v2839 = vrot.slane %v2814, %v2838
    %v2846 = vmul.f32 %v2032, %v2819
    %v2847 = vmul.f32 %v2034, %v2823
    %v2848 = vmul.f32 %v2419, %v2827
    %v2849 = vmul.f32 %v2421, %v2831
    %v2850 = vmul.f32 %v2806, %v2835
    %v2851 = vmul.f32 %v2808, %v2839
    %v2852 = vmul.f32 %v2036, %v2819
    %v2853 = vmul.f32 %v2038, %v2823
    %v2854 = vmul.f32 %v2423, %v2827
    %v2855 = vmul.f32 %v2425, %v2831
    %v2856 = vmul.f32 %v2810, %v2835
    %v2857 = vmul.f32 %v2812, %v2839
    %v2858 = vld [vmem:[#allocation8] sm:$0x3f]
    %v2860 = vlaneseq
    %v2861 = vshrl.u32 %v2860, 7
    %v2862 = vsub.s32 0, %v2861
    %v2863 = vrot.slane %v2858, %v2862
    %v2864 = vlaneseq
    %v2865 = vshrl.u32 %v2864, 7
    %v2866 = vsub.s32 1, %v2865
    %v2867 = vrot.slane %v2858, %v2866
    %v2868 = vlaneseq
    %v2869 = vshrl.u32 %v2868, 7
    %v2870 = vsub.s32 2, %v2869
    %v2871 = vrot.slane %v2858, %v2870
    %v2872 = vlaneseq
    %v2873 = vshrl.u32 %v2872, 7
    %v2874 = vsub.s32 3, %v2873
    %v2875 = vrot.slane %v2858, %v2874
    %v2876 = vlaneseq
    %v2877 = vshrl.u32 %v2876, 7
    %v2878 = vsub.s32 4, %v2877
    %v2879 = vrot.slane %v2858, %v2878
    %v2880 = vlaneseq
    %v2881 = vshrl.u32 %v2880, 7
    %v2882 = vsub.s32 5, %v2881
    %v2883 = vrot.slane %v2858, %v2882
    %v2890 = vadd.f32 %v2846, %v2863
    %v2891 = vadd.f32 %v2847, %v2867
    %v2892 = vadd.f32 %v2848, %v2871
    %v2893 = vadd.f32 %v2849, %v2875
    %v2894 = vadd.f32 %v2850, %v2879
    %v2895 = vadd.f32 %v2851, %v2883
    %v2896 = vadd.f32 %v2852, %v2863
    %v2897 = vadd.f32 %v2853, %v2867
    %v2898 = vadd.f32 %v2854, %v2871
    %v2899 = vadd.f32 %v2855, %v2875
    %v2900 = vadd.f32 %v2856, %v2879
    %v2901 = vadd.f32 %v2857, %v2883
    %v2902 = vmul.f32 %v2890, 0.5
    %v2903 = vmul.f32 %v2891, 0.5
    %v2904 = vmul.f32 %v2892, 0.5
    %v2905 = vmul.f32 %v2893, 0.5
    %v2906 = vmul.f32 %v2894, 0.5
    %v2907 = vmul.f32 %v2895, 0.5
    %v2908 = vmul.f32 %v2896, 0.5
    %v2909 = vmul.f32 %v2897, 0.5
    %v2910 = vmul.f32 %v2898, 0.5
    %v2911 = vmul.f32 %v2899, 0.5
    %v2912 = vmul.f32 %v2900, 0.5
    %v2913 = vmul.f32 %v2901, 0.5
    %v2914 = vpack.c.bf16 %v2908, %v2902
    %v2915 = vpack.c.bf16 %v2909, %v2903
    %v2916 = vpack.c.bf16 %v2910, %v2904
    %v2917 = vpack.c.bf16 %v2911, %v2905
    %v2918 = vpack.c.bf16 %v2912, %v2906
    %v2919 = vpack.c.bf16 %v2913, %v2907
    %v2920 = vld [vmem:[%s2] sm:$0xff]
    %v2921 = vld [vmem:[%s2 + $0x8] sm:$0xf]
    %v2922 = vld [vmem:[%s2 + $0xc] sm:$0xff]
    %v2923 = vld [vmem:[%s2 + $0x14] sm:$0xf]
    %v2924 = vld [vmem:[%s2 + $0x18] sm:$0xff]
    %v2925 = vld [vmem:[%s2 + $0x20] sm:$0xf]
    %v2926 = vld [vmem:[%s2 + $0x24] sm:$0xff]
    %v2927 = vld [vmem:[%s2 + $0x2c] sm:$0xf]
    %v2928 = vld [vmem:[%s2 + $0x30] sm:$0xff]
    %v2929 = vld [vmem:[%s2 + $0x38] sm:$0xf]
    %v2930 = vld [vmem:[%s2 + $0x3c] sm:$0xff]
    %v2931 = vld [vmem:[%s2 + $0x44] sm:$0xf]
    %v2932 = vld [vmem:[#allocation21] sm:$0xf]
    %v2933 = vld [vmem:[#allocation21 + $0x4] sm:$0xf]
    %v2934 = vld [vmem:[#allocation21 + $0x8] sm:$0xf]
    %v2935 = vld [vmem:[#allocation21 + $0xc] sm:$0xf]
    %v2936 = vld [vmem:[#allocation21 + $0x10] sm:$0xf]
    %v2937 = vld [vmem:[#allocation21 + $0x14] sm:$0xf]
    %v2938 = vld [vmem:[#allocation21 + $0x18] sm:$0xf]
    %v2939 = vld [vmem:[#allocation21 + $0x1c] sm:$0xf]
    %v2940 = vld [vmem:[#allocation21 + $0x20] sm:$0xf]
    %v2941 = vld [vmem:[#allocation21 + $0x24] sm:$0xf]
    %v2942 = vld [vmem:[#allocation21 + $0x28] sm:$0xf]
    %v2943 = vld [vmem:[#allocation21 + $0x2c] sm:$0xf]
    %v2944 = vld [vmem:[#allocation21 + $0x30] sm:$0xf]
    %v2945 = vld [vmem:[#allocation21 + $0x34] sm:$0xf]
    %v2946 = vld [vmem:[#allocation21 + $0x38] sm:$0xf]
    %v2947 = vld [vmem:[#allocation21 + $0x3c] sm:$0xf]
    %v2948 = vld [vmem:[#allocation21 + $0x40] sm:$0xf]
    %v2949 = vld [vmem:[#allocation21 + $0x44] sm:$0xf]
    %v2950 = vld [vmem:[#allocation21 + $0x48] sm:$0xf]
    %v2951 = vld [vmem:[#allocation21 + $0x4c] sm:$0xf]
    %v2952 = vld [vmem:[#allocation21 + $0x50] sm:$0xf]
    %v2953 = vld [vmem:[#allocation21 + $0x54] sm:$0xf]
    %v2954 = vld [vmem:[#allocation21 + $0x58] sm:$0xf]
    %v2955 = vld [vmem:[#allocation21 + $0x5c] sm:$0xf]
    %v2956 = vld [vmem:[#allocation21 + $0x60] sm:$0xf]
    %v2957 = vld [vmem:[#allocation21 + $0x64] sm:$0xf]
    %v2958 = vld [vmem:[#allocation21 + $0x68] sm:$0xf]
    %v2959 = vld [vmem:[#allocation21 + $0x6c] sm:$0xf]
    %v2960 = vld [vmem:[#allocation21 + $0x70] sm:$0xf]
    %v2961 = vld [vmem:[#allocation21 + $0x74] sm:$0xf]
    %v2962 = vld [vmem:[#allocation21 + $0x78] sm:$0xf]
    %v2963 = vld [vmem:[#allocation21 + $0x7c] sm:$0xf]
    %v2964 = vld [vmem:[#allocation21 + $0x80] sm:$0xf]
    %v2965 = vld [vmem:[#allocation21 + $0x84] sm:$0xf]
    %v2966 = vld [vmem:[#allocation21 + $0x88] sm:$0xf]
    %v2967 = vld [vmem:[#allocation21 + $0x8c] sm:$0xf]
    %v2968 = vld [vmem:[#allocation21 + $0x90] sm:$0xf]
    %v2969 = vld [vmem:[#allocation21 + $0x94] sm:$0xf]
    %v2970 = vld [vmem:[#allocation21 + $0x98] sm:$0xf]
    %v2971 = vld [vmem:[#allocation21 + $0x9c] sm:$0xf]
    %v2972 = vld [vmem:[#allocation21 + $0xa0] sm:$0xf]
    %v2973 = vld [vmem:[#allocation21 + $0xa4] sm:$0xf]
    %v2974 = vld [vmem:[#allocation21 + $0xa8] sm:$0xf]
    %v2975 = vld [vmem:[#allocation21 + $0xac] sm:$0xf]
    %v2976 = vld [vmem:[#allocation21 + $0xb0] sm:$0xf]
    %v2977 = vld [vmem:[#allocation21 + $0xb4] sm:$0xf]
    %v2978 = vld [vmem:[#allocation21 + $0xb8] sm:$0xf]
    %v2979 = vld [vmem:[#allocation21 + $0xbc] sm:$0xf]
    %v2980 = vld [vmem:[#allocation23] sm:$0x1]
    %v2982 = vlaneseq
    %v2983 = vshrl.u32 %v2982, 7
    %v2984 = vsub.s32 0, %v2983
    %v2985 = vrot.slane %v2980, %v2984
    %v2999 = vunpack.c.l.b16 %v2920
    %v3000 = vunpack.c.h.b16 %v2920
    %v3001 = vunpack.c.l.b16 %v2921
    %v3002 = vunpack.c.l.b16 %v2922
    %v3003 = vunpack.c.h.b16 %v2922
    %v3004 = vunpack.c.l.b16 %v2923
    %v3005 = vunpack.c.l.b16 %v2924
    %v3006 = vunpack.c.h.b16 %v2924
    %v3007 = vunpack.c.l.b16 %v2925
    %v3008 = vunpack.c.l.b16 %v2926
    %v3009 = vunpack.c.h.b16 %v2926
    %v3010 = vunpack.c.l.b16 %v2927
    %v3011 = vunpack.c.l.b16 %v2928
    %v3012 = vunpack.c.h.b16 %v2928
    %v3013 = vunpack.c.l.b16 %v2929
    %v3014 = vunpack.c.l.b16 %v2930
    %v3015 = vunpack.c.h.b16 %v2930
    %v3016 = vunpack.c.l.b16 %v2931
    %v3017 = vpack.c.b16 %v3002, %v2999
    %v3018 = vpack.c.b16 %v3003, %v3000
    %v3019 = vpack.c.b16 %v3004, %v3001
    %v3020 = vpack.c.b16 %v3008, %v3005
    %v3021 = vpack.c.b16 %v3009, %v3006
    %v3022 = vpack.c.b16 %v3010, %v3007
    %v3023 = vpack.c.b16 %v3014, %v3011
    %v3024 = vpack.c.b16 %v3015, %v3012
    %v3025 = vpack.c.b16 %v3016, %v3013
    %v3083 = vunpack.c.l.b16 %v2932
    %v3084 = vunpack.c.l.b16 %v2933
    %v3085 = vunpack.c.l.b16 %v2934
    %v3086 = vunpack.c.l.b16 %v2935
    %v3087 = vunpack.c.l.b16 %v2936
    %v3088 = vunpack.c.l.b16 %v2937
    %v3089 = vunpack.c.l.b16 %v2938
    %v3090 = vunpack.c.l.b16 %v2939
    %v3091 = vunpack.c.l.b16 %v2940
    %v3092 = vunpack.c.l.b16 %v2941
    %v3093 = vunpack.c.l.b16 %v2942
    %v3094 = vunpack.c.l.b16 %v2943
    %v3095 = vunpack.c.l.b16 %v2944
    %v3096 = vunpack.c.l.b16 %v2945
    %v3097 = vunpack.c.l.b16 %v2946
    %v3098 = vunpack.c.l.b16 %v2947
    %v3099 = vunpack.c.l.b16 %v2948
    %v3100 = vunpack.c.l.b16 %v2949
    %v3101 = vunpack.c.l.b16 %v2950
    %v3102 = vunpack.c.l.b16 %v2951
    %v3103 = vunpack.c.l.b16 %v2952
    %v3104 = vunpack.c.l.b16 %v2953
    %v3105 = vunpack.c.l.b16 %v2954
    %v3106 = vunpack.c.l.b16 %v2955
    %v3107 = vunpack.c.l.b16 %v2956
    %v3108 = vunpack.c.l.b16 %v2957
    %v3109 = vunpack.c.l.b16 %v2958
    %v3110 = vunpack.c.l.b16 %v2959
    %v3111 = vunpack.c.l.b16 %v2960
    %v3112 = vunpack.c.l.b16 %v2961
    %v3113 = vunpack.c.l.b16 %v2962
    %v3114 = vunpack.c.l.b16 %v2963
    %v3115 = vunpack.c.l.b16 %v2964
    %v3116 = vunpack.c.l.b16 %v2965
    %v3117 = vunpack.c.l.b16 %v2966
    %v3118 = vunpack.c.l.b16 %v2967
    %v3119 = vunpack.c.l.b16 %v2968
    %v3120 = vunpack.c.l.b16 %v2969
    %v3121 = vunpack.c.l.b16 %v2970
    %v3122 = vunpack.c.l.b16 %v2971
    %v3123 = vunpack.c.l.b16 %v2972
    %v3124 = vunpack.c.l.b16 %v2973
    %v3125 = vunpack.c.l.b16 %v2974
    %v3126 = vunpack.c.l.b16 %v2975
    %v3127 = vunpack.c.l.b16 %v2976
    %v3128 = vunpack.c.l.b16 %v2977
    %v3129 = vunpack.c.l.b16 %v2978
    %v3130 = vunpack.c.l.b16 %v2979
    %v3131 = vpack.c.b16 %v3084, %v3083
    %v3132 = vpack.c.b16 %v3086, %v3085
    %v3133 = vpack.c.b16 %v3088, %v3087
    %v3134 = vpack.c.b16 %v3090, %v3089
    %v3135 = vpack.c.b16 %v3092, %v3091
    %v3136 = vpack.c.b16 %v3094, %v3093
    %v3137 = vpack.c.b16 %v3096, %v3095
    %v3138 = vpack.c.b16 %v3098, %v3097
    %v3139 = vpack.c.b16 %v3100, %v3099
    %v3140 = vpack.c.b16 %v3102, %v3101
    %v3141 = vpack.c.b16 %v3104, %v3103
    %v3142 = vpack.c.b16 %v3106, %v3105
    %v3143 = vpack.c.b16 %v3108, %v3107
    %v3144 = vpack.c.b16 %v3110, %v3109
    %v3145 = vpack.c.b16 %v3112, %v3111
    %v3146 = vpack.c.b16 %v3114, %v3113
    %v3147 = vpack.c.b16 %v3116, %v3115
    %v3148 = vpack.c.b16 %v3118, %v3117
    %v3149 = vpack.c.b16 %v3120, %v3119
    %v3150 = vpack.c.b16 %v3122, %v3121
    %v3151 = vpack.c.b16 %v3124, %v3123
    %v3152 = vpack.c.b16 %v3126, %v3125
    %v3153 = vpack.c.b16 %v3128, %v3127
    %v3154 = vpack.c.b16 %v3130, %v3129
    %3179 = vmatprep.subr.bf16.mxu0 0
    %3180 = vmatpush1.bf16.msra.mxu0 %v3131
    %3181 = vmatprep.subr.bf16.mxu0 0
    %3182 = vmatpush1.bf16.msra.mxu0 %v3132
    %3183 = vmatprep.subr.bf16.mxu0 0
    %3184 = vmatpush1.bf16.msra.mxu0 %v3133
    %3185 = vmatprep.subr.bf16.mxu0 0
    %3186 = vmatpush1.bf16.msra.mxu0 %v3134
    %3187 = vmatprep.subr.bf16.mxu0 0
    %3188 = vmatpush1.bf16.msra.mxu0 %v3135
    %3189 = vmatprep.subr.bf16.mxu0 0
    %3190 = vmatpush1.bf16.msra.mxu0 %v3136
    %3191 = vmatprep.subr.bf16.mxu0 0
    %3192 = vmatpush1.bf16.msra.mxu0 %v3137
    %3193 = vmatprep.subr.bf16.mxu0 0
    %3194 = vmatpush1.bf16.msra.mxu0 %v3138
    %3195 = vmatprep.subr.bf16.mxu0 0
    %3196 = vmatpush1.bf16.msra.mxu0 %v3139
    %3197 = vmatprep.subr.bf16.mxu0 0
    %3198 = vmatpush1.bf16.msra.mxu0 %v3140
    %3199 = vmatprep.subr.bf16.mxu0 0
    %3200 = vmatpush1.bf16.msra.mxu0 %v3141
    %3201 = vmatprep.subr.bf16.mxu0 0
    %3202 = vmatpush1.bf16.msra.mxu0 %v3142
    %3203 = vmatprep.subr.bf16.mxu0 0
    %3204 = vmatpush1.bf16.msra.mxu0 %v3143
    %3205 = vmatprep.subr.bf16.mxu0 0
    %3206 = vmatpush1.bf16.msra.mxu0 %v3144
    %3207 = vmatprep.subr.bf16.mxu0 0
    %3208 = vmatpush1.bf16.msra.mxu0 %v3145
    %3209 = vmatprep.subr.bf16.mxu0 0
    %3210 = vmatpush1.bf16.msra.mxu0 %v3146
    %3211 = vmatprep.mubr.bf16.mxu0 %v3018
    %3212 = vmatmul.mubr.bf16.gmra.mrb[0].mxu0 %v3017
    %v3213 = vpop.f32.mrb[0].mxu0
    %v3214 = vadd.f32 %v2985, %v3213
    %v3215 = vpop.f32.mrb[0].mxu0
    %v3216 = vpop.f32.mrb[0].mxu0
    %v3217 = vadd.f32 %v2985, %v3216
    %v3218 = vpop.f32.mrb[0].mxu0
    %3219 = vmatprep.mubr.bf16.mxu0 %v3021
    %3220 = vmatmul.mubr.bf16.gmra.mrb[0].mxu0 %v3020
    %v3221 = vpop.f32.mrb[0].mxu0
    %v3222 = vadd.f32 %v2985, %v3221
    %v3223 = vpop.f32.mrb[0].mxu0
    %v3224 = vpop.f32.mrb[0].mxu0
    %v3225 = vadd.f32 %v2985, %v3224
    %v3226 = vpop.f32.mrb[0].mxu0
    %3227 = vmatprep.mubr.bf16.mxu0 %v3024
    %3228 = vmatmul.mubr.bf16.gmra.mrb[0].mxu0 %v3023
    %v3229 = vpop.f32.mrb[0].mxu0
    %v3230 = vadd.f32 %v2985, %v3229
    %v3231 = vpop.f32.mrb[0].mxu0
    %v3232 = vpop.f32.mrb[0].mxu0
    %v3233 = vadd.f32 %v2985, %v3232
    %v3234 = vpop.f32.mrb[0].mxu0
    %3235 = vdwg.mxu0
    %3236 = vmatprep.subr.bf16.mxu0 0
    %3237 = vmatpush1.bf16.msra.mxu0 %v3147
    %3238 = vmatprep.subr.bf16.mxu0 0
    %3239 = vmatpush1.bf16.msra.mxu0 %v3148
    %3240 = vmatprep.subr.bf16.mxu0 0
    %3241 = vmatpush1.bf16.msra.mxu0 %v3149
    %3242 = vmatprep.subr.bf16.mxu0 0
    %3243 = vmatpush1.bf16.msra.mxu0 %v3150
    %3244 = vmatprep.subr.bf16.mxu0 0
    %3245 = vmatpush1.bf16.msra.mxu0 %v3151
    %3246 = vmatprep.subr.bf16.mxu0 0
    %3247 = vmatpush1.bf16.msra.mxu0 %v3152
    %3248 = vmatprep.subr.bf16.mxu0 0
    %3249 = vmatpush1.bf16.msra.mxu0 %v3153
    %3250 = vmatprep.subr.bf16.mxu0 0
    %3251 = vmatpush1.bf16.msra.mxu0 %v3154
    %3252 = vmatprep.subr.bf16.mxu0 0
    %3253 = vmatpush1.bf16.msra.mxu0 0
    %3254 = vmatprep.subr.bf16.mxu0 0
    %3255 = vmatpush1.bf16.msra.mxu0 0
    %3256 = vmatprep.subr.bf16.mxu0 0
    %3257 = vmatpush1.bf16.msra.mxu0 0
    %3258 = vmatprep.subr.bf16.mxu0 0
    %3259 = vmatpush1.bf16.msra.mxu0 0
    %3260 = vmatprep.subr.bf16.mxu0 0
    %3261 = vmatpush1.bf16.msra.mxu0 0
    %3262 = vmatprep.subr.bf16.mxu0 0
    %3263 = vmatpush1.bf16.msra.mxu0 0
    %3264 = vmatprep.subr.bf16.mxu0 0
    %3265 = vmatpush1.bf16.msra.mxu0 0
    %3266 = vmatprep.subr.bf16.mxu0 0
    %3267 = vmatpush1.bf16.msra.mxu0 0
    %3268 = vmatprep.mubr.bf16.mxu0 0
    %3269 = vmatmul.mubr.bf16.gmra.mrb[0].mxu0 %v3019
    %v3270 = vpop.f32.mrb[0].mxu0
    %v3271 = vadd.f32 %v3214, %v3270
    %v3272 = vpop.f32.mrb[0].mxu0
    %v3273 = vpop.f32.mrb[0].mxu0
    %v3274 = vadd.f32 %v3217, %v3273
    %v3275 = vpop.f32.mrb[0].mxu0
    %3276 = vmatprep.mubr.bf16.mxu0 0
    %3277 = vmatmul.mubr.bf16.gmra.mrb[0].mxu0 %v3022
    %v3278 = vpop.f32.mrb[0].mxu0
    %v3279 = vadd.f32 %v3222, %v3278
    %v3280 = vpop.f32.mrb[0].mxu0
    %v3281 = vpop.f32.mrb[0].mxu0
    %v3282 = vadd.f32 %v3225, %v3281
    %v3283 = vpop.f32.mrb[0].mxu0
    %3284 = vmatprep.mubr.bf16.mxu0 0
    %3285 = vmatmul.mubr.bf16.gmra.mrb[0].mxu0 %v3025
    %v3286 = vpop.f32.mrb[0].mxu0
    %v3287 = vadd.f32 %v3230, %v3286
    %v3288 = vpop.f32.mrb[0].mxu0
    %v3289 = vpop.f32.mrb[0].mxu0
    %v3290 = vadd.f32 %v3233, %v3289
    %v3291 = vpop.f32.mrb[0].mxu0
    %3292 = vdwg.mxu0
    %v3293 = vmax.f32 %v3271, 0.0
    %v3294 = vmax.f32 %v3274, 0.0
    %v3295 = vmax.f32 %v3279, 0.0
    %v3296 = vmax.f32 %v3282, 0.0
    %v3297 = vmax.f32 %v3287, 0.0
    %v3298 = vmax.f32 %v3290, 0.0
    %v3299 = vpack.c.bf16 %v3294, %v3293
    %v3300 = vpack.c.bf16 %v3296, %v3295
    %v3301 = vpack.c.bf16 %v3298, %v3297
    %v3302 = vld [vmem:[#allocation24] sm:$0xf]
    %v3303 = vld [vmem:[#allocation24 + $0x4] sm:$0xf]
    %v3304 = vld [vmem:[#allocation24 + $0x8] sm:$0xf]
    %v3305 = vld [vmem:[#allocation24 + $0xc] sm:$0xf]
    %v3306 = vld [vmem:[#allocation24 + $0x10] sm:$0xf]
    %v3307 = vld [vmem:[#allocation24 + $0x14] sm:$0xf]
    %v3308 = vld [vmem:[#allocation24 + $0x18] sm:$0xf]
    %v3309 = vld [vmem:[#allocation24 + $0x1c] sm:$0xf]
    %v3310 = vld [vmem:[#allocation24 + $0x20] sm:$0xf]
    %v3311 = vld [vmem:[#allocation24 + $0x24] sm:$0xf]
    %v3312 = vld [vmem:[#allocation24 + $0x28] sm:$0xf]
    %v3313 = vld [vmem:[#allocation24 + $0x2c] sm:$0xf]
    %v3314 = vld [vmem:[#allocation24 + $0x30] sm:$0xf]
    %v3315 = vld [vmem:[#allocation24 + $0x34] sm:$0xf]
    %v3316 = vld [vmem:[#allocation24 + $0x38] sm:$0xf]
    %v3317 = vld [vmem:[#allocation24 + $0x3c] sm:$0xf]
    %v3318 = vld [vmem:[#allocation26] sm:$0x1]
    %v3320 = vlaneseq
    %v3321 = vshrl.u32 %v3320, 7
    %v3322 = vsub.s32 0, %v3321
    %v3323 = vrot.slane %v3318, %v3322
    %v3341 = vunpack.c.l.b16 %v3302
    %v3342 = vunpack.c.l.b16 %v3303
    %v3343 = vunpack.c.l.b16 %v3304
    %v3344 = vunpack.c.l.b16 %v3305
    %v3345 = vunpack.c.l.b16 %v3306
    %v3346 = vunpack.c.l.b16 %v3307
    %v3347 = vunpack.c.l.b16 %v3308
    %v3348 = vunpack.c.l.b16 %v3309
    %v3349 = vunpack.c.l.b16 %v3310
    %v3350 = vunpack.c.l.b16 %v3311
    %v3351 = vunpack.c.l.b16 %v3312
    %v3352 = vunpack.c.l.b16 %v3313
    %v3353 = vunpack.c.l.b16 %v3314
    %v3354 = vunpack.c.l.b16 %v3315
    %v3355 = vunpack.c.l.b16 %v3316
    %v3356 = vunpack.c.l.b16 %v3317
    %v3357 = vpack.c.b16 %v3342, %v3341
    %v3358 = vpack.c.b16 %v3344, %v3343
    %v3359 = vpack.c.b16 %v3346, %v3345
    %v3360 = vpack.c.b16 %v3348, %v3347
    %v3361 = vpack.c.b16 %v3350, %v3349
    %v3362 = vpack.c.b16 %v3352, %v3351
    %v3363 = vpack.c.b16 %v3354, %v3353
    %v3364 = vpack.c.b16 %v3356, %v3355
    %3373 = vmatprep.subr.bf16.mxu0 0
    %3374 = vmatpush1.bf16.msra.mxu0 %v3357
    %3375 = vmatprep.subr.bf16.mxu0 0
    %3376 = vmatpush1.bf16.msra.mxu0 %v3358
    %3377 = vmatprep.subr.bf16.mxu0 0
    %3378 = vmatpush1.bf16.msra.mxu0 %v3359
    %3379 = vmatprep.subr.bf16.mxu0 0
    %3380 = vmatpush1.bf16.msra.mxu0 %v3360
    %3381 = vmatprep.subr.bf16.mxu0 0
    %3382 = vmatpush1.bf16.msra.mxu0 %v3361
    %3383 = vmatprep.subr.bf16.mxu0 0
    %3384 = vmatpush1.bf16.msra.mxu0 %v3362
    %3385 = vmatprep.subr.bf16.mxu0 0
    %3386 = vmatpush1.bf16.msra.mxu0 %v3363
    %3387 = vmatprep.subr.bf16.mxu0 0
    %3388 = vmatpush1.bf16.msra.mxu0 %v3364
    %3389 = vmatprep.subr.bf16.mxu0 0
    %3390 = vmatpush1.bf16.msra.mxu0 0
    %3391 = vmatprep.subr.bf16.mxu0 0
    %3392 = vmatpush1.bf16.msra.mxu0 0
    %3393 = vmatprep.subr.bf16.mxu0 0
    %3394 = vmatpush1.bf16.msra.mxu0 0
    %3395 = vmatprep.subr.bf16.mxu0 0
    %3396 = vmatpush1.bf16.msra.mxu0 0
    %3397 = vmatprep.subr.bf16.mxu0 0
    %3398 = vmatpush1.bf16.msra.mxu0 0
    %3399 = vmatprep.subr.bf16.mxu0 0
    %3400 = vmatpush1.bf16.msra.mxu0 0
    %3401 = vmatprep.subr.bf16.mxu0 0
    %3402 = vmatpush1.bf16.msra.mxu0 0
    %3403 = vmatprep.subr.bf16.mxu0 0
    %3404 = vmatpush1.bf16.msra.mxu0 0
    %3405 = vmatprep.mubr.bf16.mxu0 0
    %3406 = vmatmul.mubr.bf16.gmra.mrb[0].mxu0 %v3299
    %v3407 = vpop.f32.mrb[0].mxu0
    %v3408 = vadd.f32 %v3323, %v3407
    %v3409 = vpop.f32.mrb[0].mxu0
    %v3410 = vpop.f32.mrb[0].mxu0
    %v3411 = vadd.f32 %v3323, %v3410
    %v3412 = vpop.f32.mrb[0].mxu0
    %3413 = vmatprep.mubr.bf16.mxu0 0
    %3414 = vmatmul.mubr.bf16.gmra.mrb[0].mxu0 %v3300
    %v3415 = vpop.f32.mrb[0].mxu0
    %v3416 = vadd.f32 %v3323, %v3415
    %v3417 = vpop.f32.mrb[0].mxu0
    %v3418 = vpop.f32.mrb[0].mxu0
    %v3419 = vadd.f32 %v3323, %v3418
    %v3420 = vpop.f32.mrb[0].mxu0
    %3421 = vmatprep.mubr.bf16.mxu0 0
    %3422 = vmatmul.mubr.bf16.gmra.mrb[0].mxu0 %v3301
    %v3423 = vpop.f32.mrb[0].mxu0
    %v3424 = vadd.f32 %v3323, %v3423
    %v3425 = vpop.f32.mrb[0].mxu0
    %v3426 = vpop.f32.mrb[0].mxu0
    %v3427 = vadd.f32 %v3323, %v3426
    %v3428 = vpop.f32.mrb[0].mxu0
    %3429 = vdwg.mxu0
    %v3430 = vpack.c.bf16 %v3411, %v3408
    %v3431 = vpack.c.bf16 %v3416, %v3416
    %v3432 = vpack.c.bf16 %v3424, %v3419
    %v3433 = vpack.c.bf16 %v3427, %v3427
    %v3434 = vld [vmem:[%s0] sm:$0x3f]
    %s3435 = smul.u32 2, 96
    %s3436 = smul.u32 %s3435, 6
    %s3437 = sshll.u32 %s3436, 4
    %3438 = dma.done [#allocation3], %s3437
    %v3439 = vld [vmem:[#allocation2] sm:$0xff]
    %v3440 = vld [vmem:[#allocation2 + $0x8] sm:$0xff]
    %v3441 = vld [vmem:[#allocation2 + $0x10] sm:$0xff]
    %v3442 = vld [vmem:[#allocation2 + $0x18] sm:$0xff]
    %v3443 = vld [vmem:[#allocation2 + $0x20] sm:$0xff]
    %v3444 = vld [vmem:[#allocation2 + $0x28] sm:$0xff]
    %v3445 = vld [vmem:[#allocation2 + $0x30] sm:$0xff]
    %v3446 = vld [vmem:[#allocation2 + $0x38] sm:$0xff]
    %v3447 = vld [vmem:[#allocation2 + $0x40] sm:$0xff]
    %v3448 = vld [vmem:[#allocation2 + $0x48] sm:$0xff]
    %v3449 = vld [vmem:[#allocation2 + $0x50] sm:$0xff]
    %v3450 = vld [vmem:[#allocation2 + $0x58] sm:$0xff]
    %v3451 = vld [vmem:[#allocation2 + $0x60] sm:$0xff]
    %v3452 = vld [vmem:[#allocation2 + $0x68] sm:$0xff]
    %v3453 = vld [vmem:[#allocation2 + $0x70] sm:$0xff]
    %v3454 = vld [vmem:[#allocation2 + $0x78] sm:$0xff]
    %v3455 = vld [vmem:[#allocation2 + $0x80] sm:$0xff]
    %v3456 = vld [vmem:[#allocation2 + $0x88] sm:$0xff]
    %v3457 = vld [vmem:[#allocation2 + $0x90] sm:$0xff]
    %v3458 = vld [vmem:[#allocation2 + $0x98] sm:$0xff]
    %v3459 = vld [vmem:[#allocation2 + $0xa0] sm:$0xff]
    %v3460 = vld [vmem:[#allocation2 + $0xa8] sm:$0xff]
    %v3461 = vld [vmem:[#allocation2 + $0xb0] sm:$0xff]
    %v3462 = vld [vmem:[#allocation2 + $0xb8] sm:$0xff]
    %v3463 = vld [vmem:[#allocation2 + $0xc0] sm:$0xff]
    %v3464 = vld [vmem:[#allocation2 + $0xc8] sm:$0xff]
    %v3465 = vld [vmem:[#allocation2 + $0xd0] sm:$0xff]
    %v3466 = vld [vmem:[#allocation2 + $0xd8] sm:$0xff]
    %v3467 = vld [vmem:[#allocation2 + $0xe0] sm:$0xff]
    %v3468 = vld [vmem:[#allocation2 + $0xe8] sm:$0xff]
    %v3469 = vld [vmem:[#allocation2 + $0xf0] sm:$0xff]
    %v3470 = vld [vmem:[#allocation2 + $0xf8] sm:$0xff]
    %v3471 = vld [vmem:[#allocation2 + $0x100] sm:$0xff]
    %v3472 = vld [vmem:[#allocation2 + $0x108] sm:$0xff]
    %v3473 = vld [vmem:[#allocation2 + $0x110] sm:$0xff]
    %v3474 = vld [vmem:[#allocation2 + $0x118] sm:$0xff]
    %v3475 = vld [vmem:[#allocation2 + $0x120] sm:$0xff]
    %v3476 = vld [vmem:[#allocation2 + $0x128] sm:$0xff]
    %v3477 = vld [vmem:[#allocation2 + $0x130] sm:$0xff]
    %v3478 = vld [vmem:[#allocation2 + $0x138] sm:$0xff]
    %v3479 = vld [vmem:[#allocation2 + $0x140] sm:$0xff]
    %v3480 = vld [vmem:[#allocation2 + $0x148] sm:$0xff]
    %v3481 = vld [vmem:[#allocation2 + $0x150] sm:$0xff]
    %v3482 = vld [vmem:[#allocation2 + $0x158] sm:$0xff]
    %v3483 = vld [vmem:[#allocation2 + $0x160] sm:$0xff]
    %v3484 = vld [vmem:[#allocation2 + $0x168] sm:$0xff]
    %v3485 = vld [vmem:[#allocation2 + $0x170] sm:$0xff]
    %v3486 = vld [vmem:[#allocation2 + $0x178] sm:$0xff]
    %v3487 = vld [vmem:[#allocation2 + $0x180] sm:$0xff]
    %v3488 = vld [vmem:[#allocation2 + $0x188] sm:$0xff]
    %v3489 = vld [vmem:[#allocation2 + $0x190] sm:$0xff]
    %v3490 = vld [vmem:[#allocation2 + $0x198] sm:$0xff]
    %v3491 = vld [vmem:[#allocation2 + $0x1a0] sm:$0xff]
    %v3492 = vld [vmem:[#allocation2 + $0x1a8] sm:$0xff]
    %v3493 = vld [vmem:[#allocation2 + $0x1b0] sm:$0xff]
    %v3494 = vld [vmem:[#allocation2 + $0x1b8] sm:$0xff]
    %v3495 = vld [vmem:[#allocation2 + $0x1c0] sm:$0xff]
    %v3496 = vld [vmem:[#allocation2 + $0x1c8] sm:$0xff]
    %v3497 = vld [vmem:[#allocation2 + $0x1d0] sm:$0xff]
    %v3498 = vld [vmem:[#allocation2 + $0x1d8] sm:$0xff]
    %v3499 = vld [vmem:[#allocation2 + $0x1e0] sm:$0xff]
    %v3500 = vld [vmem:[#allocation2 + $0x1e8] sm:$0xff]
    %v3501 = vld [vmem:[#allocation2 + $0x1f0] sm:$0xff]
    %v3502 = vld [vmem:[#allocation2 + $0x1f8] sm:$0xff]
    %v3503 = vld [vmem:[#allocation2 + $0x200] sm:$0xff]
    %v3504 = vld [vmem:[#allocation2 + $0x208] sm:$0xff]
    %v3505 = vld [vmem:[#allocation2 + $0x210] sm:$0xff]
    %v3506 = vld [vmem:[#allocation2 + $0x218] sm:$0xff]
    %v3507 = vld [vmem:[#allocation2 + $0x220] sm:$0xff]
    %v3508 = vld [vmem:[#allocation2 + $0x228] sm:$0xff]
    %v3509 = vld [vmem:[#allocation2 + $0x230] sm:$0xff]
    %v3510 = vld [vmem:[#allocation2 + $0x238] sm:$0xff]
    %v3511 = vld [vmem:[#allocation2 + $0x240] sm:$0xff]
    %v3512 = vld [vmem:[#allocation2 + $0x248] sm:$0xff]
    %v3513 = vld [vmem:[#allocation2 + $0x250] sm:$0xff]
    %v3514 = vld [vmem:[#allocation2 + $0x258] sm:$0xff]
    %v3515 = vld [vmem:[#allocation2 + $0x260] sm:$0xff]
    %v3516 = vld [vmem:[#allocation2 + $0x268] sm:$0xff]
    %v3517 = vld [vmem:[#allocation2 + $0x270] sm:$0xff]
    %v3518 = vld [vmem:[#allocation2 + $0x278] sm:$0xff]
    %v3519 = vld [vmem:[#allocation2 + $0x280] sm:$0xff]
    %v3520 = vld [vmem:[#allocation2 + $0x288] sm:$0xff]
    %v3521 = vld [vmem:[#allocation2 + $0x290] sm:$0xff]
    %v3522 = vld [vmem:[#allocation2 + $0x298] sm:$0xff]
    %v3523 = vld [vmem:[#allocation2 + $0x2a0] sm:$0xff]
    %v3524 = vld [vmem:[#allocation2 + $0x2a8] sm:$0xff]
    %v3525 = vld [vmem:[#allocation2 + $0x2b0] sm:$0xff]
    %v3526 = vld [vmem:[#allocation2 + $0x2b8] sm:$0xff]
    %v3527 = vld [vmem:[#allocation2 + $0x2c0] sm:$0xff]
    %v3528 = vld [vmem:[#allocation2 + $0x2c8] sm:$0xff]
    %v3529 = vld [vmem:[#allocation2 + $0x2d0] sm:$0xff]
    %v3530 = vld [vmem:[#allocation2 + $0x2d8] sm:$0xff]
    %v3531 = vld [vmem:[#allocation2 + $0x2e0] sm:$0xff]
    %v3532 = vld [vmem:[#allocation2 + $0x2e8] sm:$0xff]
    %v3533 = vld [vmem:[#allocation2 + $0x2f0] sm:$0xff]
    %v3534 = vld [vmem:[#allocation2 + $0x2f8] sm:$0xff]
    %v3535 = vld [vmem:[#allocation2 + $0x300] sm:$0xff]
    %v3536 = vld [vmem:[#allocation2 + $0x308] sm:$0xff]
    %v3537 = vld [vmem:[#allocation2 + $0x310] sm:$0xff]
    %v3538 = vld [vmem:[#allocation2 + $0x318] sm:$0xff]
    %v3539 = vld [vmem:[#allocation2 + $0x320] sm:$0xff]
    %v3540 = vld [vmem:[#allocation2 + $0x328] sm:$0xff]
    %v3541 = vld [vmem:[#allocation2 + $0x330] sm:$0xff]
    %v3542 = vld [vmem:[#allocation2 + $0x338] sm:$0xff]
    %v3543 = vld [vmem:[#allocation2 + $0x340] sm:$0xff]
    %v3544 = vld [vmem:[#allocation2 + $0x348] sm:$0xff]
    %v3545 = vld [vmem:[#allocation2 + $0x350] sm:$0xff]
    %v3546 = vld [vmem:[#allocation2 + $0x358] sm:$0xff]
    %v3547 = vld [vmem:[#allocation2 + $0x360] sm:$0xff]
    %v3548 = vld [vmem:[#allocation2 + $0x368] sm:$0xff]
    %v3549 = vld [vmem:[#allocation2 + $0x370] sm:$0xff]
    %v3550 = vld [vmem:[#allocation2 + $0x378] sm:$0xff]
    %v3551 = vld [vmem:[#allocation2 + $0x380] sm:$0xff]
    %v3552 = vld [vmem:[#allocation2 + $0x388] sm:$0xff]
    %v3553 = vld [vmem:[#allocation2 + $0x390] sm:$0xff]
    %v3554 = vld [vmem:[#allocation2 + $0x398] sm:$0xff]
    %v3555 = vld [vmem:[#allocation2 + $0x3a0] sm:$0xff]
    %v3556 = vld [vmem:[#allocation2 + $0x3a8] sm:$0xff]
    %v3557 = vld [vmem:[#allocation2 + $0x3b0] sm:$0xff]
    %v3558 = vld [vmem:[#allocation2 + $0x3b8] sm:$0xff]
    %v3559 = vld [vmem:[#allocation2 + $0x3c0] sm:$0xff]
    %v3560 = vld [vmem:[#allocation2 + $0x3c8] sm:$0xff]
    %v3561 = vld [vmem:[#allocation2 + $0x3d0] sm:$0xff]
    %v3562 = vld [vmem:[#allocation2 + $0x3d8] sm:$0xff]
    %v3563 = vld [vmem:[#allocation2 + $0x3e0] sm:$0xff]
    %v3564 = vld [vmem:[#allocation2 + $0x3e8] sm:$0xff]
    %v3565 = vld [vmem:[#allocation2 + $0x3f0] sm:$0xff]
    %v3566 = vld [vmem:[#allocation2 + $0x3f8] sm:$0xff]
    %v3567 = vld [vmem:[#allocation2 + $0x400] sm:$0xff]
    %v3568 = vld [vmem:[#allocation2 + $0x408] sm:$0xff]
    %v3569 = vld [vmem:[#allocation2 + $0x410] sm:$0xff]
    %v3570 = vld [vmem:[#allocation2 + $0x418] sm:$0xff]
    %v3571 = vld [vmem:[#allocation2 + $0x420] sm:$0xff]
    %v3572 = vld [vmem:[#allocation2 + $0x428] sm:$0xff]
    %v3573 = vld [vmem:[#allocation2 + $0x430] sm:$0xff]
    %v3574 = vld [vmem:[#allocation2 + $0x438] sm:$0xff]
    %v3575 = vld [vmem:[#allocation2 + $0x440] sm:$0xff]
    %v3576 = vld [vmem:[#allocation2 + $0x448] sm:$0xff]
    %v3577 = vld [vmem:[#allocation2 + $0x450] sm:$0xff]
    %v3578 = vld [vmem:[#allocation2 + $0x458] sm:$0xff]
    %v3579 = vld [vmem:[#allocation2 + $0x460] sm:$0xff]
    %v3580 = vld [vmem:[#allocation2 + $0x468] sm:$0xff]
    %v3581 = vld [vmem:[#allocation2 + $0x470] sm:$0xff]
    %v3582 = vld [vmem:[#allocation2 + $0x478] sm:$0xff]
    %v3583 = vunpack.c.l.s8.bf16 %v3439
    %v3584 = vunpack.c.l.s8.bf16 %v3440
    %v3585 = vunpack.c.l.s8.bf16 %v3441
    %v3586 = vunpack.c.l.s8.bf16 %v3442
    %v3587 = vunpack.c.l.s8.bf16 %v3443
    %v3588 = vunpack.c.l.s8.bf16 %v3444
    %v3589 = vunpack.c.h.s8.bf16 %v3439
    %v3590 = vunpack.c.h.s8.bf16 %v3440
    %v3591 = vunpack.c.h.s8.bf16 %v3441
    %v3592 = vunpack.c.h.s8.bf16 %v3442
    %v3593 = vunpack.c.h.s8.bf16 %v3443
    %v3594 = vunpack.c.h.s8.bf16 %v3444
    %v3595 = vunpack.c.l.s8.bf16 %v3445
    %v3596 = vunpack.c.l.s8.bf16 %v3446
    %v3597 = vunpack.c.l.s8.bf16 %v3447
    %v3598 = vunpack.c.l.s8.bf16 %v3448
    %v3599 = vunpack.c.l.s8.bf16 %v3449
    %v3600 = vunpack.c.l.s8.bf16 %v3450
    %v3601 = vunpack.c.h.s8.bf16 %v3445
    %v3602 = vunpack.c.h.s8.bf16 %v3446
    %v3603 = vunpack.c.h.s8.bf16 %v3447
    %v3604 = vunpack.c.h.s8.bf16 %v3448
    %v3605 = vunpack.c.h.s8.bf16 %v3449
    %v3606 = vunpack.c.h.s8.bf16 %v3450
    %v3607 = vunpack.c.l.s8.bf16 %v3451
    %v3608 = vunpack.c.l.s8.bf16 %v3452
    %v3609 = vunpack.c.l.s8.bf16 %v3453
    %v3610 = vunpack.c.l.s8.bf16 %v3454
    %v3611 = vunpack.c.l.s8.bf16 %v3455
    %v3612 = vunpack.c.l.s8.bf16 %v3456
    %v3613 = vunpack.c.h.s8.bf16 %v3451
    %v3614 = vunpack.c.h.s8.bf16 %v3452
    %v3615 = vunpack.c.h.s8.bf16 %v3453
    %v3616 = vunpack.c.h.s8.bf16 %v3454
    %v3617 = vunpack.c.h.s8.bf16 %v3455
    %v3618 = vunpack.c.h.s8.bf16 %v3456
    %v3619 = vunpack.c.l.s8.bf16 %v3457
    %v3620 = vunpack.c.l.s8.bf16 %v3458
    %v3621 = vunpack.c.l.s8.bf16 %v3459
    %v3622 = vunpack.c.l.s8.bf16 %v3460
    %v3623 = vunpack.c.l.s8.bf16 %v3461
    %v3624 = vunpack.c.l.s8.bf16 %v3462
    %v3625 = vunpack.c.h.s8.bf16 %v3457
    %v3626 = vunpack.c.h.s8.bf16 %v3458
    %v3627 = vunpack.c.h.s8.bf16 %v3459
    %v3628 = vunpack.c.h.s8.bf16 %v3460
    %v3629 = vunpack.c.h.s8.bf16 %v3461
    %v3630 = vunpack.c.h.s8.bf16 %v3462
    %v3631 = vunpack.c.l.s8.bf16 %v3463
    %v3632 = vunpack.c.l.s8.bf16 %v3464
    %v3633 = vunpack.c.l.s8.bf16 %v3465
    %v3634 = vunpack.c.l.s8.bf16 %v3466
    %v3635 = vunpack.c.l.s8.bf16 %v3467
    %v3636 = vunpack.c.l.s8.bf16 %v3468
    %v3637 = vunpack.c.h.s8.bf16 %v3463
    %v3638 = vunpack.c.h.s8.bf16 %v3464
    %v3639 = vunpack.c.h.s8.bf16 %v3465
    %v3640 = vunpack.c.h.s8.bf16 %v3466
    %v3641 = vunpack.c.h.s8.bf16 %v3467
    %v3642 = vunpack.c.h.s8.bf16 %v3468
    %v3643 = vunpack.c.l.s8.bf16 %v3469
    %v3644 = vunpack.c.l.s8.bf16 %v3470
    %v3645 = vunpack.c.l.s8.bf16 %v3471
    %v3646 = vunpack.c.l.s8.bf16 %v3472
    %v3647 = vunpack.c.l.s8.bf16 %v3473
    %v3648 = vunpack.c.l.s8.bf16 %v3474
    %v3649 = vunpack.c.h.s8.bf16 %v3469
    %v3650 = vunpack.c.h.s8.bf16 %v3470
    %v3651 = vunpack.c.h.s8.bf16 %v3471
    %v3652 = vunpack.c.h.s8.bf16 %v3472
    %v3653 = vunpack.c.h.s8.bf16 %v3473
    %v3654 = vunpack.c.h.s8.bf16 %v3474
    %v3655 = vunpack.c.l.s8.bf16 %v3475
    %v3656 = vunpack.c.l.s8.bf16 %v3476
    %v3657 = vunpack.c.l.s8.bf16 %v3477
    %v3658 = vunpack.c.l.s8.bf16 %v3478
    %v3659 = vunpack.c.l.s8.bf16 %v3479
    %v3660 = vunpack.c.l.s8.bf16 %v3480
    %v3661 = vunpack.c.h.s8.bf16 %v3475
    %v3662 = vunpack.c.h.s8.bf16 %v3476
    %v3663 = vunpack.c.h.s8.bf16 %v3477
    %v3664 = vunpack.c.h.s8.bf16 %v3478
    %v3665 = vunpack.c.h.s8.bf16 %v3479
    %v3666 = vunpack.c.h.s8.bf16 %v3480
    %v3667 = vunpack.c.l.s8.bf16 %v3481
    %v3668 = vunpack.c.l.s8.bf16 %v3482
    %v3669 = vunpack.c.l.s8.bf16 %v3483
    %v3670 = vunpack.c.l.s8.bf16 %v3484
    %v3671 = vunpack.c.l.s8.bf16 %v3485
    %v3672 = vunpack.c.l.s8.bf16 %v3486
    %v3673 = vunpack.c.h.s8.bf16 %v3481
    %v3674 = vunpack.c.h.s8.bf16 %v3482
    %v3675 = vunpack.c.h.s8.bf16 %v3483
    %v3676 = vunpack.c.h.s8.bf16 %v3484
    %v3677 = vunpack.c.h.s8.bf16 %v3485
    %v3678 = vunpack.c.h.s8.bf16 %v3486
    %v3679 = vunpack.c.l.s8.bf16 %v3487
    %v3680 = vunpack.c.l.s8.bf16 %v3488
    %v3681 = vunpack.c.l.s8.bf16 %v3489
    %v3682 = vunpack.c.l.s8.bf16 %v3490
    %v3683 = vunpack.c.l.s8.bf16 %v3491
    %v3684 = vunpack.c.l.s8.bf16 %v3492
    %v3685 = vunpack.c.h.s8.bf16 %v3487
    %v3686 = vunpack.c.h.s8.bf16 %v3488
    %v3687 = vunpack.c.h.s8.bf16 %v3489
    %v3688 = vunpack.c.h.s8.bf16 %v3490
    %v3689 = vunpack.c.h.s8.bf16 %v3491
    %v3690 = vunpack.c.h.s8.bf16 %v3492
    %v3691 = vunpack.c.l.s8.bf16 %v3493
    %v3692 = vunpack.c.l.s8.bf16 %v3494
    %v3693 = vunpack.c.l.s8.bf16 %v3495
    %v3694 = vunpack.c.l.s8.bf16 %v3496
    %v3695 = vunpack.c.l.s8.bf16 %v3497
    %v3696 = vunpack.c.l.s8.bf16 %v3498
    %v3697 = vunpack.c.h.s8.bf16 %v3493
    %v3698 = vunpack.c.h.s8.bf16 %v3494
    %v3699 = vunpack.c.h.s8.bf16 %v3495
    %v3700 = vunpack.c.h.s8.bf16 %v3496
    %v3701 = vunpack.c.h.s8.bf16 %v3497
    %v3702 = vunpack.c.h.s8.bf16 %v3498
    %v3703 = vunpack.c.l.s8.bf16 %v3499
    %v3704 = vunpack.c.l.s8.bf16 %v3500
    %v3705 = vunpack.c.l.s8.bf16 %v3501
    %v3706 = vunpack.c.l.s8.bf16 %v3502
    %v3707 = vunpack.c.l.s8.bf16 %v3503
    %v3708 = vunpack.c.l.s8.bf16 %v3504
    %v3709 = vunpack.c.h.s8.bf16 %v3499
    %v3710 = vunpack.c.h.s8.bf16 %v3500
    %v3711 = vunpack.c.h.s8.bf16 %v3501
    %v3712 = vunpack.c.h.s8.bf16 %v3502
    %v3713 = vunpack.c.h.s8.bf16 %v3503
    %v3714 = vunpack.c.h.s8.bf16 %v3504
    %v3715 = vunpack.c.l.s8.bf16 %v3505
    %v3716 = vunpack.c.l.s8.bf16 %v3506
    %v3717 = vunpack.c.l.s8.bf16 %v3507
    %v3718 = vunpack.c.l.s8.bf16 %v3508
    %v3719 = vunpack.c.l.s8.bf16 %v3509
    %v3720 = vunpack.c.l.s8.bf16 %v3510
    %v3721 = vunpack.c.h.s8.bf16 %v3505
    %v3722 = vunpack.c.h.s8.bf16 %v3506
    %v3723 = vunpack.c.h.s8.bf16 %v3507
    %v3724 = vunpack.c.h.s8.bf16 %v3508
    %v3725 = vunpack.c.h.s8.bf16 %v3509
    %v3726 = vunpack.c.h.s8.bf16 %v3510
    %v3727 = vunpack.c.l.s8.bf16 %v3511
    %v3728 = vunpack.c.l.s8.bf16 %v3512
    %v3729 = vunpack.c.l.s8.bf16 %v3513
    %v3730 = vunpack.c.l.s8.bf16 %v3514
    %v3731 = vunpack.c.l.s8.bf16 %v3515
    %v3732 = vunpack.c.l.s8.bf16 %v3516
    %v3733 = vunpack.c.h.s8.bf16 %v3511
    %v3734 = vunpack.c.h.s8.bf16 %v3512
    %v3735 = vunpack.c.h.s8.bf16 %v3513
    %v3736 = vunpack.c.h.s8.bf16 %v3514
    %v3737 = vunpack.c.h.s8.bf16 %v3515
    %v3738 = vunpack.c.h.s8.bf16 %v3516
    %v3739 = vunpack.c.l.s8.bf16 %v3517
    %v3740 = vunpack.c.l.s8.bf16 %v3518
    %v3741 = vunpack.c.l.s8.bf16 %v3519
    %v3742 = vunpack.c.l.s8.bf16 %v3520
    %v3743 = vunpack.c.l.s8.bf16 %v3521
    %v3744 = vunpack.c.l.s8.bf16 %v3522
    %v3745 = vunpack.c.h.s8.bf16 %v3517
    %v3746 = vunpack.c.h.s8.bf16 %v3518
    %v3747 = vunpack.c.h.s8.bf16 %v3519
    %v3748 = vunpack.c.h.s8.bf16 %v3520
    %v3749 = vunpack.c.h.s8.bf16 %v3521
    %v3750 = vunpack.c.h.s8.bf16 %v3522
    %v3751 = vunpack.c.l.s8.bf16 %v3523
    %v3752 = vunpack.c.l.s8.bf16 %v3524
    %v3753 = vunpack.c.l.s8.bf16 %v3525
    %v3754 = vunpack.c.l.s8.bf16 %v3526
    %v3755 = vunpack.c.l.s8.bf16 %v3527
    %v3756 = vunpack.c.l.s8.bf16 %v3528
    %v3757 = vunpack.c.h.s8.bf16 %v3523
    %v3758 = vunpack.c.h.s8.bf16 %v3524
    %v3759 = vunpack.c.h.s8.bf16 %v3525
    %v3760 = vunpack.c.h.s8.bf16 %v3526
    %v3761 = vunpack.c.h.s8.bf16 %v3527
    %v3762 = vunpack.c.h.s8.bf16 %v3528
    %v3763 = vunpack.c.l.s8.bf16 %v3529
    %v3764 = vunpack.c.l.s8.bf16 %v3530
    %v3765 = vunpack.c.l.s8.bf16 %v3531
    %v3766 = vunpack.c.l.s8.bf16 %v3532
    %v3767 = vunpack.c.l.s8.bf16 %v3533
    %v3768 = vunpack.c.l.s8.bf16 %v3534
    %v3769 = vunpack.c.h.s8.bf16 %v3529
    %v3770 = vunpack.c.h.s8.bf16 %v3530
    %v3771 = vunpack.c.h.s8.bf16 %v3531
    %v3772 = vunpack.c.h.s8.bf16 %v3532
    %v3773 = vunpack.c.h.s8.bf16 %v3533
    %v3774 = vunpack.c.h.s8.bf16 %v3534
    %v3775 = vunpack.c.l.s8.bf16 %v3535
    %v3776 = vunpack.c.l.s8.bf16 %v3536
    %v3777 = vunpack.c.l.s8.bf16 %v3537
    %v3778 = vunpack.c.l.s8.bf16 %v3538
    %v3779 = vunpack.c.l.s8.bf16 %v3539
    %v3780 = vunpack.c.l.s8.bf16 %v3540
    %v3781 = vunpack.c.h.s8.bf16 %v3535
    %v3782 = vunpack.c.h.s8.bf16 %v3536
    %v3783 = vunpack.c.h.s8.bf16 %v3537
    %v3784 = vunpack.c.h.s8.bf16 %v3538
    %v3785 = vunpack.c.h.s8.bf16 %v3539
    %v3786 = vunpack.c.h.s8.bf16 %v3540
    %v3787 = vunpack.c.l.s8.bf16 %v3541
    %v3788 = vunpack.c.l.s8.bf16 %v3542
    %v3789 = vunpack.c.l.s8.bf16 %v3543
    %v3790 = vunpack.c.l.s8.bf16 %v3544
    %v3791 = vunpack.c.l.s8.bf16 %v3545
    %v3792 = vunpack.c.l.s8.bf16 %v3546
    %v3793 = vunpack.c.h.s8.bf16 %v3541
    %v3794 = vunpack.c.h.s8.bf16 %v3542
    %v3795 = vunpack.c.h.s8.bf16 %v3543
    %v3796 = vunpack.c.h.s8.bf16 %v3544
    %v3797 = vunpack.c.h.s8.bf16 %v3545
    %v3798 = vunpack.c.h.s8.bf16 %v3546
    %v3799 = vunpack.c.l.s8.bf16 %v3547
    %v3800 = vunpack.c.l.s8.bf16 %v3548
    %v3801 = vunpack.c.l.s8.bf16 %v3549
    %v3802 = vunpack.c.l.s8.bf16 %v3550
    %v3803 = vunpack.c.l.s8.bf16 %v3551
    %v3804 = vunpack.c.l.s8.bf16 %v3552
    %v3805 = vunpack.c.h.s8.bf16 %v3547
    %v3806 = vunpack.c.h.s8.bf16 %v3548
    %v3807 = vunpack.c.h.s8.bf16 %v3549
    %v3808 = vunpack.c.h.s8.bf16 %v3550
    %v3809 = vunpack.c.h.s8.bf16 %v3551
    %v3810 = vunpack.c.h.s8.bf16 %v3552
    %v3811 = vunpack.c.l.s8.bf16 %v3553
    %v3812 = vunpack.c.l.s8.bf16 %v3554
    %v3813 = vunpack.c.l.s8.bf16 %v3555
    %v3814 = vunpack.c.l.s8.bf16 %v3556
    %v3815 = vunpack.c.l.s8.bf16 %v3557
    %v3816 = vunpack.c.l.s8.bf16 %v3558
    %v3817 = vunpack.c.h.s8.bf16 %v3553
    %v3818 = vunpack.c.h.s8.bf16 %v3554
    %v3819 = vunpack.c.h.s8.bf16 %v3555
    %v3820 = vunpack.c.h.s8.bf16 %v3556
    %v3821 = vunpack.c.h.s8.bf16 %v3557
    %v3822 = vunpack.c.h.s8.bf16 %v3558
    %v3823 = vunpack.c.l.s8.bf16 %v3559
    %v3824 = vunpack.c.l.s8.bf16 %v3560
    %v3825 = vunpack.c.l.s8.bf16 %v3561
    %v3826 = vunpack.c.l.s8.bf16 %v3562
    %v3827 = vunpack.c.l.s8.bf16 %v3563
    %v3828 = vunpack.c.l.s8.bf16 %v3564
    %v3829 = vunpack.c.h.s8.bf16 %v3559
    %v3830 = vunpack.c.h.s8.bf16 %v3560
    %v3831 = vunpack.c.h.s8.bf16 %v3561
    %v3832 = vunpack.c.h.s8.bf16 %v3562
    %v3833 = vunpack.c.h.s8.bf16 %v3563
    %v3834 = vunpack.c.h.s8.bf16 %v3564
    %v3835 = vunpack.c.l.s8.bf16 %v3565
    %v3836 = vunpack.c.l.s8.bf16 %v3566
    %v3837 = vunpack.c.l.s8.bf16 %v3567
    %v3838 = vunpack.c.l.s8.bf16 %v3568
    %v3839 = vunpack.c.l.s8.bf16 %v3569
    %v3840 = vunpack.c.l.s8.bf16 %v3570
    %v3841 = vunpack.c.h.s8.bf16 %v3565
    %v3842 = vunpack.c.h.s8.bf16 %v3566
    %v3843 = vunpack.c.h.s8.bf16 %v3567
    %v3844 = vunpack.c.h.s8.bf16 %v3568
    %v3845 = vunpack.c.h.s8.bf16 %v3569
    %v3846 = vunpack.c.h.s8.bf16 %v3570
    %v3847 = vunpack.c.l.s8.bf16 %v3571
    %v3848 = vunpack.c.l.s8.bf16 %v3572
    %v3849 = vunpack.c.l.s8.bf16 %v3573
    %v3850 = vunpack.c.l.s8.bf16 %v3574
    %v3851 = vunpack.c.l.s8.bf16 %v3575
    %v3852 = vunpack.c.l.s8.bf16 %v3576
    %v3853 = vunpack.c.h.s8.bf16 %v3571
    %v3854 = vunpack.c.h.s8.bf16 %v3572
    %v3855 = vunpack.c.h.s8.bf16 %v3573
    %v3856 = vunpack.c.h.s8.bf16 %v3574
    %v3857 = vunpack.c.h.s8.bf16 %v3575
    %v3858 = vunpack.c.h.s8.bf16 %v3576
    %v3859 = vunpack.c.l.s8.bf16 %v3577
    %v3860 = vunpack.c.l.s8.bf16 %v3578
    %v3861 = vunpack.c.l.s8.bf16 %v3579
    %v3862 = vunpack.c.l.s8.bf16 %v3580
    %v3863 = vunpack.c.l.s8.bf16 %v3581
    %v3864 = vunpack.c.l.s8.bf16 %v3582
    %v3865 = vunpack.c.h.s8.bf16 %v3577
    %v3866 = vunpack.c.h.s8.bf16 %v3578
    %v3867 = vunpack.c.h.s8.bf16 %v3579
    %v3868 = vunpack.c.h.s8.bf16 %v3580
    %v3869 = vunpack.c.h.s8.bf16 %v3581
    %v3870 = vunpack.c.h.s8.bf16 %v3582
    %v3872 = vcombine.high %v3434, %v3434
    %v3874 = vunpack.c.l.s4 1966171168
    %v3875 = vunpack.c.0.s8 %v3874
    %v3876 = vlaneseq
    %v3877 = vshrl.u32 %v3876, 7
    %v3878 = vsub.s32 %v3875, %v3877
    %v3879 = vrot.slane %v3434, %v3878
    %v3881 = vunpack.c.l.s4 1966171168
    %v3882 = vunpack.c.0.s8 %v3881
    %v3883 = vlaneseq
    %v3884 = vshrl.u32 %v3883, 7
    %v3885 = vsub.s32 %v3882, %v3884
    %v3886 = vrot.slane %v3872, %v3885
    %v3887 = vcombine.high %v3879, %v3879
    %v3888 = vcombine.high %v3886, %v3886
    %v3890 = vunpack.c.l.s4 1966171168
    %v3891 = vunpack.c.0.s8 %v3890
    %v3892 = vlaneseq
    %v3893 = vshrl.u32 %v3892, 7
    %v3894 = vsub.s32 %v3891, %v3893
    %v3895 = vrot.slane %v3879, %v3894
    %v3897 = vunpack.c.l.s4 1966171168
    %v3898 = vunpack.c.0.s8 %v3897
    %v3899 = vlaneseq
    %v3900 = vshrl.u32 %v3899, 7
    %v3901 = vsub.s32 %v3898, %v3900
    %v3902 = vrot.slane %v3886, %v3901
    %v3904 = vunpack.c.l.s4 1966171168
    %v3905 = vunpack.c.0.s8 %v3904
    %v3906 = vlaneseq
    %v3907 = vshrl.u32 %v3906, 7
    %v3908 = vsub.s32 %v3905, %v3907
    %v3909 = vrot.slane %v3887, %v3908
    %v3911 = vunpack.c.l.s4 1966171168
    %v3912 = vunpack.c.0.s8 %v3911
    %v3913 = vlaneseq
    %v3914 = vshrl.u32 %v3913, 7
    %v3915 = vsub.s32 %v3912, %v3914
    %v3916 = vrot.slane %v3888, %v3915
    %v3917 = vcombine.high %v3895, %v3895
    %v3918 = vcombine.high %v3909, %v3909
    %3925 = vmatprep.subr.bf16.mxu0 %v3584
    %3926 = vmatpush1.bf16.msra.mxu0 %v3583
    %3927 = vmatprep.subr.bf16.mxu0 %v3590
    %3928 = vmatpush1.bf16.msra.mxu0 %v3589
    %3929 = vmatprep.subr.bf16.mxu0 %v3596
    %3930 = vmatpush1.bf16.msra.mxu0 %v3595
    %3931 = vmatprep.subr.bf16.mxu0 %v3602
    %3932 = vmatpush1.bf16.msra.mxu0 %v3601
    %3933 = vmatprep.subr.bf16.mxu0 %v3608
    %3934 = vmatpush1.bf16.msra.mxu0 %v3607
    %3935 = vmatprep.subr.bf16.mxu0 %v3614
    %3936 = vmatpush1.bf16.msra.mxu0 %v3613
    %3937 = vmatprep.subr.bf16.mxu0 %v3620
    %3938 = vmatpush1.bf16.msra.mxu0 %v3619
    %3939 = vmatprep.subr.bf16.mxu0 %v3626
    %3940 = vmatpush1.bf16.msra.mxu0 %v3625
    %3941 = vmatprep.subr.bf16.mxu0 %v3632
    %3942 = vmatpush1.bf16.msra.mxu0 %v3631
    %3943 = vmatprep.subr.bf16.mxu0 %v3638
    %3944 = vmatpush1.bf16.msra.mxu0 %v3637
    %3945 = vmatprep.subr.bf16.mxu0 %v3644
    %3946 = vmatpush1.bf16.msra.mxu0 %v3643
    %3947 = vmatprep.subr.bf16.mxu0 %v3650
    %3948 = vmatpush1.bf16.msra.mxu0 %v3649
    %3949 = vmatprep.subr.bf16.mxu0 %v3656
    %3950 = vmatpush1.bf16.msra.mxu0 %v3655
    %3951 = vmatprep.subr.bf16.mxu0 %v3662
    %3952 = vmatpush1.bf16.msra.mxu0 %v3661
    %3953 = vmatprep.subr.bf16.mxu0 %v3668
    %3954 = vmatpush1.bf16.msra.mxu0 %v3667
    %3955 = vmatprep.subr.bf16.mxu0 %v3674
    %3956 = vmatpush1.bf16.msra.mxu0 %v3673
    %3957 = vmatprep.mubr.bf16.mxu0 %v3909
    %3958 = vmatmul.mubr.bf16.gmra.mrb[0].mxu0 %v3895
    %v3959 = vpop.f32.mrb[0].mxu0
    %v3960 = vadd.f32 0.0, %v3959
    %v3961 = vpop.f32.mrb[0].mxu0
    %v3962 = vadd.f32 0.0, %v3961
    %v3963 = vpop.f32.mrb[0].mxu0
    %v3964 = vpop.f32.mrb[0].mxu0
    %3965 = vdwg.mxu0
    %3966 = vmatprep.subr.bf16.mxu0 %v3680
    %3967 = vmatpush1.bf16.msra.mxu0 %v3679
    %3968 = vmatprep.subr.bf16.mxu0 %v3686
    %3969 = vmatpush1.bf16.msra.mxu0 %v3685
    %3970 = vmatprep.subr.bf16.mxu0 %v3692
    %3971 = vmatpush1.bf16.msra.mxu0 %v3691
    %3972 = vmatprep.subr.bf16.mxu0 %v3698
    %3973 = vmatpush1.bf16.msra.mxu0 %v3697
    %3974 = vmatprep.subr.bf16.mxu0 %v3704
    %3975 = vmatpush1.bf16.msra.mxu0 %v3703
    %3976 = vmatprep.subr.bf16.mxu0 %v3710
    %3977 = vmatpush1.bf16.msra.mxu0 %v3709
    %3978 = vmatprep.subr.bf16.mxu0 %v3716
    %3979 = vmatpush1.bf16.msra.mxu0 %v3715
    %3980 = vmatprep.subr.bf16.mxu0 %v3722
    %3981 = vmatpush1.bf16.msra.mxu0 %v3721
    %3982 = vmatprep.subr.bf16.mxu0 %v3728
    %3983 = vmatpush1.bf16.msra.mxu0 %v3727
    %3984 = vmatprep.subr.bf16.mxu0 %v3734
    %3985 = vmatpush1.bf16.msra.mxu0 %v3733
    %3986 = vmatprep.subr.bf16.mxu0 %v3740
    %3987 = vmatpush1.bf16.msra.mxu0 %v3739
    %3988 = vmatprep.subr.bf16.mxu0 %v3746
    %3989 = vmatpush1.bf16.msra.mxu0 %v3745
    %3990 = vmatprep.subr.bf16.mxu0 %v3752
    %3991 = vmatpush1.bf16.msra.mxu0 %v3751
    %3992 = vmatprep.subr.bf16.mxu0 %v3758
    %3993 = vmatpush1.bf16.msra.mxu0 %v3757
    %3994 = vmatprep.subr.bf16.mxu0 %v3764
    %3995 = vmatpush1.bf16.msra.mxu0 %v3763
    %3996 = vmatprep.subr.bf16.mxu0 %v3770
    %3997 = vmatpush1.bf16.msra.mxu0 %v3769
    %3998 = vmatprep.mubr.bf16.mxu0 %v3918
    %3999 = vmatmul.mubr.bf16.gmra.mrb[0].mxu0 %v3917
    %v4000 = vpop.f32.mrb[0].mxu0
    %v4001 = vadd.f32 %v3960, %v4000
    %v4002 = vpop.f32.mrb[0].mxu0
    %v4003 = vadd.f32 %v3962, %v4002
    %v4004 = vpop.f32.mrb[0].mxu0
    %v4005 = vpop.f32.mrb[0].mxu0
    %4006 = vdwg.mxu0
    %4007 = vmatprep.subr.bf16.mxu0 %v3776
    %4008 = vmatpush1.bf16.msra.mxu0 %v3775
    %4009 = vmatprep.subr.bf16.mxu0 %v3782
    %4010 = vmatpush1.bf16.msra.mxu0 %v3781
    %4011 = vmatprep.subr.bf16.mxu0 %v3788
    %4012 = vmatpush1.bf16.msra.mxu0 %v3787
    %4013 = vmatprep.subr.bf16.mxu0 %v3794
    %4014 = vmatpush1.bf16.msra.mxu0 %v3793
    %4015 = vmatprep.subr.bf16.mxu0 %v3800
    %4016 = vmatpush1.bf16.msra.mxu0 %v3799
    %4017 = vmatprep.subr.bf16.mxu0 %v3806
    %4018 = vmatpush1.bf16.msra.mxu0 %v3805
    %4019 = vmatprep.subr.bf16.mxu0 %v3812
    %4020 = vmatpush1.bf16.msra.mxu0 %v3811
    %4021 = vmatprep.subr.bf16.mxu0 %v3818
    %4022 = vmatpush1.bf16.msra.mxu0 %v3817
    %4023 = vmatprep.subr.bf16.mxu0 %v3824
    %4024 = vmatpush1.bf16.msra.mxu0 %v3823
    %4025 = vmatprep.subr.bf16.mxu0 %v3830
    %4026 = vmatpush1.bf16.msra.mxu0 %v3829
    %4027 = vmatprep.subr.bf16.mxu0 %v3836
    %4028 = vmatpush1.bf16.msra.mxu0 %v3835
    %4029 = vmatprep.subr.bf16.mxu0 %v3842
    %4030 = vmatpush1.bf16.msra.mxu0 %v3841
    %4031 = vmatprep.subr.bf16.mxu0 %v3848
    %4032 = vmatpush1.bf16.msra.mxu0 %v3847
    %4033 = vmatprep.subr.bf16.mxu0 %v3854
    %4034 = vmatpush1.bf16.msra.mxu0 %v3853
    %4035 = vmatprep.subr.bf16.mxu0 %v3860
    %4036 = vmatpush1.bf16.msra.mxu0 %v3859
    %4037 = vmatprep.subr.bf16.mxu0 %v3866
    %4038 = vmatpush1.bf16.msra.mxu0 %v3865
    %4039 = vmatprep.mubr.bf16.mxu0 %v3916
    %4040 = vmatmul.mubr.bf16.gmra.mrb[0].mxu0 %v3902
    %v4041 = vpop.f32.mrb[0].mxu0
    %v4042 = vadd.f32 %v4001, %v4041
    %v4043 = vpop.f32.mrb[0].mxu0
    %v4044 = vadd.f32 %v4003, %v4043
    %v4045 = vpop.f32.mrb[0].mxu0
    %v4046 = vpop.f32.mrb[0].mxu0
    %4047 = vdwg.mxu0
    %4048 = vmatprep.subr.bf16.mxu0 %v3586
    %4049 = vmatpush1.bf16.msra.mxu0 %v3585
    %4050 = vmatprep.subr.bf16.mxu0 %v3592
    %4051 = vmatpush1.bf16.msra.mxu0 %v3591
    %4052 = vmatprep.subr.bf16.mxu0 %v3598
    %4053 = vmatpush1.bf16.msra.mxu0 %v3597
    %4054 = vmatprep.subr.bf16.mxu0 %v3604
    %4055 = vmatpush1.bf16.msra.mxu0 %v3603
    %4056 = vmatprep.subr.bf16.mxu0 %v3610
    %4057 = vmatpush1.bf16.msra.mxu0 %v3609
    %4058 = vmatprep.subr.bf16.mxu0 %v3616
    %4059 = vmatpush1.bf16.msra.mxu0 %v3615
    %4060 = vmatprep.subr.bf16.mxu0 %v3622
    %4061 = vmatpush1.bf16.msra.mxu0 %v3621
    %4062 = vmatprep.subr.bf16.mxu0 %v3628
    %4063 = vmatpush1.bf16.msra.mxu0 %v3627
    %4064 = vmatprep.subr.bf16.mxu0 %v3634
    %4065 = vmatpush1.bf16.msra.mxu0 %v3633
    %4066 = vmatprep.subr.bf16.mxu0 %v3640
    %4067 = vmatpush1.bf16.msra.mxu0 %v3639
    %4068 = vmatprep.subr.bf16.mxu0 %v3646
    %4069 = vmatpush1.bf16.msra.mxu0 %v3645
    %4070 = vmatprep.subr.bf16.mxu0 %v3652
    %4071 = vmatpush1.bf16.msra.mxu0 %v3651
    %4072 = vmatprep.subr.bf16.mxu0 %v3658
    %4073 = vmatpush1.bf16.msra.mxu0 %v3657
    %4074 = vmatprep.subr.bf16.mxu0 %v3664
    %4075 = vmatpush1.bf16.msra.mxu0 %v3663
    %4076 = vmatprep.subr.bf16.mxu0 %v3670
    %4077 = vmatpush1.bf16.msra.mxu0 %v3669
    %4078 = vmatprep.subr.bf16.mxu0 %v3676
    %4079 = vmatpush1.bf16.msra.mxu0 %v3675
    %4080 = vmatprep.mubr.bf16.mxu0 %v3909
    %4081 = vmatmul.mubr.bf16.gmra.mrb[0].mxu0 %v3895
    %v4082 = vpop.f32.mrb[0].mxu0
    %v4083 = vadd.f32 0.0, %v4082
    %v4084 = vpop.f32.mrb[0].mxu0
    %v4085 = vadd.f32 0.0, %v4084
    %v4086 = vpop.f32.mrb[0].mxu0
    %v4087 = vpop.f32.mrb[0].mxu0
    %4088 = vdwg.mxu0
    %4089 = vmatprep.subr.bf16.mxu0 %v3682
    %4090 = vmatpush1.bf16.msra.mxu0 %v3681
    %4091 = vmatprep.subr.bf16.mxu0 %v3688
    %4092 = vmatpush1.bf16.msra.mxu0 %v3687
    %4093 = vmatprep.subr.bf16.mxu0 %v3694
    %4094 = vmatpush1.bf16.msra.mxu0 %v3693
    %4095 = vmatprep.subr.bf16.mxu0 %v3700
    %4096 = vmatpush1.bf16.msra.mxu0 %v3699
    %4097 = vmatprep.subr.bf16.mxu0 %v3706
    %4098 = vmatpush1.bf16.msra.mxu0 %v3705
    %4099 = vmatprep.subr.bf16.mxu0 %v3712
    %4100 = vmatpush1.bf16.msra.mxu0 %v3711
    %4101 = vmatprep.subr.bf16.mxu0 %v3718
    %4102 = vmatpush1.bf16.msra.mxu0 %v3717
    %4103 = vmatprep.subr.bf16.mxu0 %v3724
    %4104 = vmatpush1.bf16.msra.mxu0 %v3723
    %4105 = vmatprep.subr.bf16.mxu0 %v3730
    %4106 = vmatpush1.bf16.msra.mxu0 %v3729
    %4107 = vmatprep.subr.bf16.mxu0 %v3736
    %4108 = vmatpush1.bf16.msra.mxu0 %v3735
    %4109 = vmatprep.subr.bf16.mxu0 %v3742
    %4110 = vmatpush1.bf16.msra.mxu0 %v3741
    %4111 = vmatprep.subr.bf16.mxu0 %v3748
    %4112 = vmatpush1.bf16.msra.mxu0 %v3747
    %4113 = vmatprep.subr.bf16.mxu0 %v3754
    %4114 = vmatpush1.bf16.msra.mxu0 %v3753
    %4115 = vmatprep.subr.bf16.mxu0 %v3760
    %4116 = vmatpush1.bf16.msra.mxu0 %v3759
    %4117 = vmatprep.subr.bf16.mxu0 %v3766
    %4118 = vmatpush1.bf16.msra.mxu0 %v3765
    %4119 = vmatprep.subr.bf16.mxu0 %v3772
    %4120 = vmatpush1.bf16.msra.mxu0 %v3771
    %4121 = vmatprep.mubr.bf16.mxu0 %v3918
    %4122 = vmatmul.mubr.bf16.gmra.mrb[0].mxu0 %v3917
    %v4123 = vpop.f32.mrb[0].mxu0
    %v4124 = vadd.f32 %v4083, %v4123
    %v4125 = vpop.f32.mrb[0].mxu0
    %v4126 = vadd.f32 %v4085, %v4125
    %v4127 = vpop.f32.mrb[0].mxu0
    %v4128 = vpop.f32.mrb[0].mxu0
    %4129 = vdwg.mxu0
    %4130 = vmatprep.subr.bf16.mxu0 %v3778
    %4131 = vmatpush1.bf16.msra.mxu0 %v3777
    %4132 = vmatprep.subr.bf16.mxu0 %v3784
    %4133 = vmatpush1.bf16.msra.mxu0 %v3783
    %4134 = vmatprep.subr.bf16.mxu0 %v3790
    %4135 = vmatpush1.bf16.msra.mxu0 %v3789
    %4136 = vmatprep.subr.bf16.mxu0 %v3796
    %4137 = vmatpush1.bf16.msra.mxu0 %v3795
    %4138 = vmatprep.subr.bf16.mxu0 %v3802
    %4139 = vmatpush1.bf16.msra.mxu0 %v3801
    %4140 = vmatprep.subr.bf16.mxu0 %v3808
    %4141 = vmatpush1.bf16.msra.mxu0 %v3807
    %4142 = vmatprep.subr.bf16.mxu0 %v3814
    %4143 = vmatpush1.bf16.msra.mxu0 %v3813
    %4144 = vmatprep.subr.bf16.mxu0 %v3820
    %4145 = vmatpush1.bf16.msra.mxu0 %v3819
    %4146 = vmatprep.subr.bf16.mxu0 %v3826
    %4147 = vmatpush1.bf16.msra.mxu0 %v3825
    %4148 = vmatprep.subr.bf16.mxu0 %v3832
    %4149 = vmatpush1.bf16.msra.mxu0 %v3831
    %4150 = vmatprep.subr.bf16.mxu0 %v3838
    %4151 = vmatpush1.bf16.msra.mxu0 %v3837
    %4152 = vmatprep.subr.bf16.mxu0 %v3844
    %4153 = vmatpush1.bf16.msra.mxu0 %v3843
    %4154 = vmatprep.subr.bf16.mxu0 %v3850
    %4155 = vmatpush1.bf16.msra.mxu0 %v3849
    %4156 = vmatprep.subr.bf16.mxu0 %v3856
    %4157 = vmatpush1.bf16.msra.mxu0 %v3855
    %4158 = vmatprep.subr.bf16.mxu0 %v3862
    %4159 = vmatpush1.bf16.msra.mxu0 %v3861
    %4160 = vmatprep.subr.bf16.mxu0 %v3868
    %4161 = vmatpush1.bf16.msra.mxu0 %v3867
    %4162 = vmatprep.mubr.bf16.mxu0 %v3916
    %4163 = vmatmul.mubr.bf16.gmra.mrb[0].mxu0 %v3902
    %v4164 = vpop.f32.mrb[0].mxu0
    %v4165 = vadd.f32 %v4124, %v4164
    %v4166 = vpop.f32.mrb[0].mxu0
    %v4167 = vadd.f32 %v4126, %v4166
    %v4168 = vpop.f32.mrb[0].mxu0
    %v4169 = vpop.f32.mrb[0].mxu0
    %4170 = vdwg.mxu0
    %4171 = vmatprep.subr.bf16.mxu0 %v3588
    %4172 = vmatpush1.bf16.msra.mxu0 %v3587
    %4173 = vmatprep.subr.bf16.mxu0 %v3594
    %4174 = vmatpush1.bf16.msra.mxu0 %v3593
    %4175 = vmatprep.subr.bf16.mxu0 %v3600
    %4176 = vmatpush1.bf16.msra.mxu0 %v3599
    %4177 = vmatprep.subr.bf16.mxu0 %v3606
    %4178 = vmatpush1.bf16.msra.mxu0 %v3605
    %4179 = vmatprep.subr.bf16.mxu0 %v3612
    %4180 = vmatpush1.bf16.msra.mxu0 %v3611
    %4181 = vmatprep.subr.bf16.mxu0 %v3618
    %4182 = vmatpush1.bf16.msra.mxu0 %v3617
    %4183 = vmatprep.subr.bf16.mxu0 %v3624
    %4184 = vmatpush1.bf16.msra.mxu0 %v3623
    %4185 = vmatprep.subr.bf16.mxu0 %v3630
    %4186 = vmatpush1.bf16.msra.mxu0 %v3629
    %4187 = vmatprep.subr.bf16.mxu0 %v3636
    %4188 = vmatpush1.bf16.msra.mxu0 %v3635
    %4189 = vmatprep.subr.bf16.mxu0 %v3642
    %4190 = vmatpush1.bf16.msra.mxu0 %v3641
    %4191 = vmatprep.subr.bf16.mxu0 %v3648
    %4192 = vmatpush1.bf16.msra.mxu0 %v3647
    %4193 = vmatprep.subr.bf16.mxu0 %v3654
    %4194 = vmatpush1.bf16.msra.mxu0 %v3653
    %4195 = vmatprep.subr.bf16.mxu0 %v3660
    %4196 = vmatpush1.bf16.msra.mxu0 %v3659
    %4197 = vmatprep.subr.bf16.mxu0 %v3666
    %4198 = vmatpush1.bf16.msra.mxu0 %v3665
    %4199 = vmatprep.subr.bf16.mxu0 %v3672
    %4200 = vmatpush1.bf16.msra.mxu0 %v3671
    %4201 = vmatprep.subr.bf16.mxu0 %v3678
    %4202 = vmatpush1.bf16.msra.mxu0 %v3677
    %4203 = vmatprep.mubr.bf16.mxu0 %v3909
    %4204 = vmatmul.mubr.bf16.gmra.mrb[0].mxu0 %v3895
    %v4205 = vpop.f32.mrb[0].mxu0
    %v4206 = vadd.f32 0.0, %v4205
    %v4207 = vpop.f32.mrb[0].mxu0
    %v4208 = vadd.f32 0.0, %v4207
    %v4209 = vpop.f32.mrb[0].mxu0
    %v4210 = vpop.f32.mrb[0].mxu0
    %4211 = vdwg.mxu0
    %4212 = vmatprep.subr.bf16.mxu0 %v3684
    %4213 = vmatpush1.bf16.msra.mxu0 %v3683
    %4214 = vmatprep.subr.bf16.mxu0 %v3690
    %4215 = vmatpush1.bf16.msra.mxu0 %v3689
    %4216 = vmatprep.subr.bf16.mxu0 %v3696
    %4217 = vmatpush1.bf16.msra.mxu0 %v3695
    %4218 = vmatprep.subr.bf16.mxu0 %v3702
    %4219 = vmatpush1.bf16.msra.mxu0 %v3701
    %4220 = vmatprep.subr.bf16.mxu0 %v3708
    %4221 = vmatpush1.bf16.msra.mxu0 %v3707
    %4222 = vmatprep.subr.bf16.mxu0 %v3714
    %4223 = vmatpush1.bf16.msra.mxu0 %v3713
    %4224 = vmatprep.subr.bf16.mxu0 %v3720
    %4225 = vmatpush1.bf16.msra.mxu0 %v3719
    %4226 = vmatprep.subr.bf16.mxu0 %v3726
    %4227 = vmatpush1.bf16.msra.mxu0 %v3725
    %4228 = vmatprep.subr.bf16.mxu0 %v3732
    %4229 = vmatpush1.bf16.msra.mxu0 %v3731
    %4230 = vmatprep.subr.bf16.mxu0 %v3738
    %4231 = vmatpush1.bf16.msra.mxu0 %v3737
    %4232 = vmatprep.subr.bf16.mxu0 %v3744
    %4233 = vmatpush1.bf16.msra.mxu0 %v3743
    %4234 = vmatprep.subr.bf16.mxu0 %v3750
    %4235 = vmatpush1.bf16.msra.mxu0 %v3749
    %4236 = vmatprep.subr.bf16.mxu0 %v3756
    %4237 = vmatpush1.bf16.msra.mxu0 %v3755
    %4238 = vmatprep.subr.bf16.mxu0 %v3762
    %4239 = vmatpush1.bf16.msra.mxu0 %v3761
    %4240 = vmatprep.subr.bf16.mxu0 %v3768
    %4241 = vmatpush1.bf16.msra.mxu0 %v3767
    %4242 = vmatprep.subr.bf16.mxu0 %v3774
    %4243 = vmatpush1.bf16.msra.mxu0 %v3773
    %4244 = vmatprep.mubr.bf16.mxu0 %v3918
    %4245 = vmatmul.mubr.bf16.gmra.mrb[0].mxu0 %v3917
    %v4246 = vpop.f32.mrb[0].mxu0
    %v4247 = vadd.f32 %v4206, %v4246
    %v4248 = vpop.f32.mrb[0].mxu0
    %v4249 = vadd.f32 %v4208, %v4248
    %v4250 = vpop.f32.mrb[0].mxu0
    %v4251 = vpop.f32.mrb[0].mxu0
    %4252 = vdwg.mxu0
    %4253 = vmatprep.subr.bf16.mxu0 %v3780
    %4254 = vmatpush1.bf16.msra.mxu0 %v3779
    %4255 = vmatprep.subr.bf16.mxu0 %v3786
    %4256 = vmatpush1.bf16.msra.mxu0 %v3785
    %4257 = vmatprep.subr.bf16.mxu0 %v3792
    %4258 = vmatpush1.bf16.msra.mxu0 %v3791
    %4259 = vmatprep.subr.bf16.mxu0 %v3798
    %4260 = vmatpush1.bf16.msra.mxu0 %v3797
    %4261 = vmatprep.subr.bf16.mxu0 %v3804
    %4262 = vmatpush1.bf16.msra.mxu0 %v3803
    %4263 = vmatprep.subr.bf16.mxu0 %v3810
    %4264 = vmatpush1.bf16.msra.mxu0 %v3809
    %4265 = vmatprep.subr.bf16.mxu0 %v3816
    %4266 = vmatpush1.bf16.msra.mxu0 %v3815
    %4267 = vmatprep.subr.bf16.mxu0 %v3822
    %4268 = vmatpush1.bf16.msra.mxu0 %v3821
    %4269 = vmatprep.subr.bf16.mxu0 %v3828
    %4270 = vmatpush1.bf16.msra.mxu0 %v3827
    %4271 = vmatprep.subr.bf16.mxu0 %v3834
    %4272 = vmatpush1.bf16.msra.mxu0 %v3833
    %4273 = vmatprep.subr.bf16.mxu0 %v3840
    %4274 = vmatpush1.bf16.msra.mxu0 %v3839
    %4275 = vmatprep.subr.bf16.mxu0 %v3846
    %4276 = vmatpush1.bf16.msra.mxu0 %v3845
    %4277 = vmatprep.subr.bf16.mxu0 %v3852
    %4278 = vmatpush1.bf16.msra.mxu0 %v3851
    %4279 = vmatprep.subr.bf16.mxu0 %v3858
    %4280 = vmatpush1.bf16.msra.mxu0 %v3857
    %4281 = vmatprep.subr.bf16.mxu0 %v3864
    %4282 = vmatpush1.bf16.msra.mxu0 %v3863
    %4283 = vmatprep.subr.bf16.mxu0 %v3870
    %4284 = vmatpush1.bf16.msra.mxu0 %v3869
    %4285 = vmatprep.mubr.bf16.mxu0 %v3916
    %4286 = vmatmul.mubr.bf16.gmra.mrb[0].mxu0 %v3902
    %v4287 = vpop.f32.mrb[0].mxu0
    %v4288 = vadd.f32 %v4247, %v4287
    %v4289 = vpop.f32.mrb[0].mxu0
    %v4290 = vadd.f32 %v4249, %v4289
    %v4291 = vpop.f32.mrb[0].mxu0
    %v4292 = vpop.f32.mrb[0].mxu0
    %4293 = vdwg.mxu0
    %v4294 = vlaneseq
    %v4295 = vshrl.u32 %v4294, 7
    %v4296 = vsub.s32 0, %v4295
    %v4297 = vrot.slane %v313, %v4296
    %v4298 = vlaneseq
    %v4299 = vshrl.u32 %v4298, 7
    %v4300 = vsub.s32 0, %v4299
    %v4301 = vrot.slane %v314, %v4300
    %v4302 = vlaneseq
    %v4303 = vshrl.u32 %v4302, 7
    %v4304 = vsub.s32 0, %v4303
    %v4305 = vrot.slane %v315, %v4304
    %v4306 = vlaneseq
    %v4307 = vshrl.u32 %v4306, 7
    %v4308 = vsub.s32 0, %v4307
    %v4309 = vrot.slane %v316, %v4308
    %v4310 = vlaneseq
    %v4311 = vshrl.u32 %v4310, 7
    %v4312 = vsub.s32 0, %v4311
    %v4313 = vrot.slane %v317, %v4312
    %v4314 = vlaneseq
    %v4315 = vshrl.u32 %v4314, 7
    %v4316 = vsub.s32 0, %v4315
    %v4317 = vrot.slane %v318, %v4316
    %v4318 = vmul.f32 %v4042, %v4297
    %v4319 = vmul.f32 %v4044, %v4301
    %v4320 = vmul.f32 %v4165, %v4305
    %v4321 = vmul.f32 %v4167, %v4309
    %v4322 = vmul.f32 %v4288, %v4313
    %v4323 = vmul.f32 %v4290, %v4317
    %v4324 = vlaneseq
    %v4325 = vshrl.u32 %v4324, 7
    %v4326 = vsub.s32 0, %v4325
    %v4327 = vrot.slane %v319, %v4326
    %v4328 = vlaneseq
    %v4329 = vshrl.u32 %v4328, 7
    %v4330 = vsub.s32 0, %v4329
    %v4331 = vrot.slane %v320, %v4330
    %v4332 = vlaneseq
    %v4333 = vshrl.u32 %v4332, 7
    %v4334 = vsub.s32 0, %v4333
    %v4335 = vrot.slane %v321, %v4334
    %v4336 = vlaneseq
    %v4337 = vshrl.u32 %v4336, 7
    %v4338 = vsub.s32 0, %v4337
    %v4339 = vrot.slane %v322, %v4338
    %v4340 = vlaneseq
    %v4341 = vshrl.u32 %v4340, 7
    %v4342 = vsub.s32 0, %v4341
    %v4343 = vrot.slane %v323, %v4342
    %v4344 = vlaneseq
    %v4345 = vshrl.u32 %v4344, 7
    %v4346 = vsub.s32 0, %v4345
    %v4347 = vrot.slane %v324, %v4346
    %v4348 = vadd.f32 %v4318, %v4327
    %v4349 = vadd.f32 %v4319, %v4331
    %v4350 = vadd.f32 %v4320, %v4335
    %v4351 = vadd.f32 %v4321, %v4339
    %v4352 = vadd.f32 %v4322, %v4343
    %v4353 = vadd.f32 %v4323, %v4347
    %s4354 = sshll.u32 %s3436, 4
    %4355 = dma.done %s259, %s4354
    %v4356 = vld [vmem:[%s258] sm:$0xff]
    %v4357 = vld [vmem:[%s258 + $0x8] sm:$0xff]
    %v4358 = vld [vmem:[%s258 + $0x10] sm:$0xff]
    %v4359 = vld [vmem:[%s258 + $0x18] sm:$0xff]
    %v4360 = vld [vmem:[%s258 + $0x20] sm:$0xff]
    %v4361 = vld [vmem:[%s258 + $0x28] sm:$0xff]
    %v4362 = vld [vmem:[%s258 + $0x30] sm:$0xff]
    %v4363 = vld [vmem:[%s258 + $0x38] sm:$0xff]
    %v4364 = vld [vmem:[%s258 + $0x40] sm:$0xff]
    %v4365 = vld [vmem:[%s258 + $0x48] sm:$0xff]
    %v4366 = vld [vmem:[%s258 + $0x50] sm:$0xff]
    %v4367 = vld [vmem:[%s258 + $0x58] sm:$0xff]
    %v4368 = vld [vmem:[%s258 + $0x60] sm:$0xff]
    %v4369 = vld [vmem:[%s258 + $0x68] sm:$0xff]
    %v4370 = vld [vmem:[%s258 + $0x70] sm:$0xff]
    %v4371 = vld [vmem:[%s258 + $0x78] sm:$0xff]
    %v4372 = vld [vmem:[%s258 + $0x80] sm:$0xff]
    %v4373 = vld [vmem:[%s258 + $0x88] sm:$0xff]
    %v4374 = vld [vmem:[%s258 + $0x90] sm:$0xff]
    %v4375 = vld [vmem:[%s258 + $0x98] sm:$0xff]
    %v4376 = vld [vmem:[%s258 + $0xa0] sm:$0xff]
    %v4377 = vld [vmem:[%s258 + $0xa8] sm:$0xff]
    %v4378 = vld [vmem:[%s258 + $0xb0] sm:$0xff]
    %v4379 = vld [vmem:[%s258 + $0xb8] sm:$0xff]
    %v4380 = vld [vmem:[%s258 + $0xc0] sm:$0xff]
    %v4381 = vld [vmem:[%s258 + $0xc8] sm:$0xff]
    %v4382 = vld [vmem:[%s258 + $0xd0] sm:$0xff]
    %v4383 = vld [vmem:[%s258 + $0xd8] sm:$0xff]
    %v4384 = vld [vmem:[%s258 + $0xe0] sm:$0xff]
    %v4385 = vld [vmem:[%s258 + $0xe8] sm:$0xff]
    %v4386 = vld [vmem:[%s258 + $0xf0] sm:$0xff]
    %v4387 = vld [vmem:[%s258 + $0xf8] sm:$0xff]
    %v4388 = vld [vmem:[%s258 + $0x100] sm:$0xff]
    %v4389 = vld [vmem:[%s258 + $0x108] sm:$0xff]
    %v4390 = vld [vmem:[%s258 + $0x110] sm:$0xff]
    %v4391 = vld [vmem:[%s258 + $0x118] sm:$0xff]
    %v4392 = vld [vmem:[%s258 + $0x120] sm:$0xff]
    %v4393 = vld [vmem:[%s258 + $0x128] sm:$0xff]
    %v4394 = vld [vmem:[%s258 + $0x130] sm:$0xff]
    %v4395 = vld [vmem:[%s258 + $0x138] sm:$0xff]
    %v4396 = vld [vmem:[%s258 + $0x140] sm:$0xff]
    %v4397 = vld [vmem:[%s258 + $0x148] sm:$0xff]
    %v4398 = vld [vmem:[%s258 + $0x150] sm:$0xff]
    %v4399 = vld [vmem:[%s258 + $0x158] sm:$0xff]
    %v4400 = vld [vmem:[%s258 + $0x160] sm:$0xff]
    %v4401 = vld [vmem:[%s258 + $0x168] sm:$0xff]
    %v4402 = vld [vmem:[%s258 + $0x170] sm:$0xff]
    %v4403 = vld [vmem:[%s258 + $0x178] sm:$0xff]
    %v4404 = vld [vmem:[%s258 + $0x180] sm:$0xff]
    %v4405 = vld [vmem:[%s258 + $0x188] sm:$0xff]
    %v4406 = vld [vmem:[%s258 + $0x190] sm:$0xff]
    %v4407 = vld [vmem:[%s258 + $0x198] sm:$0xff]
    %v4408 = vld [vmem:[%s258 + $0x1a0] sm:$0xff]
    %v4409 = vld [vmem:[%s258 + $0x1a8] sm:$0xff]
    %v4410 = vld [vmem:[%s258 + $0x1b0] sm:$0xff]
    %v4411 = vld [vmem:[%s258 + $0x1b8] sm:$0xff]
    %v4412 = vld [vmem:[%s258 + $0x1c0] sm:$0xff]
    %v4413 = vld [vmem:[%s258 + $0x1c8] sm:$0xff]
    %v4414 = vld [vmem:[%s258 + $0x1d0] sm:$0xff]
    %v4415 = vld [vmem:[%s258 + $0x1d8] sm:$0xff]
    %v4416 = vld [vmem:[%s258 + $0x1e0] sm:$0xff]
    %v4417 = vld [vmem:[%s258 + $0x1e8] sm:$0xff]
    %v4418 = vld [vmem:[%s258 + $0x1f0] sm:$0xff]
    %v4419 = vld [vmem:[%s258 + $0x1f8] sm:$0xff]
    %v4420 = vld [vmem:[%s258 + $0x200] sm:$0xff]
    %v4421 = vld [vmem:[%s258 + $0x208] sm:$0xff]
    %v4422 = vld [vmem:[%s258 + $0x210] sm:$0xff]
    %v4423 = vld [vmem:[%s258 + $0x218] sm:$0xff]
    %v4424 = vld [vmem:[%s258 + $0x220] sm:$0xff]
    %v4425 = vld [vmem:[%s258 + $0x228] sm:$0xff]
    %v4426 = vld [vmem:[%s258 + $0x230] sm:$0xff]
    %v4427 = vld [vmem:[%s258 + $0x238] sm:$0xff]
    %v4428 = vld [vmem:[%s258 + $0x240] sm:$0xff]
    %v4429 = vld [vmem:[%s258 + $0x248] sm:$0xff]
    %v4430 = vld [vmem:[%s258 + $0x250] sm:$0xff]
    %v4431 = vld [vmem:[%s258 + $0x258] sm:$0xff]
    %v4432 = vld [vmem:[%s258 + $0x260] sm:$0xff]
    %v4433 = vld [vmem:[%s258 + $0x268] sm:$0xff]
    %v4434 = vld [vmem:[%s258 + $0x270] sm:$0xff]
    %v4435 = vld [vmem:[%s258 + $0x278] sm:$0xff]
    %v4436 = vld [vmem:[%s258 + $0x280] sm:$0xff]
    %v4437 = vld [vmem:[%s258 + $0x288] sm:$0xff]
    %v4438 = vld [vmem:[%s258 + $0x290] sm:$0xff]
    %v4439 = vld [vmem:[%s258 + $0x298] sm:$0xff]
    %v4440 = vld [vmem:[%s258 + $0x2a0] sm:$0xff]
    %v4441 = vld [vmem:[%s258 + $0x2a8] sm:$0xff]
    %v4442 = vld [vmem:[%s258 + $0x2b0] sm:$0xff]
    %v4443 = vld [vmem:[%s258 + $0x2b8] sm:$0xff]
    %v4444 = vld [vmem:[%s258 + $0x2c0] sm:$0xff]
    %v4445 = vld [vmem:[%s258 + $0x2c8] sm:$0xff]
    %v4446 = vld [vmem:[%s258 + $0x2d0] sm:$0xff]
    %v4447 = vld [vmem:[%s258 + $0x2d8] sm:$0xff]
    %v4448 = vld [vmem:[%s258 + $0x2e0] sm:$0xff]
    %v4449 = vld [vmem:[%s258 + $0x2e8] sm:$0xff]
    %v4450 = vld [vmem:[%s258 + $0x2f0] sm:$0xff]
    %v4451 = vld [vmem:[%s258 + $0x2f8] sm:$0xff]
    %v4452 = vld [vmem:[%s258 + $0x300] sm:$0xff]
    %v4453 = vld [vmem:[%s258 + $0x308] sm:$0xff]
    %v4454 = vld [vmem:[%s258 + $0x310] sm:$0xff]
    %v4455 = vld [vmem:[%s258 + $0x318] sm:$0xff]
    %v4456 = vld [vmem:[%s258 + $0x320] sm:$0xff]
    %v4457 = vld [vmem:[%s258 + $0x328] sm:$0xff]
    %v4458 = vld [vmem:[%s258 + $0x330] sm:$0xff]
    %v4459 = vld [vmem:[%s258 + $0x338] sm:$0xff]
    %v4460 = vld [vmem:[%s258 + $0x340] sm:$0xff]
    %v4461 = vld [vmem:[%s258 + $0x348] sm:$0xff]
    %v4462 = vld [vmem:[%s258 + $0x350] sm:$0xff]
    %v4463 = vld [vmem:[%s258 + $0x358] sm:$0xff]
    %v4464 = vld [vmem:[%s258 + $0x360] sm:$0xff]
    %v4465 = vld [vmem:[%s258 + $0x368] sm:$0xff]
    %v4466 = vld [vmem:[%s258 + $0x370] sm:$0xff]
    %v4467 = vld [vmem:[%s258 + $0x378] sm:$0xff]
    %v4468 = vld [vmem:[%s258 + $0x380] sm:$0xff]
    %v4469 = vld [vmem:[%s258 + $0x388] sm:$0xff]
    %v4470 = vld [vmem:[%s258 + $0x390] sm:$0xff]
    %v4471 = vld [vmem:[%s258 + $0x398] sm:$0xff]
    %v4472 = vld [vmem:[%s258 + $0x3a0] sm:$0xff]
    %v4473 = vld [vmem:[%s258 + $0x3a8] sm:$0xff]
    %v4474 = vld [vmem:[%s258 + $0x3b0] sm:$0xff]
    %v4475 = vld [vmem:[%s258 + $0x3b8] sm:$0xff]
    %v4476 = vld [vmem:[%s258 + $0x3c0] sm:$0xff]
    %v4477 = vld [vmem:[%s258 + $0x3c8] sm:$0xff]
    %v4478 = vld [vmem:[%s258 + $0x3d0] sm:$0xff]
    %v4479 = vld [vmem:[%s258 + $0x3d8] sm:$0xff]
    %v4480 = vld [vmem:[%s258 + $0x3e0] sm:$0xff]
    %v4481 = vld [vmem:[%s258 + $0x3e8] sm:$0xff]
    %v4482 = vld [vmem:[%s258 + $0x3f0] sm:$0xff]
    %v4483 = vld [vmem:[%s258 + $0x3f8] sm:$0xff]
    %v4484 = vld [vmem:[%s258 + $0x400] sm:$0xff]
    %v4485 = vld [vmem:[%s258 + $0x408] sm:$0xff]
    %v4486 = vld [vmem:[%s258 + $0x410] sm:$0xff]
    %v4487 = vld [vmem:[%s258 + $0x418] sm:$0xff]
    %v4488 = vld [vmem:[%s258 + $0x420] sm:$0xff]
    %v4489 = vld [vmem:[%s258 + $0x428] sm:$0xff]
    %v4490 = vld [vmem:[%s258 + $0x430] sm:$0xff]
    %v4491 = vld [vmem:[%s258 + $0x438] sm:$0xff]
    %v4492 = vld [vmem:[%s258 + $0x440] sm:$0xff]
    %v4493 = vld [vmem:[%s258 + $0x448] sm:$0xff]
    %v4494 = vld [vmem:[%s258 + $0x450] sm:$0xff]
    %v4495 = vld [vmem:[%s258 + $0x458] sm:$0xff]
    %v4496 = vld [vmem:[%s258 + $0x460] sm:$0xff]
    %v4497 = vld [vmem:[%s258 + $0x468] sm:$0xff]
    %v4498 = vld [vmem:[%s258 + $0x470] sm:$0xff]
    %v4499 = vld [vmem:[%s258 + $0x478] sm:$0xff]
    %v4500 = vunpack.c.l.s8.bf16 %v4356
    %v4501 = vunpack.c.l.s8.bf16 %v4357
    %v4502 = vunpack.c.l.s8.bf16 %v4358
    %v4503 = vunpack.c.l.s8.bf16 %v4359
    %v4504 = vunpack.c.l.s8.bf16 %v4360
    %v4505 = vunpack.c.l.s8.bf16 %v4361
    %v4506 = vunpack.c.h.s8.bf16 %v4356
    %v4507 = vunpack.c.h.s8.bf16 %v4357
    %v4508 = vunpack.c.h.s8.bf16 %v4358
    %v4509 = vunpack.c.h.s8.bf16 %v4359
    %v4510 = vunpack.c.h.s8.bf16 %v4360
    %v4511 = vunpack.c.h.s8.bf16 %v4361
    %v4512 = vunpack.c.l.s8.bf16 %v4362
    %v4513 = vunpack.c.l.s8.bf16 %v4363
    %v4514 = vunpack.c.l.s8.bf16 %v4364
    %v4515 = vunpack.c.l.s8.bf16 %v4365
    %v4516 = vunpack.c.l.s8.bf16 %v4366
    %v4517 = vunpack.c.l.s8.bf16 %v4367
    %v4518 = vunpack.c.h.s8.bf16 %v4362
    %v4519 = vunpack.c.h.s8.bf16 %v4363
    %v4520 = vunpack.c.h.s8.bf16 %v4364
    %v4521 = vunpack.c.h.s8.bf16 %v4365
    %v4522 = vunpack.c.h.s8.bf16 %v4366
    %v4523 = vunpack.c.h.s8.bf16 %v4367
    %v4524 = vunpack.c.l.s8.bf16 %v4368
    %v4525 = vunpack.c.l.s8.bf16 %v4369
    %v4526 = vunpack.c.l.s8.bf16 %v4370
    %v4527 = vunpack.c.l.s8.bf16 %v4371
    %v4528 = vunpack.c.l.s8.bf16 %v4372
    %v4529 = vunpack.c.l.s8.bf16 %v4373
    %v4530 = vunpack.c.h.s8.bf16 %v4368
    %v4531 = vunpack.c.h.s8.bf16 %v4369
    %v4532 = vunpack.c.h.s8.bf16 %v4370
    %v4533 = vunpack.c.h.s8.bf16 %v4371
    %v4534 = vunpack.c.h.s8.bf16 %v4372
    %v4535 = vunpack.c.h.s8.bf16 %v4373
    %v4536 = vunpack.c.l.s8.bf16 %v4374
    %v4537 = vunpack.c.l.s8.bf16 %v4375
    %v4538 = vunpack.c.l.s8.bf16 %v4376
    %v4539 = vunpack.c.l.s8.bf16 %v4377
    %v4540 = vunpack.c.l.s8.bf16 %v4378
    %v4541 = vunpack.c.l.s8.bf16 %v4379
    %v4542 = vunpack.c.h.s8.bf16 %v4374
    %v4543 = vunpack.c.h.s8.bf16 %v4375
    %v4544 = vunpack.c.h.s8.bf16 %v4376
    %v4545 = vunpack.c.h.s8.bf16 %v4377
    %v4546 = vunpack.c.h.s8.bf16 %v4378
    %v4547 = vunpack.c.h.s8.bf16 %v4379
    %v4548 = vunpack.c.l.s8.bf16 %v4380
    %v4549 = vunpack.c.l.s8.bf16 %v4381
    %v4550 = vunpack.c.l.s8.bf16 %v4382
    %v4551 = vunpack.c.l.s8.bf16 %v4383
    %v4552 = vunpack.c.l.s8.bf16 %v4384
    %v4553 = vunpack.c.l.s8.bf16 %v4385
    %v4554 = vunpack.c.h.s8.bf16 %v4380
    %v4555 = vunpack.c.h.s8.bf16 %v4381
    %v4556 = vunpack.c.h.s8.bf16 %v4382
    %v4557 = vunpack.c.h.s8.bf16 %v4383
    %v4558 = vunpack.c.h.s8.bf16 %v4384
    %v4559 = vunpack.c.h.s8.bf16 %v4385
    %v4560 = vunpack.c.l.s8.bf16 %v4386
    %v4561 = vunpack.c.l.s8.bf16 %v4387
    %v4562 = vunpack.c.l.s8.bf16 %v4388
    %v4563 = vunpack.c.l.s8.bf16 %v4389
    %v4564 = vunpack.c.l.s8.bf16 %v4390
    %v4565 = vunpack.c.l.s8.bf16 %v4391
    %v4566 = vunpack.c.h.s8.bf16 %v4386
    %v4567 = vunpack.c.h.s8.bf16 %v4387
    %v4568 = vunpack.c.h.s8.bf16 %v4388
    %v4569 = vunpack.c.h.s8.bf16 %v4389
    %v4570 = vunpack.c.h.s8.bf16 %v4390
    %v4571 = vunpack.c.h.s8.bf16 %v4391
    %v4572 = vunpack.c.l.s8.bf16 %v4392
    %v4573 = vunpack.c.l.s8.bf16 %v4393
    %v4574 = vunpack.c.l.s8.bf16 %v4394
    %v4575 = vunpack.c.l.s8.bf16 %v4395
    %v4576 = vunpack.c.l.s8.bf16 %v4396
    %v4577 = vunpack.c.l.s8.bf16 %v4397
    %v4578 = vunpack.c.h.s8.bf16 %v4392
    %v4579 = vunpack.c.h.s8.bf16 %v4393
    %v4580 = vunpack.c.h.s8.bf16 %v4394
    %v4581 = vunpack.c.h.s8.bf16 %v4395
    %v4582 = vunpack.c.h.s8.bf16 %v4396
    %v4583 = vunpack.c.h.s8.bf16 %v4397
    %v4584 = vunpack.c.l.s8.bf16 %v4398
    %v4585 = vunpack.c.l.s8.bf16 %v4399
    %v4586 = vunpack.c.l.s8.bf16 %v4400
    %v4587 = vunpack.c.l.s8.bf16 %v4401
    %v4588 = vunpack.c.l.s8.bf16 %v4402
    %v4589 = vunpack.c.l.s8.bf16 %v4403
    %v4590 = vunpack.c.h.s8.bf16 %v4398
    %v4591 = vunpack.c.h.s8.bf16 %v4399
    %v4592 = vunpack.c.h.s8.bf16 %v4400
    %v4593 = vunpack.c.h.s8.bf16 %v4401
    %v4594 = vunpack.c.h.s8.bf16 %v4402
    %v4595 = vunpack.c.h.s8.bf16 %v4403
    %v4596 = vunpack.c.l.s8.bf16 %v4404
    %v4597 = vunpack.c.l.s8.bf16 %v4405
    %v4598 = vunpack.c.l.s8.bf16 %v4406
    %v4599 = vunpack.c.l.s8.bf16 %v4407
    %v4600 = vunpack.c.l.s8.bf16 %v4408
    %v4601 = vunpack.c.l.s8.bf16 %v4409
    %v4602 = vunpack.c.h.s8.bf16 %v4404
    %v4603 = vunpack.c.h.s8.bf16 %v4405
    %v4604 = vunpack.c.h.s8.bf16 %v4406
    %v4605 = vunpack.c.h.s8.bf16 %v4407
    %v4606 = vunpack.c.h.s8.bf16 %v4408
    %v4607 = vunpack.c.h.s8.bf16 %v4409
    %v4608 = vunpack.c.l.s8.bf16 %v4410
    %v4609 = vunpack.c.l.s8.bf16 %v4411
    %v4610 = vunpack.c.l.s8.bf16 %v4412
    %v4611 = vunpack.c.l.s8.bf16 %v4413
    %v4612 = vunpack.c.l.s8.bf16 %v4414
    %v4613 = vunpack.c.l.s8.bf16 %v4415
    %v4614 = vunpack.c.h.s8.bf16 %v4410
    %v4615 = vunpack.c.h.s8.bf16 %v4411
    %v4616 = vunpack.c.h.s8.bf16 %v4412
    %v4617 = vunpack.c.h.s8.bf16 %v4413
    %v4618 = vunpack.c.h.s8.bf16 %v4414
    %v4619 = vunpack.c.h.s8.bf16 %v4415
    %v4620 = vunpack.c.l.s8.bf16 %v4416
    %v4621 = vunpack.c.l.s8.bf16 %v4417
    %v4622 = vunpack.c.l.s8.bf16 %v4418
    %v4623 = vunpack.c.l.s8.bf16 %v4419
    %v4624 = vunpack.c.l.s8.bf16 %v4420
    %v4625 = vunpack.c.l.s8.bf16 %v4421
    %v4626 = vunpack.c.h.s8.bf16 %v4416
    %v4627 = vunpack.c.h.s8.bf16 %v4417
    %v4628 = vunpack.c.h.s8.bf16 %v4418
    %v4629 = vunpack.c.h.s8.bf16 %v4419
    %v4630 = vunpack.c.h.s8.bf16 %v4420
    %v4631 = vunpack.c.h.s8.bf16 %v4421
    %v4632 = vunpack.c.l.s8.bf16 %v4422
    %v4633 = vunpack.c.l.s8.bf16 %v4423
    %v4634 = vunpack.c.l.s8.bf16 %v4424
    %v4635 = vunpack.c.l.s8.bf16 %v4425
    %v4636 = vunpack.c.l.s8.bf16 %v4426
    %v4637 = vunpack.c.l.s8.bf16 %v4427
    %v4638 = vunpack.c.h.s8.bf16 %v4422
    %v4639 = vunpack.c.h.s8.bf16 %v4423
    %v4640 = vunpack.c.h.s8.bf16 %v4424
    %v4641 = vunpack.c.h.s8.bf16 %v4425
    %v4642 = vunpack.c.h.s8.bf16 %v4426
    %v4643 = vunpack.c.h.s8.bf16 %v4427
    %v4644 = vunpack.c.l.s8.bf16 %v4428
    %v4645 = vunpack.c.l.s8.bf16 %v4429
    %v4646 = vunpack.c.l.s8.bf16 %v4430
    %v4647 = vunpack.c.l.s8.bf16 %v4431
    %v4648 = vunpack.c.l.s8.bf16 %v4432
    %v4649 = vunpack.c.l.s8.bf16 %v4433
    %v4650 = vunpack.c.h.s8.bf16 %v4428
    %v4651 = vunpack.c.h.s8.bf16 %v4429
    %v4652 = vunpack.c.h.s8.bf16 %v4430
    %v4653 = vunpack.c.h.s8.bf16 %v4431
    %v4654 = vunpack.c.h.s8.bf16 %v4432
    %v4655 = vunpack.c.h.s8.bf16 %v4433
    %v4656 = vunpack.c.l.s8.bf16 %v4434
    %v4657 = vunpack.c.l.s8.bf16 %v4435
    %v4658 = vunpack.c.l.s8.bf16 %v4436
    %v4659 = vunpack.c.l.s8.bf16 %v4437
    %v4660 = vunpack.c.l.s8.bf16 %v4438
    %v4661 = vunpack.c.l.s8.bf16 %v4439
    %v4662 = vunpack.c.h.s8.bf16 %v4434
    %v4663 = vunpack.c.h.s8.bf16 %v4435
    %v4664 = vunpack.c.h.s8.bf16 %v4436
    %v4665 = vunpack.c.h.s8.bf16 %v4437
    %v4666 = vunpack.c.h.s8.bf16 %v4438
    %v4667 = vunpack.c.h.s8.bf16 %v4439
    %v4668 = vunpack.c.l.s8.bf16 %v4440
    %v4669 = vunpack.c.l.s8.bf16 %v4441
    %v4670 = vunpack.c.l.s8.bf16 %v4442
    %v4671 = vunpack.c.l.s8.bf16 %v4443
    %v4672 = vunpack.c.l.s8.bf16 %v4444
    %v4673 = vunpack.c.l.s8.bf16 %v4445
    %v4674 = vunpack.c.h.s8.bf16 %v4440
    %v4675 = vunpack.c.h.s8.bf16 %v4441
    %v4676 = vunpack.c.h.s8.bf16 %v4442
    %v4677 = vunpack.c.h.s8.bf16 %v4443
    %v4678 = vunpack.c.h.s8.bf16 %v4444
    %v4679 = vunpack.c.h.s8.bf16 %v4445
    %v4680 = vunpack.c.l.s8.bf16 %v4446
    %v4681 = vunpack.c.l.s8.bf16 %v4447
    %v4682 = vunpack.c.l.s8.bf16 %v4448
    %v4683 = vunpack.c.l.s8.bf16 %v4449
    %v4684 = vunpack.c.l.s8.bf16 %v4450
    %v4685 = vunpack.c.l.s8.bf16 %v4451
    %v4686 = vunpack.c.h.s8.bf16 %v4446
    %v4687 = vunpack.c.h.s8.bf16 %v4447
    %v4688 = vunpack.c.h.s8.bf16 %v4448
    %v4689 = vunpack.c.h.s8.bf16 %v4449
    %v4690 = vunpack.c.h.s8.bf16 %v4450
    %v4691 = vunpack.c.h.s8.bf16 %v4451
    %v4692 = vunpack.c.l.s8.bf16 %v4452
    %v4693 = vunpack.c.l.s8.bf16 %v4453
    %v4694 = vunpack.c.l.s8.bf16 %v4454
    %v4695 = vunpack.c.l.s8.bf16 %v4455
    %v4696 = vunpack.c.l.s8.bf16 %v4456
    %v4697 = vunpack.c.l.s8.bf16 %v4457
    %v4698 = vunpack.c.h.s8.bf16 %v4452
    %v4699 = vunpack.c.h.s8.bf16 %v4453
    %v4700 = vunpack.c.h.s8.bf16 %v4454
    %v4701 = vunpack.c.h.s8.bf16 %v4455
    %v4702 = vunpack.c.h.s8.bf16 %v4456
    %v4703 = vunpack.c.h.s8.bf16 %v4457
    %v4704 = vunpack.c.l.s8.bf16 %v4458
    %v4705 = vunpack.c.l.s8.bf16 %v4459
    %v4706 = vunpack.c.l.s8.bf16 %v4460
    %v4707 = vunpack.c.l.s8.bf16 %v4461
    %v4708 = vunpack.c.l.s8.bf16 %v4462
    %v4709 = vunpack.c.l.s8.bf16 %v4463
    %v4710 = vunpack.c.h.s8.bf16 %v4458
    %v4711 = vunpack.c.h.s8.bf16 %v4459
    %v4712 = vunpack.c.h.s8.bf16 %v4460
    %v4713 = vunpack.c.h.s8.bf16 %v4461
    %v4714 = vunpack.c.h.s8.bf16 %v4462
    %v4715 = vunpack.c.h.s8.bf16 %v4463
    %v4716 = vunpack.c.l.s8.bf16 %v4464
    %v4717 = vunpack.c.l.s8.bf16 %v4465
    %v4718 = vunpack.c.l.s8.bf16 %v4466
    %v4719 = vunpack.c.l.s8.bf16 %v4467
    %v4720 = vunpack.c.l.s8.bf16 %v4468
    %v4721 = vunpack.c.l.s8.bf16 %v4469
    %v4722 = vunpack.c.h.s8.bf16 %v4464
    %v4723 = vunpack.c.h.s8.bf16 %v4465
    %v4724 = vunpack.c.h.s8.bf16 %v4466
    %v4725 = vunpack.c.h.s8.bf16 %v4467
    %v4726 = vunpack.c.h.s8.bf16 %v4468
    %v4727 = vunpack.c.h.s8.bf16 %v4469
    %v4728 = vunpack.c.l.s8.bf16 %v4470
    %v4729 = vunpack.c.l.s8.bf16 %v4471
    %v4730 = vunpack.c.l.s8.bf16 %v4472
    %v4731 = vunpack.c.l.s8.bf16 %v4473
    %v4732 = vunpack.c.l.s8.bf16 %v4474
    %v4733 = vunpack.c.l.s8.bf16 %v4475
    %v4734 = vunpack.c.h.s8.bf16 %v4470
    %v4735 = vunpack.c.h.s8.bf16 %v4471
    %v4736 = vunpack.c.h.s8.bf16 %v4472
    %v4737 = vunpack.c.h.s8.bf16 %v4473
    %v4738 = vunpack.c.h.s8.bf16 %v4474
    %v4739 = vunpack.c.h.s8.bf16 %v4475
    %v4740 = vunpack.c.l.s8.bf16 %v4476
    %v4741 = vunpack.c.l.s8.bf16 %v4477
    %v4742 = vunpack.c.l.s8.bf16 %v4478
    %v4743 = vunpack.c.l.s8.bf16 %v4479
    %v4744 = vunpack.c.l.s8.bf16 %v4480
    %v4745 = vunpack.c.l.s8.bf16 %v4481
    %v4746 = vunpack.c.h.s8.bf16 %v4476
    %v4747 = vunpack.c.h.s8.bf16 %v4477
    %v4748 = vunpack.c.h.s8.bf16 %v4478
    %v4749 = vunpack.c.h.s8.bf16 %v4479
    %v4750 = vunpack.c.h.s8.bf16 %v4480
    %v4751 = vunpack.c.h.s8.bf16 %v4481
    %v4752 = vunpack.c.l.s8.bf16 %v4482
    %v4753 = vunpack.c.l.s8.bf16 %v4483
    %v4754 = vunpack.c.l.s8.bf16 %v4484
    %v4755 = vunpack.c.l.s8.bf16 %v4485
    %v4756 = vunpack.c.l.s8.bf16 %v4486
    %v4757 = vunpack.c.l.s8.bf16 %v4487
    %v4758 = vunpack.c.h.s8.bf16 %v4482
    %v4759 = vunpack.c.h.s8.bf16 %v4483
    %v4760 = vunpack.c.h.s8.bf16 %v4484
    %v4761 = vunpack.c.h.s8.bf16 %v4485
    %v4762 = vunpack.c.h.s8.bf16 %v4486
    %v4763 = vunpack.c.h.s8.bf16 %v4487
    %v4764 = vunpack.c.l.s8.bf16 %v4488
    %v4765 = vunpack.c.l.s8.bf16 %v4489
    %v4766 = vunpack.c.l.s8.bf16 %v4490
    %v4767 = vunpack.c.l.s8.bf16 %v4491
    %v4768 = vunpack.c.l.s8.bf16 %v4492
    %v4769 = vunpack.c.l.s8.bf16 %v4493
    %v4770 = vunpack.c.h.s8.bf16 %v4488
    %v4771 = vunpack.c.h.s8.bf16 %v4489
    %v4772 = vunpack.c.h.s8.bf16 %v4490
    %v4773 = vunpack.c.h.s8.bf16 %v4491
    %v4774 = vunpack.c.h.s8.bf16 %v4492
    %v4775 = vunpack.c.h.s8.bf16 %v4493
    %v4776 = vunpack.c.l.s8.bf16 %v4494
    %v4777 = vunpack.c.l.s8.bf16 %v4495
    %v4778 = vunpack.c.l.s8.bf16 %v4496
    %v4779 = vunpack.c.l.s8.bf16 %v4497
    %v4780 = vunpack.c.l.s8.bf16 %v4498
    %v4781 = vunpack.c.l.s8.bf16 %v4499
    %v4782 = vunpack.c.h.s8.bf16 %v4494
    %v4783 = vunpack.c.h.s8.bf16 %v4495
    %v4784 = vunpack.c.h.s8.bf16 %v4496
    %v4785 = vunpack.c.h.s8.bf16 %v4497
    %v4786 = vunpack.c.h.s8.bf16 %v4498
    %v4787 = vunpack.c.h.s8.bf16 %v4499
    %4788 = vmatprep.subr.bf16.mxu0 %v4501
    %4789 = vmatpush1.bf16.msra.mxu0 %v4500
    %4790 = vmatprep.subr.bf16.mxu0 %v4507
    %4791 = vmatpush1.bf16.msra.mxu0 %v4506
    %4792 = vmatprep.subr.bf16.mxu0 %v4513
    %4793 = vmatpush1.bf16.msra.mxu0 %v4512
    %4794 = vmatprep.subr.bf16.mxu0 %v4519
    %4795 = vmatpush1.bf16.msra.mxu0 %v4518
    %4796 = vmatprep.subr.bf16.mxu0 %v4525
    %4797 = vmatpush1.bf16.msra.mxu0 %v4524
    %4798 = vmatprep.subr.bf16.mxu0 %v4531
    %4799 = vmatpush1.bf16.msra.mxu0 %v4530
    %4800 = vmatprep.subr.bf16.mxu0 %v4537
    %4801 = vmatpush1.bf16.msra.mxu0 %v4536
    %4802 = vmatprep.subr.bf16.mxu0 %v4543
    %4803 = vmatpush1.bf16.msra.mxu0 %v4542
    %4804 = vmatprep.subr.bf16.mxu0 %v4549
    %4805 = vmatpush1.bf16.msra.mxu0 %v4548
    %4806 = vmatprep.subr.bf16.mxu0 %v4555
    %4807 = vmatpush1.bf16.msra.mxu0 %v4554
    %4808 = vmatprep.subr.bf16.mxu0 %v4561
    %4809 = vmatpush1.bf16.msra.mxu0 %v4560
    %4810 = vmatprep.subr.bf16.mxu0 %v4567
    %4811 = vmatpush1.bf16.msra.mxu0 %v4566
    %4812 = vmatprep.subr.bf16.mxu0 %v4573
    %4813 = vmatpush1.bf16.msra.mxu0 %v4572
    %4814 = vmatprep.subr.bf16.mxu0 %v4579
    %4815 = vmatpush1.bf16.msra.mxu0 %v4578
    %4816 = vmatprep.subr.bf16.mxu0 %v4585
    %4817 = vmatpush1.bf16.msra.mxu0 %v4584
    %4818 = vmatprep.subr.bf16.mxu0 %v4591
    %4819 = vmatpush1.bf16.msra.mxu0 %v4590
    %4820 = vmatprep.mubr.bf16.mxu0 %v2915
    %4821 = vmatmul.mubr.bf16.gmra.mrb[0].mxu0 %v2914
    %v4822 = vpop.f32.mrb[0].mxu0
    %v4823 = vadd.f32 0.0, %v4822
    %v4824 = vpop.f32.mrb[0].mxu0
    %v4825 = vadd.f32 0.0, %v4824
    %v4826 = vpop.f32.mrb[0].mxu0
    %v4827 = vadd.f32 0.0, %v4826
    %v4828 = vpop.f32.mrb[0].mxu0
    %v4829 = vadd.f32 0.0, %v4828
    %4830 = vdwg.mxu0
    %4831 = vmatprep.subr.bf16.mxu0 %v4597
    %4832 = vmatpush1.bf16.msra.mxu0 %v4596
    %4833 = vmatprep.subr.bf16.mxu0 %v4603
    %4834 = vmatpush1.bf16.msra.mxu0 %v4602
    %4835 = vmatprep.subr.bf16.mxu0 %v4609
    %4836 = vmatpush1.bf16.msra.mxu0 %v4608
    %4837 = vmatprep.subr.bf16.mxu0 %v4615
    %4838 = vmatpush1.bf16.msra.mxu0 %v4614
    %4839 = vmatprep.subr.bf16.mxu0 %v4621
    %4840 = vmatpush1.bf16.msra.mxu0 %v4620
    %4841 = vmatprep.subr.bf16.mxu0 %v4627
    %4842 = vmatpush1.bf16.msra.mxu0 %v4626
    %4843 = vmatprep.subr.bf16.mxu0 %v4633
    %4844 = vmatpush1.bf16.msra.mxu0 %v4632
    %4845 = vmatprep.subr.bf16.mxu0 %v4639
    %4846 = vmatpush1.bf16.msra.mxu0 %v4638
    %4847 = vmatprep.subr.bf16.mxu0 %v4645
    %4848 = vmatpush1.bf16.msra.mxu0 %v4644
    %4849 = vmatprep.subr.bf16.mxu0 %v4651
    %4850 = vmatpush1.bf16.msra.mxu0 %v4650
    %4851 = vmatprep.subr.bf16.mxu0 %v4657
    %4852 = vmatpush1.bf16.msra.mxu0 %v4656
    %4853 = vmatprep.subr.bf16.mxu0 %v4663
    %4854 = vmatpush1.bf16.msra.mxu0 %v4662
    %4855 = vmatprep.subr.bf16.mxu0 %v4669
    %4856 = vmatpush1.bf16.msra.mxu0 %v4668
    %4857 = vmatprep.subr.bf16.mxu0 %v4675
    %4858 = vmatpush1.bf16.msra.mxu0 %v4674
    %4859 = vmatprep.subr.bf16.mxu0 %v4681
    %4860 = vmatpush1.bf16.msra.mxu0 %v4680
    %4861 = vmatprep.subr.bf16.mxu0 %v4687
    %4862 = vmatpush1.bf16.msra.mxu0 %v4686
    %4863 = vmatprep.mubr.bf16.mxu0 %v2917
    %4864 = vmatmul.mubr.bf16.gmra.mrb[0].mxu0 %v2916
    %v4865 = vpop.f32.mrb[0].mxu0
    %v4866 = vadd.f32 %v4823, %v4865
    %v4867 = vpop.f32.mrb[0].mxu0
    %v4868 = vadd.f32 %v4825, %v4867
    %v4869 = vpop.f32.mrb[0].mxu0
    %v4870 = vadd.f32 %v4827, %v4869
    %v4871 = vpop.f32.mrb[0].mxu0
    %v4872 = vadd.f32 %v4829, %v4871
    %4873 = vdwg.mxu0
    %4874 = vmatprep.subr.bf16.mxu0 %v4693
    %4875 = vmatpush1.bf16.msra.mxu0 %v4692
    %4876 = vmatprep.subr.bf16.mxu0 %v4699
    %4877 = vmatpush1.bf16.msra.mxu0 %v4698
    %4878 = vmatprep.subr.bf16.mxu0 %v4705
    %4879 = vmatpush1.bf16.msra.mxu0 %v4704
    %4880 = vmatprep.subr.bf16.mxu0 %v4711
    %4881 = vmatpush1.bf16.msra.mxu0 %v4710
    %4882 = vmatprep.subr.bf16.mxu0 %v4717
    %4883 = vmatpush1.bf16.msra.mxu0 %v4716
    %4884 = vmatprep.subr.bf16.mxu0 %v4723
    %4885 = vmatpush1.bf16.msra.mxu0 %v4722
    %4886 = vmatprep.subr.bf16.mxu0 %v4729
    %4887 = vmatpush1.bf16.msra.mxu0 %v4728
    %4888 = vmatprep.subr.bf16.mxu0 %v4735
    %4889 = vmatpush1.bf16.msra.mxu0 %v4734
    %4890 = vmatprep.subr.bf16.mxu0 %v4741
    %4891 = vmatpush1.bf16.msra.mxu0 %v4740
    %4892 = vmatprep.subr.bf16.mxu0 %v4747
    %4893 = vmatpush1.bf16.msra.mxu0 %v4746
    %4894 = vmatprep.subr.bf16.mxu0 %v4753
    %4895 = vmatpush1.bf16.msra.mxu0 %v4752
    %4896 = vmatprep.subr.bf16.mxu0 %v4759
    %4897 = vmatpush1.bf16.msra.mxu0 %v4758
    %4898 = vmatprep.subr.bf16.mxu0 %v4765
    %4899 = vmatpush1.bf16.msra.mxu0 %v4764
    %4900 = vmatprep.subr.bf16.mxu0 %v4771
    %4901 = vmatpush1.bf16.msra.mxu0 %v4770
    %4902 = vmatprep.subr.bf16.mxu0 %v4777
    %4903 = vmatpush1.bf16.msra.mxu0 %v4776
    %4904 = vmatprep.subr.bf16.mxu0 %v4783
    %4905 = vmatpush1.bf16.msra.mxu0 %v4782
    %4906 = vmatprep.mubr.bf16.mxu0 %v2919
    %4907 = vmatmul.mubr.bf16.gmra.mrb[0].mxu0 %v2918
    %v4908 = vpop.f32.mrb[0].mxu0
    %v4909 = vadd.f32 %v4866, %v4908
    %v4910 = vpop.f32.mrb[0].mxu0
    %v4911 = vadd.f32 %v4868, %v4910
    %v4912 = vpop.f32.mrb[0].mxu0
    %v4913 = vadd.f32 %v4870, %v4912
    %v4914 = vpop.f32.mrb[0].mxu0
    %v4915 = vadd.f32 %v4872, %v4914
    %4916 = vdwg.mxu0
    %4917 = vmatprep.subr.bf16.mxu0 %v4503
    %4918 = vmatpush1.bf16.msra.mxu0 %v4502
    %4919 = vmatprep.subr.bf16.mxu0 %v4509
    %4920 = vmatpush1.bf16.msra.mxu0 %v4508
    %4921 = vmatprep.subr.bf16.mxu0 %v4515
    %4922 = vmatpush1.bf16.msra.mxu0 %v4514
    %4923 = vmatprep.subr.bf16.mxu0 %v4521
    %4924 = vmatpush1.bf16.msra.mxu0 %v4520
    %4925 = vmatprep.subr.bf16.mxu0 %v4527
    %4926 = vmatpush1.bf16.msra.mxu0 %v4526
    %4927 = vmatprep.subr.bf16.mxu0 %v4533
    %4928 = vmatpush1.bf16.msra.mxu0 %v4532
    %4929 = vmatprep.subr.bf16.mxu0 %v4539
    %4930 = vmatpush1.bf16.msra.mxu0 %v4538
    %4931 = vmatprep.subr.bf16.mxu0 %v4545
    %4932 = vmatpush1.bf16.msra.mxu0 %v4544
    %4933 = vmatprep.subr.bf16.mxu0 %v4551
    %4934 = vmatpush1.bf16.msra.mxu0 %v4550
    %4935 = vmatprep.subr.bf16.mxu0 %v4557
    %4936 = vmatpush1.bf16.msra.mxu0 %v4556
    %4937 = vmatprep.subr.bf16.mxu0 %v4563
    %4938 = vmatpush1.bf16.msra.mxu0 %v4562
    %4939 = vmatprep.subr.bf16.mxu0 %v4569
    %4940 = vmatpush1.bf16.msra.mxu0 %v4568
    %4941 = vmatprep.subr.bf16.mxu0 %v4575
    %4942 = vmatpush1.bf16.msra.mxu0 %v4574
    %4943 = vmatprep.subr.bf16.mxu0 %v4581
    %4944 = vmatpush1.bf16.msra.mxu0 %v4580
    %4945 = vmatprep.subr.bf16.mxu0 %v4587
    %4946 = vmatpush1.bf16.msra.mxu0 %v4586
    %4947 = vmatprep.subr.bf16.mxu0 %v4593
    %4948 = vmatpush1.bf16.msra.mxu0 %v4592
    %4949 = vmatprep.mubr.bf16.mxu0 %v2915
    %4950 = vmatmul.mubr.bf16.gmra.mrb[0].mxu0 %v2914
    %v4951 = vpop.f32.mrb[0].mxu0
    %v4952 = vadd.f32 0.0, %v4951
    %v4953 = vpop.f32.mrb[0].mxu0
    %v4954 = vadd.f32 0.0, %v4953
    %v4955 = vpop.f32.mrb[0].mxu0
    %v4956 = vadd.f32 0.0, %v4955
    %v4957 = vpop.f32.mrb[0].mxu0
    %v4958 = vadd.f32 0.0, %v4957
    %4959 = vdwg.mxu0
    %4960 = vmatprep.subr.bf16.mxu0 %v4599
    %4961 = vmatpush1.bf16.msra.mxu0 %v4598
    %4962 = vmatprep.subr.bf16.mxu0 %v4605
    %4963 = vmatpush1.bf16.msra.mxu0 %v4604
    %4964 = vmatprep.subr.bf16.mxu0 %v4611
    %4965 = vmatpush1.bf16.msra.mxu0 %v4610
    %4966 = vmatprep.subr.bf16.mxu0 %v4617
    %4967 = vmatpush1.bf16.msra.mxu0 %v4616
    %4968 = vmatprep.subr.bf16.mxu0 %v4623
    %4969 = vmatpush1.bf16.msra.mxu0 %v4622
    %4970 = vmatprep.subr.bf16.mxu0 %v4629
    %4971 = vmatpush1.bf16.msra.mxu0 %v4628
    %4972 = vmatprep.subr.bf16.mxu0 %v4635
    %4973 = vmatpush1.bf16.msra.mxu0 %v4634
    %4974 = vmatprep.subr.bf16.mxu0 %v4641
    %4975 = vmatpush1.bf16.msra.mxu0 %v4640
    %4976 = vmatprep.subr.bf16.mxu0 %v4647
    %4977 = vmatpush1.bf16.msra.mxu0 %v4646
    %4978 = vmatprep.subr.bf16.mxu0 %v4653
    %4979 = vmatpush1.bf16.msra.mxu0 %v4652
    %4980 = vmatprep.subr.bf16.mxu0 %v4659
    %4981 = vmatpush1.bf16.msra.mxu0 %v4658
    %4982 = vmatprep.subr.bf16.mxu0 %v4665
    %4983 = vmatpush1.bf16.msra.mxu0 %v4664
    %4984 = vmatprep.subr.bf16.mxu0 %v4671
    %4985 = vmatpush1.bf16.msra.mxu0 %v4670
    %4986 = vmatprep.subr.bf16.mxu0 %v4677
    %4987 = vmatpush1.bf16.msra.mxu0 %v4676
    %4988 = vmatprep.subr.bf16.mxu0 %v4683
    %4989 = vmatpush1.bf16.msra.mxu0 %v4682
    %4990 = vmatprep.subr.bf16.mxu0 %v4689
    %4991 = vmatpush1.bf16.msra.mxu0 %v4688
    %4992 = vmatprep.mubr.bf16.mxu0 %v2917
    %4993 = vmatmul.mubr.bf16.gmra.mrb[0].mxu0 %v2916
    %v4994 = vpop.f32.mrb[0].mxu0
    %v4995 = vadd.f32 %v4952, %v4994
    %v4996 = vpop.f32.mrb[0].mxu0
    %v4997 = vadd.f32 %v4954, %v4996
    %v4998 = vpop.f32.mrb[0].mxu0
    %v4999 = vadd.f32 %v4956, %v4998
    %v5000 = vpop.f32.mrb[0].mxu0
    %v5001 = vadd.f32 %v4958, %v5000
    %5002 = vdwg.mxu0
    %5003 = vmatprep.subr.bf16.mxu0 %v4695
    %5004 = vmatpush1.bf16.msra.mxu0 %v4694
    %5005 = vmatprep.subr.bf16.mxu0 %v4701
    %5006 = vmatpush1.bf16.msra.mxu0 %v4700
    %5007 = vmatprep.subr.bf16.mxu0 %v4707
    %5008 = vmatpush1.bf16.msra.mxu0 %v4706
    %5009 = vmatprep.subr.bf16.mxu0 %v4713
    %5010 = vmatpush1.bf16.msra.mxu0 %v4712
    %5011 = vmatprep.subr.bf16.mxu0 %v4719
    %5012 = vmatpush1.bf16.msra.mxu0 %v4718
    %5013 = vmatprep.subr.bf16.mxu0 %v4725
    %5014 = vmatpush1.bf16.msra.mxu0 %v4724
    %5015 = vmatprep.subr.bf16.mxu0 %v4731
    %5016 = vmatpush1.bf16.msra.mxu0 %v4730
    %5017 = vmatprep.subr.bf16.mxu0 %v4737
    %5018 = vmatpush1.bf16.msra.mxu0 %v4736
    %5019 = vmatprep.subr.bf16.mxu0 %v4743
    %5020 = vmatpush1.bf16.msra.mxu0 %v4742
    %5021 = vmatprep.subr.bf16.mxu0 %v4749
    %5022 = vmatpush1.bf16.msra.mxu0 %v4748
    %5023 = vmatprep.subr.bf16.mxu0 %v4755
    %5024 = vmatpush1.bf16.msra.mxu0 %v4754
    %5025 = vmatprep.subr.bf16.mxu0 %v4761
    %5026 = vmatpush1.bf16.msra.mxu0 %v4760
    %5027 = vmatprep.subr.bf16.mxu0 %v4767
    %5028 = vmatpush1.bf16.msra.mxu0 %v4766
    %5029 = vmatprep.subr.bf16.mxu0 %v4773
    %5030 = vmatpush1.bf16.msra.mxu0 %v4772
    %5031 = vmatprep.subr.bf16.mxu0 %v4779
    %5032 = vmatpush1.bf16.msra.mxu0 %v4778
    %5033 = vmatprep.subr.bf16.mxu0 %v4785
    %5034 = vmatpush1.bf16.msra.mxu0 %v4784
    %5035 = vmatprep.mubr.bf16.mxu0 %v2919
    %5036 = vmatmul.mubr.bf16.gmra.mrb[0].mxu0 %v2918
    %v5037 = vpop.f32.mrb[0].mxu0
    %v5038 = vadd.f32 %v4995, %v5037
    %v5039 = vpop.f32.mrb[0].mxu0
    %v5040 = vadd.f32 %v4997, %v5039
    %v5041 = vpop.f32.mrb[0].mxu0
    %v5042 = vadd.f32 %v4999, %v5041
    %v5043 = vpop.f32.mrb[0].mxu0
    %v5044 = vadd.f32 %v5001, %v5043
    %5045 = vdwg.mxu0
    %5046 = vmatprep.subr.bf16.mxu0 %v4505
    %5047 = vmatpush1.bf16.msra.mxu0 %v4504
    %5048 = vmatprep.subr.bf16.mxu0 %v4511
    %5049 = vmatpush1.bf16.msra.mxu0 %v4510
    %5050 = vmatprep.subr.bf16.mxu0 %v4517
    %5051 = vmatpush1.bf16.msra.mxu0 %v4516
    %5052 = vmatprep.subr.bf16.mxu0 %v4523
    %5053 = vmatpush1.bf16.msra.mxu0 %v4522
    %5054 = vmatprep.subr.bf16.mxu0 %v4529
    %5055 = vmatpush1.bf16.msra.mxu0 %v4528
    %5056 = vmatprep.subr.bf16.mxu0 %v4535
    %5057 = vmatpush1.bf16.msra.mxu0 %v4534
    %5058 = vmatprep.subr.bf16.mxu0 %v4541
    %5059 = vmatpush1.bf16.msra.mxu0 %v4540
    %5060 = vmatprep.subr.bf16.mxu0 %v4547
    %5061 = vmatpush1.bf16.msra.mxu0 %v4546
    %5062 = vmatprep.subr.bf16.mxu0 %v4553
    %5063 = vmatpush1.bf16.msra.mxu0 %v4552
    %5064 = vmatprep.subr.bf16.mxu0 %v4559
    %5065 = vmatpush1.bf16.msra.mxu0 %v4558
    %5066 = vmatprep.subr.bf16.mxu0 %v4565
    %5067 = vmatpush1.bf16.msra.mxu0 %v4564
    %5068 = vmatprep.subr.bf16.mxu0 %v4571
    %5069 = vmatpush1.bf16.msra.mxu0 %v4570
    %5070 = vmatprep.subr.bf16.mxu0 %v4577
    %5071 = vmatpush1.bf16.msra.mxu0 %v4576
    %5072 = vmatprep.subr.bf16.mxu0 %v4583
    %5073 = vmatpush1.bf16.msra.mxu0 %v4582
    %5074 = vmatprep.subr.bf16.mxu0 %v4589
    %5075 = vmatpush1.bf16.msra.mxu0 %v4588
    %5076 = vmatprep.subr.bf16.mxu0 %v4595
    %5077 = vmatpush1.bf16.msra.mxu0 %v4594
    %5078 = vmatprep.mubr.bf16.mxu0 %v2915
    %5079 = vmatmul.mubr.bf16.gmra.mrb[0].mxu0 %v2914
    %v5080 = vpop.f32.mrb[0].mxu0
    %v5081 = vadd.f32 0.0, %v5080
    %v5082 = vpop.f32.mrb[0].mxu0
    %v5083 = vadd.f32 0.0, %v5082
    %v5084 = vpop.f32.mrb[0].mxu0
    %v5085 = vadd.f32 0.0, %v5084
    %v5086 = vpop.f32.mrb[0].mxu0
    %v5087 = vadd.f32 0.0, %v5086
    %5088 = vdwg.mxu0
    %5089 = vmatprep.subr.bf16.mxu0 %v4601
    %5090 = vmatpush1.bf16.msra.mxu0 %v4600
    %5091 = vmatprep.subr.bf16.mxu0 %v4607
    %5092 = vmatpush1.bf16.msra.mxu0 %v4606
    %5093 = vmatprep.subr.bf16.mxu0 %v4613
    %5094 = vmatpush1.bf16.msra.mxu0 %v4612
    %5095 = vmatprep.subr.bf16.mxu0 %v4619
    %5096 = vmatpush1.bf16.msra.mxu0 %v4618
    %5097 = vmatprep.subr.bf16.mxu0 %v4625
    %5098 = vmatpush1.bf16.msra.mxu0 %v4624
    %5099 = vmatprep.subr.bf16.mxu0 %v4631
    %5100 = vmatpush1.bf16.msra.mxu0 %v4630
    %5101 = vmatprep.subr.bf16.mxu0 %v4637
    %5102 = vmatpush1.bf16.msra.mxu0 %v4636
    %5103 = vmatprep.subr.bf16.mxu0 %v4643
    %5104 = vmatpush1.bf16.msra.mxu0 %v4642
    %5105 = vmatprep.subr.bf16.mxu0 %v4649
    %5106 = vmatpush1.bf16.msra.mxu0 %v4648
    %5107 = vmatprep.subr.bf16.mxu0 %v4655
    %5108 = vmatpush1.bf16.msra.mxu0 %v4654
    %5109 = vmatprep.subr.bf16.mxu0 %v4661
    %5110 = vmatpush1.bf16.msra.mxu0 %v4660
    %5111 = vmatprep.subr.bf16.mxu0 %v4667
    %5112 = vmatpush1.bf16.msra.mxu0 %v4666
    %5113 = vmatprep.subr.bf16.mxu0 %v4673
    %5114 = vmatpush1.bf16.msra.mxu0 %v4672
    %5115 = vmatprep.subr.bf16.mxu0 %v4679
    %5116 = vmatpush1.bf16.msra.mxu0 %v4678
    %5117 = vmatprep.subr.bf16.mxu0 %v4685
    %5118 = vmatpush1.bf16.msra.mxu0 %v4684
    %5119 = vmatprep.subr.bf16.mxu0 %v4691
    %5120 = vmatpush1.bf16.msra.mxu0 %v4690
    %5121 = vmatprep.mubr.bf16.mxu0 %v2917
    %5122 = vmatmul.mubr.bf16.gmra.mrb[0].mxu0 %v2916
    %v5123 = vpop.f32.mrb[0].mxu0
    %v5124 = vadd.f32 %v5081, %v5123
    %v5125 = vpop.f32.mrb[0].mxu0
    %v5126 = vadd.f32 %v5083, %v5125
    %v5127 = vpop.f32.mrb[0].mxu0
    %v5128 = vadd.f32 %v5085, %v5127
    %v5129 = vpop.f32.mrb[0].mxu0
    %v5130 = vadd.f32 %v5087, %v5129
    %5131 = vdwg.mxu0
    %5132 = vmatprep.subr.bf16.mxu0 %v4697
    %5133 = vmatpush1.bf16.msra.mxu0 %v4696
    %5134 = vmatprep.subr.bf16.mxu0 %v4703
    %5135 = vmatpush1.bf16.msra.mxu0 %v4702
    %5136 = vmatprep.subr.bf16.mxu0 %v4709
    %5137 = vmatpush1.bf16.msra.mxu0 %v4708
    %5138 = vmatprep.subr.bf16.mxu0 %v4715
    %5139 = vmatpush1.bf16.msra.mxu0 %v4714
    %5140 = vmatprep.subr.bf16.mxu0 %v4721
    %5141 = vmatpush1.bf16.msra.mxu0 %v4720
    %5142 = vmatprep.subr.bf16.mxu0 %v4727
    %5143 = vmatpush1.bf16.msra.mxu0 %v4726
    %5144 = vmatprep.subr.bf16.mxu0 %v4733
    %5145 = vmatpush1.bf16.msra.mxu0 %v4732
    %5146 = vmatprep.subr.bf16.mxu0 %v4739
    %5147 = vmatpush1.bf16.msra.mxu0 %v4738
    %5148 = vmatprep.subr.bf16.mxu0 %v4745
    %5149 = vmatpush1.bf16.msra.mxu0 %v4744
    %5150 = vmatprep.subr.bf16.mxu0 %v4751
    %5151 = vmatpush1.bf16.msra.mxu0 %v4750
    %5152 = vmatprep.subr.bf16.mxu0 %v4757
    %5153 = vmatpush1.bf16.msra.mxu0 %v4756
    %5154 = vmatprep.subr.bf16.mxu0 %v4763
    %5155 = vmatpush1.bf16.msra.mxu0 %v4762
    %5156 = vmatprep.subr.bf16.mxu0 %v4769
    %5157 = vmatpush1.bf16.msra.mxu0 %v4768
    %5158 = vmatprep.subr.bf16.mxu0 %v4775
    %5159 = vmatpush1.bf16.msra.mxu0 %v4774
    %5160 = vmatprep.subr.bf16.mxu0 %v4781
    %5161 = vmatpush1.bf16.msra.mxu0 %v4780
    %5162 = vmatprep.subr.bf16.mxu0 %v4787
    %5163 = vmatpush1.bf16.msra.mxu0 %v4786
    %5164 = vmatprep.mubr.bf16.mxu0 %v2919
    %5165 = vmatmul.mubr.bf16.gmra.mrb[0].mxu0 %v2918
    %v5166 = vpop.f32.mrb[0].mxu0
    %v5167 = vadd.f32 %v5124, %v5166
    %v5168 = vpop.f32.mrb[0].mxu0
    %v5169 = vadd.f32 %v5126, %v5168
    %v5170 = vpop.f32.mrb[0].mxu0
    %v5171 = vadd.f32 %v5128, %v5170
    %v5172 = vpop.f32.mrb[0].mxu0
    %v5173 = vadd.f32 %v5130, %v5172
    %5174 = vdwg.mxu0
    %v5175 = vlaneseq
    %v5176 = vshrl.u32 %v5175, 7
    %v5177 = vsub.s32 1, %v5176
    %v5178 = vrot.slane %v313, %v5177
    %v5179 = vlaneseq
    %v5180 = vshrl.u32 %v5179, 7
    %v5181 = vsub.s32 1, %v5180
    %v5182 = vrot.slane %v314, %v5181
    %v5183 = vlaneseq
    %v5184 = vshrl.u32 %v5183, 7
    %v5185 = vsub.s32 1, %v5184
    %v5186 = vrot.slane %v315, %v5185
    %v5187 = vlaneseq
    %v5188 = vshrl.u32 %v5187, 7
    %v5189 = vsub.s32 1, %v5188
    %v5190 = vrot.slane %v316, %v5189
    %v5191 = vlaneseq
    %v5192 = vshrl.u32 %v5191, 7
    %v5193 = vsub.s32 1, %v5192
    %v5194 = vrot.slane %v317, %v5193
    %v5195 = vlaneseq
    %v5196 = vshrl.u32 %v5195, 7
    %v5197 = vsub.s32 1, %v5196
    %v5198 = vrot.slane %v318, %v5197
    %v5199 = vmul.f32 %v4909, %v5178
    %v5200 = vmul.f32 %v4911, %v5182
    %v5201 = vmul.f32 %v5038, %v5186
    %v5202 = vmul.f32 %v5040, %v5190
    %v5203 = vmul.f32 %v5167, %v5194
    %v5204 = vmul.f32 %v5169, %v5198
    %v5205 = vmul.f32 %v4913, %v5178
    %v5206 = vmul.f32 %v4915, %v5182
    %v5207 = vmul.f32 %v5042, %v5186
    %v5208 = vmul.f32 %v5044, %v5190
    %v5209 = vmul.f32 %v5171, %v5194
    %v5210 = vmul.f32 %v5173, %v5198
    %v5211 = vlaneseq
    %v5212 = vshrl.u32 %v5211, 7
    %v5213 = vsub.s32 1, %v5212
    %v5214 = vrot.slane %v319, %v5213
    %v5215 = vlaneseq
    %v5216 = vshrl.u32 %v5215, 7
    %v5217 = vsub.s32 1, %v5216
    %v5218 = vrot.slane %v320, %v5217
    %v5219 = vlaneseq
    %v5220 = vshrl.u32 %v5219, 7
    %v5221 = vsub.s32 1, %v5220
    %v5222 = vrot.slane %v321, %v5221
    %v5223 = vlaneseq
    %v5224 = vshrl.u32 %v5223, 7
    %v5225 = vsub.s32 1, %v5224
    %v5226 = vrot.slane %v322, %v5225
    %v5227 = vlaneseq
    %v5228 = vshrl.u32 %v5227, 7
    %v5229 = vsub.s32 1, %v5228
    %v5230 = vrot.slane %v323, %v5229
    %v5231 = vlaneseq
    %v5232 = vshrl.u32 %v5231, 7
    %v5233 = vsub.s32 1, %v5232
    %v5234 = vrot.slane %v324, %v5233
    %v5235 = vadd.f32 %v5199, %v5214
    %v5236 = vadd.f32 %v5200, %v5218
    %v5237 = vadd.f32 %v5201, %v5222
    %v5238 = vadd.f32 %v5202, %v5226
    %v5239 = vadd.f32 %v5203, %v5230
    %v5240 = vadd.f32 %v5204, %v5234
    %v5241 = vadd.f32 %v5205, %v5214
    %v5242 = vadd.f32 %v5206, %v5218
    %v5243 = vadd.f32 %v5207, %v5222
    %v5244 = vadd.f32 %v5208, %v5226
    %v5245 = vadd.f32 %v5209, %v5230
    %v5246 = vadd.f32 %v5210, %v5234
    %s5247 = sshll.u32 %s3436, 4
    %5248 = dma.done %s273, %s5247
    %v5249 = vld [vmem:[%s272] sm:$0xff]
    %v5250 = vld [vmem:[%s272 + $0x8] sm:$0xff]
    %v5251 = vld [vmem:[%s272 + $0x10] sm:$0xff]
    %v5252 = vld [vmem:[%s272 + $0x18] sm:$0xff]
    %v5253 = vld [vmem:[%s272 + $0x20] sm:$0xff]
    %v5254 = vld [vmem:[%s272 + $0x28] sm:$0xff]
    %v5255 = vld [vmem:[%s272 + $0x30] sm:$0xff]
    %v5256 = vld [vmem:[%s272 + $0x38] sm:$0xff]
    %v5257 = vld [vmem:[%s272 + $0x40] sm:$0xff]
    %v5258 = vld [vmem:[%s272 + $0x48] sm:$0xff]
    %v5259 = vld [vmem:[%s272 + $0x50] sm:$0xff]
    %v5260 = vld [vmem:[%s272 + $0x58] sm:$0xff]
    %v5261 = vld [vmem:[%s272 + $0x60] sm:$0xff]
    %v5262 = vld [vmem:[%s272 + $0x68] sm:$0xff]
    %v5263 = vld [vmem:[%s272 + $0x70] sm:$0xff]
    %v5264 = vld [vmem:[%s272 + $0x78] sm:$0xff]
    %v5265 = vld [vmem:[%s272 + $0x80] sm:$0xff]
    %v5266 = vld [vmem:[%s272 + $0x88] sm:$0xff]
    %v5267 = vld [vmem:[%s272 + $0x90] sm:$0xff]
    %v5268 = vld [vmem:[%s272 + $0x98] sm:$0xff]
    %v5269 = vld [vmem:[%s272 + $0xa0] sm:$0xff]
    %v5270 = vld [vmem:[%s272 + $0xa8] sm:$0xff]
    %v5271 = vld [vmem:[%s272 + $0xb0] sm:$0xff]
    %v5272 = vld [vmem:[%s272 + $0xb8] sm:$0xff]
    %v5273 = vld [vmem:[%s272 + $0xc0] sm:$0xff]
    %v5274 = vld [vmem:[%s272 + $0xc8] sm:$0xff]
    %v5275 = vld [vmem:[%s272 + $0xd0] sm:$0xff]
    %v5276 = vld [vmem:[%s272 + $0xd8] sm:$0xff]
    %v5277 = vld [vmem:[%s272 + $0xe0] sm:$0xff]
    %v5278 = vld [vmem:[%s272 + $0xe8] sm:$0xff]
    %v5279 = vld [vmem:[%s272 + $0xf0] sm:$0xff]
    %v5280 = vld [vmem:[%s272 + $0xf8] sm:$0xff]
    %v5281 = vld [vmem:[%s272 + $0x100] sm:$0xff]
    %v5282 = vld [vmem:[%s272 + $0x108] sm:$0xff]
    %v5283 = vld [vmem:[%s272 + $0x110] sm:$0xff]
    %v5284 = vld [vmem:[%s272 + $0x118] sm:$0xff]
    %v5285 = vld [vmem:[%s272 + $0x120] sm:$0xff]
    %v5286 = vld [vmem:[%s272 + $0x128] sm:$0xff]
    %v5287 = vld [vmem:[%s272 + $0x130] sm:$0xff]
    %v5288 = vld [vmem:[%s272 + $0x138] sm:$0xff]
    %v5289 = vld [vmem:[%s272 + $0x140] sm:$0xff]
    %v5290 = vld [vmem:[%s272 + $0x148] sm:$0xff]
    %v5291 = vld [vmem:[%s272 + $0x150] sm:$0xff]
    %v5292 = vld [vmem:[%s272 + $0x158] sm:$0xff]
    %v5293 = vld [vmem:[%s272 + $0x160] sm:$0xff]
    %v5294 = vld [vmem:[%s272 + $0x168] sm:$0xff]
    %v5295 = vld [vmem:[%s272 + $0x170] sm:$0xff]
    %v5296 = vld [vmem:[%s272 + $0x178] sm:$0xff]
    %v5297 = vld [vmem:[%s272 + $0x180] sm:$0xff]
    %v5298 = vld [vmem:[%s272 + $0x188] sm:$0xff]
    %v5299 = vld [vmem:[%s272 + $0x190] sm:$0xff]
    %v5300 = vld [vmem:[%s272 + $0x198] sm:$0xff]
    %v5301 = vld [vmem:[%s272 + $0x1a0] sm:$0xff]
    %v5302 = vld [vmem:[%s272 + $0x1a8] sm:$0xff]
    %v5303 = vld [vmem:[%s272 + $0x1b0] sm:$0xff]
    %v5304 = vld [vmem:[%s272 + $0x1b8] sm:$0xff]
    %v5305 = vld [vmem:[%s272 + $0x1c0] sm:$0xff]
    %v5306 = vld [vmem:[%s272 + $0x1c8] sm:$0xff]
    %v5307 = vld [vmem:[%s272 + $0x1d0] sm:$0xff]
    %v5308 = vld [vmem:[%s272 + $0x1d8] sm:$0xff]
    %v5309 = vld [vmem:[%s272 + $0x1e0] sm:$0xff]
    %v5310 = vld [vmem:[%s272 + $0x1e8] sm:$0xff]
    %v5311 = vld [vmem:[%s272 + $0x1f0] sm:$0xff]
    %v5312 = vld [vmem:[%s272 + $0x1f8] sm:$0xff]
    %v5313 = vld [vmem:[%s272 + $0x200] sm:$0xff]
    %v5314 = vld [vmem:[%s272 + $0x208] sm:$0xff]
    %v5315 = vld [vmem:[%s272 + $0x210] sm:$0xff]
    %v5316 = vld [vmem:[%s272 + $0x218] sm:$0xff]
    %v5317 = vld [vmem:[%s272 + $0x220] sm:$0xff]
    %v5318 = vld [vmem:[%s272 + $0x228] sm:$0xff]
    %v5319 = vld [vmem:[%s272 + $0x230] sm:$0xff]
    %v5320 = vld [vmem:[%s272 + $0x238] sm:$0xff]
    %v5321 = vld [vmem:[%s272 + $0x240] sm:$0xff]
    %v5322 = vld [vmem:[%s272 + $0x248] sm:$0xff]
    %v5323 = vld [vmem:[%s272 + $0x250] sm:$0xff]
    %v5324 = vld [vmem:[%s272 + $0x258] sm:$0xff]
    %v5325 = vld [vmem:[%s272 + $0x260] sm:$0xff]
    %v5326 = vld [vmem:[%s272 + $0x268] sm:$0xff]
    %v5327 = vld [vmem:[%s272 + $0x270] sm:$0xff]
    %v5328 = vld [vmem:[%s272 + $0x278] sm:$0xff]
    %v5329 = vld [vmem:[%s272 + $0x280] sm:$0xff]
    %v5330 = vld [vmem:[%s272 + $0x288] sm:$0xff]
    %v5331 = vld [vmem:[%s272 + $0x290] sm:$0xff]
    %v5332 = vld [vmem:[%s272 + $0x298] sm:$0xff]
    %v5333 = vld [vmem:[%s272 + $0x2a0] sm:$0xff]
    %v5334 = vld [vmem:[%s272 + $0x2a8] sm:$0xff]
    %v5335 = vld [vmem:[%s272 + $0x2b0] sm:$0xff]
    %v5336 = vld [vmem:[%s272 + $0x2b8] sm:$0xff]
    %v5337 = vld [vmem:[%s272 + $0x2c0] sm:$0xff]
    %v5338 = vld [vmem:[%s272 + $0x2c8] sm:$0xff]
    %v5339 = vld [vmem:[%s272 + $0x2d0] sm:$0xff]
    %v5340 = vld [vmem:[%s272 + $0x2d8] sm:$0xff]
    %v5341 = vld [vmem:[%s272 + $0x2e0] sm:$0xff]
    %v5342 = vld [vmem:[%s272 + $0x2e8] sm:$0xff]
    %v5343 = vld [vmem:[%s272 + $0x2f0] sm:$0xff]
    %v5344 = vld [vmem:[%s272 + $0x2f8] sm:$0xff]
    %v5345 = vld [vmem:[%s272 + $0x300] sm:$0xff]
    %v5346 = vld [vmem:[%s272 + $0x308] sm:$0xff]
    %v5347 = vld [vmem:[%s272 + $0x310] sm:$0xff]
    %v5348 = vld [vmem:[%s272 + $0x318] sm:$0xff]
    %v5349 = vld [vmem:[%s272 + $0x320] sm:$0xff]
    %v5350 = vld [vmem:[%s272 + $0x328] sm:$0xff]
    %v5351 = vld [vmem:[%s272 + $0x330] sm:$0xff]
    %v5352 = vld [vmem:[%s272 + $0x338] sm:$0xff]
    %v5353 = vld [vmem:[%s272 + $0x340] sm:$0xff]
    %v5354 = vld [vmem:[%s272 + $0x348] sm:$0xff]
    %v5355 = vld [vmem:[%s272 + $0x350] sm:$0xff]
    %v5356 = vld [vmem:[%s272 + $0x358] sm:$0xff]
    %v5357 = vld [vmem:[%s272 + $0x360] sm:$0xff]
    %v5358 = vld [vmem:[%s272 + $0x368] sm:$0xff]
    %v5359 = vld [vmem:[%s272 + $0x370] sm:$0xff]
    %v5360 = vld [vmem:[%s272 + $0x378] sm:$0xff]
    %v5361 = vld [vmem:[%s272 + $0x380] sm:$0xff]
    %v5362 = vld [vmem:[%s272 + $0x388] sm:$0xff]
    %v5363 = vld [vmem:[%s272 + $0x390] sm:$0xff]
    %v5364 = vld [vmem:[%s272 + $0x398] sm:$0xff]
    %v5365 = vld [vmem:[%s272 + $0x3a0] sm:$0xff]
    %v5366 = vld [vmem:[%s272 + $0x3a8] sm:$0xff]
    %v5367 = vld [vmem:[%s272 + $0x3b0] sm:$0xff]
    %v5368 = vld [vmem:[%s272 + $0x3b8] sm:$0xff]
    %v5369 = vld [vmem:[%s272 + $0x3c0] sm:$0xff]
    %v5370 = vld [vmem:[%s272 + $0x3c8] sm:$0xff]
    %v5371 = vld [vmem:[%s272 + $0x3d0] sm:$0xff]
    %v5372 = vld [vmem:[%s272 + $0x3d8] sm:$0xff]
    %v5373 = vld [vmem:[%s272 + $0x3e0] sm:$0xff]
    %v5374 = vld [vmem:[%s272 + $0x3e8] sm:$0xff]
    %v5375 = vld [vmem:[%s272 + $0x3f0] sm:$0xff]
    %v5376 = vld [vmem:[%s272 + $0x3f8] sm:$0xff]
    %v5377 = vld [vmem:[%s272 + $0x400] sm:$0xff]
    %v5378 = vld [vmem:[%s272 + $0x408] sm:$0xff]
    %v5379 = vld [vmem:[%s272 + $0x410] sm:$0xff]
    %v5380 = vld [vmem:[%s272 + $0x418] sm:$0xff]
    %v5381 = vld [vmem:[%s272 + $0x420] sm:$0xff]
    %v5382 = vld [vmem:[%s272 + $0x428] sm:$0xff]
    %v5383 = vld [vmem:[%s272 + $0x430] sm:$0xff]
    %v5384 = vld [vmem:[%s272 + $0x438] sm:$0xff]
    %v5385 = vld [vmem:[%s272 + $0x440] sm:$0xff]
    %v5386 = vld [vmem:[%s272 + $0x448] sm:$0xff]
    %v5387 = vld [vmem:[%s272 + $0x450] sm:$0xff]
    %v5388 = vld [vmem:[%s272 + $0x458] sm:$0xff]
    %v5389 = vld [vmem:[%s272 + $0x460] sm:$0xff]
    %v5390 = vld [vmem:[%s272 + $0x468] sm:$0xff]
    %v5391 = vld [vmem:[%s272 + $0x470] sm:$0xff]
    %v5392 = vld [vmem:[%s272 + $0x478] sm:$0xff]
    %v5393 = vunpack.c.l.s8.bf16 %v5249
    %v5394 = vunpack.c.l.s8.bf16 %v5250
    %v5395 = vunpack.c.l.s8.bf16 %v5251
    %v5396 = vunpack.c.l.s8.bf16 %v5252
    %v5397 = vunpack.c.l.s8.bf16 %v5253
    %v5398 = vunpack.c.l.s8.bf16 %v5254
    %v5399 = vunpack.c.h.s8.bf16 %v5249
    %v5400 = vunpack.c.h.s8.bf16 %v5250
    %v5401 = vunpack.c.h.s8.bf16 %v5251
    %v5402 = vunpack.c.h.s8.bf16 %v5252
    %v5403 = vunpack.c.h.s8.bf16 %v5253
    %v5404 = vunpack.c.h.s8.bf16 %v5254
    %v5405 = vunpack.c.l.s8.bf16 %v5255
    %v5406 = vunpack.c.l.s8.bf16 %v5256
    %v5407 = vunpack.c.l.s8.bf16 %v5257
    %v5408 = vunpack.c.l.s8.bf16 %v5258
    %v5409 = vunpack.c.l.s8.bf16 %v5259
    %v5410 = vunpack.c.l.s8.bf16 %v5260
    %v5411 = vunpack.c.h.s8.bf16 %v5255
    %v5412 = vunpack.c.h.s8.bf16 %v5256
    %v5413 = vunpack.c.h.s8.bf16 %v5257
    %v5414 = vunpack.c.h.s8.bf16 %v5258
    %v5415 = vunpack.c.h.s8.bf16 %v5259
    %v5416 = vunpack.c.h.s8.bf16 %v5260
    %v5417 = vunpack.c.l.s8.bf16 %v5261
    %v5418 = vunpack.c.l.s8.bf16 %v5262
    %v5419 = vunpack.c.l.s8.bf16 %v5263
    %v5420 = vunpack.c.l.s8.bf16 %v5264
    %v5421 = vunpack.c.l.s8.bf16 %v5265
    %v5422 = vunpack.c.l.s8.bf16 %v5266
    %v5423 = vunpack.c.h.s8.bf16 %v5261
    %v5424 = vunpack.c.h.s8.bf16 %v5262
    %v5425 = vunpack.c.h.s8.bf16 %v5263
    %v5426 = vunpack.c.h.s8.bf16 %v5264
    %v5427 = vunpack.c.h.s8.bf16 %v5265
    %v5428 = vunpack.c.h.s8.bf16 %v5266
    %v5429 = vunpack.c.l.s8.bf16 %v5267
    %v5430 = vunpack.c.l.s8.bf16 %v5268
    %v5431 = vunpack.c.l.s8.bf16 %v5269
    %v5432 = vunpack.c.l.s8.bf16 %v5270
    %v5433 = vunpack.c.l.s8.bf16 %v5271
    %v5434 = vunpack.c.l.s8.bf16 %v5272
    %v5435 = vunpack.c.h.s8.bf16 %v5267
    %v5436 = vunpack.c.h.s8.bf16 %v5268
    %v5437 = vunpack.c.h.s8.bf16 %v5269
    %v5438 = vunpack.c.h.s8.bf16 %v5270
    %v5439 = vunpack.c.h.s8.bf16 %v5271
    %v5440 = vunpack.c.h.s8.bf16 %v5272
    %v5441 = vunpack.c.l.s8.bf16 %v5273
    %v5442 = vunpack.c.l.s8.bf16 %v5274
    %v5443 = vunpack.c.l.s8.bf16 %v5275
    %v5444 = vunpack.c.l.s8.bf16 %v5276
    %v5445 = vunpack.c.l.s8.bf16 %v5277
    %v5446 = vunpack.c.l.s8.bf16 %v5278
    %v5447 = vunpack.c.h.s8.bf16 %v5273
    %v5448 = vunpack.c.h.s8.bf16 %v5274
    %v5449 = vunpack.c.h.s8.bf16 %v5275
    %v5450 = vunpack.c.h.s8.bf16 %v5276
    %v5451 = vunpack.c.h.s8.bf16 %v5277
    %v5452 = vunpack.c.h.s8.bf16 %v5278
    %v5453 = vunpack.c.l.s8.bf16 %v5279
    %v5454 = vunpack.c.l.s8.bf16 %v5280
    %v5455 = vunpack.c.l.s8.bf16 %v5281
    %v5456 = vunpack.c.l.s8.bf16 %v5282
    %v5457 = vunpack.c.l.s8.bf16 %v5283
    %v5458 = vunpack.c.l.s8.bf16 %v5284
    %v5459 = vunpack.c.h.s8.bf16 %v5279
    %v5460 = vunpack.c.h.s8.bf16 %v5280
    %v5461 = vunpack.c.h.s8.bf16 %v5281
    %v5462 = vunpack.c.h.s8.bf16 %v5282
    %v5463 = vunpack.c.h.s8.bf16 %v5283
    %v5464 = vunpack.c.h.s8.bf16 %v5284
    %v5465 = vunpack.c.l.s8.bf16 %v5285
    %v5466 = vunpack.c.l.s8.bf16 %v5286
    %v5467 = vunpack.c.l.s8.bf16 %v5287
    %v5468 = vunpack.c.l.s8.bf16 %v5288
    %v5469 = vunpack.c.l.s8.bf16 %v5289
    %v5470 = vunpack.c.l.s8.bf16 %v5290
    %v5471 = vunpack.c.h.s8.bf16 %v5285
    %v5472 = vunpack.c.h.s8.bf16 %v5286
    %v5473 = vunpack.c.h.s8.bf16 %v5287
    %v5474 = vunpack.c.h.s8.bf16 %v5288
    %v5475 = vunpack.c.h.s8.bf16 %v5289
    %v5476 = vunpack.c.h.s8.bf16 %v5290
    %v5477 = vunpack.c.l.s8.bf16 %v5291
    %v5478 = vunpack.c.l.s8.bf16 %v5292
    %v5479 = vunpack.c.l.s8.bf16 %v5293
    %v5480 = vunpack.c.l.s8.bf16 %v5294
    %v5481 = vunpack.c.l.s8.bf16 %v5295
    %v5482 = vunpack.c.l.s8.bf16 %v5296
    %v5483 = vunpack.c.h.s8.bf16 %v5291
    %v5484 = vunpack.c.h.s8.bf16 %v5292
    %v5485 = vunpack.c.h.s8.bf16 %v5293
    %v5486 = vunpack.c.h.s8.bf16 %v5294
    %v5487 = vunpack.c.h.s8.bf16 %v5295
    %v5488 = vunpack.c.h.s8.bf16 %v5296
    %v5489 = vunpack.c.l.s8.bf16 %v5297
    %v5490 = vunpack.c.l.s8.bf16 %v5298
    %v5491 = vunpack.c.l.s8.bf16 %v5299
    %v5492 = vunpack.c.l.s8.bf16 %v5300
    %v5493 = vunpack.c.l.s8.bf16 %v5301
    %v5494 = vunpack.c.l.s8.bf16 %v5302
    %v5495 = vunpack.c.h.s8.bf16 %v5297
    %v5496 = vunpack.c.h.s8.bf16 %v5298
    %v5497 = vunpack.c.h.s8.bf16 %v5299
    %v5498 = vunpack.c.h.s8.bf16 %v5300
    %v5499 = vunpack.c.h.s8.bf16 %v5301
    %v5500 = vunpack.c.h.s8.bf16 %v5302
    %v5501 = vunpack.c.l.s8.bf16 %v5303
    %v5502 = vunpack.c.l.s8.bf16 %v5304
    %v5503 = vunpack.c.l.s8.bf16 %v5305
    %v5504 = vunpack.c.l.s8.bf16 %v5306
    %v5505 = vunpack.c.l.s8.bf16 %v5307
    %v5506 = vunpack.c.l.s8.bf16 %v5308
    %v5507 = vunpack.c.h.s8.bf16 %v5303
    %v5508 = vunpack.c.h.s8.bf16 %v5304
    %v5509 = vunpack.c.h.s8.bf16 %v5305
    %v5510 = vunpack.c.h.s8.bf16 %v5306
    %v5511 = vunpack.c.h.s8.bf16 %v5307
    %v5512 = vunpack.c.h.s8.bf16 %v5308
    %v5513 = vunpack.c.l.s8.bf16 %v5309
    %v5514 = vunpack.c.l.s8.bf16 %v5310
    %v5515 = vunpack.c.l.s8.bf16 %v5311
    %v5516 = vunpack.c.l.s8.bf16 %v5312
    %v5517 = vunpack.c.l.s8.bf16 %v5313
    %v5518 = vunpack.c.l.s8.bf16 %v5314
    %v5519 = vunpack.c.h.s8.bf16 %v5309
    %v5520 = vunpack.c.h.s8.bf16 %v5310
    %v5521 = vunpack.c.h.s8.bf16 %v5311
    %v5522 = vunpack.c.h.s8.bf16 %v5312
    %v5523 = vunpack.c.h.s8.bf16 %v5313
    %v5524 = vunpack.c.h.s8.bf16 %v5314
    %v5525 = vunpack.c.l.s8.bf16 %v5315
    %v5526 = vunpack.c.l.s8.bf16 %v5316
    %v5527 = vunpack.c.l.s8.bf16 %v5317
    %v5528 = vunpack.c.l.s8.bf16 %v5318
    %v5529 = vunpack.c.l.s8.bf16 %v5319
    %v5530 = vunpack.c.l.s8.bf16 %v5320
    %v5531 = vunpack.c.h.s8.bf16 %v5315
    %v5532 = vunpack.c.h.s8.bf16 %v5316
    %v5533 = vunpack.c.h.s8.bf16 %v5317
    %v5534 = vunpack.c.h.s8.bf16 %v5318
    %v5535 = vunpack.c.h.s8.bf16 %v5319
    %v5536 = vunpack.c.h.s8.bf16 %v5320
    %v5537 = vunpack.c.l.s8.bf16 %v5321
    %v5538 = vunpack.c.l.s8.bf16 %v5322
    %v5539 = vunpack.c.l.s8.bf16 %v5323
    %v5540 = vunpack.c.l.s8.bf16 %v5324
    %v5541 = vunpack.c.l.s8.bf16 %v5325
    %v5542 = vunpack.c.l.s8.bf16 %v5326
    %v5543 = vunpack.c.h.s8.bf16 %v5321
    %v5544 = vunpack.c.h.s8.bf16 %v5322
    %v5545 = vunpack.c.h.s8.bf16 %v5323
    %v5546 = vunpack.c.h.s8.bf16 %v5324
    %v5547 = vunpack.c.h.s8.bf16 %v5325
    %v5548 = vunpack.c.h.s8.bf16 %v5326
    %v5549 = vunpack.c.l.s8.bf16 %v5327
    %v5550 = vunpack.c.l.s8.bf16 %v5328
    %v5551 = vunpack.c.l.s8.bf16 %v5329
    %v5552 = vunpack.c.l.s8.bf16 %v5330
    %v5553 = vunpack.c.l.s8.bf16 %v5331
    %v5554 = vunpack.c.l.s8.bf16 %v5332
    %v5555 = vunpack.c.h.s8.bf16 %v5327
    %v5556 = vunpack.c.h.s8.bf16 %v5328
    %v5557 = vunpack.c.h.s8.bf16 %v5329
    %v5558 = vunpack.c.h.s8.bf16 %v5330
    %v5559 = vunpack.c.h.s8.bf16 %v5331
    %v5560 = vunpack.c.h.s8.bf16 %v5332
    %v5561 = vunpack.c.l.s8.bf16 %v5333
    %v5562 = vunpack.c.l.s8.bf16 %v5334
    %v5563 = vunpack.c.l.s8.bf16 %v5335
    %v5564 = vunpack.c.l.s8.bf16 %v5336
    %v5565 = vunpack.c.l.s8.bf16 %v5337
    %v5566 = vunpack.c.l.s8.bf16 %v5338
    %v5567 = vunpack.c.h.s8.bf16 %v5333
    %v5568 = vunpack.c.h.s8.bf16 %v5334
    %v5569 = vunpack.c.h.s8.bf16 %v5335
    %v5570 = vunpack.c.h.s8.bf16 %v5336
    %v5571 = vunpack.c.h.s8.bf16 %v5337
    %v5572 = vunpack.c.h.s8.bf16 %v5338
    %v5573 = vunpack.c.l.s8.bf16 %v5339
    %v5574 = vunpack.c.l.s8.bf16 %v5340
    %v5575 = vunpack.c.l.s8.bf16 %v5341
    %v5576 = vunpack.c.l.s8.bf16 %v5342
    %v5577 = vunpack.c.l.s8.bf16 %v5343
    %v5578 = vunpack.c.l.s8.bf16 %v5344
    %v5579 = vunpack.c.h.s8.bf16 %v5339
    %v5580 = vunpack.c.h.s8.bf16 %v5340
    %v5581 = vunpack.c.h.s8.bf16 %v5341
    %v5582 = vunpack.c.h.s8.bf16 %v5342
    %v5583 = vunpack.c.h.s8.bf16 %v5343
    %v5584 = vunpack.c.h.s8.bf16 %v5344
    %v5585 = vunpack.c.l.s8.bf16 %v5345
    %v5586 = vunpack.c.l.s8.bf16 %v5346
    %v5587 = vunpack.c.l.s8.bf16 %v5347
    %v5588 = vunpack.c.l.s8.bf16 %v5348
    %v5589 = vunpack.c.l.s8.bf16 %v5349
    %v5590 = vunpack.c.l.s8.bf16 %v5350
    %v5591 = vunpack.c.h.s8.bf16 %v5345
    %v5592 = vunpack.c.h.s8.bf16 %v5346
    %v5593 = vunpack.c.h.s8.bf16 %v5347
    %v5594 = vunpack.c.h.s8.bf16 %v5348
    %v5595 = vunpack.c.h.s8.bf16 %v5349
    %v5596 = vunpack.c.h.s8.bf16 %v5350
    %v5597 = vunpack.c.l.s8.bf16 %v5351
    %v5598 = vunpack.c.l.s8.bf16 %v5352
    %v5599 = vunpack.c.l.s8.bf16 %v5353
    %v5600 = vunpack.c.l.s8.bf16 %v5354
    %v5601 = vunpack.c.l.s8.bf16 %v5355
    %v5602 = vunpack.c.l.s8.bf16 %v5356
    %v5603 = vunpack.c.h.s8.bf16 %v5351
    %v5604 = vunpack.c.h.s8.bf16 %v5352
    %v5605 = vunpack.c.h.s8.bf16 %v5353
    %v5606 = vunpack.c.h.s8.bf16 %v5354
    %v5607 = vunpack.c.h.s8.bf16 %v5355
    %v5608 = vunpack.c.h.s8.bf16 %v5356
    %v5609 = vunpack.c.l.s8.bf16 %v5357
    %v5610 = vunpack.c.l.s8.bf16 %v5358
    %v5611 = vunpack.c.l.s8.bf16 %v5359
    %v5612 = vunpack.c.l.s8.bf16 %v5360
    %v5613 = vunpack.c.l.s8.bf16 %v5361
    %v5614 = vunpack.c.l.s8.bf16 %v5362
    %v5615 = vunpack.c.h.s8.bf16 %v5357
    %v5616 = vunpack.c.h.s8.bf16 %v5358
    %v5617 = vunpack.c.h.s8.bf16 %v5359
    %v5618 = vunpack.c.h.s8.bf16 %v5360
    %v5619 = vunpack.c.h.s8.bf16 %v5361
    %v5620 = vunpack.c.h.s8.bf16 %v5362
    %v5621 = vunpack.c.l.s8.bf16 %v5363
    %v5622 = vunpack.c.l.s8.bf16 %v5364
    %v5623 = vunpack.c.l.s8.bf16 %v5365
    %v5624 = vunpack.c.l.s8.bf16 %v5366
    %v5625 = vunpack.c.l.s8.bf16 %v5367
    %v5626 = vunpack.c.l.s8.bf16 %v5368
    %v5627 = vunpack.c.h.s8.bf16 %v5363
    %v5628 = vunpack.c.h.s8.bf16 %v5364
    %v5629 = vunpack.c.h.s8.bf16 %v5365
    %v5630 = vunpack.c.h.s8.bf16 %v5366
    %v5631 = vunpack.c.h.s8.bf16 %v5367
    %v5632 = vunpack.c.h.s8.bf16 %v5368
    %v5633 = vunpack.c.l.s8.bf16 %v5369
    %v5634 = vunpack.c.l.s8.bf16 %v5370
    %v5635 = vunpack.c.l.s8.bf16 %v5371
    %v5636 = vunpack.c.l.s8.bf16 %v5372
    %v5637 = vunpack.c.l.s8.bf16 %v5373
    %v5638 = vunpack.c.l.s8.bf16 %v5374
    %v5639 = vunpack.c.h.s8.bf16 %v5369
    %v5640 = vunpack.c.h.s8.bf16 %v5370
    %v5641 = vunpack.c.h.s8.bf16 %v5371
    %v5642 = vunpack.c.h.s8.bf16 %v5372
    %v5643 = vunpack.c.h.s8.bf16 %v5373
    %v5644 = vunpack.c.h.s8.bf16 %v5374
    %v5645 = vunpack.c.l.s8.bf16 %v5375
    %v5646 = vunpack.c.l.s8.bf16 %v5376
    %v5647 = vunpack.c.l.s8.bf16 %v5377
    %v5648 = vunpack.c.l.s8.bf16 %v5378
    %v5649 = vunpack.c.l.s8.bf16 %v5379
    %v5650 = vunpack.c.l.s8.bf16 %v5380
    %v5651 = vunpack.c.h.s8.bf16 %v5375
    %v5652 = vunpack.c.h.s8.bf16 %v5376
    %v5653 = vunpack.c.h.s8.bf16 %v5377
    %v5654 = vunpack.c.h.s8.bf16 %v5378
    %v5655 = vunpack.c.h.s8.bf16 %v5379
    %v5656 = vunpack.c.h.s8.bf16 %v5380
    %v5657 = vunpack.c.l.s8.bf16 %v5381
    %v5658 = vunpack.c.l.s8.bf16 %v5382
    %v5659 = vunpack.c.l.s8.bf16 %v5383
    %v5660 = vunpack.c.l.s8.bf16 %v5384
    %v5661 = vunpack.c.l.s8.bf16 %v5385
    %v5662 = vunpack.c.l.s8.bf16 %v5386
    %v5663 = vunpack.c.h.s8.bf16 %v5381
    %v5664 = vunpack.c.h.s8.bf16 %v5382
    %v5665 = vunpack.c.h.s8.bf16 %v5383
    %v5666 = vunpack.c.h.s8.bf16 %v5384
    %v5667 = vunpack.c.h.s8.bf16 %v5385
    %v5668 = vunpack.c.h.s8.bf16 %v5386
    %v5669 = vunpack.c.l.s8.bf16 %v5387
    %v5670 = vunpack.c.l.s8.bf16 %v5388
    %v5671 = vunpack.c.l.s8.bf16 %v5389
    %v5672 = vunpack.c.l.s8.bf16 %v5390
    %v5673 = vunpack.c.l.s8.bf16 %v5391
    %v5674 = vunpack.c.l.s8.bf16 %v5392
    %v5675 = vunpack.c.h.s8.bf16 %v5387
    %v5676 = vunpack.c.h.s8.bf16 %v5388
    %v5677 = vunpack.c.h.s8.bf16 %v5389
    %v5678 = vunpack.c.h.s8.bf16 %v5390
    %v5679 = vunpack.c.h.s8.bf16 %v5391
    %v5680 = vunpack.c.h.s8.bf16 %v5392
    %5681 = vmatprep.subr.bf16.mxu0 %v5394
    %5682 = vmatpush1.bf16.msra.mxu0 %v5393
    %5683 = vmatprep.subr.bf16.mxu0 %v5400
    %5684 = vmatpush1.bf16.msra.mxu0 %v5399
    %5685 = vmatprep.subr.bf16.mxu0 %v5406
    %5686 = vmatpush1.bf16.msra.mxu0 %v5405
    %5687 = vmatprep.subr.bf16.mxu0 %v5412
    %5688 = vmatpush1.bf16.msra.mxu0 %v5411
    %5689 = vmatprep.subr.bf16.mxu0 %v5418
    %5690 = vmatpush1.bf16.msra.mxu0 %v5417
    %5691 = vmatprep.subr.bf16.mxu0 %v5424
    %5692 = vmatpush1.bf16.msra.mxu0 %v5423
    %5693 = vmatprep.subr.bf16.mxu0 %v5430
    %5694 = vmatpush1.bf16.msra.mxu0 %v5429
    %5695 = vmatprep.subr.bf16.mxu0 %v5436
    %5696 = vmatpush1.bf16.msra.mxu0 %v5435
    %5697 = vmatprep.subr.bf16.mxu0 %v5442
    %5698 = vmatpush1.bf16.msra.mxu0 %v5441
    %5699 = vmatprep.subr.bf16.mxu0 %v5448
    %5700 = vmatpush1.bf16.msra.mxu0 %v5447
    %5701 = vmatprep.subr.bf16.mxu0 %v5454
    %5702 = vmatpush1.bf16.msra.mxu0 %v5453
    %5703 = vmatprep.subr.bf16.mxu0 %v5460
    %5704 = vmatpush1.bf16.msra.mxu0 %v5459
    %5705 = vmatprep.subr.bf16.mxu0 %v5466
    %5706 = vmatpush1.bf16.msra.mxu0 %v5465
    %5707 = vmatprep.subr.bf16.mxu0 %v5472
    %5708 = vmatpush1.bf16.msra.mxu0 %v5471
    %5709 = vmatprep.subr.bf16.mxu0 %v5478
    %5710 = vmatpush1.bf16.msra.mxu0 %v5477
    %5711 = vmatprep.subr.bf16.mxu0 %v5484
    %5712 = vmatpush1.bf16.msra.mxu0 %v5483
    %5713 = vmatprep.mubr.bf16.mxu0 %v2915
    %5714 = vmatmul.mubr.bf16.gmra.mrb[0].mxu0 %v2914
    %v5715 = vpop.f32.mrb[0].mxu0
    %v5716 = vadd.f32 0.0, %v5715
    %v5717 = vpop.f32.mrb[0].mxu0
    %v5718 = vadd.f32 0.0, %v5717
    %v5719 = vpop.f32.mrb[0].mxu0
    %v5720 = vadd.f32 0.0, %v5719
    %v5721 = vpop.f32.mrb[0].mxu0
    %v5722 = vadd.f32 0.0, %v5721
    %5723 = vdwg.mxu0
    %5724 = vmatprep.subr.bf16.mxu0 %v5490
    %5725 = vmatpush1.bf16.msra.mxu0 %v5489
    %5726 = vmatprep.subr.bf16.mxu0 %v5496
    %5727 = vmatpush1.bf16.msra.mxu0 %v5495
    %5728 = vmatprep.subr.bf16.mxu0 %v5502
    %5729 = vmatpush1.bf16.msra.mxu0 %v5501
    %5730 = vmatprep.subr.bf16.mxu0 %v5508
    %5731 = vmatpush1.bf16.msra.mxu0 %v5507
    %5732 = vmatprep.subr.bf16.mxu0 %v5514
    %5733 = vmatpush1.bf16.msra.mxu0 %v5513
    %5734 = vmatprep.subr.bf16.mxu0 %v5520
    %5735 = vmatpush1.bf16.msra.mxu0 %v5519
    %5736 = vmatprep.subr.bf16.mxu0 %v5526
    %5737 = vmatpush1.bf16.msra.mxu0 %v5525
    %5738 = vmatprep.subr.bf16.mxu0 %v5532
    %5739 = vmatpush1.bf16.msra.mxu0 %v5531
    %5740 = vmatprep.subr.bf16.mxu0 %v5538
    %5741 = vmatpush1.bf16.msra.mxu0 %v5537
    %5742 = vmatprep.subr.bf16.mxu0 %v5544
    %5743 = vmatpush1.bf16.msra.mxu0 %v5543
    %5744 = vmatprep.subr.bf16.mxu0 %v5550
    %5745 = vmatpush1.bf16.msra.mxu0 %v5549
    %5746 = vmatprep.subr.bf16.mxu0 %v5556
    %5747 = vmatpush1.bf16.msra.mxu0 %v5555
    %5748 = vmatprep.subr.bf16.mxu0 %v5562
    %5749 = vmatpush1.bf16.msra.mxu0 %v5561
    %5750 = vmatprep.subr.bf16.mxu0 %v5568
    %5751 = vmatpush1.bf16.msra.mxu0 %v5567
    %5752 = vmatprep.subr.bf16.mxu0 %v5574
    %5753 = vmatpush1.bf16.msra.mxu0 %v5573
    %5754 = vmatprep.subr.bf16.mxu0 %v5580
    %5755 = vmatpush1.bf16.msra.mxu0 %v5579
    %5756 = vmatprep.mubr.bf16.mxu0 %v2917
    %5757 = vmatmul.mubr.bf16.gmra.mrb[0].mxu0 %v2916
    %v5758 = vpop.f32.mrb[0].mxu0
    %v5759 = vadd.f32 %v5716, %v5758
    %v5760 = vpop.f32.mrb[0].mxu0
    %v5761 = vadd.f32 %v5718, %v5760
    %v5762 = vpop.f32.mrb[0].mxu0
    %v5763 = vadd.f32 %v5720, %v5762
    %v5764 = vpop.f32.mrb[0].mxu0
    %v5765 = vadd.f32 %v5722, %v5764
    %5766 = vdwg.mxu0
    %5767 = vmatprep.subr.bf16.mxu0 %v5586
    %5768 = vmatpush1.bf16.msra.mxu0 %v5585
    %5769 = vmatprep.subr.bf16.mxu0 %v5592
    %5770 = vmatpush1.bf16.msra.mxu0 %v5591
    %5771 = vmatprep.subr.bf16.mxu0 %v5598
    %5772 = vmatpush1.bf16.msra.mxu0 %v5597
    %5773 = vmatprep.subr.bf16.mxu0 %v5604
    %5774 = vmatpush1.bf16.msra.mxu0 %v5603
    %5775 = vmatprep.subr.bf16.mxu0 %v5610
    %5776 = vmatpush1.bf16.msra.mxu0 %v5609
    %5777 = vmatprep.subr.bf16.mxu0 %v5616
    %5778 = vmatpush1.bf16.msra.mxu0 %v5615
    %5779 = vmatprep.subr.bf16.mxu0 %v5622
    %5780 = vmatpush1.bf16.msra.mxu0 %v5621
    %5781 = vmatprep.subr.bf16.mxu0 %v5628
    %5782 = vmatpush1.bf16.msra.mxu0 %v5627
    %5783 = vmatprep.subr.bf16.mxu0 %v5634
    %5784 = vmatpush1.bf16.msra.mxu0 %v5633
    %5785 = vmatprep.subr.bf16.mxu0 %v5640
    %5786 = vmatpush1.bf16.msra.mxu0 %v5639
    %5787 = vmatprep.subr.bf16.mxu0 %v5646
    %5788 = vmatpush1.bf16.msra.mxu0 %v5645
    %5789 = vmatprep.subr.bf16.mxu0 %v5652
    %5790 = vmatpush1.bf16.msra.mxu0 %v5651
    %5791 = vmatprep.subr.bf16.mxu0 %v5658
    %5792 = vmatpush1.bf16.msra.mxu0 %v5657
    %5793 = vmatprep.subr.bf16.mxu0 %v5664
    %5794 = vmatpush1.bf16.msra.mxu0 %v5663
    %5795 = vmatprep.subr.bf16.mxu0 %v5670
    %5796 = vmatpush1.bf16.msra.mxu0 %v5669
    %5797 = vmatprep.subr.bf16.mxu0 %v5676
    %5798 = vmatpush1.bf16.msra.mxu0 %v5675
    %5799 = vmatprep.mubr.bf16.mxu0 %v2919
    %5800 = vmatmul.mubr.bf16.gmra.mrb[0].mxu0 %v2918
    %v5801 = vpop.f32.mrb[0].mxu0
    %v5802 = vadd.f32 %v5759, %v5801
    %v5803 = vpop.f32.mrb[0].mxu0
    %v5804 = vadd.f32 %v5761, %v5803
    %v5805 = vpop.f32.mrb[0].mxu0
    %v5806 = vadd.f32 %v5763, %v5805
    %v5807 = vpop.f32.mrb[0].mxu0
    %v5808 = vadd.f32 %v5765, %v5807
    %5809 = vdwg.mxu0
    %5810 = vmatprep.subr.bf16.mxu0 %v5396
    %5811 = vmatpush1.bf16.msra.mxu0 %v5395
    %5812 = vmatprep.subr.bf16.mxu0 %v5402
    %5813 = vmatpush1.bf16.msra.mxu0 %v5401
    %5814 = vmatprep.subr.bf16.mxu0 %v5408
    %5815 = vmatpush1.bf16.msra.mxu0 %v5407
    %5816 = vmatprep.subr.bf16.mxu0 %v5414
    %5817 = vmatpush1.bf16.msra.mxu0 %v5413
    %5818 = vmatprep.subr.bf16.mxu0 %v5420
    %5819 = vmatpush1.bf16.msra.mxu0 %v5419
    %5820 = vmatprep.subr.bf16.mxu0 %v5426
    %5821 = vmatpush1.bf16.msra.mxu0 %v5425
    %5822 = vmatprep.subr.bf16.mxu0 %v5432
    %5823 = vmatpush1.bf16.msra.mxu0 %v5431
    %5824 = vmatprep.subr.bf16.mxu0 %v5438
    %5825 = vmatpush1.bf16.msra.mxu0 %v5437
    %5826 = vmatprep.subr.bf16.mxu0 %v5444
    %5827 = vmatpush1.bf16.msra.mxu0 %v5443
    %5828 = vmatprep.subr.bf16.mxu0 %v5450
    %5829 = vmatpush1.bf16.msra.mxu0 %v5449
    %5830 = vmatprep.subr.bf16.mxu0 %v5456
    %5831 = vmatpush1.bf16.msra.mxu0 %v5455
    %5832 = vmatprep.subr.bf16.mxu0 %v5462
    %5833 = vmatpush1.bf16.msra.mxu0 %v5461
    %5834 = vmatprep.subr.bf16.mxu0 %v5468
    %5835 = vmatpush1.bf16.msra.mxu0 %v5467
    %5836 = vmatprep.subr.bf16.mxu0 %v5474
    %5837 = vmatpush1.bf16.msra.mxu0 %v5473
    %5838 = vmatprep.subr.bf16.mxu0 %v5480
    %5839 = vmatpush1.bf16.msra.mxu0 %v5479
    %5840 = vmatprep.subr.bf16.mxu0 %v5486
    %5841 = vmatpush1.bf16.msra.mxu0 %v5485
    %5842 = vmatprep.mubr.bf16.mxu0 %v2915
    %5843 = vmatmul.mubr.bf16.gmra.mrb[0].mxu0 %v2914
    %v5844 = vpop.f32.mrb[0].mxu0
    %v5845 = vadd.f32 0.0, %v5844
    %v5846 = vpop.f32.mrb[0].mxu0
    %v5847 = vadd.f32 0.0, %v5846
    %v5848 = vpop.f32.mrb[0].mxu0
    %v5849 = vadd.f32 0.0, %v5848
    %v5850 = vpop.f32.mrb[0].mxu0
    %v5851 = vadd.f32 0.0, %v5850
    %5852 = vdwg.mxu0
    %5853 = vmatprep.subr.bf16.mxu0 %v5492
    %5854 = vmatpush1.bf16.msra.mxu0 %v5491
    %5855 = vmatprep.subr.bf16.mxu0 %v5498
    %5856 = vmatpush1.bf16.msra.mxu0 %v5497
    %5857 = vmatprep.subr.bf16.mxu0 %v5504
    %5858 = vmatpush1.bf16.msra.mxu0 %v5503
    %5859 = vmatprep.subr.bf16.mxu0 %v5510
    %5860 = vmatpush1.bf16.msra.mxu0 %v5509
    %5861 = vmatprep.subr.bf16.mxu0 %v5516
    %5862 = vmatpush1.bf16.msra.mxu0 %v5515
    %5863 = vmatprep.subr.bf16.mxu0 %v5522
    %5864 = vmatpush1.bf16.msra.mxu0 %v5521
    %5865 = vmatprep.subr.bf16.mxu0 %v5528
    %5866 = vmatpush1.bf16.msra.mxu0 %v5527
    %5867 = vmatprep.subr.bf16.mxu0 %v5534
    %5868 = vmatpush1.bf16.msra.mxu0 %v5533
    %5869 = vmatprep.subr.bf16.mxu0 %v5540
    %5870 = vmatpush1.bf16.msra.mxu0 %v5539
    %5871 = vmatprep.subr.bf16.mxu0 %v5546
    %5872 = vmatpush1.bf16.msra.mxu0 %v5545
    %5873 = vmatprep.subr.bf16.mxu0 %v5552
    %5874 = vmatpush1.bf16.msra.mxu0 %v5551
    %5875 = vmatprep.subr.bf16.mxu0 %v5558
    %5876 = vmatpush1.bf16.msra.mxu0 %v5557
    %5877 = vmatprep.subr.bf16.mxu0 %v5564
    %5878 = vmatpush1.bf16.msra.mxu0 %v5563
    %5879 = vmatprep.subr.bf16.mxu0 %v5570
    %5880 = vmatpush1.bf16.msra.mxu0 %v5569
    %5881 = vmatprep.subr.bf16.mxu0 %v5576
    %5882 = vmatpush1.bf16.msra.mxu0 %v5575
    %5883 = vmatprep.subr.bf16.mxu0 %v5582
    %5884 = vmatpush1.bf16.msra.mxu0 %v5581
    %5885 = vmatprep.mubr.bf16.mxu0 %v2917
    %5886 = vmatmul.mubr.bf16.gmra.mrb[0].mxu0 %v2916
    %v5887 = vpop.f32.mrb[0].mxu0
    %v5888 = vadd.f32 %v5845, %v5887
    %v5889 = vpop.f32.mrb[0].mxu0
    %v5890 = vadd.f32 %v5847, %v5889
    %v5891 = vpop.f32.mrb[0].mxu0
    %v5892 = vadd.f32 %v5849, %v5891
    %v5893 = vpop.f32.mrb[0].mxu0
    %v5894 = vadd.f32 %v5851, %v5893
    %5895 = vdwg.mxu0
    %5896 = vmatprep.subr.bf16.mxu0 %v5588
    %5897 = vmatpush1.bf16.msra.mxu0 %v5587
    %5898 = vmatprep.subr.bf16.mxu0 %v5594
    %5899 = vmatpush1.bf16.msra.mxu0 %v5593
    %5900 = vmatprep.subr.bf16.mxu0 %v5600
    %5901 = vmatpush1.bf16.msra.mxu0 %v5599
    %5902 = vmatprep.subr.bf16.mxu0 %v5606
    %5903 = vmatpush1.bf16.msra.mxu0 %v5605
    %5904 = vmatprep.subr.bf16.mxu0 %v5612
    %5905 = vmatpush1.bf16.msra.mxu0 %v5611
    %5906 = vmatprep.subr.bf16.mxu0 %v5618
    %5907 = vmatpush1.bf16.msra.mxu0 %v5617
    %5908 = vmatprep.subr.bf16.mxu0 %v5624
    %5909 = vmatpush1.bf16.msra.mxu0 %v5623
    %5910 = vmatprep.subr.bf16.mxu0 %v5630
    %5911 = vmatpush1.bf16.msra.mxu0 %v5629
    %5912 = vmatprep.subr.bf16.mxu0 %v5636
    %5913 = vmatpush1.bf16.msra.mxu0 %v5635
    %5914 = vmatprep.subr.bf16.mxu0 %v5642
    %5915 = vmatpush1.bf16.msra.mxu0 %v5641
    %5916 = vmatprep.subr.bf16.mxu0 %v5648
    %5917 = vmatpush1.bf16.msra.mxu0 %v5647
    %5918 = vmatprep.subr.bf16.mxu0 %v5654
    %5919 = vmatpush1.bf16.msra.mxu0 %v5653
    %5920 = vmatprep.subr.bf16.mxu0 %v5660
    %5921 = vmatpush1.bf16.msra.mxu0 %v5659
    %5922 = vmatprep.subr.bf16.mxu0 %v5666
    %5923 = vmatpush1.bf16.msra.mxu0 %v5665
    %5924 = vmatprep.subr.bf16.mxu0 %v5672
    %5925 = vmatpush1.bf16.msra.mxu0 %v5671
    %5926 = vmatprep.subr.bf16.mxu0 %v5678
    %5927 = vmatpush1.bf16.msra.mxu0 %v5677
    %5928 = vmatprep.mubr.bf16.mxu0 %v2919
    %5929 = vmatmul.mubr.bf16.gmra.mrb[0].mxu0 %v2918
    %v5930 = vpop.f32.mrb[0].mxu0
    %v5931 = vadd.f32 %v5888, %v5930
    %v5932 = vpop.f32.mrb[0].mxu0
    %v5933 = vadd.f32 %v5890, %v5932
    %v5934 = vpop.f32.mrb[0].mxu0
    %v5935 = vadd.f32 %v5892, %v5934
    %v5936 = vpop.f32.mrb[0].mxu0
    %v5937 = vadd.f32 %v5894, %v5936
    %5938 = vdwg.mxu0
    %5939 = vmatprep.subr.bf16.mxu0 %v5398
    %5940 = vmatpush1.bf16.msra.mxu0 %v5397
    %5941 = vmatprep.subr.bf16.mxu0 %v5404
    %5942 = vmatpush1.bf16.msra.mxu0 %v5403
    %5943 = vmatprep.subr.bf16.mxu0 %v5410
    %5944 = vmatpush1.bf16.msra.mxu0 %v5409
    %5945 = vmatprep.subr.bf16.mxu0 %v5416
    %5946 = vmatpush1.bf16.msra.mxu0 %v5415
    %5947 = vmatprep.subr.bf16.mxu0 %v5422
    %5948 = vmatpush1.bf16.msra.mxu0 %v5421
    %5949 = vmatprep.subr.bf16.mxu0 %v5428
    %5950 = vmatpush1.bf16.msra.mxu0 %v5427
    %5951 = vmatprep.subr.bf16.mxu0 %v5434
    %5952 = vmatpush1.bf16.msra.mxu0 %v5433
    %5953 = vmatprep.subr.bf16.mxu0 %v5440
    %5954 = vmatpush1.bf16.msra.mxu0 %v5439
    %5955 = vmatprep.subr.bf16.mxu0 %v5446
    %5956 = vmatpush1.bf16.msra.mxu0 %v5445
    %5957 = vmatprep.subr.bf16.mxu0 %v5452
    %5958 = vmatpush1.bf16.msra.mxu0 %v5451
    %5959 = vmatprep.subr.bf16.mxu0 %v5458
    %5960 = vmatpush1.bf16.msra.mxu0 %v5457
    %5961 = vmatprep.subr.bf16.mxu0 %v5464
    %5962 = vmatpush1.bf16.msra.mxu0 %v5463
    %5963 = vmatprep.subr.bf16.mxu0 %v5470
    %5964 = vmatpush1.bf16.msra.mxu0 %v5469
    %5965 = vmatprep.subr.bf16.mxu0 %v5476
    %5966 = vmatpush1.bf16.msra.mxu0 %v5475
    %5967 = vmatprep.subr.bf16.mxu0 %v5482
    %5968 = vmatpush1.bf16.msra.mxu0 %v5481
    %5969 = vmatprep.subr.bf16.mxu0 %v5488
    %5970 = vmatpush1.bf16.msra.mxu0 %v5487
    %5971 = vmatprep.mubr.bf16.mxu0 %v2915
    %5972 = vmatmul.mubr.bf16.gmra.mrb[0].mxu0 %v2914
    %v5973 = vpop.f32.mrb[0].mxu0
    %v5974 = vadd.f32 0.0, %v5973
    %v5975 = vpop.f32.mrb[0].mxu0
    %v5976 = vadd.f32 0.0, %v5975
    %v5977 = vpop.f32.mrb[0].mxu0
    %v5978 = vadd.f32 0.0, %v5977
    %v5979 = vpop.f32.mrb[0].mxu0
    %v5980 = vadd.f32 0.0, %v5979
    %5981 = vdwg.mxu0
    %5982 = vmatprep.subr.bf16.mxu0 %v5494
    %5983 = vmatpush1.bf16.msra.mxu0 %v5493
    %5984 = vmatprep.subr.bf16.mxu0 %v5500
    %5985 = vmatpush1.bf16.msra.mxu0 %v5499
    %5986 = vmatprep.subr.bf16.mxu0 %v5506
    %5987 = vmatpush1.bf16.msra.mxu0 %v5505
    %5988 = vmatprep.subr.bf16.mxu0 %v5512
    %5989 = vmatpush1.bf16.msra.mxu0 %v5511
    %5990 = vmatprep.subr.bf16.mxu0 %v5518
    %5991 = vmatpush1.bf16.msra.mxu0 %v5517
    %5992 = vmatprep.subr.bf16.mxu0 %v5524
    %5993 = vmatpush1.bf16.msra.mxu0 %v5523
    %5994 = vmatprep.subr.bf16.mxu0 %v5530
    %5995 = vmatpush1.bf16.msra.mxu0 %v5529
    %5996 = vmatprep.subr.bf16.mxu0 %v5536
    %5997 = vmatpush1.bf16.msra.mxu0 %v5535
    %5998 = vmatprep.subr.bf16.mxu0 %v5542
    %5999 = vmatpush1.bf16.msra.mxu0 %v5541
    %6000 = vmatprep.subr.bf16.mxu0 %v5548
    %6001 = vmatpush1.bf16.msra.mxu0 %v5547
    %6002 = vmatprep.subr.bf16.mxu0 %v5554
    %6003 = vmatpush1.bf16.msra.mxu0 %v5553
    %6004 = vmatprep.subr.bf16.mxu0 %v5560
    %6005 = vmatpush1.bf16.msra.mxu0 %v5559
    %6006 = vmatprep.subr.bf16.mxu0 %v5566
    %6007 = vmatpush1.bf16.msra.mxu0 %v5565
    %6008 = vmatprep.subr.bf16.mxu0 %v5572
    %6009 = vmatpush1.bf16.msra.mxu0 %v5571
    %6010 = vmatprep.subr.bf16.mxu0 %v5578
    %6011 = vmatpush1.bf16.msra.mxu0 %v5577
    %6012 = vmatprep.subr.bf16.mxu0 %v5584
    %6013 = vmatpush1.bf16.msra.mxu0 %v5583
    %6014 = vmatprep.mubr.bf16.mxu0 %v2917
    %6015 = vmatmul.mubr.bf16.gmra.mrb[0].mxu0 %v2916
    %v6016 = vpop.f32.mrb[0].mxu0
    %v6017 = vadd.f32 %v5974, %v6016
    %v6018 = vpop.f32.mrb[0].mxu0
    %v6019 = vadd.f32 %v5976, %v6018
    %v6020 = vpop.f32.mrb[0].mxu0
    %v6021 = vadd.f32 %v5978, %v6020
    %v6022 = vpop.f32.mrb[0].mxu0
    %v6023 = vadd.f32 %v5980, %v6022
    %6024 = vdwg.mxu0
    %6025 = vmatprep.subr.bf16.mxu0 %v5590
    %6026 = vmatpush1.bf16.msra.mxu0 %v5589
    %6027 = vmatprep.subr.bf16.mxu0 %v5596
    %6028 = vmatpush1.bf16.msra.mxu0 %v5595
    %6029 = vmatprep.subr.bf16.mxu0 %v5602
    %6030 = vmatpush1.bf16.msra.mxu0 %v5601
    %6031 = vmatprep.subr.bf16.mxu0 %v5608
    %6032 = vmatpush1.bf16.msra.mxu0 %v5607
    %6033 = vmatprep.subr.bf16.mxu0 %v5614
    %6034 = vmatpush1.bf16.msra.mxu0 %v5613
    %6035 = vmatprep.subr.bf16.mxu0 %v5620
    %6036 = vmatpush1.bf16.msra.mxu0 %v5619
    %6037 = vmatprep.subr.bf16.mxu0 %v5626
    %6038 = vmatpush1.bf16.msra.mxu0 %v5625
    %6039 = vmatprep.subr.bf16.mxu0 %v5632
    %6040 = vmatpush1.bf16.msra.mxu0 %v5631
    %6041 = vmatprep.subr.bf16.mxu0 %v5638
    %6042 = vmatpush1.bf16.msra.mxu0 %v5637
    %6043 = vmatprep.subr.bf16.mxu0 %v5644
    %6044 = vmatpush1.bf16.msra.mxu0 %v5643
    %6045 = vmatprep.subr.bf16.mxu0 %v5650
    %6046 = vmatpush1.bf16.msra.mxu0 %v5649
    %6047 = vmatprep.subr.bf16.mxu0 %v5656
    %6048 = vmatpush1.bf16.msra.mxu0 %v5655
    %6049 = vmatprep.subr.bf16.mxu0 %v5662
    %6050 = vmatpush1.bf16.msra.mxu0 %v5661
    %6051 = vmatprep.subr.bf16.mxu0 %v5668
    %6052 = vmatpush1.bf16.msra.mxu0 %v5667
    %6053 = vmatprep.subr.bf16.mxu0 %v5674
    %6054 = vmatpush1.bf16.msra.mxu0 %v5673
    %6055 = vmatprep.subr.bf16.mxu0 %v5680
    %6056 = vmatpush1.bf16.msra.mxu0 %v5679
    %6057 = vmatprep.mubr.bf16.mxu0 %v2919
    %6058 = vmatmul.mubr.bf16.gmra.mrb[0].mxu0 %v2918
    %v6059 = vpop.f32.mrb[0].mxu0
    %v6060 = vadd.f32 %v6017, %v6059
    %v6061 = vpop.f32.mrb[0].mxu0
    %v6062 = vadd.f32 %v6019, %v6061
    %v6063 = vpop.f32.mrb[0].mxu0
    %v6064 = vadd.f32 %v6021, %v6063
    %v6065 = vpop.f32.mrb[0].mxu0
    %v6066 = vadd.f32 %v6023, %v6065
    %6067 = vdwg.mxu0
    %v6068 = vlaneseq
    %v6069 = vshrl.u32 %v6068, 7
    %v6070 = vsub.s32 2, %v6069
    %v6071 = vrot.slane %v313, %v6070
    %v6072 = vlaneseq
    %v6073 = vshrl.u32 %v6072, 7
    %v6074 = vsub.s32 2, %v6073
    %v6075 = vrot.slane %v314, %v6074
    %v6076 = vlaneseq
    %v6077 = vshrl.u32 %v6076, 7
    %v6078 = vsub.s32 2, %v6077
    %v6079 = vrot.slane %v315, %v6078
    %v6080 = vlaneseq
    %v6081 = vshrl.u32 %v6080, 7
    %v6082 = vsub.s32 2, %v6081
    %v6083 = vrot.slane %v316, %v6082
    %v6084 = vlaneseq
    %v6085 = vshrl.u32 %v6084, 7
    %v6086 = vsub.s32 2, %v6085
    %v6087 = vrot.slane %v317, %v6086
    %v6088 = vlaneseq
    %v6089 = vshrl.u32 %v6088, 7
    %v6090 = vsub.s32 2, %v6089
    %v6091 = vrot.slane %v318, %v6090
    %v6092 = vmul.f32 %v5802, %v6071
    %v6093 = vmul.f32 %v5804, %v6075
    %v6094 = vmul.f32 %v5931, %v6079
    %v6095 = vmul.f32 %v5933, %v6083
    %v6096 = vmul.f32 %v6060, %v6087
    %v6097 = vmul.f32 %v6062, %v6091
    %v6098 = vmul.f32 %v5806, %v6071
    %v6099 = vmul.f32 %v5808, %v6075
    %v6100 = vmul.f32 %v5935, %v6079
    %v6101 = vmul.f32 %v5937, %v6083
    %v6102 = vmul.f32 %v6064, %v6087
    %v6103 = vmul.f32 %v6066, %v6091
    %v6104 = vlaneseq
    %v6105 = vshrl.u32 %v6104, 7
    %v6106 = vsub.s32 2, %v6105
    %v6107 = vrot.slane %v319, %v6106
    %v6108 = vlaneseq
    %v6109 = vshrl.u32 %v6108, 7
    %v6110 = vsub.s32 2, %v6109
    %v6111 = vrot.slane %v320, %v6110
    %v6112 = vlaneseq
    %v6113 = vshrl.u32 %v6112, 7
    %v6114 = vsub.s32 2, %v6113
    %v6115 = vrot.slane %v321, %v6114
    %v6116 = vlaneseq
    %v6117 = vshrl.u32 %v6116, 7
    %v6118 = vsub.s32 2, %v6117
    %v6119 = vrot.slane %v322, %v6118
    %v6120 = vlaneseq
    %v6121 = vshrl.u32 %v6120, 7
    %v6122 = vsub.s32 2, %v6121
    %v6123 = vrot.slane %v323, %v6122
    %v6124 = vlaneseq
    %v6125 = vshrl.u32 %v6124, 7
    %v6126 = vsub.s32 2, %v6125
    %v6127 = vrot.slane %v324, %v6126
    %v6128 = vadd.f32 %v6092, %v6107
    %v6129 = vadd.f32 %v6093, %v6111
    %v6130 = vadd.f32 %v6094, %v6115
    %v6131 = vadd.f32 %v6095, %v6119
    %v6132 = vadd.f32 %v6096, %v6123
    %v6133 = vadd.f32 %v6097, %v6127
    %v6134 = vadd.f32 %v6098, %v6107
    %v6135 = vadd.f32 %v6099, %v6111
    %v6136 = vadd.f32 %v6100, %v6115
    %v6137 = vadd.f32 %v6101, %v6119
    %v6138 = vadd.f32 %v6102, %v6123
    %v6139 = vadd.f32 %v6103, %v6127
    %v6146 = vcombine.low %v4348, %v4349
    %v6147 = vcombine.low %v4350, %v4351
    %v6148 = vcombine.low %v4352, %v4353
    %v6150 = vunpack.c.l.s4 1966171168
    %v6151 = vunpack.c.0.s8 %v6150
    %v6152 = vlaneseq
    %v6153 = vshrl.u32 %v6152, 7
    %v6154 = vsub.s32 %v6151, %v6153
    %v6155 = vrot.slane %v6146, %v6154
    %v6157 = vunpack.c.l.s4 1966171168
    %v6158 = vunpack.c.0.s8 %v6157
    %v6159 = vlaneseq
    %v6160 = vshrl.u32 %v6159, 7
    %v6161 = vsub.s32 %v6158, %v6160
    %v6162 = vrot.slane %v6147, %v6161
    %v6164 = vunpack.c.l.s4 1966171168
    %v6165 = vunpack.c.0.s8 %v6164
    %v6166 = vlaneseq
    %v6167 = vshrl.u32 %v6166, 7
    %v6168 = vsub.s32 %v6165, %v6167
    %v6169 = vrot.slane %v6148, %v6168
    %v6170 = vcombine.low %v6155, %v6162
    %v6171 = vcombine.high %v6155, %v6162
    %v6172 = vcombine.high %v6169, %v6169
    %v6174 = vunpack.c.l.s4 1966171168
    %v6175 = vunpack.c.0.s8 %v6174
    %v6176 = vlaneseq
    %v6177 = vshrl.u32 %v6176, 7
    %v6178 = vsub.s32 %v6175, %v6177
    %v6179 = vrot.slane %v6170, %v6178
    %v6181 = vunpack.c.l.s4 1966171168
    %v6182 = vunpack.c.0.s8 %v6181
    %v6183 = vlaneseq
    %v6184 = vshrl.u32 %v6183, 7
    %v6185 = vsub.s32 %v6182, %v6184
    %v6186 = vrot.slane %v6171, %v6185
    %v6188 = vunpack.c.l.s4 1966171168
    %v6189 = vunpack.c.0.s8 %v6188
    %v6190 = vlaneseq
    %v6191 = vshrl.u32 %v6190, 7
    %v6192 = vsub.s32 %v6189, %v6191
    %v6193 = vrot.slane %v6169, %v6192
    %v6195 = vunpack.c.l.s4 1966171168
    %v6196 = vunpack.c.0.s8 %v6195
    %v6197 = vlaneseq
    %v6198 = vshrl.u32 %v6197, 7
    %v6199 = vsub.s32 %v6196, %v6198
    %v6200 = vrot.slane %v6172, %v6199
    %v6201 = vcombine.low %v6179, %v6193
    %v6202 = vcombine.low %v6186, %v6200
    %v6203 = vlaneseq
    %v6204 = vshrl.u32 %v6203, 7
    %v6205 = vsub.s32 0, %v6204
    %v6206 = vrot.slane %v6201, %v6205
    %v6207 = vlaneseq
    %v6208 = vshrl.u32 %v6207, 7
    %v6209 = vsub.s32 1, %v6208
    %v6210 = vrot.slane %v6201, %v6209
    %v6211 = vlaneseq
    %v6212 = vshrl.u32 %v6211, 7
    %v6213 = vsub.s32 2, %v6212
    %v6214 = vrot.slane %v6201, %v6213
    %v6215 = vlaneseq
    %v6216 = vshrl.u32 %v6215, 7
    %v6217 = vsub.s32 3, %v6216
    %v6218 = vrot.slane %v6201, %v6217
    %v6219 = vlaneseq
    %v6220 = vshrl.u32 %v6219, 7
    %v6221 = vsub.s32 4, %v6220
    %v6222 = vrot.slane %v6201, %v6221
    %v6223 = vlaneseq
    %v6224 = vshrl.u32 %v6223, 7
    %v6225 = vsub.s32 5, %v6224
    %v6226 = vrot.slane %v6201, %v6225
    %v6227 = vlaneseq
    %v6228 = vshrl.u32 %v6227, 7
    %v6229 = vsub.s32 0, %v6228
    %v6230 = vrot.slane %v6202, %v6229
    %v6231 = vlaneseq
    %v6232 = vshrl.u32 %v6231, 7
    %v6233 = vsub.s32 1, %v6232
    %v6234 = vrot.slane %v6202, %v6233
    %v6235 = vlaneseq
    %v6236 = vshrl.u32 %v6235, 7
    %v6237 = vsub.s32 2, %v6236
    %v6238 = vrot.slane %v6202, %v6237
    %v6239 = vlaneseq
    %v6240 = vshrl.u32 %v6239, 7
    %v6241 = vsub.s32 3, %v6240
    %v6242 = vrot.slane %v6202, %v6241
    %v6243 = vlaneseq
    %v6244 = vshrl.u32 %v6243, 7
    %v6245 = vsub.s32 4, %v6244
    %v6246 = vrot.slane %v6202, %v6245
    %v6247 = vlaneseq
    %v6248 = vshrl.u32 %v6247, 7
    %v6249 = vsub.s32 5, %v6248
    %v6250 = vrot.slane %v6202, %v6249
    %v6263 = vpack.c.bf16 %v6206, %v6206
    %v6264 = vpack.c.bf16 %v6210, %v6210
    %v6265 = vpack.c.bf16 %v6214, %v6214
    %v6266 = vpack.c.bf16 %v6218, %v6218
    %v6267 = vpack.c.bf16 %v6222, %v6222
    %v6268 = vpack.c.bf16 %v6226, %v6226
    %v6269 = vpack.c.bf16 %v6230, %v6230
    %v6270 = vpack.c.bf16 %v6234, %v6234
    %v6271 = vpack.c.bf16 %v6238, %v6238
    %v6272 = vpack.c.bf16 %v6242, %v6242
    %v6273 = vpack.c.bf16 %v6246, %v6246
    %v6274 = vpack.c.bf16 %v6250, %v6250
    %v6275 = vpack.c.bf16 %v5235, %v5235
    %v6276 = vpack.c.bf16 %v5236, %v5236
    %v6277 = vpack.c.bf16 %v5237, %v5237
    %v6278 = vpack.c.bf16 %v5238, %v5238
    %v6279 = vpack.c.bf16 %v5239, %v5239
    %v6280 = vpack.c.bf16 %v5240, %v5240
    %v6281 = vpack.c.bf16 %v5241, %v5241
    %v6282 = vpack.c.bf16 %v5242, %v5242
    %v6283 = vpack.c.bf16 %v5243, %v5243
    %v6284 = vpack.c.bf16 %v5244, %v5244
    %v6285 = vpack.c.bf16 %v5245, %v5245
    %v6286 = vpack.c.bf16 %v5246, %v5246
    %v6287 = vpack.c.bf16 %v6128, %v6128
    %v6288 = vpack.c.bf16 %v6129, %v6129
    %v6289 = vpack.c.bf16 %v6130, %v6130
    %v6290 = vpack.c.bf16 %v6131, %v6131
    %v6291 = vpack.c.bf16 %v6132, %v6132
    %v6292 = vpack.c.bf16 %v6133, %v6133
    %v6293 = vpack.c.bf16 %v6134, %v6134
    %v6294 = vpack.c.bf16 %v6135, %v6135
    %v6295 = vpack.c.bf16 %v6136, %v6136
    %v6296 = vpack.c.bf16 %v6137, %v6137
    %v6297 = vpack.c.bf16 %v6138, %v6138
    %v6298 = vpack.c.bf16 %v6139, %v6139
    %6299 = vmatprep.subr.bf16.mxu0 %v6276
    %6300 = vmatpush1.bf16.xpose.msra.mxu0 %v6275
    %6301 = vmatprep.subr.bf16.mxu0 0
    %6302 = vmatpush1.bf16.xpose.msra.mxu0 0
    %6303 = vmatprep.subr.bf16.mxu0 0
    %6304 = vmatpush1.bf16.xpose.msra.mxu0 0
    %6305 = vmatprep.subr.bf16.mxu0 0
    %6306 = vmatpush1.bf16.xpose.msra.mxu0 0
    %6307 = vmatprep.subr.bf16.mxu0 0
    %6308 = vmatpush1.bf16.xpose.msra.mxu0 0
    %6309 = vmatprep.subr.bf16.mxu0 0
    %6310 = vmatpush1.bf16.xpose.msra.mxu0 0
    %6311 = vmatprep.subr.bf16.mxu0 0
    %6312 = vmatpush1.bf16.xpose.msra.mxu0 0
    %6313 = vmatprep.subr.bf16.mxu0 0
    %6314 = vmatpush1.bf16.xpose.msra.mxu0 0
    %6315 = vmatprep.subr.bf16.mxu0 0
    %6316 = vmatpush1.bf16.xpose.msra.mxu0 0
    %6317 = vmatprep.subr.bf16.mxu0 0
    %6318 = vmatpush1.bf16.xpose.msra.mxu0 0
    %6319 = vmatprep.subr.bf16.mxu0 0
    %6320 = vmatpush1.bf16.xpose.msra.mxu0 0
    %6321 = vmatprep.subr.bf16.mxu0 0
    %6322 = vmatpush1.bf16.xpose.msra.mxu0 0
    %6323 = vmatprep.subr.bf16.mxu0 0
    %6324 = vmatpush1.bf16.xpose.msra.mxu0 0
    %6325 = vmatprep.subr.bf16.mxu0 0
    %6326 = vmatpush1.bf16.xpose.msra.mxu0 0
    %6327 = vmatprep.subr.bf16.mxu0 0
    %6328 = vmatpush1.bf16.xpose.msra.mxu0 0
    %6329 = vmatprep.subr.bf16.mxu0 0
    %6330 = vmatpush1.bf16.xpose.msra.mxu0 0
    %6331 = vmatprep.mubr.bf16.mxu0 %v6264
    %6332 = vmatmul.mubr.bf16.gmra.mrb[0].mxu0 %v6263
    %v6333 = vpop.f32.mrb[0].mxu0
    %v6334 = vadd.f32 0.0, %v6333
    %v6335 = vpop.f32.mrb[0].mxu0
    %v6336 = vpop.f32.mrb[0].mxu0
    %v6337 = vpop.f32.mrb[0].mxu0
    %6338 = vdwg.mxu0
    %6339 = vmatprep.subr.bf16.mxu0 %v6278
    %6340 = vmatpush1.bf16.xpose.msra.mxu0 %v6277
    %6341 = vmatprep.subr.bf16.mxu0 0
    %6342 = vmatpush1.bf16.xpose.msra.mxu0 0
    %6343 = vmatprep.subr.bf16.mxu0 0
    %6344 = vmatpush1.bf16.xpose.msra.mxu0 0
    %6345 = vmatprep.subr.bf16.mxu0 0
    %6346 = vmatpush1.bf16.xpose.msra.mxu0 0
    %6347 = vmatprep.subr.bf16.mxu0 0
    %6348 = vmatpush1.bf16.xpose.msra.mxu0 0
    %6349 = vmatprep.subr.bf16.mxu0 0
    %6350 = vmatpush1.bf16.xpose.msra.mxu0 0
    %6351 = vmatprep.subr.bf16.mxu0 0
    %6352 = vmatpush1.bf16.xpose.msra.mxu0 0
    %6353 = vmatprep.subr.bf16.mxu0 0
    %6354 = vmatpush1.bf16.xpose.msra.mxu0 0
    %6355 = vmatprep.subr.bf16.mxu0 0
    %6356 = vmatpush1.bf16.xpose.msra.mxu0 0
    %6357 = vmatprep.subr.bf16.mxu0 0
    %6358 = vmatpush1.bf16.xpose.msra.mxu0 0
    %6359 = vmatprep.subr.bf16.mxu0 0
    %6360 = vmatpush1.bf16.xpose.msra.mxu0 0
    %6361 = vmatprep.subr.bf16.mxu0 0
    %6362 = vmatpush1.bf16.xpose.msra.mxu0 0
    %6363 = vmatprep.subr.bf16.mxu0 0
    %6364 = vmatpush1.bf16.xpose.msra.mxu0 0
    %6365 = vmatprep.subr.bf16.mxu0 0
    %6366 = vmatpush1.bf16.xpose.msra.mxu0 0
    %6367 = vmatprep.subr.bf16.mxu0 0
    %6368 = vmatpush1.bf16.xpose.msra.mxu0 0
    %6369 = vmatprep.subr.bf16.mxu0 0
    %6370 = vmatpush1.bf16.xpose.msra.mxu0 0
    %6371 = vmatprep.mubr.bf16.mxu0 %v6266
    %6372 = vmatmul.mubr.bf16.gmra.mrb[0].mxu0 %v6265
    %v6373 = vpop.f32.mrb[0].mxu0
    %v6374 = vadd.f32 %v6334, %v6373
    %v6375 = vpop.f32.mrb[0].mxu0
    %v6376 = vpop.f32.mrb[0].mxu0
    %v6377 = vpop.f32.mrb[0].mxu0
    %6378 = vdwg.mxu0
    %6379 = vmatprep.subr.bf16.mxu0 %v6280
    %6380 = vmatpush1.bf16.xpose.msra.mxu0 %v6279
    %6381 = vmatprep.subr.bf16.mxu0 0
    %6382 = vmatpush1.bf16.xpose.msra.mxu0 0
    %6383 = vmatprep.subr.bf16.mxu0 0
    %6384 = vmatpush1.bf16.xpose.msra.mxu0 0
    %6385 = vmatprep.subr.bf16.mxu0 0
    %6386 = vmatpush1.bf16.xpose.msra.mxu0 0
    %6387 = vmatprep.subr.bf16.mxu0 0
    %6388 = vmatpush1.bf16.xpose.msra.mxu0 0
    %6389 = vmatprep.subr.bf16.mxu0 0
    %6390 = vmatpush1.bf16.xpose.msra.mxu0 0
    %6391 = vmatprep.subr.bf16.mxu0 0
    %6392 = vmatpush1.bf16.xpose.msra.mxu0 0
    %6393 = vmatprep.subr.bf16.mxu0 0
    %6394 = vmatpush1.bf16.xpose.msra.mxu0 0
    %6395 = vmatprep.subr.bf16.mxu0 0
    %6396 = vmatpush1.bf16.xpose.msra.mxu0 0
    %6397 = vmatprep.subr.bf16.mxu0 0
    %6398 = vmatpush1.bf16.xpose.msra.mxu0 0
    %6399 = vmatprep.subr.bf16.mxu0 0
    %6400 = vmatpush1.bf16.xpose.msra.mxu0 0
    %6401 = vmatprep.subr.bf16.mxu0 0
    %6402 = vmatpush1.bf16.xpose.msra.mxu0 0
    %6403 = vmatprep.subr.bf16.mxu0 0
    %6404 = vmatpush1.bf16.xpose.msra.mxu0 0
    %6405 = vmatprep.subr.bf16.mxu0 0
    %6406 = vmatpush1.bf16.xpose.msra.mxu0 0
    %6407 = vmatprep.subr.bf16.mxu0 0
    %6408 = vmatpush1.bf16.xpose.msra.mxu0 0
    %6409 = vmatprep.subr.bf16.mxu0 0
    %6410 = vmatpush1.bf16.xpose.msra.mxu0 0
    %6411 = vmatprep.mubr.bf16.mxu0 %v6268
    %6412 = vmatmul.mubr.bf16.gmra.mrb[0].mxu0 %v6267
    %v6413 = vpop.f32.mrb[0].mxu0
    %v6414 = vadd.f32 %v6374, %v6413
    %v6415 = vpop.f32.mrb[0].mxu0
    %v6416 = vpop.f32.mrb[0].mxu0
    %v6417 = vpop.f32.mrb[0].mxu0
    %6418 = vdwg.mxu0
    %6419 = vmatprep.subr.bf16.mxu0 %v6282
    %6420 = vmatpush1.bf16.xpose.msra.mxu0 %v6281
    %6421 = vmatprep.subr.bf16.mxu0 0
    %6422 = vmatpush1.bf16.xpose.msra.mxu0 0
    %6423 = vmatprep.subr.bf16.mxu0 0
    %6424 = vmatpush1.bf16.xpose.msra.mxu0 0
    %6425 = vmatprep.subr.bf16.mxu0 0
    %6426 = vmatpush1.bf16.xpose.msra.mxu0 0
    %6427 = vmatprep.subr.bf16.mxu0 0
    %6428 = vmatpush1.bf16.xpose.msra.mxu0 0
    %6429 = vmatprep.subr.bf16.mxu0 0
    %6430 = vmatpush1.bf16.xpose.msra.mxu0 0
    %6431 = vmatprep.subr.bf16.mxu0 0
    %6432 = vmatpush1.bf16.xpose.msra.mxu0 0
    %6433 = vmatprep.subr.bf16.mxu0 0
    %6434 = vmatpush1.bf16.xpose.msra.mxu0 0
    %6435 = vmatprep.subr.bf16.mxu0 0
    %6436 = vmatpush1.bf16.xpose.msra.mxu0 0
    %6437 = vmatprep.subr.bf16.mxu0 0
    %6438 = vmatpush1.bf16.xpose.msra.mxu0 0
    %6439 = vmatprep.subr.bf16.mxu0 0
    %6440 = vmatpush1.bf16.xpose.msra.mxu0 0
    %6441 = vmatprep.subr.bf16.mxu0 0
    %6442 = vmatpush1.bf16.xpose.msra.mxu0 0
    %6443 = vmatprep.subr.bf16.mxu0 0
    %6444 = vmatpush1.bf16.xpose.msra.mxu0 0
    %6445 = vmatprep.subr.bf16.mxu0 0
    %6446 = vmatpush1.bf16.xpose.msra.mxu0 0
    %6447 = vmatprep.subr.bf16.mxu0 0
    %6448 = vmatpush1.bf16.xpose.msra.mxu0 0
    %6449 = vmatprep.subr.bf16.mxu0 0
    %6450 = vmatpush1.bf16.xpose.msra.mxu0 0
    %6451 = vmatprep.mubr.bf16.mxu0 %v6270
    %6452 = vmatmul.mubr.bf16.gmra.mrb[0].mxu0 %v6269
    %v6453 = vpop.f32.mrb[0].mxu0
    %v6454 = vadd.f32 0.0, %v6453
    %v6455 = vpop.f32.mrb[0].mxu0
    %v6456 = vpop.f32.mrb[0].mxu0
    %v6457 = vpop.f32.mrb[0].mxu0
    %6458 = vdwg.mxu0
    %6459 = vmatprep.subr.bf16.mxu0 %v6284
    %6460 = vmatpush1.bf16.xpose.msra.mxu0 %v6283
    %6461 = vmatprep.subr.bf16.mxu0 0
    %6462 = vmatpush1.bf16.xpose.msra.mxu0 0
    %6463 = vmatprep.subr.bf16.mxu0 0
    %6464 = vmatpush1.bf16.xpose.msra.mxu0 0
    %6465 = vmatprep.subr.bf16.mxu0 0
    %6466 = vmatpush1.bf16.xpose.msra.mxu0 0
    %6467 = vmatprep.subr.bf16.mxu0 0
    %6468 = vmatpush1.bf16.xpose.msra.mxu0 0
    %6469 = vmatprep.subr.bf16.mxu0 0
    %6470 = vmatpush1.bf16.xpose.msra.mxu0 0
    %6471 = vmatprep.subr.bf16.mxu0 0
    %6472 = vmatpush1.bf16.xpose.msra.mxu0 0
    %6473 = vmatprep.subr.bf16.mxu0 0
    %6474 = vmatpush1.bf16.xpose.msra.mxu0 0
    %6475 = vmatprep.subr.bf16.mxu0 0
    %6476 = vmatpush1.bf16.xpose.msra.mxu0 0
    %6477 = vmatprep.subr.bf16.mxu0 0
    %6478 = vmatpush1.bf16.xpose.msra.mxu0 0
    %6479 = vmatprep.subr.bf16.mxu0 0
    %6480 = vmatpush1.bf16.xpose.msra.mxu0 0
    %6481 = vmatprep.subr.bf16.mxu0 0
    %6482 = vmatpush1.bf16.xpose.msra.mxu0 0
    %6483 = vmatprep.subr.bf16.mxu0 0
    %6484 = vmatpush1.bf16.xpose.msra.mxu0 0
    %6485 = vmatprep.subr.bf16.mxu0 0
    %6486 = vmatpush1.bf16.xpose.msra.mxu0 0
    %6487 = vmatprep.subr.bf16.mxu0 0
    %6488 = vmatpush1.bf16.xpose.msra.mxu0 0
    %6489 = vmatprep.subr.bf16.mxu0 0
    %6490 = vmatpush1.bf16.xpose.msra.mxu0 0
    %6491 = vmatprep.mubr.bf16.mxu0 %v6272
    %6492 = vmatmul.mubr.bf16.gmra.mrb[0].mxu0 %v6271
    %v6493 = vpop.f32.mrb[0].mxu0
    %v6494 = vadd.f32 %v6454, %v6493
    %v6495 = vpop.f32.mrb[0].mxu0
    %v6496 = vpop.f32.mrb[0].mxu0
    %v6497 = vpop.f32.mrb[0].mxu0
    %6498 = vdwg.mxu0
    %6499 = vmatprep.subr.bf16.mxu0 %v6286
    %6500 = vmatpush1.bf16.xpose.msra.mxu0 %v6285
    %6501 = vmatprep.subr.bf16.mxu0 0
    %6502 = vmatpush1.bf16.xpose.msra.mxu0 0
    %6503 = vmatprep.subr.bf16.mxu0 0
    %6504 = vmatpush1.bf16.xpose.msra.mxu0 0
    %6505 = vmatprep.subr.bf16.mxu0 0
    %6506 = vmatpush1.bf16.xpose.msra.mxu0 0
    %6507 = vmatprep.subr.bf16.mxu0 0
    %6508 = vmatpush1.bf16.xpose.msra.mxu0 0
    %6509 = vmatprep.subr.bf16.mxu0 0
    %6510 = vmatpush1.bf16.xpose.msra.mxu0 0
    %6511 = vmatprep.subr.bf16.mxu0 0
    %6512 = vmatpush1.bf16.xpose.msra.mxu0 0
    %6513 = vmatprep.subr.bf16.mxu0 0
    %6514 = vmatpush1.bf16.xpose.msra.mxu0 0
    %6515 = vmatprep.subr.bf16.mxu0 0
    %6516 = vmatpush1.bf16.xpose.msra.mxu0 0
    %6517 = vmatprep.subr.bf16.mxu0 0
    %6518 = vmatpush1.bf16.xpose.msra.mxu0 0
    %6519 = vmatprep.subr.bf16.mxu0 0
    %6520 = vmatpush1.bf16.xpose.msra.mxu0 0
    %6521 = vmatprep.subr.bf16.mxu0 0
    %6522 = vmatpush1.bf16.xpose.msra.mxu0 0
    %6523 = vmatprep.subr.bf16.mxu0 0
    %6524 = vmatpush1.bf16.xpose.msra.mxu0 0
    %6525 = vmatprep.subr.bf16.mxu0 0
    %6526 = vmatpush1.bf16.xpose.msra.mxu0 0
    %6527 = vmatprep.subr.bf16.mxu0 0
    %6528 = vmatpush1.bf16.xpose.msra.mxu0 0
    %6529 = vmatprep.subr.bf16.mxu0 0
    %6530 = vmatpush1.bf16.xpose.msra.mxu0 0
    %6531 = vmatprep.mubr.bf16.mxu0 %v6274
    %6532 = vmatmul.mubr.bf16.gmra.mrb[0].mxu0 %v6273
    %v6533 = vpop.f32.mrb[0].mxu0
    %v6534 = vadd.f32 %v6494, %v6533
    %v6535 = vpop.f32.mrb[0].mxu0
    %v6536 = vpop.f32.mrb[0].mxu0
    %v6537 = vpop.f32.mrb[0].mxu0
    %6538 = vdwg.mxu0
    %v6539 = vmul.f32 %v6414, 0.03608439
    %v6540 = vmul.f32 %v6534, 0.03608439
    %vm6541 = vcmask 57344
    %v6542 = vsel %vm6541, %v6539, -inf
    %6543 = vmax.xlane.f32.xlu0 %v6542
    %v6544 = vpop.xlane.xlu0 %6543
    %v6545 = vsel %vm6541, %v6540, -inf
    %6546 = vmax.xlane.f32.xlu0 %v6545
    %v6547 = vpop.xlane.xlu0 %6546
    %v6548 = vsub.f32 %v6539, %v6544
    %v6549 = vsub.f32 %v6540, %v6547
    %v6550 = vmul.f32 %v6548, 1.442695
    %v6551 = vpow.pop %v6550
    %v6552 = vmul.f32 %v6549, 1.442695
    %v6553 = vpow.pop %v6552
    %v6554 = vsel %vm6541, %v6551, 0.0
    %6555 = vadd.xlane.f32.xlu0 %v6554
    %v6556 = vpop.xlane.xlu0 %6555
    %v6557 = vsel %vm6541, %v6553, 0.0
    %6558 = vadd.xlane.f32.xlu0 %v6557
    %v6559 = vpop.xlane.xlu0 %6558
    %v6560 = vrcp.pop %v6556
    %v6561 = vmul.f32 %v6551, %v6560
    %v6562 = vrcp.pop %v6559
    %v6563 = vmul.f32 %v6553, %v6562
    %v6564 = vpack.c.bf16 %v6561, %v6561
    %v6565 = vpack.c.bf16 %v6563, %v6563
    %vm6566 = vcmask 64512
    %v6568 = vsel %vm6566, %v6564, 0
    %vm6570 = vcmask 1043456
    %v6572 = vsel %vm6570, %v6287, 0
    %v6575 = vsel %vm6570, %v6288, 0
    %v6578 = vsel %vm6570, %v6289, 0
    %v6581 = vsel %vm6570, %v6290, 0
    %v6584 = vsel %vm6570, %v6291, 0
    %v6587 = vsel %vm6570, %v6292, 0
    %6589 = vmatprep.subr.bf16.mxu0 %v6575
    %6590 = vmatpush1.bf16.msra.mxu0 %v6572
    %6591 = vmatprep.subr.bf16.mxu0 0
    %6592 = vmatpush1.bf16.msra.mxu0 0
    %6593 = vmatprep.subr.bf16.mxu0 0
    %6594 = vmatpush1.bf16.msra.mxu0 0
    %6595 = vmatprep.subr.bf16.mxu0 0
    %6596 = vmatpush1.bf16.msra.mxu0 0
    %6597 = vmatprep.subr.bf16.mxu0 0
    %6598 = vmatpush1.bf16.msra.mxu0 0
    %6599 = vmatprep.subr.bf16.mxu0 0
    %6600 = vmatpush1.bf16.msra.mxu0 0
    %6601 = vmatprep.subr.bf16.mxu0 0
    %6602 = vmatpush1.bf16.msra.mxu0 0
    %6603 = vmatprep.subr.bf16.mxu0 0
    %6604 = vmatpush1.bf16.msra.mxu0 0
    %6605 = vmatprep.subr.bf16.mxu0 0
    %6606 = vmatpush1.bf16.msra.mxu0 0
    %6607 = vmatprep.subr.bf16.mxu0 0
    %6608 = vmatpush1.bf16.msra.mxu0 0
    %6609 = vmatprep.subr.bf16.mxu0 0
    %6610 = vmatpush1.bf16.msra.mxu0 0
    %6611 = vmatprep.subr.bf16.mxu0 0
    %6612 = vmatpush1.bf16.msra.mxu0 0
    %6613 = vmatprep.subr.bf16.mxu0 0
    %6614 = vmatpush1.bf16.msra.mxu0 0
    %6615 = vmatprep.subr.bf16.mxu0 0
    %6616 = vmatpush1.bf16.msra.mxu0 0
    %6617 = vmatprep.subr.bf16.mxu0 0
    %6618 = vmatpush1.bf16.msra.mxu0 0
    %6619 = vmatprep.subr.bf16.mxu0 0
    %6620 = vmatpush1.bf16.msra.mxu0 0
    %6621 = vmatprep.mubr.bf16.mxu0 0
    %6622 = vmatmul.mubr.bf16.gmra.mrb[0].mxu0 %v6568
    %v6623 = vpop.f32.mrb[0].mxu0
    %v6624 = vadd.f32 0.0, %v6623
    %v6625 = vpop.f32.mrb[0].mxu0
    %v6626 = vadd.f32 0.0, %v6625
    %v6627 = vpop.f32.mrb[0].mxu0
    %v6628 = vpop.f32.mrb[0].mxu0
    %6629 = vdwg.mxu0
    %6630 = vmatprep.subr.bf16.mxu0 %v6581
    %6631 = vmatpush1.bf16.msra.mxu0 %v6578
    %6632 = vmatprep.subr.bf16.mxu0 0
    %6633 = vmatpush1.bf16.msra.mxu0 0
    %6634 = vmatprep.subr.bf16.mxu0 0
    %6635 = vmatpush1.bf16.msra.mxu0 0
    %6636 = vmatprep.subr.bf16.mxu0 0
    %6637 = vmatpush1.bf16.msra.mxu0 0
    %6638 = vmatprep.subr.bf16.mxu0 0
    %6639 = vmatpush1.bf16.msra.mxu0 0
    %6640 = vmatprep.subr.bf16.mxu0 0
    %6641 = vmatpush1.bf16.msra.mxu0 0
    %6642 = vmatprep.subr.bf16.mxu0 0
    %6643 = vmatpush1.bf16.msra.mxu0 0
    %6644 = vmatprep.subr.bf16.mxu0 0
    %6645 = vmatpush1.bf16.msra.mxu0 0
    %6646 = vmatprep.subr.bf16.mxu0 0
    %6647 = vmatpush1.bf16.msra.mxu0 0
    %6648 = vmatprep.subr.bf16.mxu0 0
    %6649 = vmatpush1.bf16.msra.mxu0 0
    %6650 = vmatprep.subr.bf16.mxu0 0
    %6651 = vmatpush1.bf16.msra.mxu0 0
    %6652 = vmatprep.subr.bf16.mxu0 0
    %6653 = vmatpush1.bf16.msra.mxu0 0
    %6654 = vmatprep.subr.bf16.mxu0 0
    %6655 = vmatpush1.bf16.msra.mxu0 0
    %6656 = vmatprep.subr.bf16.mxu0 0
    %6657 = vmatpush1.bf16.msra.mxu0 0
    %6658 = vmatprep.subr.bf16.mxu0 0
    %6659 = vmatpush1.bf16.msra.mxu0 0
    %6660 = vmatprep.subr.bf16.mxu0 0
    %6661 = vmatpush1.bf16.msra.mxu0 0
    %6662 = vmatprep.mubr.bf16.mxu0 0
    %6663 = vmatmul.mubr.bf16.gmra.mrb[0].mxu0 %v6568
    %v6664 = vpop.f32.mrb[0].mxu0
    %v6665 = vadd.f32 0.0, %v6664
    %v6666 = vpop.f32.mrb[0].mxu0
    %v6667 = vadd.f32 0.0, %v6666
    %v6668 = vpop.f32.mrb[0].mxu0
    %v6669 = vpop.f32.mrb[0].mxu0
    %6670 = vdwg.mxu0
    %6671 = vmatprep.subr.bf16.mxu0 %v6587
    %6672 = vmatpush1.bf16.msra.mxu0 %v6584
    %6673 = vmatprep.subr.bf16.mxu0 0
    %6674 = vmatpush1.bf16.msra.mxu0 0
    %6675 = vmatprep.subr.bf16.mxu0 0
    %6676 = vmatpush1.bf16.msra.mxu0 0
    %6677 = vmatprep.subr.bf16.mxu0 0
    %6678 = vmatpush1.bf16.msra.mxu0 0
    %6679 = vmatprep.subr.bf16.mxu0 0
    %6680 = vmatpush1.bf16.msra.mxu0 0
    %6681 = vmatprep.subr.bf16.mxu0 0
    %6682 = vmatpush1.bf16.msra.mxu0 0
    %6683 = vmatprep.subr.bf16.mxu0 0
    %6684 = vmatpush1.bf16.msra.mxu0 0
    %6685 = vmatprep.subr.bf16.mxu0 0
    %6686 = vmatpush1.bf16.msra.mxu0 0
    %6687 = vmatprep.subr.bf16.mxu0 0
    %6688 = vmatpush1.bf16.msra.mxu0 0
    %6689 = vmatprep.subr.bf16.mxu0 0
    %6690 = vmatpush1.bf16.msra.mxu0 0
    %6691 = vmatprep.subr.bf16.mxu0 0
    %6692 = vmatpush1.bf16.msra.mxu0 0
    %6693 = vmatprep.subr.bf16.mxu0 0
    %6694 = vmatpush1.bf16.msra.mxu0 0
    %6695 = vmatprep.subr.bf16.mxu0 0
    %6696 = vmatpush1.bf16.msra.mxu0 0
    %6697 = vmatprep.subr.bf16.mxu0 0
    %6698 = vmatpush1.bf16.msra.mxu0 0
    %6699 = vmatprep.subr.bf16.mxu0 0
    %6700 = vmatpush1.bf16.msra.mxu0 0
    %6701 = vmatprep.subr.bf16.mxu0 0
    %6702 = vmatpush1.bf16.msra.mxu0 0
    %6703 = vmatprep.mubr.bf16.mxu0 0
    %6704 = vmatmul.mubr.bf16.gmra.mrb[0].mxu0 %v6568
    %v6705 = vpop.f32.mrb[0].mxu0
    %v6706 = vadd.f32 0.0, %v6705
    %v6707 = vpop.f32.mrb[0].mxu0
    %v6708 = vadd.f32 0.0, %v6707
    %v6709 = vpop.f32.mrb[0].mxu0
    %v6710 = vpop.f32.mrb[0].mxu0
    %6711 = vdwg.mxu0
    %v6713 = vsel %vm6566, %v6565, 0
    %v6716 = vsel %vm6570, %v6293, 0
    %v6719 = vsel %vm6570, %v6294, 0
    %v6722 = vsel %vm6570, %v6295, 0
    %v6725 = vsel %vm6570, %v6296, 0
    %v6728 = vsel %vm6570, %v6297, 0
    %v6731 = vsel %vm6570, %v6298, 0
    %6733 = vmatprep.subr.bf16.mxu0 %v6719
    %6734 = vmatpush1.bf16.msra.mxu0 %v6716
    %6735 = vmatprep.subr.bf16.mxu0 0
    %6736 = vmatpush1.bf16.msra.mxu0 0
    %6737 = vmatprep.subr.bf16.mxu0 0
    %6738 = vmatpush1.bf16.msra.mxu0 0
    %6739 = vmatprep.subr.bf16.mxu0 0
    %6740 = vmatpush1.bf16.msra.mxu0 0
    %6741 = vmatprep.subr.bf16.mxu0 0
    %6742 = vmatpush1.bf16.msra.mxu0 0
    %6743 = vmatprep.subr.bf16.mxu0 0
    %6744 = vmatpush1.bf16.msra.mxu0 0
    %6745 = vmatprep.subr.bf16.mxu0 0
    %6746 = vmatpush1.bf16.msra.mxu0 0
    %6747 = vmatprep.subr.bf16.mxu0 0
    %6748 = vmatpush1.bf16.msra.mxu0 0
    %6749 = vmatprep.subr.bf16.mxu0 0
    %6750 = vmatpush1.bf16.msra.mxu0 0
    %6751 = vmatprep.subr.bf16.mxu0 0
    %6752 = vmatpush1.bf16.msra.mxu0 0
    %6753 = vmatprep.subr.bf16.mxu0 0
    %6754 = vmatpush1.bf16.msra.mxu0 0
    %6755 = vmatprep.subr.bf16.mxu0 0
    %6756 = vmatpush1.bf16.msra.mxu0 0
    %6757 = vmatprep.subr.bf16.mxu0 0
    %6758 = vmatpush1.bf16.msra.mxu0 0
    %6759 = vmatprep.subr.bf16.mxu0 0
    %6760 = vmatpush1.bf16.msra.mxu0 0
    %6761 = vmatprep.subr.bf16.mxu0 0
    %6762 = vmatpush1.bf16.msra.mxu0 0
    %6763 = vmatprep.subr.bf16.mxu0 0
    %6764 = vmatpush1.bf16.msra.mxu0 0
    %6765 = vmatprep.mubr.bf16.mxu0 0
    %6766 = vmatmul.mubr.bf16.gmra.mrb[0].mxu0 %v6713
    %v6767 = vpop.f32.mrb[0].mxu0
    %v6768 = vadd.f32 0.0, %v6767
    %v6769 = vpop.f32.mrb[0].mxu0
    %v6770 = vadd.f32 0.0, %v6769
    %v6771 = vpop.f32.mrb[0].mxu0
    %v6772 = vpop.f32.mrb[0].mxu0
    %6773 = vdwg.mxu0
    %6774 = vmatprep.subr.bf16.mxu0 %v6725
    %6775 = vmatpush1.bf16.msra.mxu0 %v6722
    %6776 = vmatprep.subr.bf16.mxu0 0
    %6777 = vmatpush1.bf16.msra.mxu0 0
    %6778 = vmatprep.subr.bf16.mxu0 0
    %6779 = vmatpush1.bf16.msra.mxu0 0
    %6780 = vmatprep.subr.bf16.mxu0 0
    %6781 = vmatpush1.bf16.msra.mxu0 0
    %6782 = vmatprep.subr.bf16.mxu0 0
    %6783 = vmatpush1.bf16.msra.mxu0 0
    %6784 = vmatprep.subr.bf16.mxu0 0
    %6785 = vmatpush1.bf16.msra.mxu0 0
    %6786 = vmatprep.subr.bf16.mxu0 0
    %6787 = vmatpush1.bf16.msra.mxu0 0
    %6788 = vmatprep.subr.bf16.mxu0 0
    %6789 = vmatpush1.bf16.msra.mxu0 0
    %6790 = vmatprep.subr.bf16.mxu0 0
    %6791 = vmatpush1.bf16.msra.mxu0 0
    %6792 = vmatprep.subr.bf16.mxu0 0
    %6793 = vmatpush1.bf16.msra.mxu0 0
    %6794 = vmatprep.subr.bf16.mxu0 0
    %6795 = vmatpush1.bf16.msra.mxu0 0
    %6796 = vmatprep.subr.bf16.mxu0 0
    %6797 = vmatpush1.bf16.msra.mxu0 0
    %6798 = vmatprep.subr.bf16.mxu0 0
    %6799 = vmatpush1.bf16.msra.mxu0 0
    %6800 = vmatprep.subr.bf16.mxu0 0
    %6801 = vmatpush1.bf16.msra.mxu0 0
    %6802 = vmatprep.subr.bf16.mxu0 0
    %6803 = vmatpush1.bf16.msra.mxu0 0
    %6804 = vmatprep.subr.bf16.mxu0 0
    %6805 = vmatpush1.bf16.msra.mxu0 0
    %6806 = vmatprep.mubr.bf16.mxu0 0
    %6807 = vmatmul.mubr.bf16.gmra.mrb[0].mxu0 %v6713
    %v6808 = vpop.f32.mrb[0].mxu0
    %v6809 = vadd.f32 0.0, %v6808
    %v6810 = vpop.f32.mrb[0].mxu0
    %v6811 = vadd.f32 0.0, %v6810
    %v6812 = vpop.f32.mrb[0].mxu0
    %v6813 = vpop.f32.mrb[0].mxu0
    %6814 = vdwg.mxu0
    %6815 = vmatprep.subr.bf16.mxu0 %v6731
    %6816 = vmatpush1.bf16.msra.mxu0 %v6728
    %6817 = vmatprep.subr.bf16.mxu0 0
    %6818 = vmatpush1.bf16.msra.mxu0 0
    %6819 = vmatprep.subr.bf16.mxu0 0
    %6820 = vmatpush1.bf16.msra.mxu0 0
    %6821 = vmatprep.subr.bf16.mxu0 0
    %6822 = vmatpush1.bf16.msra.mxu0 0
    %6823 = vmatprep.subr.bf16.mxu0 0
    %6824 = vmatpush1.bf16.msra.mxu0 0
    %6825 = vmatprep.subr.bf16.mxu0 0
    %6826 = vmatpush1.bf16.msra.mxu0 0
    %6827 = vmatprep.subr.bf16.mxu0 0
    %6828 = vmatpush1.bf16.msra.mxu0 0
    %6829 = vmatprep.subr.bf16.mxu0 0
    %6830 = vmatpush1.bf16.msra.mxu0 0
    %6831 = vmatprep.subr.bf16.mxu0 0
    %6832 = vmatpush1.bf16.msra.mxu0 0
    %6833 = vmatprep.subr.bf16.mxu0 0
    %6834 = vmatpush1.bf16.msra.mxu0 0
    %6835 = vmatprep.subr.bf16.mxu0 0
    %6836 = vmatpush1.bf16.msra.mxu0 0
    %6837 = vmatprep.subr.bf16.mxu0 0
    %6838 = vmatpush1.bf16.msra.mxu0 0
    %6839 = vmatprep.subr.bf16.mxu0 0
    %6840 = vmatpush1.bf16.msra.mxu0 0
    %6841 = vmatprep.subr.bf16.mxu0 0
    %6842 = vmatpush1.bf16.msra.mxu0 0
    %6843 = vmatprep.subr.bf16.mxu0 0
    %6844 = vmatpush1.bf16.msra.mxu0 0
    %6845 = vmatprep.subr.bf16.mxu0 0
    %6846 = vmatpush1.bf16.msra.mxu0 0
    %6847 = vmatprep.mubr.bf16.mxu0 0
    %6848 = vmatmul.mubr.bf16.gmra.mrb[0].mxu0 %v6713
    %v6849 = vpop.f32.mrb[0].mxu0
    %v6850 = vadd.f32 0.0, %v6849
    %v6851 = vpop.f32.mrb[0].mxu0
    %v6852 = vadd.f32 0.0, %v6851
    %v6853 = vpop.f32.mrb[0].mxu0
    %v6854 = vpop.f32.mrb[0].mxu0
    %6855 = vdwg.mxu0
    %s6856 = sshll.u32 %s3436, 4
    %6857 = dma.done %s287, %s6856
    %v6858 = vpack.c.bf16 %v6624, %v6624
    %v6859 = vpack.c.bf16 %v6626, %v6626
    %v6860 = vpack.c.bf16 %v6665, %v6665
    %v6861 = vpack.c.bf16 %v6667, %v6667
    %v6862 = vpack.c.bf16 %v6706, %v6706
    %v6863 = vpack.c.bf16 %v6708, %v6708
    %v6864 = vpack.c.bf16 %v6768, %v6768
    %v6865 = vpack.c.bf16 %v6770, %v6770
    %v6866 = vpack.c.bf16 %v6809, %v6809
    %v6867 = vpack.c.bf16 %v6811, %v6811
    %v6868 = vpack.c.bf16 %v6850, %v6850
    %v6869 = vpack.c.bf16 %v6852, %v6852
    %v6870 = vld [vmem:[%s286] sm:$0xff]
    %v6871 = vld [vmem:[%s286 + $0x8] sm:$0xff]
    %v6872 = vld [vmem:[%s286 + $0x10] sm:$0xff]
    %v6873 = vld [vmem:[%s286 + $0x18] sm:$0xff]
    %v6874 = vld [vmem:[%s286 + $0x20] sm:$0xff]
    %v6875 = vld [vmem:[%s286 + $0x28] sm:$0xff]
    %v6876 = vld [vmem:[%s286 + $0x30] sm:$0xff]
    %v6877 = vld [vmem:[%s286 + $0x38] sm:$0xff]
    %v6878 = vld [vmem:[%s286 + $0x40] sm:$0xff]
    %v6879 = vld [vmem:[%s286 + $0x48] sm:$0xff]
    %v6880 = vld [vmem:[%s286 + $0x50] sm:$0xff]
    %v6881 = vld [vmem:[%s286 + $0x58] sm:$0xff]
    %v6882 = vld [vmem:[%s286 + $0x60] sm:$0xff]
    %v6883 = vld [vmem:[%s286 + $0x68] sm:$0xff]
    %v6884 = vld [vmem:[%s286 + $0x70] sm:$0xff]
    %v6885 = vld [vmem:[%s286 + $0x78] sm:$0xff]
    %v6886 = vld [vmem:[%s286 + $0x80] sm:$0xff]
    %v6887 = vld [vmem:[%s286 + $0x88] sm:$0xff]
    %v6888 = vld [vmem:[%s286 + $0x90] sm:$0xff]
    %v6889 = vld [vmem:[%s286 + $0x98] sm:$0xff]
    %v6890 = vld [vmem:[%s286 + $0xa0] sm:$0xff]
    %v6891 = vld [vmem:[%s286 + $0xa8] sm:$0xff]
    %v6892 = vld [vmem:[%s286 + $0xb0] sm:$0xff]
    %v6893 = vld [vmem:[%s286 + $0xb8] sm:$0xff]
    %v6894 = vld [vmem:[%s286 + $0xc0] sm:$0xff]
    %v6895 = vld [vmem:[%s286 + $0xc8] sm:$0xff]
    %v6896 = vld [vmem:[%s286 + $0xd0] sm:$0xff]
    %v6897 = vld [vmem:[%s286 + $0xd8] sm:$0xff]
    %v6898 = vld [vmem:[%s286 + $0xe0] sm:$0xff]
    %v6899 = vld [vmem:[%s286 + $0xe8] sm:$0xff]
    %v6900 = vld [vmem:[%s286 + $0xf0] sm:$0xff]
    %v6901 = vld [vmem:[%s286 + $0xf8] sm:$0xff]
    %v6902 = vld [vmem:[%s286 + $0x100] sm:$0xff]
    %v6903 = vld [vmem:[%s286 + $0x108] sm:$0xff]
    %v6904 = vld [vmem:[%s286 + $0x110] sm:$0xff]
    %v6905 = vld [vmem:[%s286 + $0x118] sm:$0xff]
    %v6906 = vld [vmem:[%s286 + $0x120] sm:$0xff]
    %v6907 = vld [vmem:[%s286 + $0x128] sm:$0xff]
    %v6908 = vld [vmem:[%s286 + $0x130] sm:$0xff]
    %v6909 = vld [vmem:[%s286 + $0x138] sm:$0xff]
    %v6910 = vld [vmem:[%s286 + $0x140] sm:$0xff]
    %v6911 = vld [vmem:[%s286 + $0x148] sm:$0xff]
    %v6912 = vld [vmem:[%s286 + $0x150] sm:$0xff]
    %v6913 = vld [vmem:[%s286 + $0x158] sm:$0xff]
    %v6914 = vld [vmem:[%s286 + $0x160] sm:$0xff]
    %v6915 = vld [vmem:[%s286 + $0x168] sm:$0xff]
    %v6916 = vld [vmem:[%s286 + $0x170] sm:$0xff]
    %v6917 = vld [vmem:[%s286 + $0x178] sm:$0xff]
    %v6918 = vld [vmem:[%s286 + $0x180] sm:$0xff]
    %v6919 = vld [vmem:[%s286 + $0x188] sm:$0xff]
    %v6920 = vld [vmem:[%s286 + $0x190] sm:$0xff]
    %v6921 = vld [vmem:[%s286 + $0x198] sm:$0xff]
    %v6922 = vld [vmem:[%s286 + $0x1a0] sm:$0xff]
    %v6923 = vld [vmem:[%s286 + $0x1a8] sm:$0xff]
    %v6924 = vld [vmem:[%s286 + $0x1b0] sm:$0xff]
    %v6925 = vld [vmem:[%s286 + $0x1b8] sm:$0xff]
    %v6926 = vld [vmem:[%s286 + $0x1c0] sm:$0xff]
    %v6927 = vld [vmem:[%s286 + $0x1c8] sm:$0xff]
    %v6928 = vld [vmem:[%s286 + $0x1d0] sm:$0xff]
    %v6929 = vld [vmem:[%s286 + $0x1d8] sm:$0xff]
    %v6930 = vld [vmem:[%s286 + $0x1e0] sm:$0xff]
    %v6931 = vld [vmem:[%s286 + $0x1e8] sm:$0xff]
    %v6932 = vld [vmem:[%s286 + $0x1f0] sm:$0xff]
    %v6933 = vld [vmem:[%s286 + $0x1f8] sm:$0xff]
    %v6934 = vld [vmem:[%s286 + $0x200] sm:$0xff]
    %v6935 = vld [vmem:[%s286 + $0x208] sm:$0xff]
    %v6936 = vld [vmem:[%s286 + $0x210] sm:$0xff]
    %v6937 = vld [vmem:[%s286 + $0x218] sm:$0xff]
    %v6938 = vld [vmem:[%s286 + $0x220] sm:$0xff]
    %v6939 = vld [vmem:[%s286 + $0x228] sm:$0xff]
    %v6940 = vld [vmem:[%s286 + $0x230] sm:$0xff]
    %v6941 = vld [vmem:[%s286 + $0x238] sm:$0xff]
    %v6942 = vld [vmem:[%s286 + $0x240] sm:$0xff]
    %v6943 = vld [vmem:[%s286 + $0x248] sm:$0xff]
    %v6944 = vld [vmem:[%s286 + $0x250] sm:$0xff]
    %v6945 = vld [vmem:[%s286 + $0x258] sm:$0xff]
    %v6946 = vld [vmem:[%s286 + $0x260] sm:$0xff]
    %v6947 = vld [vmem:[%s286 + $0x268] sm:$0xff]
    %v6948 = vld [vmem:[%s286 + $0x270] sm:$0xff]
    %v6949 = vld [vmem:[%s286 + $0x278] sm:$0xff]
    %v6950 = vld [vmem:[%s286 + $0x280] sm:$0xff]
    %v6951 = vld [vmem:[%s286 + $0x288] sm:$0xff]
    %v6952 = vld [vmem:[%s286 + $0x290] sm:$0xff]
    %v6953 = vld [vmem:[%s286 + $0x298] sm:$0xff]
    %v6954 = vld [vmem:[%s286 + $0x2a0] sm:$0xff]
    %v6955 = vld [vmem:[%s286 + $0x2a8] sm:$0xff]
    %v6956 = vld [vmem:[%s286 + $0x2b0] sm:$0xff]
    %v6957 = vld [vmem:[%s286 + $0x2b8] sm:$0xff]
    %v6958 = vld [vmem:[%s286 + $0x2c0] sm:$0xff]
    %v6959 = vld [vmem:[%s286 + $0x2c8] sm:$0xff]
    %v6960 = vld [vmem:[%s286 + $0x2d0] sm:$0xff]
    %v6961 = vld [vmem:[%s286 + $0x2d8] sm:$0xff]
    %v6962 = vld [vmem:[%s286 + $0x2e0] sm:$0xff]
    %v6963 = vld [vmem:[%s286 + $0x2e8] sm:$0xff]
    %v6964 = vld [vmem:[%s286 + $0x2f0] sm:$0xff]
    %v6965 = vld [vmem:[%s286 + $0x2f8] sm:$0xff]
    %v6966 = vld [vmem:[%s286 + $0x300] sm:$0xff]
    %v6967 = vld [vmem:[%s286 + $0x308] sm:$0xff]
    %v6968 = vld [vmem:[%s286 + $0x310] sm:$0xff]
    %v6969 = vld [vmem:[%s286 + $0x318] sm:$0xff]
    %v6970 = vld [vmem:[%s286 + $0x320] sm:$0xff]
    %v6971 = vld [vmem:[%s286 + $0x328] sm:$0xff]
    %v6972 = vld [vmem:[%s286 + $0x330] sm:$0xff]
    %v6973 = vld [vmem:[%s286 + $0x338] sm:$0xff]
    %v6974 = vld [vmem:[%s286 + $0x340] sm:$0xff]
    %v6975 = vld [vmem:[%s286 + $0x348] sm:$0xff]
    %v6976 = vld [vmem:[%s286 + $0x350] sm:$0xff]
    %v6977 = vld [vmem:[%s286 + $0x358] sm:$0xff]
    %v6978 = vld [vmem:[%s286 + $0x360] sm:$0xff]
    %v6979 = vld [vmem:[%s286 + $0x368] sm:$0xff]
    %v6980 = vld [vmem:[%s286 + $0x370] sm:$0xff]
    %v6981 = vld [vmem:[%s286 + $0x378] sm:$0xff]
    %v6982 = vld [vmem:[%s286 + $0x380] sm:$0xff]
    %v6983 = vld [vmem:[%s286 + $0x388] sm:$0xff]
    %v6984 = vld [vmem:[%s286 + $0x390] sm:$0xff]
    %v6985 = vld [vmem:[%s286 + $0x398] sm:$0xff]
    %v6986 = vld [vmem:[%s286 + $0x3a0] sm:$0xff]
    %v6987 = vld [vmem:[%s286 + $0x3a8] sm:$0xff]
    %v6988 = vld [vmem:[%s286 + $0x3b0] sm:$0xff]
    %v6989 = vld [vmem:[%s286 + $0x3b8] sm:$0xff]
    %v6990 = vld [vmem:[%s286 + $0x3c0] sm:$0xff]
    %v6991 = vld [vmem:[%s286 + $0x3c8] sm:$0xff]
    %v6992 = vld [vmem:[%s286 + $0x3d0] sm:$0xff]
    %v6993 = vld [vmem:[%s286 + $0x3d8] sm:$0xff]
    %v6994 = vld [vmem:[%s286 + $0x3e0] sm:$0xff]
    %v6995 = vld [vmem:[%s286 + $0x3e8] sm:$0xff]
    %v6996 = vld [vmem:[%s286 + $0x3f0] sm:$0xff]
    %v6997 = vld [vmem:[%s286 + $0x3f8] sm:$0xff]
    %v6998 = vld [vmem:[%s286 + $0x400] sm:$0xff]
    %v6999 = vld [vmem:[%s286 + $0x408] sm:$0xff]
    %v7000 = vld [vmem:[%s286 + $0x410] sm:$0xff]
    %v7001 = vld [vmem:[%s286 + $0x418] sm:$0xff]
    %v7002 = vld [vmem:[%s286 + $0x420] sm:$0xff]
    %v7003 = vld [vmem:[%s286 + $0x428] sm:$0xff]
    %v7004 = vld [vmem:[%s286 + $0x430] sm:$0xff]
    %v7005 = vld [vmem:[%s286 + $0x438] sm:$0xff]
    %v7006 = vld [vmem:[%s286 + $0x440] sm:$0xff]
    %v7007 = vld [vmem:[%s286 + $0x448] sm:$0xff]
    %v7008 = vld [vmem:[%s286 + $0x450] sm:$0xff]
    %v7009 = vld [vmem:[%s286 + $0x458] sm:$0xff]
    %v7010 = vld [vmem:[%s286 + $0x460] sm:$0xff]
    %v7011 = vld [vmem:[%s286 + $0x468] sm:$0xff]
    %v7012 = vld [vmem:[%s286 + $0x470] sm:$0xff]
    %v7013 = vld [vmem:[%s286 + $0x478] sm:$0xff]
    %v7014 = vunpack.c.l.s8.bf16 %v6870
    %v7015 = vunpack.c.l.s8.bf16 %v6871
    %v7016 = vunpack.c.l.s8.bf16 %v6872
    %v7017 = vunpack.c.l.s8.bf16 %v6873
    %v7018 = vunpack.c.l.s8.bf16 %v6874
    %v7019 = vunpack.c.l.s8.bf16 %v6875
    %v7020 = vunpack.c.h.s8.bf16 %v6870
    %v7021 = vunpack.c.h.s8.bf16 %v6871
    %v7022 = vunpack.c.h.s8.bf16 %v6872
    %v7023 = vunpack.c.h.s8.bf16 %v6873
    %v7024 = vunpack.c.h.s8.bf16 %v6874
    %v7025 = vunpack.c.h.s8.bf16 %v6875
    %v7026 = vunpack.c.l.s8.bf16 %v6876
    %v7027 = vunpack.c.l.s8.bf16 %v6877
    %v7028 = vunpack.c.l.s8.bf16 %v6878
    %v7029 = vunpack.c.l.s8.bf16 %v6879
    %v7030 = vunpack.c.l.s8.bf16 %v6880
    %v7031 = vunpack.c.l.s8.bf16 %v6881
    %v7032 = vunpack.c.h.s8.bf16 %v6876
    %v7033 = vunpack.c.h.s8.bf16 %v6877
    %v7034 = vunpack.c.h.s8.bf16 %v6878
    %v7035 = vunpack.c.h.s8.bf16 %v6879
    %v7036 = vunpack.c.h.s8.bf16 %v6880
    %v7037 = vunpack.c.h.s8.bf16 %v6881
    %v7038 = vunpack.c.l.s8.bf16 %v6882
    %v7039 = vunpack.c.l.s8.bf16 %v6883
    %v7040 = vunpack.c.l.s8.bf16 %v6884
    %v7041 = vunpack.c.l.s8.bf16 %v6885
    %v7042 = vunpack.c.l.s8.bf16 %v6886
    %v7043 = vunpack.c.l.s8.bf16 %v6887
    %v7044 = vunpack.c.h.s8.bf16 %v6882
    %v7045 = vunpack.c.h.s8.bf16 %v6883
    %v7046 = vunpack.c.h.s8.bf16 %v6884
    %v7047 = vunpack.c.h.s8.bf16 %v6885
    %v7048 = vunpack.c.h.s8.bf16 %v6886
    %v7049 = vunpack.c.h.s8.bf16 %v6887
    %v7050 = vunpack.c.l.s8.bf16 %v6888
    %v7051 = vunpack.c.l.s8.bf16 %v6889
    %v7052 = vunpack.c.l.s8.bf16 %v6890
    %v7053 = vunpack.c.l.s8.bf16 %v6891
    %v7054 = vunpack.c.l.s8.bf16 %v6892
    %v7055 = vunpack.c.l.s8.bf16 %v6893
    %v7056 = vunpack.c.h.s8.bf16 %v6888
    %v7057 = vunpack.c.h.s8.bf16 %v6889
    %v7058 = vunpack.c.h.s8.bf16 %v6890
    %v7059 = vunpack.c.h.s8.bf16 %v6891
    %v7060 = vunpack.c.h.s8.bf16 %v6892
    %v7061 = vunpack.c.h.s8.bf16 %v6893
    %v7062 = vunpack.c.l.s8.bf16 %v6894
    %v7063 = vunpack.c.l.s8.bf16 %v6895
    %v7064 = vunpack.c.l.s8.bf16 %v6896
    %v7065 = vunpack.c.l.s8.bf16 %v6897
    %v7066 = vunpack.c.l.s8.bf16 %v6898
    %v7067 = vunpack.c.l.s8.bf16 %v6899
    %v7068 = vunpack.c.h.s8.bf16 %v6894
    %v7069 = vunpack.c.h.s8.bf16 %v6895
    %v7070 = vunpack.c.h.s8.bf16 %v6896
    %v7071 = vunpack.c.h.s8.bf16 %v6897
    %v7072 = vunpack.c.h.s8.bf16 %v6898
    %v7073 = vunpack.c.h.s8.bf16 %v6899
    %v7074 = vunpack.c.l.s8.bf16 %v6900
    %v7075 = vunpack.c.l.s8.bf16 %v6901
    %v7076 = vunpack.c.l.s8.bf16 %v6902
    %v7077 = vunpack.c.l.s8.bf16 %v6903
    %v7078 = vunpack.c.l.s8.bf16 %v6904
    %v7079 = vunpack.c.l.s8.bf16 %v6905
    %v7080 = vunpack.c.h.s8.bf16 %v6900
    %v7081 = vunpack.c.h.s8.bf16 %v6901
    %v7082 = vunpack.c.h.s8.bf16 %v6902
    %v7083 = vunpack.c.h.s8.bf16 %v6903
    %v7084 = vunpack.c.h.s8.bf16 %v6904
    %v7085 = vunpack.c.h.s8.bf16 %v6905
    %v7086 = vunpack.c.l.s8.bf16 %v6906
    %v7087 = vunpack.c.l.s8.bf16 %v6907
    %v7088 = vunpack.c.l.s8.bf16 %v6908
    %v7089 = vunpack.c.l.s8.bf16 %v6909
    %v7090 = vunpack.c.l.s8.bf16 %v6910
    %v7091 = vunpack.c.l.s8.bf16 %v6911
    %v7092 = vunpack.c.h.s8.bf16 %v6906
    %v7093 = vunpack.c.h.s8.bf16 %v6907
    %v7094 = vunpack.c.h.s8.bf16 %v6908
    %v7095 = vunpack.c.h.s8.bf16 %v6909
    %v7096 = vunpack.c.h.s8.bf16 %v6910
    %v7097 = vunpack.c.h.s8.bf16 %v6911
    %v7098 = vunpack.c.l.s8.bf16 %v6912
    %v7099 = vunpack.c.l.s8.bf16 %v6913
    %v7100 = vunpack.c.l.s8.bf16 %v6914
    %v7101 = vunpack.c.l.s8.bf16 %v6915
    %v7102 = vunpack.c.l.s8.bf16 %v6916
    %v7103 = vunpack.c.l.s8.bf16 %v6917
    %v7104 = vunpack.c.h.s8.bf16 %v6912
    %v7105 = vunpack.c.h.s8.bf16 %v6913
    %v7106 = vunpack.c.h.s8.bf16 %v6914
    %v7107 = vunpack.c.h.s8.bf16 %v6915
    %v7108 = vunpack.c.h.s8.bf16 %v6916
    %v7109 = vunpack.c.h.s8.bf16 %v6917
    %v7110 = vunpack.c.l.s8.bf16 %v6918
    %v7111 = vunpack.c.l.s8.bf16 %v6919
    %v7112 = vunpack.c.l.s8.bf16 %v6920
    %v7113 = vunpack.c.l.s8.bf16 %v6921
    %v7114 = vunpack.c.l.s8.bf16 %v6922
    %v7115 = vunpack.c.l.s8.bf16 %v6923
    %v7116 = vunpack.c.h.s8.bf16 %v6918
    %v7117 = vunpack.c.h.s8.bf16 %v6919
    %v7118 = vunpack.c.h.s8.bf16 %v6920
    %v7119 = vunpack.c.h.s8.bf16 %v6921
    %v7120 = vunpack.c.h.s8.bf16 %v6922
    %v7121 = vunpack.c.h.s8.bf16 %v6923
    %v7122 = vunpack.c.l.s8.bf16 %v6924
    %v7123 = vunpack.c.l.s8.bf16 %v6925
    %v7124 = vunpack.c.l.s8.bf16 %v6926
    %v7125 = vunpack.c.l.s8.bf16 %v6927
    %v7126 = vunpack.c.l.s8.bf16 %v6928
    %v7127 = vunpack.c.l.s8.bf16 %v6929
    %v7128 = vunpack.c.h.s8.bf16 %v6924
    %v7129 = vunpack.c.h.s8.bf16 %v6925
    %v7130 = vunpack.c.h.s8.bf16 %v6926
    %v7131 = vunpack.c.h.s8.bf16 %v6927
    %v7132 = vunpack.c.h.s8.bf16 %v6928
    %v7133 = vunpack.c.h.s8.bf16 %v6929
    %v7134 = vunpack.c.l.s8.bf16 %v6930
    %v7135 = vunpack.c.l.s8.bf16 %v6931
    %v7136 = vunpack.c.l.s8.bf16 %v6932
    %v7137 = vunpack.c.l.s8.bf16 %v6933
    %v7138 = vunpack.c.l.s8.bf16 %v6934
    %v7139 = vunpack.c.l.s8.bf16 %v6935
    %v7140 = vunpack.c.h.s8.bf16 %v6930
    %v7141 = vunpack.c.h.s8.bf16 %v6931
    %v7142 = vunpack.c.h.s8.bf16 %v6932
    %v7143 = vunpack.c.h.s8.bf16 %v6933
    %v7144 = vunpack.c.h.s8.bf16 %v6934
    %v7145 = vunpack.c.h.s8.bf16 %v6935
    %v7146 = vunpack.c.l.s8.bf16 %v6936
    %v7147 = vunpack.c.l.s8.bf16 %v6937
    %v7148 = vunpack.c.l.s8.bf16 %v6938
    %v7149 = vunpack.c.l.s8.bf16 %v6939
    %v7150 = vunpack.c.l.s8.bf16 %v6940
    %v7151 = vunpack.c.l.s8.bf16 %v6941
    %v7152 = vunpack.c.h.s8.bf16 %v6936
    %v7153 = vunpack.c.h.s8.bf16 %v6937
    %v7154 = vunpack.c.h.s8.bf16 %v6938
    %v7155 = vunpack.c.h.s8.bf16 %v6939
    %v7156 = vunpack.c.h.s8.bf16 %v6940
    %v7157 = vunpack.c.h.s8.bf16 %v6941
    %v7158 = vunpack.c.l.s8.bf16 %v6942
    %v7159 = vunpack.c.l.s8.bf16 %v6943
    %v7160 = vunpack.c.l.s8.bf16 %v6944
    %v7161 = vunpack.c.l.s8.bf16 %v6945
    %v7162 = vunpack.c.l.s8.bf16 %v6946
    %v7163 = vunpack.c.l.s8.bf16 %v6947
    %v7164 = vunpack.c.h.s8.bf16 %v6942
    %v7165 = vunpack.c.h.s8.bf16 %v6943
    %v7166 = vunpack.c.h.s8.bf16 %v6944
    %v7167 = vunpack.c.h.s8.bf16 %v6945
    %v7168 = vunpack.c.h.s8.bf16 %v6946
    %v7169 = vunpack.c.h.s8.bf16 %v6947
    %v7170 = vunpack.c.l.s8.bf16 %v6948
    %v7171 = vunpack.c.l.s8.bf16 %v6949
    %v7172 = vunpack.c.l.s8.bf16 %v6950
    %v7173 = vunpack.c.l.s8.bf16 %v6951
    %v7174 = vunpack.c.l.s8.bf16 %v6952
    %v7175 = vunpack.c.l.s8.bf16 %v6953
    %v7176 = vunpack.c.h.s8.bf16 %v6948
    %v7177 = vunpack.c.h.s8.bf16 %v6949
    %v7178 = vunpack.c.h.s8.bf16 %v6950
    %v7179 = vunpack.c.h.s8.bf16 %v6951
    %v7180 = vunpack.c.h.s8.bf16 %v6952
    %v7181 = vunpack.c.h.s8.bf16 %v6953
    %v7182 = vunpack.c.l.s8.bf16 %v6954
    %v7183 = vunpack.c.l.s8.bf16 %v6955
    %v7184 = vunpack.c.l.s8.bf16 %v6956
    %v7185 = vunpack.c.l.s8.bf16 %v6957
    %v7186 = vunpack.c.l.s8.bf16 %v6958
    %v7187 = vunpack.c.l.s8.bf16 %v6959
    %v7188 = vunpack.c.h.s8.bf16 %v6954
    %v7189 = vunpack.c.h.s8.bf16 %v6955
    %v7190 = vunpack.c.h.s8.bf16 %v6956
    %v7191 = vunpack.c.h.s8.bf16 %v6957
    %v7192 = vunpack.c.h.s8.bf16 %v6958
    %v7193 = vunpack.c.h.s8.bf16 %v6959
    %v7194 = vunpack.c.l.s8.bf16 %v6960
    %v7195 = vunpack.c.l.s8.bf16 %v6961
    %v7196 = vunpack.c.l.s8.bf16 %v6962
    %v7197 = vunpack.c.l.s8.bf16 %v6963
    %v7198 = vunpack.c.l.s8.bf16 %v6964
    %v7199 = vunpack.c.l.s8.bf16 %v6965
    %v7200 = vunpack.c.h.s8.bf16 %v6960
    %v7201 = vunpack.c.h.s8.bf16 %v6961
    %v7202 = vunpack.c.h.s8.bf16 %v6962
    %v7203 = vunpack.c.h.s8.bf16 %v6963
    %v7204 = vunpack.c.h.s8.bf16 %v6964
    %v7205 = vunpack.c.h.s8.bf16 %v6965
    %v7206 = vunpack.c.l.s8.bf16 %v6966
    %v7207 = vunpack.c.l.s8.bf16 %v6967
    %v7208 = vunpack.c.l.s8.bf16 %v6968
    %v7209 = vunpack.c.l.s8.bf16 %v6969
    %v7210 = vunpack.c.l.s8.bf16 %v6970
    %v7211 = vunpack.c.l.s8.bf16 %v6971
    %v7212 = vunpack.c.h.s8.bf16 %v6966
    %v7213 = vunpack.c.h.s8.bf16 %v6967
    %v7214 = vunpack.c.h.s8.bf16 %v6968
    %v7215 = vunpack.c.h.s8.bf16 %v6969
    %v7216 = vunpack.c.h.s8.bf16 %v6970
    %v7217 = vunpack.c.h.s8.bf16 %v6971
    %v7218 = vunpack.c.l.s8.bf16 %v6972
    %v7219 = vunpack.c.l.s8.bf16 %v6973
    %v7220 = vunpack.c.l.s8.bf16 %v6974
    %v7221 = vunpack.c.l.s8.bf16 %v6975
    %v7222 = vunpack.c.l.s8.bf16 %v6976
    %v7223 = vunpack.c.l.s8.bf16 %v6977
    %v7224 = vunpack.c.h.s8.bf16 %v6972
    %v7225 = vunpack.c.h.s8.bf16 %v6973
    %v7226 = vunpack.c.h.s8.bf16 %v6974
    %v7227 = vunpack.c.h.s8.bf16 %v6975
    %v7228 = vunpack.c.h.s8.bf16 %v6976
    %v7229 = vunpack.c.h.s8.bf16 %v6977
    %v7230 = vunpack.c.l.s8.bf16 %v6978
    %v7231 = vunpack.c.l.s8.bf16 %v6979
    %v7232 = vunpack.c.l.s8.bf16 %v6980
    %v7233 = vunpack.c.l.s8.bf16 %v6981
    %v7234 = vunpack.c.l.s8.bf16 %v6982
    %v7235 = vunpack.c.l.s8.bf16 %v6983
    %v7236 = vunpack.c.h.s8.bf16 %v6978
    %v7237 = vunpack.c.h.s8.bf16 %v6979
    %v7238 = vunpack.c.h.s8.bf16 %v6980
    %v7239 = vunpack.c.h.s8.bf16 %v6981
    %v7240 = vunpack.c.h.s8.bf16 %v6982
    %v7241 = vunpack.c.h.s8.bf16 %v6983
    %v7242 = vunpack.c.l.s8.bf16 %v6984
    %v7243 = vunpack.c.l.s8.bf16 %v6985
    %v7244 = vunpack.c.l.s8.bf16 %v6986
    %v7245 = vunpack.c.l.s8.bf16 %v6987
    %v7246 = vunpack.c.l.s8.bf16 %v6988
    %v7247 = vunpack.c.l.s8.bf16 %v6989
    %v7248 = vunpack.c.h.s8.bf16 %v6984
    %v7249 = vunpack.c.h.s8.bf16 %v6985
    %v7250 = vunpack.c.h.s8.bf16 %v6986
    %v7251 = vunpack.c.h.s8.bf16 %v6987
    %v7252 = vunpack.c.h.s8.bf16 %v6988
    %v7253 = vunpack.c.h.s8.bf16 %v6989
    %v7254 = vunpack.c.l.s8.bf16 %v6990
    %v7255 = vunpack.c.l.s8.bf16 %v6991
    %v7256 = vunpack.c.l.s8.bf16 %v6992
    %v7257 = vunpack.c.l.s8.bf16 %v6993
    %v7258 = vunpack.c.l.s8.bf16 %v6994
    %v7259 = vunpack.c.l.s8.bf16 %v6995
    %v7260 = vunpack.c.h.s8.bf16 %v6990
    %v7261 = vunpack.c.h.s8.bf16 %v6991
    %v7262 = vunpack.c.h.s8.bf16 %v6992
    %v7263 = vunpack.c.h.s8.bf16 %v6993
    %v7264 = vunpack.c.h.s8.bf16 %v6994
    %v7265 = vunpack.c.h.s8.bf16 %v6995
    %v7266 = vunpack.c.l.s8.bf16 %v6996
    %v7267 = vunpack.c.l.s8.bf16 %v6997
    %v7268 = vunpack.c.l.s8.bf16 %v6998
    %v7269 = vunpack.c.l.s8.bf16 %v6999
    %v7270 = vunpack.c.l.s8.bf16 %v7000
    %v7271 = vunpack.c.l.s8.bf16 %v7001
    %v7272 = vunpack.c.h.s8.bf16 %v6996
    %v7273 = vunpack.c.h.s8.bf16 %v6997
    %v7274 = vunpack.c.h.s8.bf16 %v6998
    %v7275 = vunpack.c.h.s8.bf16 %v6999
    %v7276 = vunpack.c.h.s8.bf16 %v7000
    %v7277 = vunpack.c.h.s8.bf16 %v7001
    %v7278 = vunpack.c.l.s8.bf16 %v7002
    %v7279 = vunpack.c.l.s8.bf16 %v7003
    %v7280 = vunpack.c.l.s8.bf16 %v7004
    %v7281 = vunpack.c.l.s8.bf16 %v7005
    %v7282 = vunpack.c.l.s8.bf16 %v7006
    %v7283 = vunpack.c.l.s8.bf16 %v7007
    %v7284 = vunpack.c.h.s8.bf16 %v7002
    %v7285 = vunpack.c.h.s8.bf16 %v7003
    %v7286 = vunpack.c.h.s8.bf16 %v7004
    %v7287 = vunpack.c.h.s8.bf16 %v7005
    %v7288 = vunpack.c.h.s8.bf16 %v7006
    %v7289 = vunpack.c.h.s8.bf16 %v7007
    %v7290 = vunpack.c.l.s8.bf16 %v7008
    %v7291 = vunpack.c.l.s8.bf16 %v7009
    %v7292 = vunpack.c.l.s8.bf16 %v7010
    %v7293 = vunpack.c.l.s8.bf16 %v7011
    %v7294 = vunpack.c.l.s8.bf16 %v7012
    %v7295 = vunpack.c.l.s8.bf16 %v7013
    %v7296 = vunpack.c.h.s8.bf16 %v7008
    %v7297 = vunpack.c.h.s8.bf16 %v7009
    %v7298 = vunpack.c.h.s8.bf16 %v7010
    %v7299 = vunpack.c.h.s8.bf16 %v7011
    %v7300 = vunpack.c.h.s8.bf16 %v7012
    %v7301 = vunpack.c.h.s8.bf16 %v7013
    %v7314 = vunpack.c.l.b16 %v6858
    %v7315 = vunpack.c.l.b16 %v6859
    %v7316 = vunpack.c.l.b16 %v6860
    %v7317 = vunpack.c.l.b16 %v6861
    %v7318 = vunpack.c.l.b16 %v6862
    %v7319 = vunpack.c.l.b16 %v6863
    %v7320 = vunpack.c.l.b16 %v6864
    %v7321 = vunpack.c.l.b16 %v6865
    %v7322 = vunpack.c.l.b16 %v6866
    %v7323 = vunpack.c.l.b16 %v6867
    %v7324 = vunpack.c.l.b16 %v6868
    %v7325 = vunpack.c.l.b16 %v6869
    %v7326 = vrot.slane %v7320, 7
    %vm7327 = vcmask 1041409
    %v7328 = vsel %vm7327, %v7326, %v7314
    %v7329 = vrot.slane %v7321, 7
    %v7330 = vsel %vm7327, %v7329, %v7315
    %v7331 = vrot.slane %v7322, 7
    %v7332 = vsel %vm7327, %v7331, %v7316
    %v7333 = vrot.slane %v7323, 7
    %v7334 = vsel %vm7327, %v7333, %v7317
    %v7335 = vrot.slane %v7324, 7
    %v7336 = vsel %vm7327, %v7335, %v7318
    %v7337 = vrot.slane %v7325, 7
    %v7338 = vsel %vm7327, %v7337, %v7319
    %v7339 = vpack.c.b16 %v7328, %v7328
    %v7340 = vpack.c.b16 %v7330, %v7330
    %v7341 = vpack.c.b16 %v7332, %v7332
    %v7342 = vpack.c.b16 %v7334, %v7334
    %v7343 = vpack.c.b16 %v7336, %v7336
    %v7344 = vpack.c.b16 %v7338, %v7338
    %7351 = vmatprep.subr.bf16.mxu0 %v7015
    %7352 = vmatpush1.bf16.msra.mxu0 %v7014
    %7353 = vmatprep.subr.bf16.mxu0 %v7021
    %7354 = vmatpush1.bf16.msra.mxu0 %v7020
    %7355 = vmatprep.subr.bf16.mxu0 %v7027
    %7356 = vmatpush1.bf16.msra.mxu0 %v7026
    %7357 = vmatprep.subr.bf16.mxu0 %v7033
    %7358 = vmatpush1.bf16.msra.mxu0 %v7032
    %7359 = vmatprep.subr.bf16.mxu0 %v7039
    %7360 = vmatpush1.bf16.msra.mxu0 %v7038
    %7361 = vmatprep.subr.bf16.mxu0 %v7045
    %7362 = vmatpush1.bf16.msra.mxu0 %v7044
    %7363 = vmatprep.subr.bf16.mxu0 %v7051
    %7364 = vmatpush1.bf16.msra.mxu0 %v7050
    %7365 = vmatprep.subr.bf16.mxu0 %v7057
    %7366 = vmatpush1.bf16.msra.mxu0 %v7056
    %7367 = vmatprep.subr.bf16.mxu0 %v7063
    %7368 = vmatpush1.bf16.msra.mxu0 %v7062
    %7369 = vmatprep.subr.bf16.mxu0 %v7069
    %7370 = vmatpush1.bf16.msra.mxu0 %v7068
    %7371 = vmatprep.subr.bf16.mxu0 %v7075
    %7372 = vmatpush1.bf16.msra.mxu0 %v7074
    %7373 = vmatprep.subr.bf16.mxu0 %v7081
    %7374 = vmatpush1.bf16.msra.mxu0 %v7080
    %7375 = vmatprep.subr.bf16.mxu0 %v7087
    %7376 = vmatpush1.bf16.msra.mxu0 %v7086
    %7377 = vmatprep.subr.bf16.mxu0 %v7093
    %7378 = vmatpush1.bf16.msra.mxu0 %v7092
    %7379 = vmatprep.subr.bf16.mxu0 %v7099
    %7380 = vmatpush1.bf16.msra.mxu0 %v7098
    %7381 = vmatprep.subr.bf16.mxu0 %v7105
    %7382 = vmatpush1.bf16.msra.mxu0 %v7104
    %7383 = vmatprep.mubr.bf16.mxu0 %v7340
    %7384 = vmatmul.mubr.bf16.gmra.mrb[0].mxu0 %v7339
    %v7385 = vpop.f32.mrb[0].mxu0
    %v7386 = vadd.f32 0.0, %v7385
    %v7387 = vpop.f32.mrb[0].mxu0
    %v7388 = vadd.f32 0.0, %v7387
    %v7389 = vpop.f32.mrb[0].mxu0
    %v7390 = vpop.f32.mrb[0].mxu0
    %7391 = vdwg.mxu0
    %7392 = vmatprep.subr.bf16.mxu0 %v7111
    %7393 = vmatpush1.bf16.msra.mxu0 %v7110
    %7394 = vmatprep.subr.bf16.mxu0 %v7117
    %7395 = vmatpush1.bf16.msra.mxu0 %v7116
    %7396 = vmatprep.subr.bf16.mxu0 %v7123
    %7397 = vmatpush1.bf16.msra.mxu0 %v7122
    %7398 = vmatprep.subr.bf16.mxu0 %v7129
    %7399 = vmatpush1.bf16.msra.mxu0 %v7128
    %7400 = vmatprep.subr.bf16.mxu0 %v7135
    %7401 = vmatpush1.bf16.msra.mxu0 %v7134
    %7402 = vmatprep.subr.bf16.mxu0 %v7141
    %7403 = vmatpush1.bf16.msra.mxu0 %v7140
    %7404 = vmatprep.subr.bf16.mxu0 %v7147
    %7405 = vmatpush1.bf16.msra.mxu0 %v7146
    %7406 = vmatprep.subr.bf16.mxu0 %v7153
    %7407 = vmatpush1.bf16.msra.mxu0 %v7152
    %7408 = vmatprep.subr.bf16.mxu0 %v7159
    %7409 = vmatpush1.bf16.msra.mxu0 %v7158
    %7410 = vmatprep.subr.bf16.mxu0 %v7165
    %7411 = vmatpush1.bf16.msra.mxu0 %v7164
    %7412 = vmatprep.subr.bf16.mxu0 %v7171
    %7413 = vmatpush1.bf16.msra.mxu0 %v7170
    %7414 = vmatprep.subr.bf16.mxu0 %v7177
    %7415 = vmatpush1.bf16.msra.mxu0 %v7176
    %7416 = vmatprep.subr.bf16.mxu0 %v7183
    %7417 = vmatpush1.bf16.msra.mxu0 %v7182
    %7418 = vmatprep.subr.bf16.mxu0 %v7189
    %7419 = vmatpush1.bf16.msra.mxu0 %v7188
    %7420 = vmatprep.subr.bf16.mxu0 %v7195
    %7421 = vmatpush1.bf16.msra.mxu0 %v7194
    %7422 = vmatprep.subr.bf16.mxu0 %v7201
    %7423 = vmatpush1.bf16.msra.mxu0 %v7200
    %7424 = vmatprep.mubr.bf16.mxu0 %v7342
    %7425 = vmatmul.mubr.bf16.gmra.mrb[0].mxu0 %v7341
    %v7426 = vpop.f32.mrb[0].mxu0
    %v7427 = vadd.f32 %v7386, %v7426
    %v7428 = vpop.f32.mrb[0].mxu0
    %v7429 = vadd.f32 %v7388, %v7428
    %v7430 = vpop.f32.mrb[0].mxu0
    %v7431 = vpop.f32.mrb[0].mxu0
    %7432 = vdwg.mxu0
    %7433 = vmatprep.subr.bf16.mxu0 %v7207
    %7434 = vmatpush1.bf16.msra.mxu0 %v7206
    %7435 = vmatprep.subr.bf16.mxu0 %v7213
    %7436 = vmatpush1.bf16.msra.mxu0 %v7212
    %7437 = vmatprep.subr.bf16.mxu0 %v7219
    %7438 = vmatpush1.bf16.msra.mxu0 %v7218
    %7439 = vmatprep.subr.bf16.mxu0 %v7225
    %7440 = vmatpush1.bf16.msra.mxu0 %v7224
    %7441 = vmatprep.subr.bf16.mxu0 %v7231
    %7442 = vmatpush1.bf16.msra.mxu0 %v7230
    %7443 = vmatprep.subr.bf16.mxu0 %v7237
    %7444 = vmatpush1.bf16.msra.mxu0 %v7236
    %7445 = vmatprep.subr.bf16.mxu0 %v7243
    %7446 = vmatpush1.bf16.msra.mxu0 %v7242
    %7447 = vmatprep.subr.bf16.mxu0 %v7249
    %7448 = vmatpush1.bf16.msra.mxu0 %v7248
    %7449 = vmatprep.subr.bf16.mxu0 %v7255
    %7450 = vmatpush1.bf16.msra.mxu0 %v7254
    %7451 = vmatprep.subr.bf16.mxu0 %v7261
    %7452 = vmatpush1.bf16.msra.mxu0 %v7260
    %7453 = vmatprep.subr.bf16.mxu0 %v7267
    %7454 = vmatpush1.bf16.msra.mxu0 %v7266
    %7455 = vmatprep.subr.bf16.mxu0 %v7273
    %7456 = vmatpush1.bf16.msra.mxu0 %v7272
    %7457 = vmatprep.subr.bf16.mxu0 %v7279
    %7458 = vmatpush1.bf16.msra.mxu0 %v7278
    %7459 = vmatprep.subr.bf16.mxu0 %v7285
    %7460 = vmatpush1.bf16.msra.mxu0 %v7284
    %7461 = vmatprep.subr.bf16.mxu0 %v7291
    %7462 = vmatpush1.bf16.msra.mxu0 %v7290
    %7463 = vmatprep.subr.bf16.mxu0 %v7297
    %7464 = vmatpush1.bf16.msra.mxu0 %v7296
    %7465 = vmatprep.mubr.bf16.mxu0 %v7344
    %7466 = vmatmul.mubr.bf16.gmra.mrb[0].mxu0 %v7343
    %v7467 = vpop.f32.mrb[0].mxu0
    %v7468 = vadd.f32 %v7427, %v7467
    %v7469 = vpop.f32.mrb[0].mxu0
    %v7470 = vadd.f32 %v7429, %v7469
    %v7471 = vpop.f32.mrb[0].mxu0
    %v7472 = vpop.f32.mrb[0].mxu0
    %7473 = vdwg.mxu0
    %7474 = vmatprep.subr.bf16.mxu0 %v7017
    %7475 = vmatpush1.bf16.msra.mxu0 %v7016
    %7476 = vmatprep.subr.bf16.mxu0 %v7023
    %7477 = vmatpush1.bf16.msra.mxu0 %v7022
    %7478 = vmatprep.subr.bf16.mxu0 %v7029
    %7479 = vmatpush1.bf16.msra.mxu0 %v7028
    %7480 = vmatprep.subr.bf16.mxu0 %v7035
    %7481 = vmatpush1.bf16.msra.mxu0 %v7034
    %7482 = vmatprep.subr.bf16.mxu0 %v7041
    %7483 = vmatpush1.bf16.msra.mxu0 %v7040
    %7484 = vmatprep.subr.bf16.mxu0 %v7047
    %7485 = vmatpush1.bf16.msra.mxu0 %v7046
    %7486 = vmatprep.subr.bf16.mxu0 %v7053
    %7487 = vmatpush1.bf16.msra.mxu0 %v7052
    %7488 = vmatprep.subr.bf16.mxu0 %v7059
    %7489 = vmatpush1.bf16.msra.mxu0 %v7058
    %7490 = vmatprep.subr.bf16.mxu0 %v7065
    %7491 = vmatpush1.bf16.msra.mxu0 %v7064
    %7492 = vmatprep.subr.bf16.mxu0 %v7071
    %7493 = vmatpush1.bf16.msra.mxu0 %v7070
    %7494 = vmatprep.subr.bf16.mxu0 %v7077
    %7495 = vmatpush1.bf16.msra.mxu0 %v7076
    %7496 = vmatprep.subr.bf16.mxu0 %v7083
    %7497 = vmatpush1.bf16.msra.mxu0 %v7082
    %7498 = vmatprep.subr.bf16.mxu0 %v7089
    %7499 = vmatpush1.bf16.msra.mxu0 %v7088
    %7500 = vmatprep.subr.bf16.mxu0 %v7095
    %7501 = vmatpush1.bf16.msra.mxu0 %v7094
    %7502 = vmatprep.subr.bf16.mxu0 %v7101
    %7503 = vmatpush1.bf16.msra.mxu0 %v7100
    %7504 = vmatprep.subr.bf16.mxu0 %v7107
    %7505 = vmatpush1.bf16.msra.mxu0 %v7106
    %7506 = vmatprep.mubr.bf16.mxu0 %v7340
    %7507 = vmatmul.mubr.bf16.gmra.mrb[0].mxu0 %v7339
    %v7508 = vpop.f32.mrb[0].mxu0
    %v7509 = vadd.f32 0.0, %v7508
    %v7510 = vpop.f32.mrb[0].mxu0
    %v7511 = vadd.f32 0.0, %v7510
    %v7512 = vpop.f32.mrb[0].mxu0
    %v7513 = vpop.f32.mrb[0].mxu0
    %7514 = vdwg.mxu0
    %7515 = vmatprep.subr.bf16.mxu0 %v7113
    %7516 = vmatpush1.bf16.msra.mxu0 %v7112
    %7517 = vmatprep.subr.bf16.mxu0 %v7119
    %7518 = vmatpush1.bf16.msra.mxu0 %v7118
    %7519 = vmatprep.subr.bf16.mxu0 %v7125
    %7520 = vmatpush1.bf16.msra.mxu0 %v7124
    %7521 = vmatprep.subr.bf16.mxu0 %v7131
    %7522 = vmatpush1.bf16.msra.mxu0 %v7130
    %7523 = vmatprep.subr.bf16.mxu0 %v7137
    %7524 = vmatpush1.bf16.msra.mxu0 %v7136
    %7525 = vmatprep.subr.bf16.mxu0 %v7143
    %7526 = vmatpush1.bf16.msra.mxu0 %v7142
    %7527 = vmatprep.subr.bf16.mxu0 %v7149
    %7528 = vmatpush1.bf16.msra.mxu0 %v7148
    %7529 = vmatprep.subr.bf16.mxu0 %v7155
    %7530 = vmatpush1.bf16.msra.mxu0 %v7154
    %7531 = vmatprep.subr.bf16.mxu0 %v7161
    %7532 = vmatpush1.bf16.msra.mxu0 %v7160
    %7533 = vmatprep.subr.bf16.mxu0 %v7167
    %7534 = vmatpush1.bf16.msra.mxu0 %v7166
    %7535 = vmatprep.subr.bf16.mxu0 %v7173
    %7536 = vmatpush1.bf16.msra.mxu0 %v7172
    %7537 = vmatprep.subr.bf16.mxu0 %v7179
    %7538 = vmatpush1.bf16.msra.mxu0 %v7178
    %7539 = vmatprep.subr.bf16.mxu0 %v7185
    %7540 = vmatpush1.bf16.msra.mxu0 %v7184
    %7541 = vmatprep.subr.bf16.mxu0 %v7191
    %7542 = vmatpush1.bf16.msra.mxu0 %v7190
    %7543 = vmatprep.subr.bf16.mxu0 %v7197
    %7544 = vmatpush1.bf16.msra.mxu0 %v7196
    %7545 = vmatprep.subr.bf16.mxu0 %v7203
    %7546 = vmatpush1.bf16.msra.mxu0 %v7202
    %7547 = vmatprep.mubr.bf16.mxu0 %v7342
    %7548 = vmatmul.mubr.bf16.gmra.mrb[0].mxu0 %v7341
    %v7549 = vpop.f32.mrb[0].mxu0
    %v7550 = vadd.f32 %v7509, %v7549
    %v7551 = vpop.f32.mrb[0].mxu0
    %v7552 = vadd.f32 %v7511, %v7551
    %v7553 = vpop.f32.mrb[0].mxu0
    %v7554 = vpop.f32.mrb[0].mxu0
    %7555 = vdwg.mxu0
    %7556 = vmatprep.subr.bf16.mxu0 %v7209
    %7557 = vmatpush1.bf16.msra.mxu0 %v7208
    %7558 = vmatprep.subr.bf16.mxu0 %v7215
    %7559 = vmatpush1.bf16.msra.mxu0 %v7214
    %7560 = vmatprep.subr.bf16.mxu0 %v7221
    %7561 = vmatpush1.bf16.msra.mxu0 %v7220
    %7562 = vmatprep.subr.bf16.mxu0 %v7227
    %7563 = vmatpush1.bf16.msra.mxu0 %v7226
    %7564 = vmatprep.subr.bf16.mxu0 %v7233
    %7565 = vmatpush1.bf16.msra.mxu0 %v7232
    %7566 = vmatprep.subr.bf16.mxu0 %v7239
    %7567 = vmatpush1.bf16.msra.mxu0 %v7238
    %7568 = vmatprep.subr.bf16.mxu0 %v7245
    %7569 = vmatpush1.bf16.msra.mxu0 %v7244
    %7570 = vmatprep.subr.bf16.mxu0 %v7251
    %7571 = vmatpush1.bf16.msra.mxu0 %v7250
    %7572 = vmatprep.subr.bf16.mxu0 %v7257
    %7573 = vmatpush1.bf16.msra.mxu0 %v7256
    %7574 = vmatprep.subr.bf16.mxu0 %v7263
    %7575 = vmatpush1.bf16.msra.mxu0 %v7262
    %7576 = vmatprep.subr.bf16.mxu0 %v7269
    %7577 = vmatpush1.bf16.msra.mxu0 %v7268
    %7578 = vmatprep.subr.bf16.mxu0 %v7275
    %7579 = vmatpush1.bf16.msra.mxu0 %v7274
    %7580 = vmatprep.subr.bf16.mxu0 %v7281
    %7581 = vmatpush1.bf16.msra.mxu0 %v7280
    %7582 = vmatprep.subr.bf16.mxu0 %v7287
    %7583 = vmatpush1.bf16.msra.mxu0 %v7286
    %7584 = vmatprep.subr.bf16.mxu0 %v7293
    %7585 = vmatpush1.bf16.msra.mxu0 %v7292
    %7586 = vmatprep.subr.bf16.mxu0 %v7299
    %7587 = vmatpush1.bf16.msra.mxu0 %v7298
    %7588 = vmatprep.mubr.bf16.mxu0 %v7344
    %7589 = vmatmul.mubr.bf16.gmra.mrb[0].mxu0 %v7343
    %v7590 = vpop.f32.mrb[0].mxu0
    %v7591 = vadd.f32 %v7550, %v7590
    %v7592 = vpop.f32.mrb[0].mxu0
    %v7593 = vadd.f32 %v7552, %v7592
    %v7594 = vpop.f32.mrb[0].mxu0
    %v7595 = vpop.f32.mrb[0].mxu0
    %7596 = vdwg.mxu0
    %7597 = vmatprep.subr.bf16.mxu0 %v7019
    %7598 = vmatpush1.bf16.msra.mxu0 %v7018
    %7599 = vmatprep.subr.bf16.mxu0 %v7025
    %7600 = vmatpush1.bf16.msra.mxu0 %v7024
    %7601 = vmatprep.subr.bf16.mxu0 %v7031
    %7602 = vmatpush1.bf16.msra.mxu0 %v7030
    %7603 = vmatprep.subr.bf16.mxu0 %v7037
    %7604 = vmatpush1.bf16.msra.mxu0 %v7036
    %7605 = vmatprep.subr.bf16.mxu0 %v7043
    %7606 = vmatpush1.bf16.msra.mxu0 %v7042
    %7607 = vmatprep.subr.bf16.mxu0 %v7049
    %7608 = vmatpush1.bf16.msra.mxu0 %v7048
    %7609 = vmatprep.subr.bf16.mxu0 %v7055
    %7610 = vmatpush1.bf16.msra.mxu0 %v7054
    %7611 = vmatprep.subr.bf16.mxu0 %v7061
    %7612 = vmatpush1.bf16.msra.mxu0 %v7060
    %7613 = vmatprep.subr.bf16.mxu0 %v7067
    %7614 = vmatpush1.bf16.msra.mxu0 %v7066
    %7615 = vmatprep.subr.bf16.mxu0 %v7073
    %7616 = vmatpush1.bf16.msra.mxu0 %v7072
    %7617 = vmatprep.subr.bf16.mxu0 %v7079
    %7618 = vmatpush1.bf16.msra.mxu0 %v7078
    %7619 = vmatprep.subr.bf16.mxu0 %v7085
    %7620 = vmatpush1.bf16.msra.mxu0 %v7084
    %7621 = vmatprep.subr.bf16.mxu0 %v7091
    %7622 = vmatpush1.bf16.msra.mxu0 %v7090
    %7623 = vmatprep.subr.bf16.mxu0 %v7097
    %7624 = vmatpush1.bf16.msra.mxu0 %v7096
    %7625 = vmatprep.subr.bf16.mxu0 %v7103
    %7626 = vmatpush1.bf16.msra.mxu0 %v7102
    %7627 = vmatprep.subr.bf16.mxu0 %v7109
    %7628 = vmatpush1.bf16.msra.mxu0 %v7108
    %7629 = vmatprep.mubr.bf16.mxu0 %v7340
    %7630 = vmatmul.mubr.bf16.gmra.mrb[0].mxu0 %v7339
    %v7631 = vpop.f32.mrb[0].mxu0
    %v7632 = vadd.f32 0.0, %v7631
    %v7633 = vpop.f32.mrb[0].mxu0
    %v7634 = vadd.f32 0.0, %v7633
    %v7635 = vpop.f32.mrb[0].mxu0
    %v7636 = vpop.f32.mrb[0].mxu0
    %7637 = vdwg.mxu0
    %7638 = vmatprep.subr.bf16.mxu0 %v7115
    %7639 = vmatpush1.bf16.msra.mxu0 %v7114
    %7640 = vmatprep.subr.bf16.mxu0 %v7121
    %7641 = vmatpush1.bf16.msra.mxu0 %v7120
    %7642 = vmatprep.subr.bf16.mxu0 %v7127
    %7643 = vmatpush1.bf16.msra.mxu0 %v7126
    %7644 = vmatprep.subr.bf16.mxu0 %v7133
    %7645 = vmatpush1.bf16.msra.mxu0 %v7132
    %7646 = vmatprep.subr.bf16.mxu0 %v7139
    %7647 = vmatpush1.bf16.msra.mxu0 %v7138
    %7648 = vmatprep.subr.bf16.mxu0 %v7145
    %7649 = vmatpush1.bf16.msra.mxu0 %v7144
    %7650 = vmatprep.subr.bf16.mxu0 %v7151
    %7651 = vmatpush1.bf16.msra.mxu0 %v7150
    %7652 = vmatprep.subr.bf16.mxu0 %v7157
    %7653 = vmatpush1.bf16.msra.mxu0 %v7156
    %7654 = vmatprep.subr.bf16.mxu0 %v7163
    %7655 = vmatpush1.bf16.msra.mxu0 %v7162
    %7656 = vmatprep.subr.bf16.mxu0 %v7169
    %7657 = vmatpush1.bf16.msra.mxu0 %v7168
    %7658 = vmatprep.subr.bf16.mxu0 %v7175
    %7659 = vmatpush1.bf16.msra.mxu0 %v7174
    %7660 = vmatprep.subr.bf16.mxu0 %v7181
    %7661 = vmatpush1.bf16.msra.mxu0 %v7180
    %7662 = vmatprep.subr.bf16.mxu0 %v7187
    %7663 = vmatpush1.bf16.msra.mxu0 %v7186
    %7664 = vmatprep.subr.bf16.mxu0 %v7193
    %7665 = vmatpush1.bf16.msra.mxu0 %v7192
    %7666 = vmatprep.subr.bf16.mxu0 %v7199
    %7667 = vmatpush1.bf16.msra.mxu0 %v7198
    %7668 = vmatprep.subr.bf16.mxu0 %v7205
    %7669 = vmatpush1.bf16.msra.mxu0 %v7204
    %7670 = vmatprep.mubr.bf16.mxu0 %v7342
    %7671 = vmatmul.mubr.bf16.gmra.mrb[0].mxu0 %v7341
    %v7672 = vpop.f32.mrb[0].mxu0
    %v7673 = vadd.f32 %v7632, %v7672
    %v7674 = vpop.f32.mrb[0].mxu0
    %v7675 = vadd.f32 %v7634, %v7674
    %v7676 = vpop.f32.mrb[0].mxu0
    %v7677 = vpop.f32.mrb[0].mxu0
    %7678 = vdwg.mxu0
    %7679 = vmatprep.subr.bf16.mxu0 %v7211
    %7680 = vmatpush1.bf16.msra.mxu0 %v7210
    %7681 = vmatprep.subr.bf16.mxu0 %v7217
    %7682 = vmatpush1.bf16.msra.mxu0 %v7216
    %7683 = vmatprep.subr.bf16.mxu0 %v7223
    %7684 = vmatpush1.bf16.msra.mxu0 %v7222
    %7685 = vmatprep.subr.bf16.mxu0 %v7229
    %7686 = vmatpush1.bf16.msra.mxu0 %v7228
    %7687 = vmatprep.subr.bf16.mxu0 %v7235
    %7688 = vmatpush1.bf16.msra.mxu0 %v7234
    %7689 = vmatprep.subr.bf16.mxu0 %v7241
    %7690 = vmatpush1.bf16.msra.mxu0 %v7240
    %7691 = vmatprep.subr.bf16.mxu0 %v7247
    %7692 = vmatpush1.bf16.msra.mxu0 %v7246
    %7693 = vmatprep.subr.bf16.mxu0 %v7253
    %7694 = vmatpush1.bf16.msra.mxu0 %v7252
    %7695 = vmatprep.subr.bf16.mxu0 %v7259
    %7696 = vmatpush1.bf16.msra.mxu0 %v7258
    %7697 = vmatprep.subr.bf16.mxu0 %v7265
    %7698 = vmatpush1.bf16.msra.mxu0 %v7264
    %7699 = vmatprep.subr.bf16.mxu0 %v7271
    %7700 = vmatpush1.bf16.msra.mxu0 %v7270
    %7701 = vmatprep.subr.bf16.mxu0 %v7277
    %7702 = vmatpush1.bf16.msra.mxu0 %v7276
    %7703 = vmatprep.subr.bf16.mxu0 %v7283
    %7704 = vmatpush1.bf16.msra.mxu0 %v7282
    %7705 = vmatprep.subr.bf16.mxu0 %v7289
    %7706 = vmatpush1.bf16.msra.mxu0 %v7288
    %7707 = vmatprep.subr.bf16.mxu0 %v7295
    %7708 = vmatpush1.bf16.msra.mxu0 %v7294
    %7709 = vmatprep.subr.bf16.mxu0 %v7301
    %7710 = vmatpush1.bf16.msra.mxu0 %v7300
    %7711 = vmatprep.mubr.bf16.mxu0 %v7344
    %7712 = vmatmul.mubr.bf16.gmra.mrb[0].mxu0 %v7343
    %v7713 = vpop.f32.mrb[0].mxu0
    %v7714 = vadd.f32 %v7673, %v7713
    %v7715 = vpop.f32.mrb[0].mxu0
    %v7716 = vadd.f32 %v7675, %v7715
    %v7717 = vpop.f32.mrb[0].mxu0
    %v7718 = vpop.f32.mrb[0].mxu0
    %7719 = vdwg.mxu0
    %v7720 = vlaneseq
    %v7721 = vshrl.u32 %v7720, 7
    %v7722 = vsub.s32 3, %v7721
    %v7723 = vrot.slane %v313, %v7722
    %v7724 = vlaneseq
    %v7725 = vshrl.u32 %v7724, 7
    %v7726 = vsub.s32 3, %v7725
    %v7727 = vrot.slane %v314, %v7726
    %v7728 = vlaneseq
    %v7729 = vshrl.u32 %v7728, 7
    %v7730 = vsub.s32 3, %v7729
    %v7731 = vrot.slane %v315, %v7730
    %v7732 = vlaneseq
    %v7733 = vshrl.u32 %v7732, 7
    %v7734 = vsub.s32 3, %v7733
    %v7735 = vrot.slane %v316, %v7734
    %v7736 = vlaneseq
    %v7737 = vshrl.u32 %v7736, 7
    %v7738 = vsub.s32 3, %v7737
    %v7739 = vrot.slane %v317, %v7738
    %v7740 = vlaneseq
    %v7741 = vshrl.u32 %v7740, 7
    %v7742 = vsub.s32 3, %v7741
    %v7743 = vrot.slane %v318, %v7742
    %v7744 = vmul.f32 %v7468, %v7723
    %v7745 = vmul.f32 %v7470, %v7727
    %v7746 = vmul.f32 %v7591, %v7731
    %v7747 = vmul.f32 %v7593, %v7735
    %v7748 = vmul.f32 %v7714, %v7739
    %v7749 = vmul.f32 %v7716, %v7743
    %v7750 = vlaneseq
    %v7751 = vshrl.u32 %v7750, 7
    %v7752 = vsub.s32 3, %v7751
    %v7753 = vrot.slane %v319, %v7752
    %v7754 = vlaneseq
    %v7755 = vshrl.u32 %v7754, 7
    %v7756 = vsub.s32 3, %v7755
    %v7757 = vrot.slane %v320, %v7756
    %v7758 = vlaneseq
    %v7759 = vshrl.u32 %v7758, 7
    %v7760 = vsub.s32 3, %v7759
    %v7761 = vrot.slane %v321, %v7760
    %v7762 = vlaneseq
    %v7763 = vshrl.u32 %v7762, 7
    %v7764 = vsub.s32 3, %v7763
    %v7765 = vrot.slane %v322, %v7764
    %v7766 = vlaneseq
    %v7767 = vshrl.u32 %v7766, 7
    %v7768 = vsub.s32 3, %v7767
    %v7769 = vrot.slane %v323, %v7768
    %v7770 = vlaneseq
    %v7771 = vshrl.u32 %v7770, 7
    %v7772 = vsub.s32 3, %v7771
    %v7773 = vrot.slane %v324, %v7772
    %v7774 = vadd.f32 %v7744, %v7753
    %v7775 = vadd.f32 %v7745, %v7757
    %v7776 = vadd.f32 %v7746, %v7761
    %v7777 = vadd.f32 %v7747, %v7765
    %v7778 = vadd.f32 %v7748, %v7769
    %v7779 = vadd.f32 %v7749, %v7773
    %v7780 = vunpack.c.l.bf16 %v3434
    %v7781 = vunpack.c.h.bf16 %v3434
    %v7784 = vcombine.high %v7780, %v7780
    %v7786 = vunpack.c.l.s4 1983009808
    %v7787 = vunpack.c.0.s8 %v7786
    %v7788 = vlaneseq
    %v7789 = vshrl.u32 %v7788, 7
    %v7790 = vsub.s32 %v7787, %v7789
    %v7791 = vrot.slane %v7780, %v7790
    %v7793 = vunpack.c.l.s4 1983009808
    %v7794 = vunpack.c.0.s8 %v7793
    %v7795 = vlaneseq
    %v7796 = vshrl.u32 %v7795, 7
    %v7797 = vsub.s32 %v7794, %v7796
    %v7798 = vrot.slane %v7784, %v7797
    %v7799 = vcombine.high %v7791, %v7791
    %v7800 = vcombine.high %v7798, %v7798
    %v7802 = vunpack.c.l.s4 1983009808
    %v7803 = vunpack.c.0.s8 %v7802
    %v7804 = vlaneseq
    %v7805 = vshrl.u32 %v7804, 7
    %v7806 = vsub.s32 %v7803, %v7805
    %v7807 = vrot.slane %v7781, %v7806
    %v7808 = vcombine.high %v7807, %v7807
    %v7815 = vadd.f32 %v7774, %v7791
    %v7816 = vadd.f32 %v7775, %v7799
    %v7817 = vadd.f32 %v7776, %v7798
    %v7818 = vadd.f32 %v7777, %v7800
    %v7819 = vadd.f32 %v7778, %v7807
    %v7820 = vadd.f32 %v7779, %v7808
    %s7821 = sshll.u32 %s3436, 4
    %7822 = dma.done %s301, %s7821
    %v7823 = vpack.c.bf16 %v7815, %v7815
    %v7824 = vpack.c.bf16 %v7816, %v7816
    %v7825 = vpack.c.bf16 %v7817, %v7817
    %v7826 = vpack.c.bf16 %v7818, %v7818
    %v7827 = vpack.c.bf16 %v7819, %v7819
    %v7828 = vpack.c.bf16 %v7820, %v7820
    %v7829 = vld [vmem:[%s300] sm:$0xff]
    %v7830 = vld [vmem:[%s300 + $0x8] sm:$0xff]
    %v7831 = vld [vmem:[%s300 + $0x10] sm:$0xff]
    %v7832 = vld [vmem:[%s300 + $0x18] sm:$0xff]
    %v7833 = vld [vmem:[%s300 + $0x20] sm:$0xff]
    %v7834 = vld [vmem:[%s300 + $0x28] sm:$0xff]
    %v7835 = vld [vmem:[%s300 + $0x30] sm:$0xff]
    %v7836 = vld [vmem:[%s300 + $0x38] sm:$0xff]
    %v7837 = vld [vmem:[%s300 + $0x40] sm:$0xff]
    %v7838 = vld [vmem:[%s300 + $0x48] sm:$0xff]
    %v7839 = vld [vmem:[%s300 + $0x50] sm:$0xff]
    %v7840 = vld [vmem:[%s300 + $0x58] sm:$0xff]
    %v7841 = vld [vmem:[%s300 + $0x60] sm:$0xff]
    %v7842 = vld [vmem:[%s300 + $0x68] sm:$0xff]
    %v7843 = vld [vmem:[%s300 + $0x70] sm:$0xff]
    %v7844 = vld [vmem:[%s300 + $0x78] sm:$0xff]
    %v7845 = vld [vmem:[%s300 + $0x80] sm:$0xff]
    %v7846 = vld [vmem:[%s300 + $0x88] sm:$0xff]
    %v7847 = vld [vmem:[%s300 + $0x90] sm:$0xff]
    %v7848 = vld [vmem:[%s300 + $0x98] sm:$0xff]
    %v7849 = vld [vmem:[%s300 + $0xa0] sm:$0xff]
    %v7850 = vld [vmem:[%s300 + $0xa8] sm:$0xff]
    %v7851 = vld [vmem:[%s300 + $0xb0] sm:$0xff]
    %v7852 = vld [vmem:[%s300 + $0xb8] sm:$0xff]
    %v7853 = vld [vmem:[%s300 + $0xc0] sm:$0xff]
    %v7854 = vld [vmem:[%s300 + $0xc8] sm:$0xff]
    %v7855 = vld [vmem:[%s300 + $0xd0] sm:$0xff]
    %v7856 = vld [vmem:[%s300 + $0xd8] sm:$0xff]
    %v7857 = vld [vmem:[%s300 + $0xe0] sm:$0xff]
    %v7858 = vld [vmem:[%s300 + $0xe8] sm:$0xff]
    %v7859 = vld [vmem:[%s300 + $0xf0] sm:$0xff]
    %v7860 = vld [vmem:[%s300 + $0xf8] sm:$0xff]
    %v7861 = vld [vmem:[%s300 + $0x100] sm:$0xff]
    %v7862 = vld [vmem:[%s300 + $0x108] sm:$0xff]
    %v7863 = vld [vmem:[%s300 + $0x110] sm:$0xff]
    %v7864 = vld [vmem:[%s300 + $0x118] sm:$0xff]
    %v7865 = vld [vmem:[%s300 + $0x120] sm:$0xff]
    %v7866 = vld [vmem:[%s300 + $0x128] sm:$0xff]
    %v7867 = vld [vmem:[%s300 + $0x130] sm:$0xff]
    %v7868 = vld [vmem:[%s300 + $0x138] sm:$0xff]
    %v7869 = vld [vmem:[%s300 + $0x140] sm:$0xff]
    %v7870 = vld [vmem:[%s300 + $0x148] sm:$0xff]
    %v7871 = vld [vmem:[%s300 + $0x150] sm:$0xff]
    %v7872 = vld [vmem:[%s300 + $0x158] sm:$0xff]
    %v7873 = vld [vmem:[%s300 + $0x160] sm:$0xff]
    %v7874 = vld [vmem:[%s300 + $0x168] sm:$0xff]
    %v7875 = vld [vmem:[%s300 + $0x170] sm:$0xff]
    %v7876 = vld [vmem:[%s300 + $0x178] sm:$0xff]
    %v7877 = vld [vmem:[%s300 + $0x180] sm:$0xff]
    %v7878 = vld [vmem:[%s300 + $0x188] sm:$0xff]
    %v7879 = vld [vmem:[%s300 + $0x190] sm:$0xff]
    %v7880 = vld [vmem:[%s300 + $0x198] sm:$0xff]
    %v7881 = vld [vmem:[%s300 + $0x1a0] sm:$0xff]
    %v7882 = vld [vmem:[%s300 + $0x1a8] sm:$0xff]
    %v7883 = vld [vmem:[%s300 + $0x1b0] sm:$0xff]
    %v7884 = vld [vmem:[%s300 + $0x1b8] sm:$0xff]
    %v7885 = vld [vmem:[%s300 + $0x1c0] sm:$0xff]
    %v7886 = vld [vmem:[%s300 + $0x1c8] sm:$0xff]
    %v7887 = vld [vmem:[%s300 + $0x1d0] sm:$0xff]
    %v7888 = vld [vmem:[%s300 + $0x1d8] sm:$0xff]
    %v7889 = vld [vmem:[%s300 + $0x1e0] sm:$0xff]
    %v7890 = vld [vmem:[%s300 + $0x1e8] sm:$0xff]
    %v7891 = vld [vmem:[%s300 + $0x1f0] sm:$0xff]
    %v7892 = vld [vmem:[%s300 + $0x1f8] sm:$0xff]
    %v7893 = vld [vmem:[%s300 + $0x200] sm:$0xff]
    %v7894 = vld [vmem:[%s300 + $0x208] sm:$0xff]
    %v7895 = vld [vmem:[%s300 + $0x210] sm:$0xff]
    %v7896 = vld [vmem:[%s300 + $0x218] sm:$0xff]
    %v7897 = vld [vmem:[%s300 + $0x220] sm:$0xff]
    %v7898 = vld [vmem:[%s300 + $0x228] sm:$0xff]
    %v7899 = vld [vmem:[%s300 + $0x230] sm:$0xff]
    %v7900 = vld [vmem:[%s300 + $0x238] sm:$0xff]
    %v7901 = vld [vmem:[%s300 + $0x240] sm:$0xff]
    %v7902 = vld [vmem:[%s300 + $0x248] sm:$0xff]
    %v7903 = vld [vmem:[%s300 + $0x250] sm:$0xff]
    %v7904 = vld [vmem:[%s300 + $0x258] sm:$0xff]
    %v7905 = vld [vmem:[%s300 + $0x260] sm:$0xff]
    %v7906 = vld [vmem:[%s300 + $0x268] sm:$0xff]
    %v7907 = vld [vmem:[%s300 + $0x270] sm:$0xff]
    %v7908 = vld [vmem:[%s300 + $0x278] sm:$0xff]
    %v7909 = vld [vmem:[%s300 + $0x280] sm:$0xff]
    %v7910 = vld [vmem:[%s300 + $0x288] sm:$0xff]
    %v7911 = vld [vmem:[%s300 + $0x290] sm:$0xff]
    %v7912 = vld [vmem:[%s300 + $0x298] sm:$0xff]
    %v7913 = vld [vmem:[%s300 + $0x2a0] sm:$0xff]
    %v7914 = vld [vmem:[%s300 + $0x2a8] sm:$0xff]
    %v7915 = vld [vmem:[%s300 + $0x2b0] sm:$0xff]
    %v7916 = vld [vmem:[%s300 + $0x2b8] sm:$0xff]
    %v7917 = vld [vmem:[%s300 + $0x2c0] sm:$0xff]
    %v7918 = vld [vmem:[%s300 + $0x2c8] sm:$0xff]
    %v7919 = vld [vmem:[%s300 + $0x2d0] sm:$0xff]
    %v7920 = vld [vmem:[%s300 + $0x2d8] sm:$0xff]
    %v7921 = vld [vmem:[%s300 + $0x2e0] sm:$0xff]
    %v7922 = vld [vmem:[%s300 + $0x2e8] sm:$0xff]
    %v7923 = vld [vmem:[%s300 + $0x2f0] sm:$0xff]
    %v7924 = vld [vmem:[%s300 + $0x2f8] sm:$0xff]
    %v7925 = vld [vmem:[%s300 + $0x300] sm:$0xff]
    %v7926 = vld [vmem:[%s300 + $0x308] sm:$0xff]
    %v7927 = vld [vmem:[%s300 + $0x310] sm:$0xff]
    %v7928 = vld [vmem:[%s300 + $0x318] sm:$0xff]
    %v7929 = vld [vmem:[%s300 + $0x320] sm:$0xff]
    %v7930 = vld [vmem:[%s300 + $0x328] sm:$0xff]
    %v7931 = vld [vmem:[%s300 + $0x330] sm:$0xff]
    %v7932 = vld [vmem:[%s300 + $0x338] sm:$0xff]
    %v7933 = vld [vmem:[%s300 + $0x340] sm:$0xff]
    %v7934 = vld [vmem:[%s300 + $0x348] sm:$0xff]
    %v7935 = vld [vmem:[%s300 + $0x350] sm:$0xff]
    %v7936 = vld [vmem:[%s300 + $0x358] sm:$0xff]
    %v7937 = vld [vmem:[%s300 + $0x360] sm:$0xff]
    %v7938 = vld [vmem:[%s300 + $0x368] sm:$0xff]
    %v7939 = vld [vmem:[%s300 + $0x370] sm:$0xff]
    %v7940 = vld [vmem:[%s300 + $0x378] sm:$0xff]
    %v7941 = vld [vmem:[%s300 + $0x380] sm:$0xff]
    %v7942 = vld [vmem:[%s300 + $0x388] sm:$0xff]
    %v7943 = vld [vmem:[%s300 + $0x390] sm:$0xff]
    %v7944 = vld [vmem:[%s300 + $0x398] sm:$0xff]
    %v7945 = vld [vmem:[%s300 + $0x3a0] sm:$0xff]
    %v7946 = vld [vmem:[%s300 + $0x3a8] sm:$0xff]
    %v7947 = vld [vmem:[%s300 + $0x3b0] sm:$0xff]
    %v7948 = vld [vmem:[%s300 + $0x3b8] sm:$0xff]
    %v7949 = vld [vmem:[%s300 + $0x3c0] sm:$0xff]
    %v7950 = vld [vmem:[%s300 + $0x3c8] sm:$0xff]
    %v7951 = vld [vmem:[%s300 + $0x3d0] sm:$0xff]
    %v7952 = vld [vmem:[%s300 + $0x3d8] sm:$0xff]
    %v7953 = vld [vmem:[%s300 + $0x3e0] sm:$0xff]
    %v7954 = vld [vmem:[%s300 + $0x3e8] sm:$0xff]
    %v7955 = vld [vmem:[%s300 + $0x3f0] sm:$0xff]
    %v7956 = vld [vmem:[%s300 + $0x3f8] sm:$0xff]
    %v7957 = vld [vmem:[%s300 + $0x400] sm:$0xff]
    %v7958 = vld [vmem:[%s300 + $0x408] sm:$0xff]
    %v7959 = vld [vmem:[%s300 + $0x410] sm:$0xff]
    %v7960 = vld [vmem:[%s300 + $0x418] sm:$0xff]
    %v7961 = vld [vmem:[%s300 + $0x420] sm:$0xff]
    %v7962 = vld [vmem:[%s300 + $0x428] sm:$0xff]
    %v7963 = vld [vmem:[%s300 + $0x430] sm:$0xff]
    %v7964 = vld [vmem:[%s300 + $0x438] sm:$0xff]
    %v7965 = vld [vmem:[%s300 + $0x440] sm:$0xff]
    %v7966 = vld [vmem:[%s300 + $0x448] sm:$0xff]
    %v7967 = vld [vmem:[%s300 + $0x450] sm:$0xff]
    %v7968 = vld [vmem:[%s300 + $0x458] sm:$0xff]
    %v7969 = vld [vmem:[%s300 + $0x460] sm:$0xff]
    %v7970 = vld [vmem:[%s300 + $0x468] sm:$0xff]
    %v7971 = vld [vmem:[%s300 + $0x470] sm:$0xff]
    %v7972 = vld [vmem:[%s300 + $0x478] sm:$0xff]
    %v7973 = vunpack.c.l.s8.bf16 %v7829
    %v7974 = vunpack.c.l.s8.bf16 %v7830
    %v7975 = vunpack.c.l.s8.bf16 %v7831
    %v7976 = vunpack.c.l.s8.bf16 %v7832
    %v7977 = vunpack.c.l.s8.bf16 %v7833
    %v7978 = vunpack.c.l.s8.bf16 %v7834
    %v7979 = vunpack.c.h.s8.bf16 %v7829
    %v7980 = vunpack.c.h.s8.bf16 %v7830
    %v7981 = vunpack.c.h.s8.bf16 %v7831
    %v7982 = vunpack.c.h.s8.bf16 %v7832
    %v7983 = vunpack.c.h.s8.bf16 %v7833
    %v7984 = vunpack.c.h.s8.bf16 %v7834
    %v7985 = vunpack.c.l.s8.bf16 %v7835
    %v7986 = vunpack.c.l.s8.bf16 %v7836
    %v7987 = vunpack.c.l.s8.bf16 %v7837
    %v7988 = vunpack.c.l.s8.bf16 %v7838
    %v7989 = vunpack.c.l.s8.bf16 %v7839
    %v7990 = vunpack.c.l.s8.bf16 %v7840
    %v7991 = vunpack.c.h.s8.bf16 %v7835
    %v7992 = vunpack.c.h.s8.bf16 %v7836
    %v7993 = vunpack.c.h.s8.bf16 %v7837
    %v7994 = vunpack.c.h.s8.bf16 %v7838
    %v7995 = vunpack.c.h.s8.bf16 %v7839
    %v7996 = vunpack.c.h.s8.bf16 %v7840
    %v7997 = vunpack.c.l.s8.bf16 %v7841
    %v7998 = vunpack.c.l.s8.bf16 %v7842
    %v7999 = vunpack.c.l.s8.bf16 %v7843
    %v8000 = vunpack.c.l.s8.bf16 %v7844
    %v8001 = vunpack.c.l.s8.bf16 %v7845
    %v8002 = vunpack.c.l.s8.bf16 %v7846
    %v8003 = vunpack.c.h.s8.bf16 %v7841
    %v8004 = vunpack.c.h.s8.bf16 %v7842
    %v8005 = vunpack.c.h.s8.bf16 %v7843
    %v8006 = vunpack.c.h.s8.bf16 %v7844
    %v8007 = vunpack.c.h.s8.bf16 %v7845
    %v8008 = vunpack.c.h.s8.bf16 %v7846
    %v8009 = vunpack.c.l.s8.bf16 %v7847
    %v8010 = vunpack.c.l.s8.bf16 %v7848
    %v8011 = vunpack.c.l.s8.bf16 %v7849
    %v8012 = vunpack.c.l.s8.bf16 %v7850
    %v8013 = vunpack.c.l.s8.bf16 %v7851
    %v8014 = vunpack.c.l.s8.bf16 %v7852
    %v8015 = vunpack.c.h.s8.bf16 %v7847
    %v8016 = vunpack.c.h.s8.bf16 %v7848
    %v8017 = vunpack.c.h.s8.bf16 %v7849
    %v8018 = vunpack.c.h.s8.bf16 %v7850
    %v8019 = vunpack.c.h.s8.bf16 %v7851
    %v8020 = vunpack.c.h.s8.bf16 %v7852
    %v8021 = vunpack.c.l.s8.bf16 %v7853
    %v8022 = vunpack.c.l.s8.bf16 %v7854
    %v8023 = vunpack.c.l.s8.bf16 %v7855
    %v8024 = vunpack.c.l.s8.bf16 %v7856
    %v8025 = vunpack.c.l.s8.bf16 %v7857
    %v8026 = vunpack.c.l.s8.bf16 %v7858
    %v8027 = vunpack.c.h.s8.bf16 %v7853
    %v8028 = vunpack.c.h.s8.bf16 %v7854
    %v8029 = vunpack.c.h.s8.bf16 %v7855
    %v8030 = vunpack.c.h.s8.bf16 %v7856
    %v8031 = vunpack.c.h.s8.bf16 %v7857
    %v8032 = vunpack.c.h.s8.bf16 %v7858
    %v8033 = vunpack.c.l.s8.bf16 %v7859
    %v8034 = vunpack.c.l.s8.bf16 %v7860
    %v8035 = vunpack.c.l.s8.bf16 %v7861
    %v8036 = vunpack.c.l.s8.bf16 %v7862
    %v8037 = vunpack.c.l.s8.bf16 %v7863
    %v8038 = vunpack.c.l.s8.bf16 %v7864
    %v8039 = vunpack.c.h.s8.bf16 %v7859
    %v8040 = vunpack.c.h.s8.bf16 %v7860
    %v8041 = vunpack.c.h.s8.bf16 %v7861
    %v8042 = vunpack.c.h.s8.bf16 %v7862
    %v8043 = vunpack.c.h.s8.bf16 %v7863
    %v8044 = vunpack.c.h.s8.bf16 %v7864
    %v8045 = vunpack.c.l.s8.bf16 %v7865
    %v8046 = vunpack.c.l.s8.bf16 %v7866
    %v8047 = vunpack.c.l.s8.bf16 %v7867
    %v8048 = vunpack.c.l.s8.bf16 %v7868
    %v8049 = vunpack.c.l.s8.bf16 %v7869
    %v8050 = vunpack.c.l.s8.bf16 %v7870
    %v8051 = vunpack.c.h.s8.bf16 %v7865
    %v8052 = vunpack.c.h.s8.bf16 %v7866
    %v8053 = vunpack.c.h.s8.bf16 %v7867
    %v8054 = vunpack.c.h.s8.bf16 %v7868
    %v8055 = vunpack.c.h.s8.bf16 %v7869
    %v8056 = vunpack.c.h.s8.bf16 %v7870
    %v8057 = vunpack.c.l.s8.bf16 %v7871
    %v8058 = vunpack.c.l.s8.bf16 %v7872
    %v8059 = vunpack.c.l.s8.bf16 %v7873
    %v8060 = vunpack.c.l.s8.bf16 %v7874
    %v8061 = vunpack.c.l.s8.bf16 %v7875
    %v8062 = vunpack.c.l.s8.bf16 %v7876
    %v8063 = vunpack.c.h.s8.bf16 %v7871
    %v8064 = vunpack.c.h.s8.bf16 %v7872
    %v8065 = vunpack.c.h.s8.bf16 %v7873
    %v8066 = vunpack.c.h.s8.bf16 %v7874
    %v8067 = vunpack.c.h.s8.bf16 %v7875
    %v8068 = vunpack.c.h.s8.bf16 %v7876
    %v8069 = vunpack.c.l.s8.bf16 %v7877
    %v8070 = vunpack.c.l.s8.bf16 %v7878
    %v8071 = vunpack.c.l.s8.bf16 %v7879
    %v8072 = vunpack.c.l.s8.bf16 %v7880
    %v8073 = vunpack.c.l.s8.bf16 %v7881
    %v8074 = vunpack.c.l.s8.bf16 %v7882
    %v8075 = vunpack.c.h.s8.bf16 %v7877
    %v8076 = vunpack.c.h.s8.bf16 %v7878
    %v8077 = vunpack.c.h.s8.bf16 %v7879
    %v8078 = vunpack.c.h.s8.bf16 %v7880
    %v8079 = vunpack.c.h.s8.bf16 %v7881
    %v8080 = vunpack.c.h.s8.bf16 %v7882
    %v8081 = vunpack.c.l.s8.bf16 %v7883
    %v8082 = vunpack.c.l.s8.bf16 %v7884
    %v8083 = vunpack.c.l.s8.bf16 %v7885
    %v8084 = vunpack.c.l.s8.bf16 %v7886
    %v8085 = vunpack.c.l.s8.bf16 %v7887
    %v8086 = vunpack.c.l.s8.bf16 %v7888
    %v8087 = vunpack.c.h.s8.bf16 %v7883
    %v8088 = vunpack.c.h.s8.bf16 %v7884
    %v8089 = vunpack.c.h.s8.bf16 %v7885
    %v8090 = vunpack.c.h.s8.bf16 %v7886
    %v8091 = vunpack.c.h.s8.bf16 %v7887
    %v8092 = vunpack.c.h.s8.bf16 %v7888
    %v8093 = vunpack.c.l.s8.bf16 %v7889
    %v8094 = vunpack.c.l.s8.bf16 %v7890
    %v8095 = vunpack.c.l.s8.bf16 %v7891
    %v8096 = vunpack.c.l.s8.bf16 %v7892
    %v8097 = vunpack.c.l.s8.bf16 %v7893
    %v8098 = vunpack.c.l.s8.bf16 %v7894
    %v8099 = vunpack.c.h.s8.bf16 %v7889
    %v8100 = vunpack.c.h.s8.bf16 %v7890
    %v8101 = vunpack.c.h.s8.bf16 %v7891
    %v8102 = vunpack.c.h.s8.bf16 %v7892
    %v8103 = vunpack.c.h.s8.bf16 %v7893
    %v8104 = vunpack.c.h.s8.bf16 %v7894
    %v8105 = vunpack.c.l.s8.bf16 %v7895
    %v8106 = vunpack.c.l.s8.bf16 %v7896
    %v8107 = vunpack.c.l.s8.bf16 %v7897
    %v8108 = vunpack.c.l.s8.bf16 %v7898
    %v8109 = vunpack.c.l.s8.bf16 %v7899
    %v8110 = vunpack.c.l.s8.bf16 %v7900
    %v8111 = vunpack.c.h.s8.bf16 %v7895
    %v8112 = vunpack.c.h.s8.bf16 %v7896
    %v8113 = vunpack.c.h.s8.bf16 %v7897
    %v8114 = vunpack.c.h.s8.bf16 %v7898
    %v8115 = vunpack.c.h.s8.bf16 %v7899
    %v8116 = vunpack.c.h.s8.bf16 %v7900
    %v8117 = vunpack.c.l.s8.bf16 %v7901
    %v8118 = vunpack.c.l.s8.bf16 %v7902
    %v8119 = vunpack.c.l.s8.bf16 %v7903
    %v8120 = vunpack.c.l.s8.bf16 %v7904
    %v8121 = vunpack.c.l.s8.bf16 %v7905
    %v8122 = vunpack.c.l.s8.bf16 %v7906
    %v8123 = vunpack.c.h.s8.bf16 %v7901
    %v8124 = vunpack.c.h.s8.bf16 %v7902
    %v8125 = vunpack.c.h.s8.bf16 %v7903
    %v8126 = vunpack.c.h.s8.bf16 %v7904
    %v8127 = vunpack.c.h.s8.bf16 %v7905
    %v8128 = vunpack.c.h.s8.bf16 %v7906
    %v8129 = vunpack.c.l.s8.bf16 %v7907
    %v8130 = vunpack.c.l.s8.bf16 %v7908
    %v8131 = vunpack.c.l.s8.bf16 %v7909
    %v8132 = vunpack.c.l.s8.bf16 %v7910
    %v8133 = vunpack.c.l.s8.bf16 %v7911
    %v8134 = vunpack.c.l.s8.bf16 %v7912
    %v8135 = vunpack.c.h.s8.bf16 %v7907
    %v8136 = vunpack.c.h.s8.bf16 %v7908
    %v8137 = vunpack.c.h.s8.bf16 %v7909
    %v8138 = vunpack.c.h.s8.bf16 %v7910
    %v8139 = vunpack.c.h.s8.bf16 %v7911
    %v8140 = vunpack.c.h.s8.bf16 %v7912
    %v8141 = vunpack.c.l.s8.bf16 %v7913
    %v8142 = vunpack.c.l.s8.bf16 %v7914
    %v8143 = vunpack.c.l.s8.bf16 %v7915
    %v8144 = vunpack.c.l.s8.bf16 %v7916
    %v8145 = vunpack.c.l.s8.bf16 %v7917
    %v8146 = vunpack.c.l.s8.bf16 %v7918
    %v8147 = vunpack.c.h.s8.bf16 %v7913
    %v8148 = vunpack.c.h.s8.bf16 %v7914
    %v8149 = vunpack.c.h.s8.bf16 %v7915
    %v8150 = vunpack.c.h.s8.bf16 %v7916
    %v8151 = vunpack.c.h.s8.bf16 %v7917
    %v8152 = vunpack.c.h.s8.bf16 %v7918
    %v8153 = vunpack.c.l.s8.bf16 %v7919
    %v8154 = vunpack.c.l.s8.bf16 %v7920
    %v8155 = vunpack.c.l.s8.bf16 %v7921
    %v8156 = vunpack.c.l.s8.bf16 %v7922
    %v8157 = vunpack.c.l.s8.bf16 %v7923
    %v8158 = vunpack.c.l.s8.bf16 %v7924
    %v8159 = vunpack.c.h.s8.bf16 %v7919
    %v8160 = vunpack.c.h.s8.bf16 %v7920
    %v8161 = vunpack.c.h.s8.bf16 %v7921
    %v8162 = vunpack.c.h.s8.bf16 %v7922
    %v8163 = vunpack.c.h.s8.bf16 %v7923
    %v8164 = vunpack.c.h.s8.bf16 %v7924
    %v8165 = vunpack.c.l.s8.bf16 %v7925
    %v8166 = vunpack.c.l.s8.bf16 %v7926
    %v8167 = vunpack.c.l.s8.bf16 %v7927
    %v8168 = vunpack.c.l.s8.bf16 %v7928
    %v8169 = vunpack.c.l.s8.bf16 %v7929
    %v8170 = vunpack.c.l.s8.bf16 %v7930
    %v8171 = vunpack.c.h.s8.bf16 %v7925
    %v8172 = vunpack.c.h.s8.bf16 %v7926
    %v8173 = vunpack.c.h.s8.bf16 %v7927
    %v8174 = vunpack.c.h.s8.bf16 %v7928
    %v8175 = vunpack.c.h.s8.bf16 %v7929
    %v8176 = vunpack.c.h.s8.bf16 %v7930
    %v8177 = vunpack.c.l.s8.bf16 %v7931
    %v8178 = vunpack.c.l.s8.bf16 %v7932
    %v8179 = vunpack.c.l.s8.bf16 %v7933
    %v8180 = vunpack.c.l.s8.bf16 %v7934
    %v8181 = vunpack.c.l.s8.bf16 %v7935
    %v8182 = vunpack.c.l.s8.bf16 %v7936
    %v8183 = vunpack.c.h.s8.bf16 %v7931
    %v8184 = vunpack.c.h.s8.bf16 %v7932
    %v8185 = vunpack.c.h.s8.bf16 %v7933
    %v8186 = vunpack.c.h.s8.bf16 %v7934
    %v8187 = vunpack.c.h.s8.bf16 %v7935
    %v8188 = vunpack.c.h.s8.bf16 %v7936
    %v8189 = vunpack.c.l.s8.bf16 %v7937
    %v8190 = vunpack.c.l.s8.bf16 %v7938
    %v8191 = vunpack.c.l.s8.bf16 %v7939
    %v8192 = vunpack.c.l.s8.bf16 %v7940
    %v8193 = vunpack.c.l.s8.bf16 %v7941
    %v8194 = vunpack.c.l.s8.bf16 %v7942
    %v8195 = vunpack.c.h.s8.bf16 %v7937
    %v8196 = vunpack.c.h.s8.bf16 %v7938
    %v8197 = vunpack.c.h.s8.bf16 %v7939
    %v8198 = vunpack.c.h.s8.bf16 %v7940
    %v8199 = vunpack.c.h.s8.bf16 %v7941
    %v8200 = vunpack.c.h.s8.bf16 %v7942
    %v8201 = vunpack.c.l.s8.bf16 %v7943
    %v8202 = vunpack.c.l.s8.bf16 %v7944
    %v8203 = vunpack.c.l.s8.bf16 %v7945
    %v8204 = vunpack.c.l.s8.bf16 %v7946
    %v8205 = vunpack.c.l.s8.bf16 %v7947
    %v8206 = vunpack.c.l.s8.bf16 %v7948
    %v8207 = vunpack.c.h.s8.bf16 %v7943
    %v8208 = vunpack.c.h.s8.bf16 %v7944
    %v8209 = vunpack.c.h.s8.bf16 %v7945
    %v8210 = vunpack.c.h.s8.bf16 %v7946
    %v8211 = vunpack.c.h.s8.bf16 %v7947
    %v8212 = vunpack.c.h.s8.bf16 %v7948
    %v8213 = vunpack.c.l.s8.bf16 %v7949
    %v8214 = vunpack.c.l.s8.bf16 %v7950
    %v8215 = vunpack.c.l.s8.bf16 %v7951
    %v8216 = vunpack.c.l.s8.bf16 %v7952
    %v8217 = vunpack.c.l.s8.bf16 %v7953
    %v8218 = vunpack.c.l.s8.bf16 %v7954
    %v8219 = vunpack.c.h.s8.bf16 %v7949
    %v8220 = vunpack.c.h.s8.bf16 %v7950
    %v8221 = vunpack.c.h.s8.bf16 %v7951
    %v8222 = vunpack.c.h.s8.bf16 %v7952
    %v8223 = vunpack.c.h.s8.bf16 %v7953
    %v8224 = vunpack.c.h.s8.bf16 %v7954
    %v8225 = vunpack.c.l.s8.bf16 %v7955
    %v8226 = vunpack.c.l.s8.bf16 %v7956
    %v8227 = vunpack.c.l.s8.bf16 %v7957
    %v8228 = vunpack.c.l.s8.bf16 %v7958
    %v8229 = vunpack.c.l.s8.bf16 %v7959
    %v8230 = vunpack.c.l.s8.bf16 %v7960
    %v8231 = vunpack.c.h.s8.bf16 %v7955
    %v8232 = vunpack.c.h.s8.bf16 %v7956
    %v8233 = vunpack.c.h.s8.bf16 %v7957
    %v8234 = vunpack.c.h.s8.bf16 %v7958
    %v8235 = vunpack.c.h.s8.bf16 %v7959
    %v8236 = vunpack.c.h.s8.bf16 %v7960
    %v8237 = vunpack.c.l.s8.bf16 %v7961
    %v8238 = vunpack.c.l.s8.bf16 %v7962
    %v8239 = vunpack.c.l.s8.bf16 %v7963
    %v8240 = vunpack.c.l.s8.bf16 %v7964
    %v8241 = vunpack.c.l.s8.bf16 %v7965
    %v8242 = vunpack.c.l.s8.bf16 %v7966
    %v8243 = vunpack.c.h.s8.bf16 %v7961
    %v8244 = vunpack.c.h.s8.bf16 %v7962
    %v8245 = vunpack.c.h.s8.bf16 %v7963
    %v8246 = vunpack.c.h.s8.bf16 %v7964
    %v8247 = vunpack.c.h.s8.bf16 %v7965
    %v8248 = vunpack.c.h.s8.bf16 %v7966
    %v8249 = vunpack.c.l.s8.bf16 %v7967
    %v8250 = vunpack.c.l.s8.bf16 %v7968
    %v8251 = vunpack.c.l.s8.bf16 %v7969
    %v8252 = vunpack.c.l.s8.bf16 %v7970
    %v8253 = vunpack.c.l.s8.bf16 %v7971
    %v8254 = vunpack.c.l.s8.bf16 %v7972
    %v8255 = vunpack.c.h.s8.bf16 %v7967
    %v8256 = vunpack.c.h.s8.bf16 %v7968
    %v8257 = vunpack.c.h.s8.bf16 %v7969
    %v8258 = vunpack.c.h.s8.bf16 %v7970
    %v8259 = vunpack.c.h.s8.bf16 %v7971
    %v8260 = vunpack.c.h.s8.bf16 %v7972
    %8261 = vmatprep.subr.bf16.mxu0 %v7974
    %8262 = vmatpush1.bf16.msra.mxu0 %v7973
    %8263 = vmatprep.subr.bf16.mxu0 %v7980
    %8264 = vmatpush1.bf16.msra.mxu0 %v7979
    %8265 = vmatprep.subr.bf16.mxu0 %v7986
    %8266 = vmatpush1.bf16.msra.mxu0 %v7985
    %8267 = vmatprep.subr.bf16.mxu0 %v7992
    %8268 = vmatpush1.bf16.msra.mxu0 %v7991
    %8269 = vmatprep.subr.bf16.mxu0 %v7998
    %8270 = vmatpush1.bf16.msra.mxu0 %v7997
    %8271 = vmatprep.subr.bf16.mxu0 %v8004
    %8272 = vmatpush1.bf16.msra.mxu0 %v8003
    %8273 = vmatprep.subr.bf16.mxu0 %v8010
    %8274 = vmatpush1.bf16.msra.mxu0 %v8009
    %8275 = vmatprep.subr.bf16.mxu0 %v8016
    %8276 = vmatpush1.bf16.msra.mxu0 %v8015
    %8277 = vmatprep.subr.bf16.mxu0 %v8022
    %8278 = vmatpush1.bf16.msra.mxu0 %v8021
    %8279 = vmatprep.subr.bf16.mxu0 %v8028
    %8280 = vmatpush1.bf16.msra.mxu0 %v8027
    %8281 = vmatprep.subr.bf16.mxu0 %v8034
    %8282 = vmatpush1.bf16.msra.mxu0 %v8033
    %8283 = vmatprep.subr.bf16.mxu0 %v8040
    %8284 = vmatpush1.bf16.msra.mxu0 %v8039
    %8285 = vmatprep.subr.bf16.mxu0 %v8046
    %8286 = vmatpush1.bf16.msra.mxu0 %v8045
    %8287 = vmatprep.subr.bf16.mxu0 %v8052
    %8288 = vmatpush1.bf16.msra.mxu0 %v8051
    %8289 = vmatprep.subr.bf16.mxu0 %v8058
    %8290 = vmatpush1.bf16.msra.mxu0 %v8057
    %8291 = vmatprep.subr.bf16.mxu0 %v8064
    %8292 = vmatpush1.bf16.msra.mxu0 %v8063
    %8293 = vmatprep.mubr.bf16.mxu0 %v7824
    %8294 = vmatmul.mubr.bf16.gmra.mrb[0].mxu0 %v7823
    %v8295 = vpop.f32.mrb[0].mxu0
    %v8296 = vadd.f32 0.0, %v8295
    %v8297 = vpop.f32.mrb[0].mxu0
    %v8298 = vadd.f32 0.0, %v8297
    %v8299 = vpop.f32.mrb[0].mxu0
    %v8300 = vpop.f32.mrb[0].mxu0
    %8301 = vdwg.mxu0
    %8302 = vmatprep.subr.bf16.mxu0 %v8070
    %8303 = vmatpush1.bf16.msra.mxu0 %v8069
    %8304 = vmatprep.subr.bf16.mxu0 %v8076
    %8305 = vmatpush1.bf16.msra.mxu0 %v8075
    %8306 = vmatprep.subr.bf16.mxu0 %v8082
    %8307 = vmatpush1.bf16.msra.mxu0 %v8081
    %8308 = vmatprep.subr.bf16.mxu0 %v8088
    %8309 = vmatpush1.bf16.msra.mxu0 %v8087
    %8310 = vmatprep.subr.bf16.mxu0 %v8094
    %8311 = vmatpush1.bf16.msra.mxu0 %v8093
    %8312 = vmatprep.subr.bf16.mxu0 %v8100
    %8313 = vmatpush1.bf16.msra.mxu0 %v8099
    %8314 = vmatprep.subr.bf16.mxu0 %v8106
    %8315 = vmatpush1.bf16.msra.mxu0 %v8105
    %8316 = vmatprep.subr.bf16.mxu0 %v8112
    %8317 = vmatpush1.bf16.msra.mxu0 %v8111
    %8318 = vmatprep.subr.bf16.mxu0 %v8118
    %8319 = vmatpush1.bf16.msra.mxu0 %v8117
    %8320 = vmatprep.subr.bf16.mxu0 %v8124
    %8321 = vmatpush1.bf16.msra.mxu0 %v8123
    %8322 = vmatprep.subr.bf16.mxu0 %v8130
    %8323 = vmatpush1.bf16.msra.mxu0 %v8129
    %8324 = vmatprep.subr.bf16.mxu0 %v8136
    %8325 = vmatpush1.bf16.msra.mxu0 %v8135
    %8326 = vmatprep.subr.bf16.mxu0 %v8142
    %8327 = vmatpush1.bf16.msra.mxu0 %v8141
    %8328 = vmatprep.subr.bf16.mxu0 %v8148
    %8329 = vmatpush1.bf16.msra.mxu0 %v8147
    %8330 = vmatprep.subr.bf16.mxu0 %v8154
    %8331 = vmatpush1.bf16.msra.mxu0 %v8153
    %8332 = vmatprep.subr.bf16.mxu0 %v8160
    %8333 = vmatpush1.bf16.msra.mxu0 %v8159
    %8334 = vmatprep.mubr.bf16.mxu0 %v7826
    %8335 = vmatmul.mubr.bf16.gmra.mrb[0].mxu0 %v7825
    %v8336 = vpop.f32.mrb[0].mxu0
    %v8337 = vadd.f32 %v8296, %v8336
    %v8338 = vpop.f32.mrb[0].mxu0
    %v8339 = vadd.f32 %v8298, %v8338
    %v8340 = vpop.f32.mrb[0].mxu0
    %v8341 = vpop.f32.mrb[0].mxu0
    %8342 = vdwg.mxu0
    %8343 = vmatprep.subr.bf16.mxu0 %v8166
    %8344 = vmatpush1.bf16.msra.mxu0 %v8165
    %8345 = vmatprep.subr.bf16.mxu0 %v8172
    %8346 = vmatpush1.bf16.msra.mxu0 %v8171
    %8347 = vmatprep.subr.bf16.mxu0 %v8178
    %8348 = vmatpush1.bf16.msra.mxu0 %v8177
    %8349 = vmatprep.subr.bf16.mxu0 %v8184
    %8350 = vmatpush1.bf16.msra.mxu0 %v8183
    %8351 = vmatprep.subr.bf16.mxu0 %v8190
    %8352 = vmatpush1.bf16.msra.mxu0 %v8189
    %8353 = vmatprep.subr.bf16.mxu0 %v8196
    %8354 = vmatpush1.bf16.msra.mxu0 %v8195
    %8355 = vmatprep.subr.bf16.mxu0 %v8202
    %8356 = vmatpush1.bf16.msra.mxu0 %v8201
    %8357 = vmatprep.subr.bf16.mxu0 %v8208
    %8358 = vmatpush1.bf16.msra.mxu0 %v8207
    %8359 = vmatprep.subr.bf16.mxu0 %v8214
    %8360 = vmatpush1.bf16.msra.mxu0 %v8213
    %8361 = vmatprep.subr.bf16.mxu0 %v8220
    %8362 = vmatpush1.bf16.msra.mxu0 %v8219
    %8363 = vmatprep.subr.bf16.mxu0 %v8226
    %8364 = vmatpush1.bf16.msra.mxu0 %v8225
    %8365 = vmatprep.subr.bf16.mxu0 %v8232
    %8366 = vmatpush1.bf16.msra.mxu0 %v8231
    %8367 = vmatprep.subr.bf16.mxu0 %v8238
    %8368 = vmatpush1.bf16.msra.mxu0 %v8237
    %8369 = vmatprep.subr.bf16.mxu0 %v8244
    %8370 = vmatpush1.bf16.msra.mxu0 %v8243
    %8371 = vmatprep.subr.bf16.mxu0 %v8250
    %8372 = vmatpush1.bf16.msra.mxu0 %v8249
    %8373 = vmatprep.subr.bf16.mxu0 %v8256
    %8374 = vmatpush1.bf16.msra.mxu0 %v8255
    %8375 = vmatprep.mubr.bf16.mxu0 %v7828
    %8376 = vmatmul.mubr.bf16.gmra.mrb[0].mxu0 %v7827
    %v8377 = vpop.f32.mrb[0].mxu0
    %v8378 = vadd.f32 %v8337, %v8377
    %v8379 = vpop.f32.mrb[0].mxu0
    %v8380 = vadd.f32 %v8339, %v8379
    %v8381 = vpop.f32.mrb[0].mxu0
    %v8382 = vpop.f32.mrb[0].mxu0
    %8383 = vdwg.mxu0
    %8384 = vmatprep.subr.bf16.mxu0 %v7976
    %8385 = vmatpush1.bf16.msra.mxu0 %v7975
    %8386 = vmatprep.subr.bf16.mxu0 %v7982
    %8387 = vmatpush1.bf16.msra.mxu0 %v7981
    %8388 = vmatprep.subr.bf16.mxu0 %v7988
    %8389 = vmatpush1.bf16.msra.mxu0 %v7987
    %8390 = vmatprep.subr.bf16.mxu0 %v7994
    %8391 = vmatpush1.bf16.msra.mxu0 %v7993
    %8392 = vmatprep.subr.bf16.mxu0 %v8000
    %8393 = vmatpush1.bf16.msra.mxu0 %v7999
    %8394 = vmatprep.subr.bf16.mxu0 %v8006
    %8395 = vmatpush1.bf16.msra.mxu0 %v8005
    %8396 = vmatprep.subr.bf16.mxu0 %v8012
    %8397 = vmatpush1.bf16.msra.mxu0 %v8011
    %8398 = vmatprep.subr.bf16.mxu0 %v8018
    %8399 = vmatpush1.bf16.msra.mxu0 %v8017
    %8400 = vmatprep.subr.bf16.mxu0 %v8024
    %8401 = vmatpush1.bf16.msra.mxu0 %v8023
    %8402 = vmatprep.subr.bf16.mxu0 %v8030
    %8403 = vmatpush1.bf16.msra.mxu0 %v8029
    %8404 = vmatprep.subr.bf16.mxu0 %v8036
    %8405 = vmatpush1.bf16.msra.mxu0 %v8035
    %8406 = vmatprep.subr.bf16.mxu0 %v8042
    %8407 = vmatpush1.bf16.msra.mxu0 %v8041
    %8408 = vmatprep.subr.bf16.mxu0 %v8048
    %8409 = vmatpush1.bf16.msra.mxu0 %v8047
    %8410 = vmatprep.subr.bf16.mxu0 %v8054
    %8411 = vmatpush1.bf16.msra.mxu0 %v8053
    %8412 = vmatprep.subr.bf16.mxu0 %v8060
    %8413 = vmatpush1.bf16.msra.mxu0 %v8059
    %8414 = vmatprep.subr.bf16.mxu0 %v8066
    %8415 = vmatpush1.bf16.msra.mxu0 %v8065
    %8416 = vmatprep.mubr.bf16.mxu0 %v7824
    %8417 = vmatmul.mubr.bf16.gmra.mrb[0].mxu0 %v7823
    %v8418 = vpop.f32.mrb[0].mxu0
    %v8419 = vadd.f32 0.0, %v8418
    %v8420 = vpop.f32.mrb[0].mxu0
    %v8421 = vadd.f32 0.0, %v8420
    %v8422 = vpop.f32.mrb[0].mxu0
    %v8423 = vpop.f32.mrb[0].mxu0
    %8424 = vdwg.mxu0
    %8425 = vmatprep.subr.bf16.mxu0 %v8072
    %8426 = vmatpush1.bf16.msra.mxu0 %v8071
    %8427 = vmatprep.subr.bf16.mxu0 %v8078
    %8428 = vmatpush1.bf16.msra.mxu0 %v8077
    %8429 = vmatprep.subr.bf16.mxu0 %v8084
    %8430 = vmatpush1.bf16.msra.mxu0 %v8083
    %8431 = vmatprep.subr.bf16.mxu0 %v8090
    %8432 = vmatpush1.bf16.msra.mxu0 %v8089
    %8433 = vmatprep.subr.bf16.mxu0 %v8096
    %8434 = vmatpush1.bf16.msra.mxu0 %v8095
    %8435 = vmatprep.subr.bf16.mxu0 %v8102
    %8436 = vmatpush1.bf16.msra.mxu0 %v8101
    %8437 = vmatprep.subr.bf16.mxu0 %v8108
    %8438 = vmatpush1.bf16.msra.mxu0 %v8107
    %8439 = vmatprep.subr.bf16.mxu0 %v8114
    %8440 = vmatpush1.bf16.msra.mxu0 %v8113
    %8441 = vmatprep.subr.bf16.mxu0 %v8120
    %8442 = vmatpush1.bf16.msra.mxu0 %v8119
    %8443 = vmatprep.subr.bf16.mxu0 %v8126
    %8444 = vmatpush1.bf16.msra.mxu0 %v8125
    %8445 = vmatprep.subr.bf16.mxu0 %v8132
    %8446 = vmatpush1.bf16.msra.mxu0 %v8131
    %8447 = vmatprep.subr.bf16.mxu0 %v8138
    %8448 = vmatpush1.bf16.msra.mxu0 %v8137
    %8449 = vmatprep.subr.bf16.mxu0 %v8144
    %8450 = vmatpush1.bf16.msra.mxu0 %v8143
    %8451 = vmatprep.subr.bf16.mxu0 %v8150
    %8452 = vmatpush1.bf16.msra.mxu0 %v8149
    %8453 = vmatprep.subr.bf16.mxu0 %v8156
    %8454 = vmatpush1.bf16.msra.mxu0 %v8155
    %8455 = vmatprep.subr.bf16.mxu0 %v8162
    %8456 = vmatpush1.bf16.msra.mxu0 %v8161
    %8457 = vmatprep.mubr.bf16.mxu0 %v7826
    %8458 = vmatmul.mubr.bf16.gmra.mrb[0].mxu0 %v7825
    %v8459 = vpop.f32.mrb[0].mxu0
    %v8460 = vadd.f32 %v8419, %v8459
    %v8461 = vpop.f32.mrb[0].mxu0
    %v8462 = vadd.f32 %v8421, %v8461
    %v8463 = vpop.f32.mrb[0].mxu0
    %v8464 = vpop.f32.mrb[0].mxu0
    %8465 = vdwg.mxu0
    %8466 = vmatprep.subr.bf16.mxu0 %v8168
    %8467 = vmatpush1.bf16.msra.mxu0 %v8167
    %8468 = vmatprep.subr.bf16.mxu0 %v8174
    %8469 = vmatpush1.bf16.msra.mxu0 %v8173
    %8470 = vmatprep.subr.bf16.mxu0 %v8180
    %8471 = vmatpush1.bf16.msra.mxu0 %v8179
    %8472 = vmatprep.subr.bf16.mxu0 %v8186
    %8473 = vmatpush1.bf16.msra.mxu0 %v8185
    %8474 = vmatprep.subr.bf16.mxu0 %v8192
    %8475 = vmatpush1.bf16.msra.mxu0 %v8191
    %8476 = vmatprep.subr.bf16.mxu0 %v8198
    %8477 = vmatpush1.bf16.msra.mxu0 %v8197
    %8478 = vmatprep.subr.bf16.mxu0 %v8204
    %8479 = vmatpush1.bf16.msra.mxu0 %v8203
    %8480 = vmatprep.subr.bf16.mxu0 %v8210
    %8481 = vmatpush1.bf16.msra.mxu0 %v8209
    %8482 = vmatprep.subr.bf16.mxu0 %v8216
    %8483 = vmatpush1.bf16.msra.mxu0 %v8215
    %8484 = vmatprep.subr.bf16.mxu0 %v8222
    %8485 = vmatpush1.bf16.msra.mxu0 %v8221
    %8486 = vmatprep.subr.bf16.mxu0 %v8228
    %8487 = vmatpush1.bf16.msra.mxu0 %v8227
    %8488 = vmatprep.subr.bf16.mxu0 %v8234
    %8489 = vmatpush1.bf16.msra.mxu0 %v8233
    %8490 = vmatprep.subr.bf16.mxu0 %v8240
    %8491 = vmatpush1.bf16.msra.mxu0 %v8239
    %8492 = vmatprep.subr.bf16.mxu0 %v8246
    %8493 = vmatpush1.bf16.msra.mxu0 %v8245
    %8494 = vmatprep.subr.bf16.mxu0 %v8252
    %8495 = vmatpush1.bf16.msra.mxu0 %v8251
    %8496 = vmatprep.subr.bf16.mxu0 %v8258
    %8497 = vmatpush1.bf16.msra.mxu0 %v8257
    %8498 = vmatprep.mubr.bf16.mxu0 %v7828
    %8499 = vmatmul.mubr.bf16.gmra.mrb[0].mxu0 %v7827
    %v8500 = vpop.f32.mrb[0].mxu0
    %v8501 = vadd.f32 %v8460, %v8500
    %v8502 = vpop.f32.mrb[0].mxu0
    %v8503 = vadd.f32 %v8462, %v8502
    %v8504 = vpop.f32.mrb[0].mxu0
    %v8505 = vpop.f32.mrb[0].mxu0
    %8506 = vdwg.mxu0
    %8507 = vmatprep.subr.bf16.mxu0 %v7978
    %8508 = vmatpush1.bf16.msra.mxu0 %v7977
    %8509 = vmatprep.subr.bf16.mxu0 %v7984
    %8510 = vmatpush1.bf16.msra.mxu0 %v7983
    %8511 = vmatprep.subr.bf16.mxu0 %v7990
    %8512 = vmatpush1.bf16.msra.mxu0 %v7989
    %8513 = vmatprep.subr.bf16.mxu0 %v7996
    %8514 = vmatpush1.bf16.msra.mxu0 %v7995
    %8515 = vmatprep.subr.bf16.mxu0 %v8002
    %8516 = vmatpush1.bf16.msra.mxu0 %v8001
    %8517 = vmatprep.subr.bf16.mxu0 %v8008
    %8518 = vmatpush1.bf16.msra.mxu0 %v8007
    %8519 = vmatprep.subr.bf16.mxu0 %v8014
    %8520 = vmatpush1.bf16.msra.mxu0 %v8013
    %8521 = vmatprep.subr.bf16.mxu0 %v8020
    %8522 = vmatpush1.bf16.msra.mxu0 %v8019
    %8523 = vmatprep.subr.bf16.mxu0 %v8026
    %8524 = vmatpush1.bf16.msra.mxu0 %v8025
    %8525 = vmatprep.subr.bf16.mxu0 %v8032
    %8526 = vmatpush1.bf16.msra.mxu0 %v8031
    %8527 = vmatprep.subr.bf16.mxu0 %v8038
    %8528 = vmatpush1.bf16.msra.mxu0 %v8037
    %8529 = vmatprep.subr.bf16.mxu0 %v8044
    %8530 = vmatpush1.bf16.msra.mxu0 %v8043
    %8531 = vmatprep.subr.bf16.mxu0 %v8050
    %8532 = vmatpush1.bf16.msra.mxu0 %v8049
    %8533 = vmatprep.subr.bf16.mxu0 %v8056
    %8534 = vmatpush1.bf16.msra.mxu0 %v8055
    %8535 = vmatprep.subr.bf16.mxu0 %v8062
    %8536 = vmatpush1.bf16.msra.mxu0 %v8061
    %8537 = vmatprep.subr.bf16.mxu0 %v8068
    %8538 = vmatpush1.bf16.msra.mxu0 %v8067
    %8539 = vmatprep.mubr.bf16.mxu0 %v7824
    %8540 = vmatmul.mubr.bf16.gmra.mrb[0].mxu0 %v7823
    %v8541 = vpop.f32.mrb[0].mxu0
    %v8542 = vadd.f32 0.0, %v8541
    %v8543 = vpop.f32.mrb[0].mxu0
    %v8544 = vadd.f32 0.0, %v8543
    %v8545 = vpop.f32.mrb[0].mxu0
    %v8546 = vpop.f32.mrb[0].mxu0
    %8547 = vdwg.mxu0
    %8548 = vmatprep.subr.bf16.mxu0 %v8074
    %8549 = vmatpush1.bf16.msra.mxu0 %v8073
    %8550 = vmatprep.subr.bf16.mxu0 %v8080
    %8551 = vmatpush1.bf16.msra.mxu0 %v8079
    %8552 = vmatprep.subr.bf16.mxu0 %v8086
    %8553 = vmatpush1.bf16.msra.mxu0 %v8085
    %8554 = vmatprep.subr.bf16.mxu0 %v8092
    %8555 = vmatpush1.bf16.msra.mxu0 %v8091
    %8556 = vmatprep.subr.bf16.mxu0 %v8098
    %8557 = vmatpush1.bf16.msra.mxu0 %v8097
    %8558 = vmatprep.subr.bf16.mxu0 %v8104
    %8559 = vmatpush1.bf16.msra.mxu0 %v8103
    %8560 = vmatprep.subr.bf16.mxu0 %v8110
    %8561 = vmatpush1.bf16.msra.mxu0 %v8109
    %8562 = vmatprep.subr.bf16.mxu0 %v8116
    %8563 = vmatpush1.bf16.msra.mxu0 %v8115
    %8564 = vmatprep.subr.bf16.mxu0 %v8122
    %8565 = vmatpush1.bf16.msra.mxu0 %v8121
    %8566 = vmatprep.subr.bf16.mxu0 %v8128
    %8567 = vmatpush1.bf16.msra.mxu0 %v8127
    %8568 = vmatprep.subr.bf16.mxu0 %v8134
    %8569 = vmatpush1.bf16.msra.mxu0 %v8133
    %8570 = vmatprep.subr.bf16.mxu0 %v8140
    %8571 = vmatpush1.bf16.msra.mxu0 %v8139
    %8572 = vmatprep.subr.bf16.mxu0 %v8146
    %8573 = vmatpush1.bf16.msra.mxu0 %v8145
    %8574 = vmatprep.subr.bf16.mxu0 %v8152
    %8575 = vmatpush1.bf16.msra.mxu0 %v8151
    %8576 = vmatprep.subr.bf16.mxu0 %v8158
    %8577 = vmatpush1.bf16.msra.mxu0 %v8157
    %8578 = vmatprep.subr.bf16.mxu0 %v8164
    %8579 = vmatpush1.bf16.msra.mxu0 %v8163
    %8580 = vmatprep.mubr.bf16.mxu0 %v7826
    %8581 = vmatmul.mubr.bf16.gmra.mrb[0].mxu0 %v7825
    %v8582 = vpop.f32.mrb[0].mxu0
    %v8583 = vadd.f32 %v8542, %v8582
    %v8584 = vpop.f32.mrb[0].mxu0
    %v8585 = vadd.f32 %v8544, %v8584
    %v8586 = vpop.f32.mrb[0].mxu0
    %v8587 = vpop.f32.mrb[0].mxu0
    %8588 = vdwg.mxu0
    %8589 = vmatprep.subr.bf16.mxu0 %v8170
    %8590 = vmatpush1.bf16.msra.mxu0 %v8169
    %8591 = vmatprep.subr.bf16.mxu0 %v8176
    %8592 = vmatpush1.bf16.msra.mxu0 %v8175
    %8593 = vmatprep.subr.bf16.mxu0 %v8182
    %8594 = vmatpush1.bf16.msra.mxu0 %v8181
    %8595 = vmatprep.subr.bf16.mxu0 %v8188
    %8596 = vmatpush1.bf16.msra.mxu0 %v8187
    %8597 = vmatprep.subr.bf16.mxu0 %v8194
    %8598 = vmatpush1.bf16.msra.mxu0 %v8193
    %8599 = vmatprep.subr.bf16.mxu0 %v8200
    %8600 = vmatpush1.bf16.msra.mxu0 %v8199
    %8601 = vmatprep.subr.bf16.mxu0 %v8206
    %8602 = vmatpush1.bf16.msra.mxu0 %v8205
    %8603 = vmatprep.subr.bf16.mxu0 %v8212
    %8604 = vmatpush1.bf16.msra.mxu0 %v8211
    %8605 = vmatprep.subr.bf16.mxu0 %v8218
    %8606 = vmatpush1.bf16.msra.mxu0 %v8217
    %8607 = vmatprep.subr.bf16.mxu0 %v8224
    %8608 = vmatpush1.bf16.msra.mxu0 %v8223
    %8609 = vmatprep.subr.bf16.mxu0 %v8230
    %8610 = vmatpush1.bf16.msra.mxu0 %v8229
    %8611 = vmatprep.subr.bf16.mxu0 %v8236
    %8612 = vmatpush1.bf16.msra.mxu0 %v8235
    %8613 = vmatprep.subr.bf16.mxu0 %v8242
    %8614 = vmatpush1.bf16.msra.mxu0 %v8241
    %8615 = vmatprep.subr.bf16.mxu0 %v8248
    %8616 = vmatpush1.bf16.msra.mxu0 %v8247
    %8617 = vmatprep.subr.bf16.mxu0 %v8254
    %8618 = vmatpush1.bf16.msra.mxu0 %v8253
    %8619 = vmatprep.subr.bf16.mxu0 %v8260
    %8620 = vmatpush1.bf16.msra.mxu0 %v8259
    %8621 = vmatprep.mubr.bf16.mxu0 %v7828
    %8622 = vmatmul.mubr.bf16.gmra.mrb[0].mxu0 %v7827
    %v8623 = vpop.f32.mrb[0].mxu0
    %v8624 = vadd.f32 %v8583, %v8623
    %v8625 = vpop.f32.mrb[0].mxu0
    %v8626 = vadd.f32 %v8585, %v8625
    %v8627 = vpop.f32.mrb[0].mxu0
    %v8628 = vpop.f32.mrb[0].mxu0
    %8629 = vdwg.mxu0
    %v8630 = vlaneseq
    %v8631 = vshrl.u32 %v8630, 7
    %v8632 = vsub.s32 4, %v8631
    %v8633 = vrot.slane %v313, %v8632
    %v8634 = vlaneseq
    %v8635 = vshrl.u32 %v8634, 7
    %v8636 = vsub.s32 4, %v8635
    %v8637 = vrot.slane %v314, %v8636
    %v8638 = vlaneseq
    %v8639 = vshrl.u32 %v8638, 7
    %v8640 = vsub.s32 4, %v8639
    %v8641 = vrot.slane %v315, %v8640
    %v8642 = vlaneseq
    %v8643 = vshrl.u32 %v8642, 7
    %v8644 = vsub.s32 4, %v8643
    %v8645 = vrot.slane %v316, %v8644
    %v8646 = vlaneseq
    %v8647 = vshrl.u32 %v8646, 7
    %v8648 = vsub.s32 4, %v8647
    %v8649 = vrot.slane %v317, %v8648
    %v8650 = vlaneseq
    %v8651 = vshrl.u32 %v8650, 7
    %v8652 = vsub.s32 4, %v8651
    %v8653 = vrot.slane %v318, %v8652
    %v8654 = vmul.f32 %v8378, %v8633
    %v8655 = vmul.f32 %v8380, %v8637
    %v8656 = vmul.f32 %v8501, %v8641
    %v8657 = vmul.f32 %v8503, %v8645
    %v8658 = vmul.f32 %v8624, %v8649
    %v8659 = vmul.f32 %v8626, %v8653
    %v8660 = vlaneseq
    %v8661 = vshrl.u32 %v8660, 7
    %v8662 = vsub.s32 4, %v8661
    %v8663 = vrot.slane %v319, %v8662
    %v8664 = vlaneseq
    %v8665 = vshrl.u32 %v8664, 7
    %v8666 = vsub.s32 4, %v8665
    %v8667 = vrot.slane %v320, %v8666
    %v8668 = vlaneseq
    %v8669 = vshrl.u32 %v8668, 7
    %v8670 = vsub.s32 4, %v8669
    %v8671 = vrot.slane %v321, %v8670
    %v8672 = vlaneseq
    %v8673 = vshrl.u32 %v8672, 7
    %v8674 = vsub.s32 4, %v8673
    %v8675 = vrot.slane %v322, %v8674
    %v8676 = vlaneseq
    %v8677 = vshrl.u32 %v8676, 7
    %v8678 = vsub.s32 4, %v8677
    %v8679 = vrot.slane %v323, %v8678
    %v8680 = vlaneseq
    %v8681 = vshrl.u32 %v8680, 7
    %v8682 = vsub.s32 4, %v8681
    %v8683 = vrot.slane %v324, %v8682
    %v8684 = vadd.f32 %v8654, %v8663
    %v8685 = vadd.f32 %v8655, %v8667
    %v8686 = vadd.f32 %v8656, %v8671
    %v8687 = vadd.f32 %v8657, %v8675
    %v8688 = vadd.f32 %v8658, %v8679
    %v8689 = vadd.f32 %v8659, %v8683
    %v8690 = vtanh.pop %v8684
    %v8691 = vtanh.pop %v8685
    %v8692 = vtanh.pop %v8686
    %v8693 = vtanh.pop %v8687
    %v8694 = vtanh.pop %v8688
    %v8695 = vtanh.pop %v8689
    %v8696 = vpack.c.bf16 %v8690, %v8690
    %v8697 = vpack.c.bf16 %v8691, %v8691
    %v8698 = vpack.c.bf16 %v8692, %v8692
    %v8699 = vpack.c.bf16 %v8693, %v8693
    %v8700 = vpack.c.bf16 %v8694, %v8694
    %v8701 = vpack.c.bf16 %v8695, %v8695
    %v8702 = vld [vmem:[#allocation12] sm:$0xf]
    %v8703 = vld [vmem:[#allocation12 + $0x4] sm:$0xf]
    %v8704 = vld [vmem:[#allocation12 + $0x8] sm:$0xf]
    %v8705 = vld [vmem:[#allocation12 + $0xc] sm:$0xf]
    %v8706 = vld [vmem:[#allocation12 + $0x10] sm:$0xf]
    %v8707 = vld [vmem:[#allocation12 + $0x14] sm:$0xf]
    %v8708 = vld [vmem:[#allocation12 + $0x18] sm:$0xf]
    %v8709 = vld [vmem:[#allocation12 + $0x1c] sm:$0xf]
    %v8710 = vld [vmem:[#allocation12 + $0x20] sm:$0xf]
    %v8711 = vld [vmem:[#allocation12 + $0x24] sm:$0xf]
    %v8712 = vld [vmem:[#allocation12 + $0x28] sm:$0xf]
    %v8713 = vld [vmem:[#allocation12 + $0x2c] sm:$0xf]
    %v8714 = vld [vmem:[#allocation12 + $0x30] sm:$0xf]
    %v8715 = vld [vmem:[#allocation12 + $0x34] sm:$0xf]
    %v8716 = vld [vmem:[#allocation12 + $0x38] sm:$0xf]
    %v8717 = vld [vmem:[#allocation12 + $0x3c] sm:$0xf]
    %v8718 = vld [vmem:[#allocation12 + $0x40] sm:$0xf]
    %v8719 = vld [vmem:[#allocation12 + $0x44] sm:$0xf]
    %v8720 = vld [vmem:[#allocation12 + $0x48] sm:$0xf]
    %v8721 = vld [vmem:[#allocation12 + $0x4c] sm:$0xf]
    %v8722 = vld [vmem:[#allocation12 + $0x50] sm:$0xf]
    %v8723 = vld [vmem:[#allocation12 + $0x54] sm:$0xf]
    %v8724 = vld [vmem:[#allocation12 + $0x58] sm:$0xf]
    %v8725 = vld [vmem:[#allocation12 + $0x5c] sm:$0xf]
    %v8726 = vld [vmem:[#allocation12 + $0x60] sm:$0xf]
    %v8727 = vld [vmem:[#allocation12 + $0x64] sm:$0xf]
    %v8728 = vld [vmem:[#allocation12 + $0x68] sm:$0xf]
    %v8729 = vld [vmem:[#allocation12 + $0x6c] sm:$0xf]
    %v8730 = vld [vmem:[#allocation12 + $0x70] sm:$0xf]
    %v8731 = vld [vmem:[#allocation12 + $0x74] sm:$0xf]
    %v8732 = vld [vmem:[#allocation12 + $0x78] sm:$0xf]
    %v8733 = vld [vmem:[#allocation12 + $0x7c] sm:$0xf]
    %v8734 = vld [vmem:[#allocation12 + $0x80] sm:$0xf]
    %v8735 = vld [vmem:[#allocation12 + $0x84] sm:$0xf]
    %v8736 = vld [vmem:[#allocation12 + $0x88] sm:$0xf]
    %v8737 = vld [vmem:[#allocation12 + $0x8c] sm:$0xf]
    %v8738 = vld [vmem:[#allocation12 + $0x90] sm:$0xf]
    %v8739 = vld [vmem:[#allocation12 + $0x94] sm:$0xf]
    %v8740 = vld [vmem:[#allocation12 + $0x98] sm:$0xf]
    %v8741 = vld [vmem:[#allocation12 + $0x9c] sm:$0xf]
    %v8742 = vld [vmem:[#allocation12 + $0xa0] sm:$0xf]
    %v8743 = vld [vmem:[#allocation12 + $0xa4] sm:$0xf]
    %v8744 = vld [vmem:[#allocation12 + $0xa8] sm:$0xf]
    %v8745 = vld [vmem:[#allocation12 + $0xac] sm:$0xf]
    %v8746 = vld [vmem:[#allocation12 + $0xb0] sm:$0xf]
    %v8747 = vld [vmem:[#allocation12 + $0xb4] sm:$0xf]
    %v8748 = vld [vmem:[#allocation12 + $0xb8] sm:$0xf]
    %v8749 = vld [vmem:[#allocation12 + $0xbc] sm:$0xf]
    %v8750 = vld [vmem:[#allocation12 + $0xc0] sm:$0xf]
    %v8751 = vld [vmem:[#allocation12 + $0xc4] sm:$0xf]
    %v8752 = vld [vmem:[#allocation12 + $0xc8] sm:$0xf]
    %v8753 = vld [vmem:[#allocation12 + $0xcc] sm:$0xf]
    %v8754 = vld [vmem:[#allocation12 + $0xd0] sm:$0xf]
    %v8755 = vld [vmem:[#allocation12 + $0xd4] sm:$0xf]
    %v8756 = vld [vmem:[#allocation12 + $0xd8] sm:$0xf]
    %v8757 = vld [vmem:[#allocation12 + $0xdc] sm:$0xf]
    %v8758 = vld [vmem:[#allocation12 + $0xe0] sm:$0xf]
    %v8759 = vld [vmem:[#allocation12 + $0xe4] sm:$0xf]
    %v8760 = vld [vmem:[#allocation12 + $0xe8] sm:$0xf]
    %v8761 = vld [vmem:[#allocation12 + $0xec] sm:$0xf]
    %v8762 = vld [vmem:[#allocation12 + $0xf0] sm:$0xf]
    %v8763 = vld [vmem:[#allocation12 + $0xf4] sm:$0xf]
    %v8764 = vld [vmem:[#allocation12 + $0xf8] sm:$0xf]
    %v8765 = vld [vmem:[#allocation12 + $0xfc] sm:$0xf]
    %v8766 = vld [vmem:[#allocation12 + $0x100] sm:$0xf]
    %v8767 = vld [vmem:[#allocation12 + $0x104] sm:$0xf]
    %v8768 = vld [vmem:[#allocation12 + $0x108] sm:$0xf]
    %v8769 = vld [vmem:[#allocation12 + $0x10c] sm:$0xf]
    %v8770 = vld [vmem:[#allocation12 + $0x110] sm:$0xf]
    %v8771 = vld [vmem:[#allocation12 + $0x114] sm:$0xf]
    %v8772 = vld [vmem:[#allocation12 + $0x118] sm:$0xf]
    %v8773 = vld [vmem:[#allocation12 + $0x11c] sm:$0xf]
    %v8774 = vld [vmem:[#allocation12 + $0x120] sm:$0xf]
    %v8775 = vld [vmem:[#allocation12 + $0x124] sm:$0xf]
    %v8776 = vld [vmem:[#allocation12 + $0x128] sm:$0xf]
    %v8777 = vld [vmem:[#allocation12 + $0x12c] sm:$0xf]
    %v8778 = vld [vmem:[#allocation12 + $0x130] sm:$0xf]
    %v8779 = vld [vmem:[#allocation12 + $0x134] sm:$0xf]
    %v8780 = vld [vmem:[#allocation12 + $0x138] sm:$0xf]
    %v8781 = vld [vmem:[#allocation12 + $0x13c] sm:$0xf]
    %v8782 = vld [vmem:[#allocation12 + $0x140] sm:$0xf]
    %v8783 = vld [vmem:[#allocation12 + $0x144] sm:$0xf]
    %v8784 = vld [vmem:[#allocation12 + $0x148] sm:$0xf]
    %v8785 = vld [vmem:[#allocation12 + $0x14c] sm:$0xf]
    %v8786 = vld [vmem:[#allocation12 + $0x150] sm:$0xf]
    %v8787 = vld [vmem:[#allocation12 + $0x154] sm:$0xf]
    %v8788 = vld [vmem:[#allocation12 + $0x158] sm:$0xf]
    %v8789 = vld [vmem:[#allocation12 + $0x15c] sm:$0xf]
    %v8790 = vld [vmem:[#allocation12 + $0x160] sm:$0xf]
    %v8791 = vld [vmem:[#allocation12 + $0x164] sm:$0xf]
    %v8792 = vld [vmem:[#allocation12 + $0x168] sm:$0xf]
    %v8793 = vld [vmem:[#allocation12 + $0x16c] sm:$0xf]
    %v8794 = vld [vmem:[#allocation12 + $0x170] sm:$0xf]
    %v8795 = vld [vmem:[#allocation12 + $0x174] sm:$0xf]
    %v8796 = vld [vmem:[#allocation12 + $0x178] sm:$0xf]
    %v8797 = vld [vmem:[#allocation12 + $0x17c] sm:$0xf]
    %v8798 = vld [vmem:[#allocation14] sm:$0x1]
    %v8800 = vlaneseq
    %v8801 = vshrl.u32 %v8800, 7
    %v8802 = vsub.s32 0, %v8801
    %v8803 = vrot.slane %v8798, %v8802
    %v8901 = vunpack.c.l.b16 %v8702
    %v8902 = vunpack.c.l.b16 %v8703
    %v8903 = vunpack.c.l.b16 %v8704
    %v8904 = vunpack.c.l.b16 %v8705
    %v8905 = vunpack.c.l.b16 %v8706
    %v8906 = vunpack.c.l.b16 %v8707
    %v8907 = vunpack.c.l.b16 %v8708
    %v8908 = vunpack.c.l.b16 %v8709
    %v8909 = vunpack.c.l.b16 %v8710
    %v8910 = vunpack.c.l.b16 %v8711
    %v8911 = vunpack.c.l.b16 %v8712
    %v8912 = vunpack.c.l.b16 %v8713
    %v8913 = vunpack.c.l.b16 %v8714
    %v8914 = vunpack.c.l.b16 %v8715
    %v8915 = vunpack.c.l.b16 %v8716
    %v8916 = vunpack.c.l.b16 %v8717
    %v8917 = vunpack.c.l.b16 %v8718
    %v8918 = vunpack.c.l.b16 %v8719
    %v8919 = vunpack.c.l.b16 %v8720
    %v8920 = vunpack.c.l.b16 %v8721
    %v8921 = vunpack.c.l.b16 %v8722
    %v8922 = vunpack.c.l.b16 %v8723
    %v8923 = vunpack.c.l.b16 %v8724
    %v8924 = vunpack.c.l.b16 %v8725
    %v8925 = vunpack.c.l.b16 %v8726
    %v8926 = vunpack.c.l.b16 %v8727
    %v8927 = vunpack.c.l.b16 %v8728
    %v8928 = vunpack.c.l.b16 %v8729
    %v8929 = vunpack.c.l.b16 %v8730
    %v8930 = vunpack.c.l.b16 %v8731
    %v8931 = vunpack.c.l.b16 %v8732
    %v8932 = vunpack.c.l.b16 %v8733
    %v8933 = vunpack.c.l.b16 %v8734
    %v8934 = vunpack.c.l.b16 %v8735
    %v8935 = vunpack.c.l.b16 %v8736
    %v8936 = vunpack.c.l.b16 %v8737
    %v8937 = vunpack.c.l.b16 %v8738
    %v8938 = vunpack.c.l.b16 %v8739
    %v8939 = vunpack.c.l.b16 %v8740
    %v8940 = vunpack.c.l.b16 %v8741
    %v8941 = vunpack.c.l.b16 %v8742
    %v8942 = vunpack.c.l.b16 %v8743
    %v8943 = vunpack.c.l.b16 %v8744
    %v8944 = vunpack.c.l.b16 %v8745
    %v8945 = vunpack.c.l.b16 %v8746
    %v8946 = vunpack.c.l.b16 %v8747
    %v8947 = vunpack.c.l.b16 %v8748
    %v8948 = vunpack.c.l.b16 %v8749
    %v8949 = vunpack.c.l.b16 %v8750
    %v8950 = vunpack.c.l.b16 %v8751
    %v8951 = vunpack.c.l.b16 %v8752
    %v8952 = vunpack.c.l.b16 %v8753
    %v8953 = vunpack.c.l.b16 %v8754
    %v8954 = vunpack.c.l.b16 %v8755
    %v8955 = vunpack.c.l.b16 %v8756
    %v8956 = vunpack.c.l.b16 %v8757
    %v8957 = vunpack.c.l.b16 %v8758
    %v8958 = vunpack.c.l.b16 %v8759
    %v8959 = vunpack.c.l.b16 %v8760
    %v8960 = vunpack.c.l.b16 %v8761
    %v8961 = vunpack.c.l.b16 %v8762
    %v8962 = vunpack.c.l.b16 %v8763
    %v8963 = vunpack.c.l.b16 %v8764
    %v8964 = vunpack.c.l.b16 %v8765
    %v8965 = vunpack.c.l.b16 %v8766
    %v8966 = vunpack.c.l.b16 %v8767
    %v8967 = vunpack.c.l.b16 %v8768
    %v8968 = vunpack.c.l.b16 %v8769
    %v8969 = vunpack.c.l.b16 %v8770
    %v8970 = vunpack.c.l.b16 %v8771
    %v8971 = vunpack.c.l.b16 %v8772
    %v8972 = vunpack.c.l.b16 %v8773
    %v8973 = vunpack.c.l.b16 %v8774
    %v8974 = vunpack.c.l.b16 %v8775
    %v8975 = vunpack.c.l.b16 %v8776
    %v8976 = vunpack.c.l.b16 %v8777
    %v8977 = vunpack.c.l.b16 %v8778
    %v8978 = vunpack.c.l.b16 %v8779
    %v8979 = vunpack.c.l.b16 %v8780
    %v8980 = vunpack.c.l.b16 %v8781
    %v8981 = vunpack.c.l.b16 %v8782
    %v8982 = vunpack.c.l.b16 %v8783
    %v8983 = vunpack.c.l.b16 %v8784
    %v8984 = vunpack.c.l.b16 %v8785
    %v8985 = vunpack.c.l.b16 %v8786
    %v8986 = vunpack.c.l.b16 %v8787
    %v8987 = vunpack.c.l.b16 %v8788
    %v8988 = vunpack.c.l.b16 %v8789
    %v8989 = vunpack.c.l.b16 %v8790
    %v8990 = vunpack.c.l.b16 %v8791
    %v8991 = vunpack.c.l.b16 %v8792
    %v8992 = vunpack.c.l.b16 %v8793
    %v8993 = vunpack.c.l.b16 %v8794
    %v8994 = vunpack.c.l.b16 %v8795
    %v8995 = vunpack.c.l.b16 %v8796
    %v8996 = vunpack.c.l.b16 %v8797
    %v8997 = vpack.c.b16 %v8902, %v8901
    %v8998 = vpack.c.b16 %v8904, %v8903
    %v8999 = vpack.c.b16 %v8906, %v8905
    %v9000 = vpack.c.b16 %v8908, %v8907
    %v9001 = vpack.c.b16 %v8910, %v8909
    %v9002 = vpack.c.b16 %v8912, %v8911
    %v9003 = vpack.c.b16 %v8914, %v8913
    %v9004 = vpack.c.b16 %v8916, %v8915
    %v9005 = vpack.c.b16 %v8918, %v8917
    %v9006 = vpack.c.b16 %v8920, %v8919
    %v9007 = vpack.c.b16 %v8922, %v8921
    %v9008 = vpack.c.b16 %v8924, %v8923
    %v9009 = vpack.c.b16 %v8926, %v8925
    %v9010 = vpack.c.b16 %v8928, %v8927
    %v9011 = vpack.c.b16 %v8930, %v8929
    %v9012 = vpack.c.b16 %v8932, %v8931
    %v9013 = vpack.c.b16 %v8934, %v8933
    %v9014 = vpack.c.b16 %v8936, %v8935
    %v9015 = vpack.c.b16 %v8938, %v8937
    %v9016 = vpack.c.b16 %v8940, %v8939
    %v9017 = vpack.c.b16 %v8942, %v8941
    %v9018 = vpack.c.b16 %v8944, %v8943
    %v9019 = vpack.c.b16 %v8946, %v8945
    %v9020 = vpack.c.b16 %v8948, %v8947
    %v9021 = vpack.c.b16 %v8950, %v8949
    %v9022 = vpack.c.b16 %v8952, %v8951
    %v9023 = vpack.c.b16 %v8954, %v8953
    %v9024 = vpack.c.b16 %v8956, %v8955
    %v9025 = vpack.c.b16 %v8958, %v8957
    %v9026 = vpack.c.b16 %v8960, %v8959
    %v9027 = vpack.c.b16 %v8962, %v8961
    %v9028 = vpack.c.b16 %v8964, %v8963
    %v9029 = vpack.c.b16 %v8966, %v8965
    %v9030 = vpack.c.b16 %v8968, %v8967
    %v9031 = vpack.c.b16 %v8970, %v8969
    %v9032 = vpack.c.b16 %v8972, %v8971
    %v9033 = vpack.c.b16 %v8974, %v8973
    %v9034 = vpack.c.b16 %v8976, %v8975
    %v9035 = vpack.c.b16 %v8978, %v8977
    %v9036 = vpack.c.b16 %v8980, %v8979
    %v9037 = vpack.c.b16 %v8982, %v8981
    %v9038 = vpack.c.b16 %v8984, %v8983
    %v9039 = vpack.c.b16 %v8986, %v8985
    %v9040 = vpack.c.b16 %v8988, %v8987
    %v9041 = vpack.c.b16 %v8990, %v8989
    %v9042 = vpack.c.b16 %v8992, %v8991
    %v9043 = vpack.c.b16 %v8994, %v8993
    %v9044 = vpack.c.b16 %v8996, %v8995
    %9093 = vmatprep.subr.bf16.mxu0 0
    %9094 = vmatpush1.bf16.msra.mxu0 %v8997
    %9095 = vmatprep.subr.bf16.mxu0 0
    %9096 = vmatpush1.bf16.msra.mxu0 %v8998
    %9097 = vmatprep.subr.bf16.mxu0 0
    %9098 = vmatpush1.bf16.msra.mxu0 %v8999
    %9099 = vmatprep.subr.bf16.mxu0 0
    %9100 = vmatpush1.bf16.msra.mxu0 %v9000
    %9101 = vmatprep.subr.bf16.mxu0 0
    %9102 = vmatpush1.bf16.msra.mxu0 %v9001
    %9103 = vmatprep.subr.bf16.mxu0 0
    %9104 = vmatpush1.bf16.msra.mxu0 %v9002
    %9105 = vmatprep.subr.bf16.mxu0 0
    %9106 = vmatpush1.bf16.msra.mxu0 %v9003
    %9107 = vmatprep.subr.bf16.mxu0 0
    %9108 = vmatpush1.bf16.msra.mxu0 %v9004
    %9109 = vmatprep.subr.bf16.mxu0 0
    %9110 = vmatpush1.bf16.msra.mxu0 %v9005
    %9111 = vmatprep.subr.bf16.mxu0 0
    %9112 = vmatpush1.bf16.msra.mxu0 %v9006
    %9113 = vmatprep.subr.bf16.mxu0 0
    %9114 = vmatpush1.bf16.msra.mxu0 %v9007
    %9115 = vmatprep.subr.bf16.mxu0 0
    %9116 = vmatpush1.bf16.msra.mxu0 %v9008
    %9117 = vmatprep.subr.bf16.mxu0 0
    %9118 = vmatpush1.bf16.msra.mxu0 %v9009
    %9119 = vmatprep.subr.bf16.mxu0 0
    %9120 = vmatpush1.bf16.msra.mxu0 %v9010
    %9121 = vmatprep.subr.bf16.mxu0 0
    %9122 = vmatpush1.bf16.msra.mxu0 %v9011
    %9123 = vmatprep.subr.bf16.mxu0 0
    %9124 = vmatpush1.bf16.msra.mxu0 %v9012
    %9125 = vmatprep.mubr.bf16.mxu0 %v8697
    %9126 = vmatmul.mubr.bf16.gmra.mrb[0].mxu0 %v8696
    %v9127 = vpop.f32.mrb[0].mxu0
    %v9128 = vadd.f32 %v8803, %v9127
    %v9129 = vpop.f32.mrb[0].mxu0
    %v9130 = vpop.f32.mrb[0].mxu0
    %v9131 = vpop.f32.mrb[0].mxu0
    %9132 = vdwg.mxu0
    %9133 = vmatprep.subr.bf16.mxu0 0
    %9134 = vmatpush1.bf16.msra.mxu0 %v9013
    %9135 = vmatprep.subr.bf16.mxu0 0
    %9136 = vmatpush1.bf16.msra.mxu0 %v9014
    %9137 = vmatprep.subr.bf16.mxu0 0
    %9138 = vmatpush1.bf16.msra.mxu0 %v9015
    %9139 = vmatprep.subr.bf16.mxu0 0
    %9140 = vmatpush1.bf16.msra.mxu0 %v9016
    %9141 = vmatprep.subr.bf16.mxu0 0
    %9142 = vmatpush1.bf16.msra.mxu0 %v9017
    %9143 = vmatprep.subr.bf16.mxu0 0
    %9144 = vmatpush1.bf16.msra.mxu0 %v9018
    %9145 = vmatprep.subr.bf16.mxu0 0
    %9146 = vmatpush1.bf16.msra.mxu0 %v9019
    %9147 = vmatprep.subr.bf16.mxu0 0
    %9148 = vmatpush1.bf16.msra.mxu0 %v9020
    %9149 = vmatprep.subr.bf16.mxu0 0
    %9150 = vmatpush1.bf16.msra.mxu0 %v9021
    %9151 = vmatprep.subr.bf16.mxu0 0
    %9152 = vmatpush1.bf16.msra.mxu0 %v9022
    %9153 = vmatprep.subr.bf16.mxu0 0
    %9154 = vmatpush1.bf16.msra.mxu0 %v9023
    %9155 = vmatprep.subr.bf16.mxu0 0
    %9156 = vmatpush1.bf16.msra.mxu0 %v9024
    %9157 = vmatprep.subr.bf16.mxu0 0
    %9158 = vmatpush1.bf16.msra.mxu0 %v9025
    %9159 = vmatprep.subr.bf16.mxu0 0
    %9160 = vmatpush1.bf16.msra.mxu0 %v9026
    %9161 = vmatprep.subr.bf16.mxu0 0
    %9162 = vmatpush1.bf16.msra.mxu0 %v9027
    %9163 = vmatprep.subr.bf16.mxu0 0
    %9164 = vmatpush1.bf16.msra.mxu0 %v9028
    %9165 = vmatprep.mubr.bf16.mxu0 %v8699
    %9166 = vmatmul.mubr.bf16.gmra.mrb[0].mxu0 %v8698
    %v9167 = vpop.f32.mrb[0].mxu0
    %v9168 = vadd.f32 %v9128, %v9167
    %v9169 = vpop.f32.mrb[0].mxu0
    %v9170 = vpop.f32.mrb[0].mxu0
    %v9171 = vpop.f32.mrb[0].mxu0
    %9172 = vdwg.mxu0
    %9173 = vmatprep.subr.bf16.mxu0 0
    %9174 = vmatpush1.bf16.msra.mxu0 %v9029
    %9175 = vmatprep.subr.bf16.mxu0 0
    %9176 = vmatpush1.bf16.msra.mxu0 %v9030
    %9177 = vmatprep.subr.bf16.mxu0 0
    %9178 = vmatpush1.bf16.msra.mxu0 %v9031
    %9179 = vmatprep.subr.bf16.mxu0 0
    %9180 = vmatpush1.bf16.msra.mxu0 %v9032
    %9181 = vmatprep.subr.bf16.mxu0 0
    %9182 = vmatpush1.bf16.msra.mxu0 %v9033
    %9183 = vmatprep.subr.bf16.mxu0 0
    %9184 = vmatpush1.bf16.msra.mxu0 %v9034
    %9185 = vmatprep.subr.bf16.mxu0 0
    %9186 = vmatpush1.bf16.msra.mxu0 %v9035
    %9187 = vmatprep.subr.bf16.mxu0 0
    %9188 = vmatpush1.bf16.msra.mxu0 %v9036
    %9189 = vmatprep.subr.bf16.mxu0 0
    %9190 = vmatpush1.bf16.msra.mxu0 %v9037
    %9191 = vmatprep.subr.bf16.mxu0 0
    %9192 = vmatpush1.bf16.msra.mxu0 %v9038
    %9193 = vmatprep.subr.bf16.mxu0 0
    %9194 = vmatpush1.bf16.msra.mxu0 %v9039
    %9195 = vmatprep.subr.bf16.mxu0 0
    %9196 = vmatpush1.bf16.msra.mxu0 %v9040
    %9197 = vmatprep.subr.bf16.mxu0 0
    %9198 = vmatpush1.bf16.msra.mxu0 %v9041
    %9199 = vmatprep.subr.bf16.mxu0 0
    %9200 = vmatpush1.bf16.msra.mxu0 %v9042
    %9201 = vmatprep.subr.bf16.mxu0 0
    %9202 = vmatpush1.bf16.msra.mxu0 %v9043
    %9203 = vmatprep.subr.bf16.mxu0 0
    %9204 = vmatpush1.bf16.msra.mxu0 %v9044
    %9205 = vmatprep.mubr.bf16.mxu0 %v8701
    %9206 = vmatmul.mubr.bf16.gmra.mrb[0].mxu0 %v8700
    %v9207 = vpop.f32.mrb[0].mxu0
    %v9208 = vadd.f32 %v9168, %v9207
    %v9209 = vpop.f32.mrb[0].mxu0
    %v9210 = vpop.f32.mrb[0].mxu0
    %v9211 = vpop.f32.mrb[0].mxu0
    %9212 = vdwg.mxu0
    %v9213 = vtanh.pop %v9208
    %v9214 = vpack.c.bf16 %v9213, %v9213
    %v9215 = vld [vmem:[#allocation15] sm:$0xf]
    %v9216 = vld [vmem:[#allocation15 + $0x4] sm:$0xf]
    %v9217 = vld [vmem:[#allocation15 + $0x8] sm:$0xf]
    %v9218 = vld [vmem:[#allocation15 + $0xc] sm:$0xf]
    %v9219 = vld [vmem:[#allocation15 + $0x10] sm:$0xf]
    %v9220 = vld [vmem:[#allocation15 + $0x14] sm:$0xf]
    %v9221 = vld [vmem:[#allocation15 + $0x18] sm:$0xf]
    %v9222 = vld [vmem:[#allocation15 + $0x1c] sm:$0xf]
    %v9223 = vld [vmem:[#allocation15 + $0x20] sm:$0xf]
    %v9224 = vld [vmem:[#allocation15 + $0x24] sm:$0xf]
    %v9225 = vld [vmem:[#allocation15 + $0x28] sm:$0xf]
    %v9226 = vld [vmem:[#allocation15 + $0x2c] sm:$0xf]
    %v9227 = vld [vmem:[#allocation15 + $0x30] sm:$0xf]
    %v9228 = vld [vmem:[#allocation15 + $0x34] sm:$0xf]
    %v9229 = vld [vmem:[#allocation15 + $0x38] sm:$0xf]
    %v9230 = vld [vmem:[#allocation15 + $0x3c] sm:$0xf]
    %v9231 = vld [vmem:[#allocation17] sm:$0x1]
    %v9233 = vlaneseq
    %v9234 = vshrl.u32 %v9233, 7
    %v9235 = vsub.s32 0, %v9234
    %v9236 = vrot.slane %v9231, %v9235
    %v9254 = vunpack.c.l.b16 %v9215
    %v9255 = vunpack.c.l.b16 %v9216
    %v9256 = vunpack.c.l.b16 %v9217
    %v9257 = vunpack.c.l.b16 %v9218
    %v9258 = vunpack.c.l.b16 %v9219
    %v9259 = vunpack.c.l.b16 %v9220
    %v9260 = vunpack.c.l.b16 %v9221
    %v9261 = vunpack.c.l.b16 %v9222
    %v9262 = vunpack.c.l.b16 %v9223
    %v9263 = vunpack.c.l.b16 %v9224
    %v9264 = vunpack.c.l.b16 %v9225
    %v9265 = vunpack.c.l.b16 %v9226
    %v9266 = vunpack.c.l.b16 %v9227
    %v9267 = vunpack.c.l.b16 %v9228
    %v9268 = vunpack.c.l.b16 %v9229
    %v9269 = vunpack.c.l.b16 %v9230
    %v9270 = vpack.c.b16 %v9255, %v9254
    %v9271 = vpack.c.b16 %v9257, %v9256
    %v9272 = vpack.c.b16 %v9259, %v9258
    %v9273 = vpack.c.b16 %v9261, %v9260
    %v9274 = vpack.c.b16 %v9263, %v9262
    %v9275 = vpack.c.b16 %v9265, %v9264
    %v9276 = vpack.c.b16 %v9267, %v9266
    %v9277 = vpack.c.b16 %v9269, %v9268
    %9286 = vmatprep.subr.bf16.mxu0 0
    %9287 = vmatpush1.bf16.msra.mxu0 %v9270
    %9288 = vmatprep.subr.bf16.mxu0 0
    %9289 = vmatpush1.bf16.msra.mxu0 %v9271
    %9290 = vmatprep.subr.bf16.mxu0 0
    %9291 = vmatpush1.bf16.msra.mxu0 %v9272
    %9292 = vmatprep.subr.bf16.mxu0 0
    %9293 = vmatpush1.bf16.msra.mxu0 %v9273
    %9294 = vmatprep.subr.bf16.mxu0 0
    %9295 = vmatpush1.bf16.msra.mxu0 %v9274
    %9296 = vmatprep.subr.bf16.mxu0 0
    %9297 = vmatpush1.bf16.msra.mxu0 %v9275
    %9298 = vmatprep.subr.bf16.mxu0 0
    %9299 = vmatpush1.bf16.msra.mxu0 %v9276
    %9300 = vmatprep.subr.bf16.mxu0 0
    %9301 = vmatpush1.bf16.msra.mxu0 %v9277
    %9302 = vmatprep.subr.bf16.mxu0 0
    %9303 = vmatpush1.bf16.msra.mxu0 0
    %9304 = vmatprep.subr.bf16.mxu0 0
    %9305 = vmatpush1.bf16.msra.mxu0 0
    %9306 = vmatprep.subr.bf16.mxu0 0
    %9307 = vmatpush1.bf16.msra.mxu0 0
    %9308 = vmatprep.subr.bf16.mxu0 0
    %9309 = vmatpush1.bf16.msra.mxu0 0
    %9310 = vmatprep.subr.bf16.mxu0 0
    %9311 = vmatpush1.bf16.msra.mxu0 0
    %9312 = vmatprep.subr.bf16.mxu0 0
    %9313 = vmatpush1.bf16.msra.mxu0 0
    %9314 = vmatprep.subr.bf16.mxu0 0
    %9315 = vmatpush1.bf16.msra.mxu0 0
    %9316 = vmatprep.subr.bf16.mxu0 0
    %9317 = vmatpush1.bf16.msra.mxu0 0
    %9318 = vmatprep.mubr.bf16.mxu0 0
    %9319 = vmatmul.mubr.bf16.gmra.mrb[0].mxu0 %v9214
    %v9320 = vpop.f32.mrb[0].mxu0
    %v9321 = vadd.f32 %v9236, %v9320
    %v9322 = vpop.f32.mrb[0].mxu0
    %v9323 = vpop.f32.mrb[0].mxu0
    %v9324 = vpop.f32.mrb[0].mxu0
    %9325 = vdwg.mxu0
    %v9326 = vmax.f32 %v9321, 0.0
    %v9327 = vpack.c.bf16 %v9326, %v9326
    %v9328 = vld [vmem:[#allocation18] sm:$0xf]
    %v9329 = vld [vmem:[#allocation18 + $0x4] sm:$0xf]
    %v9330 = vld [vmem:[#allocation18 + $0x8] sm:$0xf]
    %v9331 = vld [vmem:[#allocation18 + $0xc] sm:$0xf]
    %v9332 = vld [vmem:[#allocation18 + $0x10] sm:$0xf]
    %v9333 = vld [vmem:[#allocation18 + $0x14] sm:$0xf]
    %v9334 = vld [vmem:[#allocation18 + $0x18] sm:$0xf]
    %v9335 = vld [vmem:[#allocation18 + $0x1c] sm:$0xf]
    %v9336 = vld [vmem:[#allocation18 + $0x20] sm:$0xf]
    %v9337 = vld [vmem:[#allocation18 + $0x24] sm:$0xf]
    %v9338 = vld [vmem:[#allocation18 + $0x28] sm:$0xf]
    %v9339 = vld [vmem:[#allocation18 + $0x2c] sm:$0xf]
    %v9340 = vld [vmem:[#allocation18 + $0x30] sm:$0xf]
    %v9341 = vld [vmem:[#allocation18 + $0x34] sm:$0xf]
    %v9342 = vld [vmem:[#allocation18 + $0x38] sm:$0xf]
    %v9343 = vld [vmem:[#allocation18 + $0x3c] sm:$0xf]
    %v9344 = vld [vmem:[#allocation20] sm:$0x1]
    %v9346 = vlaneseq
    %v9347 = vshrl.u32 %v9346, 7
    %v9348 = vsub.s32 0, %v9347
    %v9349 = vrot.slane %v9344, %v9348
    %v9367 = vunpack.c.l.b16 %v9328
    %v9368 = vunpack.c.l.b16 %v9329
    %v9369 = vunpack.c.l.b16 %v9330
    %v9370 = vunpack.c.l.b16 %v9331
    %v9371 = vunpack.c.l.b16 %v9332
    %v9372 = vunpack.c.l.b16 %v9333
    %v9373 = vunpack.c.l.b16 %v9334
    %v9374 = vunpack.c.l.b16 %v9335
    %v9375 = vunpack.c.l.b16 %v9336
    %v9376 = vunpack.c.l.b16 %v9337
    %v9377 = vunpack.c.l.b16 %v9338
    %v9378 = vunpack.c.l.b16 %v9339
    %v9379 = vunpack.c.l.b16 %v9340
    %v9380 = vunpack.c.l.b16 %v9341
    %v9381 = vunpack.c.l.b16 %v9342
    %v9382 = vunpack.c.l.b16 %v9343
    %v9383 = vpack.c.b16 %v9368, %v9367
    %v9384 = vpack.c.b16 %v9370, %v9369
    %v9385 = vpack.c.b16 %v9372, %v9371
    %v9386 = vpack.c.b16 %v9374, %v9373
    %v9387 = vpack.c.b16 %v9376, %v9375
    %v9388 = vpack.c.b16 %v9378, %v9377
    %v9389 = vpack.c.b16 %v9380, %v9379
    %v9390 = vpack.c.b16 %v9382, %v9381
    %9399 = vmatprep.subr.bf16.mxu0 0
    %9400 = vmatpush1.bf16.msra.mxu0 %v9383
    %9401 = vmatprep.subr.bf16.mxu0 0
    %9402 = vmatpush1.bf16.msra.mxu0 %v9384
    %9403 = vmatprep.subr.bf16.mxu0 0
    %9404 = vmatpush1.bf16.msra.mxu0 %v9385
    %9405 = vmatprep.subr.bf16.mxu0 0
    %9406 = vmatpush1.bf16.msra.mxu0 %v9386
    %9407 = vmatprep.subr.bf16.mxu0 0
    %9408 = vmatpush1.bf16.msra.mxu0 %v9387
    %9409 = vmatprep.subr.bf16.mxu0 0
    %9410 = vmatpush1.bf16.msra.mxu0 %v9388
    %9411 = vmatprep.subr.bf16.mxu0 0
    %9412 = vmatpush1.bf16.msra.mxu0 %v9389
    %9413 = vmatprep.subr.bf16.mxu0 0
    %9414 = vmatpush1.bf16.msra.mxu0 %v9390
    %9415 = vmatprep.subr.bf16.mxu0 0
    %9416 = vmatpush1.bf16.msra.mxu0 0
    %9417 = vmatprep.subr.bf16.mxu0 0
    %9418 = vmatpush1.bf16.msra.mxu0 0
    %9419 = vmatprep.subr.bf16.mxu0 0
    %9420 = vmatpush1.bf16.msra.mxu0 0
    %9421 = vmatprep.subr.bf16.mxu0 0
    %9422 = vmatpush1.bf16.msra.mxu0 0
    %9423 = vmatprep.subr.bf16.mxu0 0
    %9424 = vmatpush1.bf16.msra.mxu0 0
    %9425 = vmatprep.subr.bf16.mxu0 0
    %9426 = vmatpush1.bf16.msra.mxu0 0
    %9427 = vmatprep.subr.bf16.mxu0 0
    %9428 = vmatpush1.bf16.msra.mxu0 0
    %9429 = vmatprep.subr.bf16.mxu0 0
    %9430 = vmatpush1.bf16.msra.mxu0 0
    %9431 = vmatprep.mubr.bf16.mxu0 0
    %9432 = vmatmul.mubr.bf16.gmra.mrb[0].mxu0 %v9327
    %v9433 = vpop.f32.mrb[0].mxu0
    %v9434 = vadd.f32 %v9349, %v9433
    %v9435 = vpop.f32.mrb[0].mxu0
    %v9436 = vpop.f32.mrb[0].mxu0
    %v9437 = vpop.f32.mrb[0].mxu0
    %9438 = vdwg.mxu0
    %v9441 = vunpack.c.l.s4 1966171168
    %v9442 = vunpack.c.0.s8 %v9441
    %v9443 = vlaneseq
    %v9444 = vshrl.u32 %v9443, 7
    %v9445 = vsub.s32 %v9442, %v9444
    %v9446 = vrot.slane %v9214, %v9445
    %v9448 = vunpack.c.l.s4 1966171168
    %v9449 = vunpack.c.0.s8 %v9448
    %v9450 = vlaneseq
    %v9451 = vshrl.u32 %v9450, 7
    %v9452 = vsub.s32 %v9449, %v9451
    %v9453 = vrot.slane %v9446, %v9452
    %v9454 = vunpack.i.l.s16 %v9453
    %v9455 = vunpack.i.h.s16 %v9453
    %v9456 = vpack.i.b16 %v9454, %v9454
    %v9457 = vlaneseq
    %v9458 = vshrl.u32 %v9457, 7
    %v9459 = vsub.s32 0, %v9458
    %v9460 = vrot.slane %v9456, %v9459
    %9462 = vmatprep.subr.bf16.mxu0 0
    %9463 = vmatpush1.bf16.xpose.msra.mxu0 %v3430
    %9464 = vmatprep.subr.bf16.mxu0 0
    %9465 = vmatpush1.bf16.xpose.msra.mxu0 %v3431
    %9466 = vmatprep.subr.bf16.mxu0 0
    %9467 = vmatpush1.bf16.xpose.msra.mxu0 0
    %9468 = vmatprep.subr.bf16.mxu0 0
    %9469 = vmatpush1.bf16.xpose.msra.mxu0 0
    %9470 = vmatprep.subr.bf16.mxu0 0
    %9471 = vmatpush1.bf16.xpose.msra.mxu0 0
    %9472 = vmatprep.subr.bf16.mxu0 0
    %9473 = vmatpush1.bf16.xpose.msra.mxu0 0
    %9474 = vmatprep.subr.bf16.mxu0 0
    %9475 = vmatpush1.bf16.xpose.msra.mxu0 0
    %9476 = vmatprep.subr.bf16.mxu0 0
    %9477 = vmatpush1.bf16.xpose.msra.mxu0 0
    %9478 = vmatprep.subr.bf16.mxu0 0
    %9479 = vmatpush1.bf16.xpose.msra.mxu0 0
    %9480 = vmatprep.subr.bf16.mxu0 0
    %9481 = vmatpush1.bf16.xpose.msra.mxu0 0
    %9482 = vmatprep.subr.bf16.mxu0 0
    %9483 = vmatpush1.bf16.xpose.msra.mxu0 0
    %9484 = vmatprep.subr.bf16.mxu0 0
    %9485 = vmatpush1.bf16.xpose.msra.mxu0 0
    %9486 = vmatprep.subr.bf16.mxu0 0
    %9487 = vmatpush1.bf16.xpose.msra.mxu0 0
    %9488 = vmatprep.subr.bf16.mxu0 0
    %9489 = vmatpush1.bf16.xpose.msra.mxu0 0
    %9490 = vmatprep.subr.bf16.mxu0 0
    %9491 = vmatpush1.bf16.xpose.msra.mxu0 0
    %9492 = vmatprep.subr.bf16.mxu0 0
    %9493 = vmatpush1.bf16.xpose.msra.mxu0 0
    %9494 = vmatprep.mubr.bf16.mxu0 0
    %9495 = vmatmul.mubr.bf16.gmra.mrb[0].mxu0 %v9460
    %v9496 = vpop.f32.mrb[0].mxu0
    %v9497 = vadd.f32 0.0, %v9496
    %v9498 = vpop.f32.mrb[0].mxu0
    %v9499 = vpop.f32.mrb[0].mxu0
    %v9500 = vpop.f32.mrb[0].mxu0
    %9501 = vdwg.mxu0
    %v9502 = vpack.i.b16 %v9455, %v9455
    %v9503 = vlaneseq
    %v9504 = vshrl.u32 %v9503, 7
    %v9505 = vsub.s32 0, %v9504
    %v9506 = vrot.slane %v9502, %v9505
    %9508 = vmatprep.subr.bf16.mxu0 0
    %9509 = vmatpush1.bf16.xpose.msra.mxu0 %v3432
    %9510 = vmatprep.subr.bf16.mxu0 0
    %9511 = vmatpush1.bf16.xpose.msra.mxu0 %v3433
    %9512 = vmatprep.subr.bf16.mxu0 0
    %9513 = vmatpush1.bf16.xpose.msra.mxu0 0
    %9514 = vmatprep.subr.bf16.mxu0 0
    %9515 = vmatpush1.bf16.xpose.msra.mxu0 0
    %9516 = vmatprep.subr.bf16.mxu0 0
    %9517 = vmatpush1.bf16.xpose.msra.mxu0 0
    %9518 = vmatprep.subr.bf16.mxu0 0
    %9519 = vmatpush1.bf16.xpose.msra.mxu0 0
    %9520 = vmatprep.subr.bf16.mxu0 0
    %9521 = vmatpush1.bf16.xpose.msra.mxu0 0
    %9522 = vmatprep.subr.bf16.mxu0 0
    %9523 = vmatpush1.bf16.xpose.msra.mxu0 0
    %9524 = vmatprep.subr.bf16.mxu0 0
    %9525 = vmatpush1.bf16.xpose.msra.mxu0 0
    %9526 = vmatprep.subr.bf16.mxu0 0
    %9527 = vmatpush1.bf16.xpose.msra.mxu0 0
    %9528 = vmatprep.subr.bf16.mxu0 0
    %9529 = vmatpush1.bf16.xpose.msra.mxu0 0
    %9530 = vmatprep.subr.bf16.mxu0 0
    %9531 = vmatpush1.bf16.xpose.msra.mxu0 0
    %9532 = vmatprep.subr.bf16.mxu0 0
    %9533 = vmatpush1.bf16.xpose.msra.mxu0 0
    %9534 = vmatprep.subr.bf16.mxu0 0
    %9535 = vmatpush1.bf16.xpose.msra.mxu0 0
    %9536 = vmatprep.subr.bf16.mxu0 0
    %9537 = vmatpush1.bf16.xpose.msra.mxu0 0
    %9538 = vmatprep.subr.bf16.mxu0 0
    %9539 = vmatpush1.bf16.xpose.msra.mxu0 0
    %9540 = vmatprep.mubr.bf16.mxu0 0
    %9541 = vmatmul.mubr.bf16.gmra.mrb[0].mxu0 %v9506
    %v9542 = vpop.f32.mrb[0].mxu0
    %v9543 = vadd.f32 0.0, %v9542
    %v9544 = vpop.f32.mrb[0].mxu0
    %v9545 = vpop.f32.mrb[0].mxu0
    %v9546 = vpop.f32.mrb[0].mxu0
    %9547 = vdwg.mxu0
    %v9548 = vlaneseq
    %v9549 = vand.u32 %v9548, 127
    %vm9550 = vcmp.lt.s32.totalorder %v9549, 20
    %v9553 = vrot.slane %v9543, 7
    %v9554 = vsel %vm7327, %v9553, %v9497
    %v9556 = vsel %vm9550, %v9554, -1e+30
    %vm9557 = vcmask 189440
    %v9558 = vsel %vm9557, %v9556, -inf
    %9559 = vmax.xlane.f32.xlu0 %v9558
    %v9560 = vpop.xlane.xlu0 %9559
    %v9561 = vsub.f32 %v9556, %v9560
    %v9562 = vmul.f32 %v9561, 1.442695
    %v9563 = vpow.pop %v9562
    %v9564 = vsel %vm9557, %v9563, 0.0
    %9565 = vadd.xlane.f32.xlu0 %v9564
    %v9566 = vpop.xlane.xlu0 %9565
    %v9567 = vlog2.pop %v9566
    %v9568 = vmul.f32 %v9567, 0.6931472
    %v9569 = vsub.f32 %v9561, %v9568
    %9570 = vst [vmem:[%s19] sm:$0x3] %v9434
    %9571 = vst.msk [vmem:[%s19 + $0x2] sm:$0x3] %vm9557, %v9569
    // Predicated region
    $region154: #{lxmert_ensemble_guesser_only.1} parent=1 // pred_check
      _
    $region155: #{lxmert_ensemble_guesser_only.1} parent=1 // pred_check_branch
      %9573 = sbr.rel (0) target = $region157
    $region156: #{lxmert_ensemble_guesser_only.1} parent=1 // pred_region
      _
    $region157: #{lxmert_ensemble_guesser_only.1} parent=1 // pred_fallthru
      _
    // Predicated region
    $region158: #{lxmert_ensemble_guesser_only.1} parent=1 // pred_check
      _
    $region159: #{lxmert_ensemble_guesser_only.1} parent=1 // pred_check_branch
      %9575 = sbr.rel (0) target = $region161
    $region160: #{lxmert_ensemble_guesser_only.1} parent=1 // pred_region
      _
    $region161: #{lxmert_ensemble_guesser_only.1} parent=1 // pred_fallthru
      _
    %9576 = vsyncpa [#allocation5], 1
    %9577 = vsyncpa [#allocation7], 1
    %9578 = vsyncpa [#allocation10], 1
    %9579 = vsyncpa [#allocation13], 1
    %9580 = vsyncpa [#allocation16], 1
    %9581 = vsyncpa [#allocation19], 1
    %9582 = vsyncpa [#allocation22], 1
    %9583 = vsyncpa [#allocation25], 1
  %9584 = vsyncmov [#allocation3]
  %s9585 = vpop.sfrf %9584
  %p9586 = scmp.eq.s32.totalorder %s9585, 0
  %p9587 = pneg %p9586
  %9589 = shalt.err (%p9587)
  %s9590 = scalar_lea.sflag [#allocation3], 1
  %9591 = vsyncmov %s9590
  %s9592 = vpop.sfrf %9591
  %p9593 = scmp.eq.s32.totalorder %s9592, 0
  %p9594 = pneg %p9593
  %9596 = shalt.err (%p9594)
  %s9597 = scalar_lea.sflag [#allocation3], 2
  %9598 = vsyncmov %s9597
  %s9599 = vpop.sfrf %9598
  %p9600 = scmp.eq.s32.totalorder %s9599, 0
  %p9601 = pneg %p9600
  %9603 = shalt.err (%p9601)
  %s9604 = scalar_lea.sflag [#allocation3], 3
  %9605 = vsyncmov %s9604
  %s9606 = vpop.sfrf %9605
  %p9607 = scmp.eq.s32.totalorder %s9606, 0
  %p9608 = pneg %p9607
  %9610 = shalt.err (%p9608)
  %s9611 = scalar_lea.sflag [#allocation3], 4
  %9612 = vsyncmov %s9611
  %s9613 = vpop.sfrf %9612
  %p9614 = scmp.eq.s32.totalorder %s9613, 0
  %p9615 = pneg %p9614
  %9617 = shalt.err (%p9615)

</llo_original>
